<compile_context>
chip_gen: v6e
topology: v6e:2x2x1
jax: 0.10.0
libtpu: 0.0.40
codegen_flags: <defaults>
</compile_context>

<pallas_src>
import functools

import numpy as np
import jax
import jax.numpy as jnp
from jax.experimental import pallas as pl
from jax.experimental.pallas import tpu as pltpu

LANE = 128                      # TPU lane width: all channel/feature dims padded to it
NB = 8                          # samples per grid step (sublane-aligned, VMEM-safe on v7x)
K = 5                           # conv kernel size
C_IN, C1, C2 = 3, 6, 16         # input / conv1 / conv2 channels
H_IN = 32                       # LeNet's fc1 (16*5*5) pins the input to 32x32
H1_OUT, P1 = H_IN - K + 1, (H_IN - K + 1) // 2      # 28, 14
H2_OUT, P2 = P1 - K + 1, (P1 - K + 1) // 2          # 10, 5
R1 = K * K * C_IN                                   # 75   conv1 patch width
R2 = K * K * C1                                     # 150  conv2 patch width


def _round_up(x, m):
    return (x + m - 1) // m * m


R1P = _round_up(R1, LANE)       # 128
R2P = _round_up(R2, LANE)       # 256


# ----------------------------------------------------------------------------
# Pallas kernels
# ----------------------------------------------------------------------------
def conv_pool_kernel(p_ref, w_ref, b_ref, o_ref):
    """Fused conv (im2col matmul) + 2x2 max-pool + bias + ReLU, one batch block.

    p_ref : (4, M, Rp) patch rows for the 4 pooling parities
    w_ref : (Rp, 128)  (kh, kw, cin) x cout weight matrix, zero lane-padded
    b_ref : (1, 128)   zero-padded bias
    o_ref : (M, 128)   pooled activation, channels on lanes
    """
    w = w_ref[...]
    y = jnp.dot(p_ref[0], w, preferred_element_type=jnp.float32)
    for par in range(1, p_ref.shape[0]):
        y = jnp.maximum(y, jnp.dot(p_ref[par], w, preferred_element_type=jnp.float32))
    # relu(max_i(y_i) + b) == max_i relu(y_i + b): relu monotone, shared bias.
    o_ref[...] = jnp.maximum(y + b_ref[...], 0.0)


def conv2_mlp_kernel(p_ref, wc_ref, bc_ref, w1_ref, b1_ref, w2_ref, b2_ref,
                     w3_ref, b3_ref, o_ref):
    """conv2 + pool + relu + fc1 + relu + fc2 + relu + fc3 for one batch block.

    p_ref  : (4, 25*NB, R2P) conv2 patch rows, ordered (pooled position s, sample)
    wc_ref : (R2P, 128)      conv2 weight matrix
    bc_ref : (1, 128)        conv2 bias
    w1_ref : (25, 128, 128)  fc1 weights regrouped per pooled position s
    b1/w2/b2/w3/b3           lane-padded fc biases / weights
    o_ref  : (NB, 128)       logits (lane-padded)
    """
    nb = o_ref.shape[0]
    wc = wc_ref[...]
    y = jnp.dot(p_ref[0], wc, preferred_element_type=jnp.float32)
    for par in range(1, p_ref.shape[0]):
        y = jnp.maximum(y, jnp.dot(p_ref[par], wc, preferred_element_type=jnp.float32))
    a = jnp.maximum(y + bc_ref[...], 0.0)                  # (25*NB, 128), rows (s, n)

    # fc1: pooled position s occupies the contiguous rows a[s*nb:(s+1)*nb].
    h = jnp.zeros((nb, w1_ref.shape[2]), jnp.float32)
    for s in range(w1_ref.shape[0]):
        h = h + jnp.dot(a[s * nb:(s + 1) * nb, :], w1_ref[s],
                        preferred_element_type=jnp.float32)
    h = jnp.maximum(h + b1_ref[...], 0.0)
    h = jnp.maximum(jnp.dot(h, w2_ref[...], preferred_element_type=jnp.float32)
                    + b2_ref[...], 0.0)
    o_ref[...] = (jnp.dot(h, w3_ref[...], preferred_element_type=jnp.float32)
                  + b3_ref[...])


# ----------------------------------------------------------------------------
# Pallas wrappers (batch-blocked grid, weights VMEM-resident across steps)
# ----------------------------------------------------------------------------
def conv_pool(p, w, b, rows_per_block):
    n_par, m_total, rp = p.shape
    cp = w.shape[1]
    grid = (m_total // rows_per_block,)
    flops = 2 * n_par * m_total * rp * cp
    bytes_accessed = 4 * (p.size + w.size + b.size + m_total * cp)
    return pl.pallas_call(
        conv_pool_kernel,
        out_shape=jax.ShapeDtypeStruct((m_total, cp), jnp.float32),
        grid_spec=pltpu.PrefetchScalarGridSpec(
            num_scalar_prefetch=0,
            grid=grid,
            in_specs=[
                pl.BlockSpec((n_par, rows_per_block, rp), lambda i: (0, i, 0)),
                pl.BlockSpec((rp, cp), lambda i: (0, 0)),
                pl.BlockSpec((1, cp), lambda i: (0, 0)),
            ],
            out_specs=pl.BlockSpec((rows_per_block, cp), lambda i: (i, 0)),
        ),
        compiler_params=pltpu.CompilerParams(dimension_semantics=("parallel",)),
        cost_estimate=pl.CostEstimate(flops=int(flops), transcendentals=0,
                                      bytes_accessed=int(bytes_accessed)),
    )(p, w, b)


def conv2_mlp(p, wc, bc, w1, b1, w2, b2, w3, b3):
    n_par, m_total, rp = p.shape
    rows_per_block = P2 * P2 * NB                 # 200 rows per batch block
    n_blocks = m_total // rows_per_block
    n_pad = n_blocks * NB
    flops = (2 * n_par * m_total * rp * LANE              # conv2
             + 2 * n_pad * w1.shape[0] * LANE * LANE      # fc1 (25 blocks)
             + 2 * n_pad * LANE * LANE * 2)               # fc2, fc3
    bytes_accessed = 4 * (p.size + wc.size + bc.size + w1.size + b1.size
                          + w2.size + b2.size + w3.size + b3.size + n_pad * LANE)
    return pl.pallas_call(
        conv2_mlp_kernel,
        out_shape=jax.ShapeDtypeStruct((n_pad, LANE), jnp.float32),
        grid_spec=pltpu.PrefetchScalarGridSpec(
            num_scalar_prefetch=0,
            grid=(n_blocks,),
            in_specs=[
                pl.BlockSpec((n_par, rows_per_block, rp), lambda i: (0, i, 0)),
                pl.BlockSpec(wc.shape, lambda i: (0, 0)),
                pl.BlockSpec((1, LANE), lambda i: (0, 0)),
                pl.BlockSpec(w1.shape, lambda i: (0, 0, 0)),
                pl.BlockSpec((1, LANE), lambda i: (0, 0)),
                pl.BlockSpec(w2.shape, lambda i: (0, 0)),
                pl.BlockSpec((1, LANE), lambda i: (0, 0)),
                pl.BlockSpec(w3.shape, lambda i: (0, 0)),
                pl.BlockSpec((1, LANE), lambda i: (0, 0)),
            ],
            out_specs=pl.BlockSpec((NB, LANE), lambda i: (i, 0)),
        ),
        compiler_params=pltpu.CompilerParams(dimension_semantics=("parallel",)),
        cost_estimate=pl.CostEstimate(flops=int(flops), transcendentals=0,
                                      bytes_accessed=int(bytes_accessed)),
    )(p, wc, bc, w1, b1, w2, b2, w3, b3)


# ----------------------------------------------------------------------------
# XLA glue: pooling-parity im2col (channels-last, no concatenation copies)
# ----------------------------------------------------------------------------
def conv1_patches(x):
    """x: (Np, 32, 32, 3) NHWC -> (4, Np*14*14, R1P); rows ordered (n, i, j),
    columns (kh, kw, cin); leading dim is the 2x2 pooling parity."""
    npad = x.shape[0]
    cols = jnp.stack([x[:, kh:kh + H1_OUT, kw:kw + H1_OUT, :]
                      for kh in range(K) for kw in range(K)], axis=3)  # (Np,28,28,25,3)
    pats = []
    for di in range(2):
        for dj in range(2):
            sub = cols[:, di::2, dj::2]                                # (Np,14,14,25,3)
            pats.append(sub.reshape(npad * P1 * P1, R1))
    p = jnp.stack(pats, axis=0)                                        # (4, Np*196, 75)
    return jnp.pad(p, ((0, 0), (0, 0), (0, R1P - R1)))


def conv2_patches(x1):
    """x1: (Np, 14, 14, 6) -> (4, Np*25, R2P); within each batch block of NB
    samples, rows are ordered (pooled position s, sample) so the fused kernel
    slices contiguous (NB, 128) blocks per position for fc1."""
    npad = x1.shape[0]
    nblk = npad // NB
    cols = jnp.stack([x1[:, kh:kh + H2_OUT, kw:kw + H2_OUT, :]
                      for kh in range(K) for kw in range(K)], axis=3)  # (Np,10,10,25,6)
    pats = []
    for di in range(2):
        for dj in range(2):
            sub = cols[:, di::2, dj::2]                                # (Np,5,5,25,6)
            sub = sub.reshape(nblk, NB, P2 * P2, R2)                   # (nblk,NB,25,150)
            sub = jnp.transpose(sub, (0, 2, 1, 3))                     # (nblk,25,NB,150)
            pats.append(sub.reshape(npad * P2 * P2, R2))
    p = jnp.stack(pats, axis=0)                                        # (4, Np*25, 150)
    return jnp.pad(p, ((0, 0), (0, 0), (0, R2P - R2)))


# ----------------------------------------------------------------------------
# One-time parameter repacking (runs OUTSIDE the jitted forward)
# ----------------------------------------------------------------------------
def prepare_params(params):
    (w1, b1, w2, b2, fw1, fb1, fw2, fb2, fw3, fb3) = params
    h1, h2, nc = fw1.shape[0], fw2.shape[0], fw3.shape[0]

    def conv_mat(w, r_pad):
        o, i, kh, kw = w.shape
        m = jnp.transpose(w, (2, 3, 1, 0)).reshape(kh * kw * i, o)     # (kh,kw,cin) x cout
        return jnp.pad(m, ((0, r_pad - kh * kw * i), (0, LANE - o)))

    def bias_row(b):
        return jnp.pad(b.reshape(1, -1), ((0, 0), (0, LANE - b.shape[0])))

    w1m, b1r = conv_mat(w1, R1P), bias_row(b1)
    w2m, b2r = conv_mat(w2, R2P), bias_row(b2)

    # Torch flattens pool2 as (c, i', j'); regroup fc1 per pooled position s so
    # block s maps the 16 conv2 channels at position s onto the 120 fc1 units.
    w1f = fw1.reshape(h1, C2, P2 * P2).transpose(2, 1, 0)              # (25, 16, 120)
    w1f = jnp.pad(w1f, ((0, 0), (0, LANE - C2), (0, LANE - h1)))
    w2f = jnp.pad(fw2.T, ((0, LANE - h1), (0, LANE - h2)))
    w3f = jnp.pad(fw3.T, ((0, LANE - h2), (0, LANE - nc)))
    return (w1m, b1r, w2m, b2r, w1f, bias_row(fb1), w2f, bias_row(fb2),
            w3f, bias_row(fb3))


# ----------------------------------------------------------------------------
# Full LeNet forward (two pallas_calls total)
# ----------------------------------------------------------------------------
@functools.partial(jax.jit, static_argnames=("num_classes",))
def lenet_forward(x_nchw, packed, num_classes=10):
    (w1m, b1r, w2m, b2r, w1f, b1f, w2f, b2f, w3f, b3f) = packed
    n = x_nchw.shape[0]
    n_pad = _round_up(n, NB)

    # Single layout change for the whole net: NCHW (torch) -> NHWC, batch-padded.
    x = jnp.transpose(x_nchw, (0, 2, 3, 1))
    x = jnp.pad(x, ((0, n_pad - n), (0, 0), (0, 0), (0, 0)))

    # conv1 + relu + 2x2 max-pool (one pallas_call, gridded over batch blocks)
    p1 = conv1_patches(x)
    o1 = conv_pool(p1, w1m, b1r, rows_per_block=NB * P1 * P1)
    x1 = o1.reshape(n_pad, P1, P1, LANE)[..., :C1]                     # (Np,14,14,6)

    # conv2 + relu + pool + fc1 + relu + fc2 + relu + fc3 (one fused pallas_call)
    p2 = conv2_patches(x1)
    logits = conv2_mlp(p2, w2m, b2r, w1f, b1f, w2f, b2f, w3f, b3f)
    return logits[:n, :num_classes]


# ----------------------------------------------------------------------------
# Pure-JAX reference (in-script verification only)
# ----------------------------------------------------------------------------
def ref_forward(x, params):
    (w1, b1, w2, b2, fw1, fb1, fw2, fb2, fw3, fb3) = params

    def conv(x, w, b):
        y = jax.lax.conv_general_dilated(x, w, (1, 1), 'VALID',
                                         dimension_numbers=('NCHW', 'OIHW', 'NCHW'))
        return y + b[None, :, None, None]

    def pool(x):
        n, c, h, w = x.shape
        return x.reshape(n, c, h // 2, 2, w // 2, 2).max(axis=(3, 5))

    y = pool(jnp.maximum(conv(x, w1, b1), 0))
    y = pool(jnp.maximum(conv(y, w2, b2), 0))
    y = y.reshape(x.shape[0], -1)
    y = jnp.maximum(y @ fw1.T + fb1, 0)
    y = jnp.maximum(y @ fw2.T + fb2, 0)
    return y @ fw3.T + fb3


# ----------------------------------------------------------------------------
# Deterministic parameter init + run
# ----------------------------------------------------------------------------
def init_params(key, num_classes=10):
    def uinit(k, shape, fan_in):
        bound = 1.0 / np.sqrt(fan_in)
        return jax.random.uniform(k, shape, jnp.float32, -bound, bound)

    ks = jax.random.split(key, 10)
    w1 = uinit(ks[0], (6, 3, 5, 5), 3 * 25)
    b1 = uinit(ks[1], (6,), 3 * 25)
    w2 = uinit(ks[2], (16, 6, 5, 5), 6 * 25)
    b2 = uinit(ks[3], (16,), 6 * 25)
    fw1 = uinit(ks[4], (120, 400), 400)
    fb1 = uinit(ks[5], (120,), 400)
    fw2 = uinit(ks[6], (84, 120), 120)
    fb2 = uinit(ks[7], (84,), 120)
    fw3 = uinit(ks[8], (num_classes, 84), 84)
    fb3 = uinit(ks[9], (num_classes,), 84)
    return (w1, b1, w2, b2, fw1, fb1, fw2, fb2, fw3, fb3)


if __name__ == "__main__":
    key = jax.random.PRNGKey(0)
    pkey, xkey = jax.random.split(key)
    params = init_params(pkey, num_classes=10)
    packed = prepare_params(params)   # one-time repack, outside the jitted forward

    # LeNet's fc1 (16*5*5) pins the spatial size to 32x32 (CIFAR-style), NCHW.
    x = jax.random.normal(xkey, (2, 3, 32, 32), dtype=jnp.float32)

    out = jax.block_until_ready(lenet_forward(x, packed, num_classes=10))
    assert out.shape == (2, 10) and out.dtype == jnp.float32

    ref = jax.block_until_ready(ref_forward(x, params))
    if not np.allclose(np.asarray(out), np.asarray(ref), atol=1e-3, rtol=1e-3):
        raise AssertionError("Pallas LeNet output does not match JAX reference")

    print("KERNEL_OK")
</pallas_src>

<mosaic_0001>
module attributes {stable_mosaic.version = 11 : i64} {
  func.func @conv_pool_kernel(%arg0: i32, %arg1: memref<4x1568x128xf32, #tpu.memory_space<vmem>>, %arg2: memref<128x128xf32, #tpu.memory_space<vmem>>, %arg3: memref<1x128xf32, #tpu.memory_space<vmem>>, %arg4: memref<1568x128xf32, #tpu.memory_space<vmem>>) attributes {dimension_semantics = [#tpu.dimension_semantics<parallel>], iteration_bounds = array<i64: 1>, scalar_prefetch = 0 : i64, scratch_operands = 0 : i64, tpu.core_type = #tpu.core_type<tc>, window_params = [{transform_indices = @transform_0, window_bounds = array<i64: 4, 1568, 128>}, {pipeline_mode = #tpu.pipeline_mode<synchronous>, transform_indices = @transform_1, window_bounds = array<i64: 128, 128>}, {pipeline_mode = #tpu.pipeline_mode<synchronous>, transform_indices = @transform_2, window_bounds = array<i64: 1, 128>}, {transform_indices = @transform_3, window_bounds = array<i64: 1568, 128>}]} {
    %c0 = arith.constant 0 : index
    %c0_0 = arith.constant 0 : index
    %0 = vector.load %arg2[%c0, %c0_0] : memref<128x128xf32, #tpu.memory_space<vmem>>, vector<128x128xf32>
    %c0_1 = arith.constant 0 : index
    %c0_2 = arith.constant 0 : index
    %c0_3 = arith.constant 0 : index
    %1 = vector.load %arg1[%c0_1, %c0_2, %c0_3] : memref<4x1568x128xf32, #tpu.memory_space<vmem>>, vector<1x1568x128xf32>
    %2 = vector.shape_cast %1 : vector<1x1568x128xf32> to vector<1568x128xf32>
    %cst = arith.constant dense<0.000000e+00> : vector<1568x128xf32>
    %3 = tpu.matmul %2, %0, %cst {dimension_numbers = #tpu.dot_dimension_numbers<[1], [0], [0], [1], [0, 0, 1, 1], [], []>} : vector<1568x128xf32>, vector<128x128xf32>, vector<1568x128xf32> -> vector<1568x128xf32>
    %c1 = arith.constant 1 : index
    %c0_4 = arith.constant 0 : index
    %c0_5 = arith.constant 0 : index
    %4 = vector.load %arg1[%c1, %c0_4, %c0_5] : memref<4x1568x128xf32, #tpu.memory_space<vmem>>, vector<1x1568x128xf32>
    %5 = vector.shape_cast %4 : vector<1x1568x128xf32> to vector<1568x128xf32>
    %cst_6 = arith.constant dense<0.000000e+00> : vector<1568x128xf32>
    %6 = tpu.matmul %5, %0, %cst_6 {dimension_numbers = #tpu.dot_dimension_numbers<[1], [0], [0], [1], [0, 0, 1, 1], [], []>} : vector<1568x128xf32>, vector<128x128xf32>, vector<1568x128xf32> -> vector<1568x128xf32>
    %7 = arith.maximumf %3, %6 : vector<1568x128xf32>
    %c2 = arith.constant 2 : index
    %c0_7 = arith.constant 0 : index
    %c0_8 = arith.constant 0 : index
    %8 = vector.load %arg1[%c2, %c0_7, %c0_8] : memref<4x1568x128xf32, #tpu.memory_space<vmem>>, vector<1x1568x128xf32>
    %9 = vector.shape_cast %8 : vector<1x1568x128xf32> to vector<1568x128xf32>
    %cst_9 = arith.constant dense<0.000000e+00> : vector<1568x128xf32>
    %10 = tpu.matmul %9, %0, %cst_9 {dimension_numbers = #tpu.dot_dimension_numbers<[1], [0], [0], [1], [0, 0, 1, 1], [], []>} : vector<1568x128xf32>, vector<128x128xf32>, vector<1568x128xf32> -> vector<1568x128xf32>
    %11 = arith.maximumf %7, %10 : vector<1568x128xf32>
    %c3 = arith.constant 3 : index
    %c0_10 = arith.constant 0 : index
    %c0_11 = arith.constant 0 : index
    %12 = vector.load %arg1[%c3, %c0_10, %c0_11] : memref<4x1568x128xf32, #tpu.memory_space<vmem>>, vector<1x1568x128xf32>
    %13 = vector.shape_cast %12 : vector<1x1568x128xf32> to vector<1568x128xf32>
    %cst_12 = arith.constant dense<0.000000e+00> : vector<1568x128xf32>
    %14 = tpu.matmul %13, %0, %cst_12 {dimension_numbers = #tpu.dot_dimension_numbers<[1], [0], [0], [1], [0, 0, 1, 1], [], []>} : vector<1568x128xf32>, vector<128x128xf32>, vector<1568x128xf32> -> vector<1568x128xf32>
    %15 = arith.maximumf %11, %14 : vector<1568x128xf32>
    %c0_13 = arith.constant 0 : index
    %c0_14 = arith.constant 0 : index
    %16 = vector.load %arg3[%c0_13, %c0_14] : memref<1x128xf32, #tpu.memory_space<vmem>>, vector<1x128xf32>
    %17 = vector.broadcast %16 : vector<1x128xf32> to vector<1568x128xf32>
    %18 = arith.addf %15, %17 : vector<1568x128xf32>
    %cst_15 = arith.constant 0.000000e+00 : f32
    %19 = vector.broadcast %cst_15 : f32 to vector<1568x128xf32>
    %20 = arith.maximumf %18, %19 : vector<1568x128xf32>
    %c0_16 = arith.constant 0 : index
    %c0_17 = arith.constant 0 : index
    %21 = vector.load %arg4[%c0_16, %c0_17] : memref<1568x128xf32, #tpu.memory_space<vmem>>, vector<1568x128xf32>
    tpu.vector_store %arg4[%c0_16, %c0_17], %20 {strides = array<i32>} : memref<1568x128xf32, #tpu.memory_space<vmem>>, vector<1568x128xf32>,
    return
  }
  func.func @transform_0(%arg0: i32) -> (i32, i32, i32) {
    %c0_i32 = arith.constant 0 : i32
    %c0_i32_0 = arith.constant 0 : i32
    %c0_i32_1 = arith.constant 0 : i32
    return %c0_i32, %arg0, %c0_i32_0 : i32, i32, i32
  }
  func.func @transform_1(%arg0: i32) -> (i32, i32) {
    %c0_i32 = arith.constant 0 : i32
    %c0_i32_0 = arith.constant 0 : i32
    %c0_i32_1 = arith.constant 0 : i32
    return %c0_i32, %c0_i32_0 : i32, i32
  }
  func.func @transform_2(%arg0: i32) -> (i32, i32) {
    %c0_i32 = arith.constant 0 : i32
    %c0_i32_0 = arith.constant 0 : i32
    %c0_i32_1 = arith.constant 0 : i32
    return %c0_i32, %c0_i32_0 : i32, i32
  }
  func.func @transform_3(%arg0: i32) -> (i32, i32) {
    %c0_i32 = arith.constant 0 : i32
    %c0_i32_0 = arith.constant 0 : i32
    return %arg0, %c0_i32 : i32, i32
  }
}

module attributes {stable_mosaic.version = 11 : i64} {
  func.func @conv2_mlp_kernel(%arg0: i32, %arg1: memref<4x200x256xf32, #tpu.memory_space<vmem>>, %arg2: memref<256x128xf32, #tpu.memory_space<vmem>>, %arg3: memref<1x128xf32, #tpu.memory_space<vmem>>, %arg4: memref<25x128x128xf32, #tpu.memory_space<vmem>>, %arg5: memref<1x128xf32, #tpu.memory_space<vmem>>, %arg6: memref<128x128xf32, #tpu.memory_space<vmem>>, %arg7: memref<1x128xf32, #tpu.memory_space<vmem>>, %arg8: memref<128x128xf32, #tpu.memory_space<vmem>>, %arg9: memref<1x128xf32, #tpu.memory_space<vmem>>, %arg10: memref<8x128xf32, #tpu.memory_space<vmem>>) attributes {dimension_semantics = [#tpu.dimension_semantics<parallel>], iteration_bounds = array<i64: 1>, scalar_prefetch = 0 : i64, scratch_operands = 0 : i64, tpu.core_type = #tpu.core_type<tc>, window_params = [{transform_indices = @transform_0, window_bounds = array<i64: 4, 200, 256>}, {pipeline_mode = #tpu.pipeline_mode<synchronous>, transform_indices = @transform_1, window_bounds = array<i64: 256, 128>}, {pipeline_mode = #tpu.pipeline_mode<synchronous>, transform_indices = @transform_2, window_bounds = array<i64: 1, 128>}, {pipeline_mode = #tpu.pipeline_mode<synchronous>, transform_indices = @transform_3, window_bounds = array<i64: 25, 128, 128>}, {pipeline_mode = #tpu.pipeline_mode<synchronous>, transform_indices = @transform_4, window_bounds = array<i64: 1, 128>}, {pipeline_mode = #tpu.pipeline_mode<synchronous>, transform_indices = @transform_5, window_bounds = array<i64: 128, 128>}, {pipeline_mode = #tpu.pipeline_mode<synchronous>, transform_indices = @transform_6, window_bounds = array<i64: 1, 128>}, {pipeline_mode = #tpu.pipeline_mode<synchronous>, transform_indices = @transform_7, window_bounds = array<i64: 128, 128>}, {pipeline_mode = #tpu.pipeline_mode<synchronous>, transform_indices = @transform_8, window_bounds = array<i64: 1, 128>}, {transform_indices = @transform_9, window_bounds = array<i64: 8, 128>}]} {
    %c0 = arith.constant 0 : index
    %c0_0 = arith.constant 0 : index
    %0 = vector.load %arg2[%c0, %c0_0] : memref<256x128xf32, #tpu.memory_space<vmem>>, vector<256x128xf32>
    %c0_1 = arith.constant 0 : index
    %c0_2 = arith.constant 0 : index
    %c0_3 = arith.constant 0 : index
    %1 = vector.load %arg1[%c0_1, %c0_2, %c0_3] : memref<4x200x256xf32, #tpu.memory_space<vmem>>, vector<1x200x256xf32>
    %2 = vector.shape_cast %1 : vector<1x200x256xf32> to vector<200x256xf32>
    %cst = arith.constant dense<0.000000e+00> : vector<200x128xf32>
    %3 = tpu.matmul %2, %0, %cst {dimension_numbers = #tpu.dot_dimension_numbers<[1], [0], [0], [1], [0, 0, 1, 1], [], []>} : vector<200x256xf32>, vector<256x128xf32>, vector<200x128xf32> -> vector<200x128xf32>
    %c1 = arith.constant 1 : index
    %c0_4 = arith.constant 0 : index
    %c0_5 = arith.constant 0 : index
    %4 = vector.load %arg1[%c1, %c0_4, %c0_5] : memref<4x200x256xf32, #tpu.memory_space<vmem>>, vector<1x200x256xf32>
    %5 = vector.shape_cast %4 : vector<1x200x256xf32> to vector<200x256xf32>
    %cst_6 = arith.constant dense<0.000000e+00> : vector<200x128xf32>
    %6 = tpu.matmul %5, %0, %cst_6 {dimension_numbers = #tpu.dot_dimension_numbers<[1], [0], [0], [1], [0, 0, 1, 1], [], []>} : vector<200x256xf32>, vector<256x128xf32>, vector<200x128xf32> -> vector<200x128xf32>
    %7 = arith.maximumf %3, %6 : vector<200x128xf32>
    %c2 = arith.constant 2 : index
    %c0_7 = arith.constant 0 : index
    %c0_8 = arith.constant 0 : index
    %8 = vector.load %arg1[%c2, %c0_7, %c0_8] : memref<4x200x256xf32, #tpu.memory_space<vmem>>, vector<1x200x256xf32>
    %9 = vector.shape_cast %8 : vector<1x200x256xf32> to vector<200x256xf32>
    %cst_9 = arith.constant dense<0.000000e+00> : vector<200x128xf32>
    %10 = tpu.matmul %9, %0, %cst_9 {dimension_numbers = #tpu.dot_dimension_numbers<[1], [0], [0], [1], [0, 0, 1, 1], [], []>} : vector<200x256xf32>, vector<256x128xf32>, vector<200x128xf32> -> vector<200x128xf32>
    %11 = arith.maximumf %7, %10 : vector<200x128xf32>
    %c3 = arith.constant 3 : index
    %c0_10 = arith.constant 0 : index
    %c0_11 = arith.constant 0 : index
    %12 = vector.load %arg1[%c3, %c0_10, %c0_11] : memref<4x200x256xf32, #tpu.memory_space<vmem>>, vector<1x200x256xf32>
    %13 = vector.shape_cast %12 : vector<1x200x256xf32> to vector<200x256xf32>
    %cst_12 = arith.constant dense<0.000000e+00> : vector<200x128xf32>
    %14 = tpu.matmul %13, %0, %cst_12 {dimension_numbers = #tpu.dot_dimension_numbers<[1], [0], [0], [1], [0, 0, 1, 1], [], []>} : vector<200x256xf32>, vector<256x128xf32>, vector<200x128xf32> -> vector<200x128xf32>
    %15 = arith.maximumf %11, %14 : vector<200x128xf32>
    %c0_13 = arith.constant 0 : index
    %c0_14 = arith.constant 0 : index
    %16 = vector.load %arg3[%c0_13, %c0_14] : memref<1x128xf32, #tpu.memory_space<vmem>>, vector<1x128xf32>
    %17 = vector.broadcast %16 : vector<1x128xf32> to vector<200x128xf32>
    %18 = arith.addf %15, %17 : vector<200x128xf32>
    %cst_15 = arith.constant 0.000000e+00 : f32
    %19 = vector.broadcast %cst_15 : f32 to vector<200x128xf32>
    %20 = arith.maximumf %18, %19 : vector<200x128xf32>
    %cst_16 = arith.constant 0.000000e+00 : f32
    %21 = vector.broadcast %cst_16 : f32 to vector<8x128xf32>
    %22 = vector.extract_strided_slice %20 {offsets = [0, 0], sizes = [8, 128], strides = [1, 1]} : vector<200x128xf32> to vector<8x128xf32>
    %c0_17 = arith.constant 0 : index
    %c0_18 = arith.constant 0 : index
    %c0_19 = arith.constant 0 : index
    %23 = vector.load %arg4[%c0_17, %c0_18, %c0_19] : memref<25x128x128xf32, #tpu.memory_space<vmem>>, vector<1x128x128xf32>
    %24 = vector.shape_cast %23 : vector<1x128x128xf32> to vector<128x128xf32>
    %cst_20 = arith.constant dense<0.000000e+00> : vector<8x128xf32>
    %25 = tpu.matmul %22, %24, %cst_20 {dimension_numbers = #tpu.dot_dimension_numbers<[1], [0], [0], [1], [0, 0, 1, 1], [], []>} : vector<8x128xf32>, vector<128x128xf32>, vector<8x128xf32> -> vector<8x128xf32>
    %26 = arith.addf %21, %25 : vector<8x128xf32>
    %27 = vector.extract_strided_slice %20 {offsets = [8, 0], sizes = [8, 128], strides = [1, 1]} : vector<200x128xf32> to vector<8x128xf32>
    %c1_21 = arith.constant 1 : index
    %c0_22 = arith.constant 0 : index
    %c0_23 = arith.constant 0 : index
    %28 = vector.load %arg4[%c1_21, %c0_22, %c0_23] : memref<25x128x128xf32, #tpu.memory_space<vmem>>, vector<1x128x128xf32>
    %29 = vector.shape_cast %28 : vector<1x128x128xf32> to vector<128x128xf32>
    %cst_24 = arith.constant dense<0.000000e+00> : vector<8x128xf32>
    %30 = tpu.matmul %27, %29, %cst_24 {dimension_numbers = #tpu.dot_dimension_numbers<[1], [0], [0], [1], [0, 0, 1, 1], [], []>} : vector<8x128xf32>, vector<128x128xf32>, vector<8x128xf32> -> vector<8x128xf32>
    %31 = arith.addf %26, %30 : vector<8x128xf32>
    %32 = vector.extract_strided_slice %20 {offsets = [16, 0], sizes = [8, 128], strides = [1, 1]} : vector<200x128xf32> to vector<8x128xf32>
    %c2_25 = arith.constant 2 : index
    %c0_26 = arith.constant 0 : index
    %c0_27 = arith.constant 0 : index
    %33 = vector.load %arg4[%c2_25, %c0_26, %c0_27] : memref<25x128x128xf32, #tpu.memory_space<vmem>>, vector<1x128x128xf32>
    %34 = vector.shape_cast %33 : vector<1x128x128xf32> to vector<128x128xf32>
    %cst_28 = arith.constant dense<0.000000e+00> : vector<8x128xf32>
    %35 = tpu.matmul %32, %34, %cst_28 {dimension_numbers = #tpu.dot_dimension_numbers<[1], [0], [0], [1], [0, 0, 1, 1], [], []>} : vector<8x128xf32>, vector<128x128xf32>, vector<8x128xf32> -> vector<8x128xf32>
    %36 = arith.addf %31, %35 : vector<8x128xf32>
    %37 = vector.extract_strided_slice %20 {offsets = [24, 0], sizes = [8, 128], strides = [1, 1]} : vector<200x128xf32> to vector<8x128xf32>
    %c3_29 = arith.constant 3 : index
    %c0_30 = arith.constant 0 : index
    %c0_31 = arith.constant 0 : index
    %38 = vector.load %arg4[%c3_29, %c0_30, %c0_31] : memref<25x128x128xf32, #tpu.memory_space<vmem>>, vector<1x128x128xf32>
    %39 = vector.shape_cast %38 : vector<1x128x128xf32> to vector<128x128xf32>
    %cst_32 = arith.constant dense<0.000000e+00> : vector<8x128xf32>
    %40 = tpu.matmul %37, %39, %cst_32 {dimension_numbers = #tpu.dot_dimension_numbers<[1], [0], [0], [1], [0, 0, 1, 1], [], []>} : vector<8x128xf32>, vector<128x128xf32>, vector<8x128xf32> -> vector<8x128xf32>
    %41 = arith.addf %36, %40 : vector<8x128xf32>
    %42 = vector.extract_strided_slice %20 {offsets = [32, 0], sizes = [8, 128], strides = [1, 1]} : vector<200x128xf32> to vector<8x128xf32>
    %c4 = arith.constant 4 : index
    %c0_33 = arith.constant 0 : index
    %c0_34 = arith.constant 0 : index
    %43 = vector.load %arg4[%c4, %c0_33, %c0_34] : memref<25x128x128xf32, #tpu.memory_space<vmem>>, vector<1x128x128xf32>
    %44 = vector.shape_cast %43 : vector<1x128x128xf32> to vector<128x128xf32>
    %cst_35 = arith.constant dense<0.000000e+00> : vector<8x128xf32>
    %45 = tpu.matmul %42, %44, %cst_35 {dimension_numbers = #tpu.dot_dimension_numbers<[1], [0], [0], [1], [0, 0, 1, 1], [], []>} : vector<8x128xf32>, vector<128x128xf32>, vector<8x128xf32> -> vector<8x128xf32>
    %46 = arith.addf %41, %45 : vector<8x128xf32>
    %47 = vector.extract_strided_slice %20 {offsets = [40, 0], sizes = [8, 128], strides = [1, 1]} : vector<200x128xf32> to vector<8x128xf32>
    %c5 = arith.constant 5 : index
    %c0_36 = arith.constant 0 : index
    %c0_37 = arith.constant 0 : index
    %48 = vector.load %arg4[%c5, %c0_36, %c0_37] : memref<25x128x128xf32, #tpu.memory_space<vmem>>, vector<1x128x128xf32>
    %49 = vector.shape_cast %48 : vector<1x128x128xf32> to vector<128x128xf32>
    %cst_38 = arith.constant dense<0.000000e+00> : vector<8x128xf32>
    %50 = tpu.matmul %47, %49, %cst_38 {dimension_numbers = #tpu.dot_dimension_numbers<[1], [0], [0], [1], [0, 0, 1, 1], [], []>} : vector<8x128xf32>, vector<128x128xf32>, vector<8x128xf32> -> vector<8x128xf32>
    %51 = arith.addf %46, %50 : vector<8x128xf32>
    %52 = vector.extract_strided_slice %20 {offsets = [48, 0], sizes = [8, 128], strides = [1, 1]} : vector<200x128xf32> to vector<8x128xf32>
    %c6 = arith.constant 6 : index
    %c0_39 = arith.constant 0 : index
    %c0_40 = arith.constant 0 : index
    %53 = vector.load %arg4[%c6, %c0_39, %c0_40] : memref<25x128x128xf32, #tpu.memory_space<vmem>>, vector<1x128x128xf32>
    %54 = vector.shape_cast %53 : vector<1x128x128xf32> to vector<128x128xf32>
    %cst_41 = arith.constant dense<0.000000e+00> : vector<8x128xf32>
    %55 = tpu.matmul %52, %54, %cst_41 {dimension_numbers = #tpu.dot_dimension_numbers<[1], [0], [0], [1], [0, 0, 1, 1], [], []>} : vector<8x128xf32>, vector<128x128xf32>, vector<8x128xf32> -> vector<8x128xf32>
    %56 = arith.addf %51, %55 : vector<8x128xf32>
    %57 = vector.extract_strided_slice %20 {offsets = [56, 0], sizes = [8, 128], strides = [1, 1]} : vector<200x128xf32> to vector<8x128xf32>
    %c7 = arith.constant 7 : index
    %c0_42 = arith.constant 0 : index
    %c0_43 = arith.constant 0 : index
    %58 = vector.load %arg4[%c7, %c0_42, %c0_43] : memref<25x128x128xf32, #tpu.memory_space<vmem>>, vector<1x128x128xf32>
    %59 = vector.shape_cast %58 : vector<1x128x128xf32> to vector<128x128xf32>
    %cst_44 = arith.constant dense<0.000000e+00> : vector<8x128xf32>
    %60 = tpu.matmul %57, %59, %cst_44 {dimension_numbers = #tpu.dot_dimension_numbers<[1], [0], [0], [1], [0, 0, 1, 1], [], []>} : vector<8x128xf32>, vector<128x128xf32>, vector<8x128xf32> -> vector<8x128xf32>
    %61 = arith.addf %56, %60 : vector<8x128xf32>
    %62 = vector.extract_strided_slice %20 {offsets = [64, 0], sizes = [8, 128], strides = [1, 1]} : vector<200x128xf32> to vector<8x128xf32>
    %c8 = arith.constant 8 : index
    %c0_45 = arith.constant 0 : index
    %c0_46 = arith.constant 0 : index
    %63 = vector.load %arg4[%c8, %c0_45, %c0_46] : memref<25x128x128xf32, #tpu.memory_space<vmem>>, vector<1x128x128xf32>
    %64 = vector.shape_cast %63 : vector<1x128x128xf32> to vector<128x128xf32>
    %cst_47 = arith.constant dense<0.000000e+00> : vector<8x128xf32>
    %65 = tpu.matmul %62, %64, %cst_47 {dimension_numbers = #tpu.dot_dimension_numbers<[1], [0], [0], [1], [0, 0, 1, 1], [], []>} : vector<8x128xf32>, vector<128x128xf32>, vector<8x128xf32> -> vector<8x128xf32>
    %66 = arith.addf %61, %65 : vector<8x128xf32>
    %67 = vector.extract_strided_slice %20 {offsets = [72, 0], sizes = [8, 128], strides = [1, 1]} : vector<200x128xf32> to vector<8x128xf32>
    %c9 = arith.constant 9 : index
    %c0_48 = arith.constant 0 : index
    %c0_49 = arith.constant 0 : index
    %68 = vector.load %arg4[%c9, %c0_48, %c0_49] : memref<25x128x128xf32, #tpu.memory_space<vmem>>, vector<1x128x128xf32>
    %69 = vector.shape_cast %68 : vector<1x128x128xf32> to vector<128x128xf32>
    %cst_50 = arith.constant dense<0.000000e+00> : vector<8x128xf32>
    %70 = tpu.matmul %67, %69, %cst_50 {dimension_numbers = #tpu.dot_dimension_numbers<[1], [0], [0], [1], [0, 0, 1, 1], [], []>} : vector<8x128xf32>, vector<128x128xf32>, vector<8x128xf32> -> vector<8x128xf32>
    %71 = arith.addf %66, %70 : vector<8x128xf32>
    %72 = vector.extract_strided_slice %20 {offsets = [80, 0], sizes = [8, 128], strides = [1, 1]} : vector<200x128xf32> to vector<8x128xf32>
    %c10 = arith.constant 10 : index
    %c0_51 = arith.constant 0 : index
    %c0_52 = arith.constant 0 : index
    %73 = vector.load %arg4[%c10, %c0_51, %c0_52] : memref<25x128x128xf32, #tpu.memory_space<vmem>>, vector<1x128x128xf32>
    %74 = vector.shape_cast %73 : vector<1x128x128xf32> to vector<128x128xf32>
    %cst_53 = arith.constant dense<0.000000e+00> : vector<8x128xf32>
    %75 = tpu.matmul %72, %74, %cst_53 {dimension_numbers = #tpu.dot_dimension_numbers<[1], [0], [0], [1], [0, 0, 1, 1], [], []>} : vector<8x128xf32>, vector<128x128xf32>, vector<8x128xf32> -> vector<8x128xf32>
    %76 = arith.addf %71, %75 : vector<8x128xf32>
    %77 = vector.extract_strided_slice %20 {offsets = [88, 0], sizes = [8, 128], strides = [1, 1]} : vector<200x128xf32> to vector<8x128xf32>
    %c11 = arith.constant 11 : index
    %c0_54 = arith.constant 0 : index
    %c0_55 = arith.constant 0 : index
    %78 = vector.load %arg4[%c11, %c0_54, %c0_55] : memref<25x128x128xf32, #tpu.memory_space<vmem>>, vector<1x128x128xf32>
    %79 = vector.shape_cast %78 : vector<1x128x128xf32> to vector<128x128xf32>
    %cst_56 = arith.constant dense<0.000000e+00> : vector<8x128xf32>
    %80 = tpu.matmul %77, %79, %cst_56 {dimension_numbers = #tpu.dot_dimension_numbers<[1], [0], [0], [1], [0, 0, 1, 1], [], []>} : vector<8x128xf32>, vector<128x128xf32>, vector<8x128xf32> -> vector<8x128xf32>
    %81 = arith.addf %76, %80 : vector<8x128xf32>
    %82 = vector.extract_strided_slice %20 {offsets = [96, 0], sizes = [8, 128], strides = [1, 1]} : vector<200x128xf32> to vector<8x128xf32>
    %c12 = arith.constant 12 : index
    %c0_57 = arith.constant 0 : index
    %c0_58 = arith.constant 0 : index
    %83 = vector.load %arg4[%c12, %c0_57, %c0_58] : memref<25x128x128xf32, #tpu.memory_space<vmem>>, vector<1x128x128xf32>
    %84 = vector.shape_cast %83 : vector<1x128x128xf32> to vector<128x128xf32>
    %cst_59 = arith.constant dense<0.000000e+00> : vector<8x128xf32>
    %85 = tpu.matmul %82, %84, %cst_59 {dimension_numbers = #tpu.dot_dimension_numbers<[1], [0], [0], [1], [0, 0, 1, 1], [], []>} : vector<8x128xf32>, vector<128x128xf32>, vector<8x128xf32> -> vector<8x128xf32>
    %86 = arith.addf %81, %85 : vector<8x128xf32>
    %87 = vector.extract_strided_slice %20 {offsets = [104, 0], sizes = [8, 128], strides = [1, 1]} : vector<200x128xf32> to vector<8x128xf32>
    %c13 = arith.constant 13 : index
    %c0_60 = arith.constant 0 : index
    %c0_61 = arith.constant 0 : index
    %88 = vector.load %arg4[%c13, %c0_60, %c0_61] : memref<25x128x128xf32, #tpu.memory_space<vmem>>, vector<1x128x128xf32>
    %89 = vector.shape_cast %88 : vector<1x128x128xf32> to vector<128x128xf32>
    %cst_62 = arith.constant dense<0.000000e+00> : vector<8x128xf32>
    %90 = tpu.matmul %87, %89, %cst_62 {dimension_numbers = #tpu.dot_dimension_numbers<[1], [0], [0], [1], [0, 0, 1, 1], [], []>} : vector<8x128xf32>, vector<128x128xf32>, vector<8x128xf32> -> vector<8x128xf32>
    %91 = arith.addf %86, %90 : vector<8x128xf32>
    %92 = vector.extract_strided_slice %20 {offsets = [112, 0], sizes = [8, 128], strides = [1, 1]} : vector<200x128xf32> to vector<8x128xf32>
    %c14 = arith.constant 14 : index
    %c0_63 = arith.constant 0 : index
    %c0_64 = arith.constant 0 : index
    %93 = vector.load %arg4[%c14, %c0_63, %c0_64] : memref<25x128x128xf32, #tpu.memory_space<vmem>>, vector<1x128x128xf32>
    %94 = vector.shape_cast %93 : vector<1x128x128xf32> to vector<128x128xf32>
    %cst_65 = arith.constant dense<0.000000e+00> : vector<8x128xf32>
    %95 = tpu.matmul %92, %94, %cst_65 {dimension_numbers = #tpu.dot_dimension_numbers<[1], [0], [0], [1], [0, 0, 1, 1], [], []>} : vector<8x128xf32>, vector<128x128xf32>, vector<8x128xf32> -> vector<8x128xf32>
    %96 = arith.addf %91, %95 : vector<8x128xf32>
    %97 = vector.extract_strided_slice %20 {offsets = [120, 0], sizes = [8, 128], strides = [1, 1]} : vector<200x128xf32> to vector<8x128xf32>
    %c15 = arith.constant 15 : index
    %c0_66 = arith.constant 0 : index
    %c0_67 = arith.constant 0 : index
    %98 = vector.load %arg4[%c15, %c0_66, %c0_67] : memref<25x128x128xf32, #tpu.memory_space<vmem>>, vector<1x128x128xf32>
    %99 = vector.shape_cast %98 : vector<1x128x128xf32> to vector<128x128xf32>
    %cst_68 = arith.constant dense<0.000000e+00> : vector<8x128xf32>
    %100 = tpu.matmul %97, %99, %cst_68 {dimension_numbers = #tpu.dot_dimension_numbers<[1], [0], [0], [1], [0, 0, 1, 1], [], []>} : vector<8x128xf32>, vector<128x128xf32>, vector<8x128xf32> -> vector<8x128xf32>
    %101 = arith.addf %96, %100 : vector<8x128xf32>
    %102 = vector.extract_strided_slice %20 {offsets = [128, 0], sizes = [8, 128], strides = [1, 1]} : vector<200x128xf32> to vector<8x128xf32>
    %c16 = arith.constant 16 : index
    %c0_69 = arith.constant 0 : index
    %c0_70 = arith.constant 0 : index
    %103 = vector.load %arg4[%c16, %c0_69, %c0_70] : memref<25x128x128xf32, #tpu.memory_space<vmem>>, vector<1x128x128xf32>
    %104 = vector.shape_cast %103 : vector<1x128x128xf32> to vector<128x128xf32>
    %cst_71 = arith.constant dense<0.000000e+00> : vector<8x128xf32>
    %105 = tpu.matmul %102, %104, %cst_71 {dimension_numbers = #tpu.dot_dimension_numbers<[1], [0], [0], [1], [0, 0, 1, 1], [], []>} : vector<8x128xf32>, vector<128x128xf32>, vector<8x128xf32> -> vector<8x128xf32>
    %106 = arith.addf %101, %105 : vector<8x128xf32>
    %107 = vector.extract_strided_slice %20 {offsets = [136, 0], sizes = [8, 128], strides = [1, 1]} : vector<200x128xf32> to vector<8x128xf32>
    %c17 = arith.constant 17 : index
    %c0_72 = arith.constant 0 : index
    %c0_73 = arith.constant 0 : index
    %108 = vector.load %arg4[%c17, %c0_72, %c0_73] : memref<25x128x128xf32, #tpu.memory_space<vmem>>, vector<1x128x128xf32>
    %109 = vector.shape_cast %108 : vector<1x128x128xf32> to vector<128x128xf32>
    %cst_74 = arith.constant dense<0.000000e+00> : vector<8x128xf32>
    %110 = tpu.matmul %107, %109, %cst_74 {dimension_numbers = #tpu.dot_dimension_numbers<[1], [0], [0], [1], [0, 0, 1, 1], [], []>} : vector<8x128xf32>, vector<128x128xf32>, vector<8x128xf32> -> vector<8x128xf32>
    %111 = arith.addf %106, %110 : vector<8x128xf32>
    %112 = vector.extract_strided_slice %20 {offsets = [144, 0], sizes = [8, 128], strides = [1, 1]} : vector<200x128xf32> to vector<8x128xf32>
    %c18 = arith.constant 18 : index
    %c0_75 = arith.constant 0 : index
    %c0_76 = arith.constant 0 : index
    %113 = vector.load %arg4[%c18, %c0_75, %c0_76] : memref<25x128x128xf32, #tpu.memory_space<vmem>>, vector<1x128x128xf32>
    %114 = vector.shape_cast %113 : vector<1x128x128xf32> to vector<128x128xf32>
    %cst_77 = arith.constant dense<0.000000e+00> : vector<8x128xf32>
    %115 = tpu.matmul %112, %114, %cst_77 {dimension_numbers = #tpu.dot_dimension_numbers<[1], [0], [0], [1], [0, 0, 1, 1], [], []>} : vector<8x128xf32>, vector<128x128xf32>, vector<8x128xf32> -> vector<8x128xf32>
    %116 = arith.addf %111, %115 : vector<8x128xf32>
    %117 = vector.extract_strided_slice %20 {offsets = [152, 0], sizes = [8, 128], strides = [1, 1]} : vector<200x128xf32> to vector<8x128xf32>
    %c19 = arith.constant 19 : index
    %c0_78 = arith.constant 0 : index
    %c0_79 = arith.constant 0 : index
    %118 = vector.load %arg4[%c19, %c0_78, %c0_79] : memref<25x128x128xf32, #tpu.memory_space<vmem>>, vector<1x128x128xf32>
    %119 = vector.shape_cast %118 : vector<1x128x128xf32> to vector<128x128xf32>
    %cst_80 = arith.constant dense<0.000000e+00> : vector<8x128xf32>
    %120 = tpu.matmul %117, %119, %cst_80 {dimension_numbers = #tpu.dot_dimension_numbers<[1], [0], [0], [1], [0, 0, 1, 1], [], []>} : vector<8x128xf32>, vector<128x128xf32>, vector<8x128xf32> -> vector<8x128xf32>
    %121 = arith.addf %116, %120 : vector<8x128xf32>
    %122 = vector.extract_strided_slice %20 {offsets = [160, 0], sizes = [8, 128], strides = [1, 1]} : vector<200x128xf32> to vector<8x128xf32>
    %c20 = arith.constant 20 : index
    %c0_81 = arith.constant 0 : index
    %c0_82 = arith.constant 0 : index
    %123 = vector.load %arg4[%c20, %c0_81, %c0_82] : memref<25x128x128xf32, #tpu.memory_space<vmem>>, vector<1x128x128xf32>
    %124 = vector.shape_cast %123 : vector<1x128x128xf32> to vector<128x128xf32>
    %cst_83 = arith.constant dense<0.000000e+00> : vector<8x128xf32>
    %125 = tpu.matmul %122, %124, %cst_83 {dimension_numbers = #tpu.dot_dimension_numbers<[1], [0], [0], [1], [0, 0, 1, 1], [], []>} : vector<8x128xf32>, vector<128x128xf32>, vector<8x128xf32> -> vector<8x128xf32>
    %126 = arith.addf %121, %125 : vector<8x128xf32>
    %127 = vector.extract_strided_slice %20 {offsets = [168, 0], sizes = [8, 128], strides = [1, 1]} : vector<200x128xf32> to vector<8x128xf32>
    %c21 = arith.constant 21 : index
    %c0_84 = arith.constant 0 : index
    %c0_85 = arith.constant 0 : index
    %128 = vector.load %arg4[%c21, %c0_84, %c0_85] : memref<25x128x128xf32, #tpu.memory_space<vmem>>, vector<1x128x128xf32>
    %129 = vector.shape_cast %128 : vector<1x128x128xf32> to vector<128x128xf32>
    %cst_86 = arith.constant dense<0.000000e+00> : vector<8x128xf32>
    %130 = tpu.matmul %127, %129, %cst_86 {dimension_numbers = #tpu.dot_dimension_numbers<[1], [0], [0], [1], [0, 0, 1, 1], [], []>} : vector<8x128xf32>, vector<128x128xf32>, vector<8x128xf32> -> vector<8x128xf32>
    %131 = arith.addf %126, %130 : vector<8x128xf32>
    %132 = vector.extract_strided_slice %20 {offsets = [176, 0], sizes = [8, 128], strides = [1, 1]} : vector<200x128xf32> to vector<8x128xf32>
    %c22 = arith.constant 22 : index
    %c0_87 = arith.constant 0 : index
    %c0_88 = arith.constant 0 : index
    %133 = vector.load %arg4[%c22, %c0_87, %c0_88] : memref<25x128x128xf32, #tpu.memory_space<vmem>>, vector<1x128x128xf32>
    %134 = vector.shape_cast %133 : vector<1x128x128xf32> to vector<128x128xf32>
    %cst_89 = arith.constant dense<0.000000e+00> : vector<8x128xf32>
    %135 = tpu.matmul %132, %134, %cst_89 {dimension_numbers = #tpu.dot_dimension_numbers<[1], [0], [0], [1], [0, 0, 1, 1], [], []>} : vector<8x128xf32>, vector<128x128xf32>, vector<8x128xf32> -> vector<8x128xf32>
    %136 = arith.addf %131, %135 : vector<8x128xf32>
    %137 = vector.extract_strided_slice %20 {offsets = [184, 0], sizes = [8, 128], strides = [1, 1]} : vector<200x128xf32> to vector<8x128xf32>
    %c23 = arith.constant 23 : index
    %c0_90 = arith.constant 0 : index
    %c0_91 = arith.constant 0 : index
    %138 = vector.load %arg4[%c23, %c0_90, %c0_91] : memref<25x128x128xf32, #tpu.memory_space<vmem>>, vector<1x128x128xf32>
    %139 = vector.shape_cast %138 : vector<1x128x128xf32> to vector<128x128xf32>
    %cst_92 = arith.constant dense<0.000000e+00> : vector<8x128xf32>
    %140 = tpu.matmul %137, %139, %cst_92 {dimension_numbers = #tpu.dot_dimension_numbers<[1], [0], [0], [1], [0, 0, 1, 1], [], []>} : vector<8x128xf32>, vector<128x128xf32>, vector<8x128xf32> -> vector<8x128xf32>
    %141 = arith.addf %136, %140 : vector<8x128xf32>
    %142 = vector.extract_strided_slice %20 {offsets = [192, 0], sizes = [8, 128], strides = [1, 1]} : vector<200x128xf32> to vector<8x128xf32>
    %c24 = arith.constant 24 : index
    %c0_93 = arith.constant 0 : index
    %c0_94 = arith.constant 0 : index
    %143 = vector.load %arg4[%c24, %c0_93, %c0_94] : memref<25x128x128xf32, #tpu.memory_space<vmem>>, vector<1x128x128xf32>
    %144 = vector.shape_cast %143 : vector<1x128x128xf32> to vector<128x128xf32>
    %cst_95 = arith.constant dense<0.000000e+00> : vector<8x128xf32>
    %145 = tpu.matmul %142, %144, %cst_95 {dimension_numbers = #tpu.dot_dimension_numbers<[1], [0], [0], [1], [0, 0, 1, 1], [], []>} : vector<8x128xf32>, vector<128x128xf32>, vector<8x128xf32> -> vector<8x128xf32>
    %146 = arith.addf %141, %145 : vector<8x128xf32>
    %c0_96 = arith.constant 0 : index
    %c0_97 = arith.constant 0 : index
    %147 = vector.load %arg5[%c0_96, %c0_97] : memref<1x128xf32, #tpu.memory_space<vmem>>, vector<1x128xf32>
    %148 = vector.broadcast %147 : vector<1x128xf32> to vector<8x128xf32>
    %149 = arith.addf %146, %148 : vector<8x128xf32>
    %cst_98 = arith.constant 0.000000e+00 : f32
    %150 = vector.broadcast %cst_98 : f32 to vector<8x128xf32>
    %151 = arith.maximumf %149, %150 : vector<8x128xf32>
    %c0_99 = arith.constant 0 : index
    %c0_100 = arith.constant 0 : index
    %152 = vector.load %arg6[%c0_99, %c0_100] : memref<128x128xf32, #tpu.memory_space<vmem>>, vector<128x128xf32>
    %cst_101 = arith.constant dense<0.000000e+00> : vector<8x128xf32>
    %153 = tpu.matmul %151, %152, %cst_101 {dimension_numbers = #tpu.dot_dimension_numbers<[1], [0], [0], [1], [0, 0, 1, 1], [], []>} : vector<8x128xf32>, vector<128x128xf32>, vector<8x128xf32> -> vector<8x128xf32>
    %c0_102 = arith.constant 0 : index
    %c0_103 = arith.constant 0 : index
    %154 = vector.load %arg7[%c0_102, %c0_103] : memref<1x128xf32, #tpu.memory_space<vmem>>, vector<1x128xf32>
    %155 = vector.broadcast %154 : vector<1x128xf32> to vector<8x128xf32>
    %156 = arith.addf %153, %155 : vector<8x128xf32>
    %cst_104 = arith.constant 0.000000e+00 : f32
    %157 = vector.broadcast %cst_104 : f32 to vector<8x128xf32>
    %158 = arith.maximumf %156, %157 : vector<8x128xf32>
    %c0_105 = arith.constant 0 : index
    %c0_106 = arith.constant 0 : index
    %159 = vector.load %arg8[%c0_105, %c0_106] : memref<128x128xf32, #tpu.memory_space<vmem>>, vector<128x128xf32>
    %cst_107 = arith.constant dense<0.000000e+00> : vector<8x128xf32>
    %160 = tpu.matmul %158, %159, %cst_107 {dimension_numbers = #tpu.dot_dimension_numbers<[1], [0], [0], [1], [0, 0, 1, 1], [], []>} : vector<8x128xf32>, vector<128x128xf32>, vector<8x128xf32> -> vector<8x128xf32>
    %c0_108 = arith.constant 0 : index
    %c0_109 = arith.constant 0 : index
    %161 = vector.load %arg9[%c0_108, %c0_109] : memref<1x128xf32, #tpu.memory_space<vmem>>, vector<1x128xf32>
    %162 = vector.broadcast %161 : vector<1x128xf32> to vector<8x128xf32>
    %163 = arith.addf %160, %162 : vector<8x128xf32>
    %c0_110 = arith.constant 0 : index
    %c0_111 = arith.constant 0 : index
    %164 = vector.load %arg10[%c0_110, %c0_111] : memref<8x128xf32, #tpu.memory_space<vmem>>, vector<8x128xf32>
    tpu.vector_store %arg10[%c0_110, %c0_111], %163 {strides = array<i32>} : memref<8x128xf32, #tpu.memory_space<vmem>>, vector<8x128xf32>,
    return
  }
  func.func @transform_0(%arg0: i32) -> (i32, i32, i32) {
    %c0_i32 = arith.constant 0 : i32
    %c0_i32_0 = arith.constant 0 : i32
    %c0_i32_1 = arith.constant 0 : i32
    return %c0_i32, %arg0, %c0_i32_0 : i32, i32, i32
  }
  func.func @transform_1(%arg0: i32) -> (i32, i32) {
    %c0_i32 = arith.constant 0 : i32
    %c0_i32_0 = arith.constant 0 : i32
    %c0_i32_1 = arith.constant 0 : i32
    return %c0_i32, %c0_i32_0 : i32, i32
  }
  func.func @transform_2(%arg0: i32) -> (i32, i32) {
    %c0_i32 = arith.constant 0 : i32
    %c0_i32_0 = arith.constant 0 : i32
    %c0_i32_1 = arith.constant 0 : i32
    return %c0_i32, %c0_i32_0 : i32, i32
  }
  func.func @transform_3(%arg0: i32) -> (i32, i32, i32) {
    %c0_i32 = arith.constant 0 : i32
    %c0_i32_0 = arith.constant 0 : i32
    %c0_i32_1 = arith.constant 0 : i32
    %c0_i32_2 = arith.constant 0 : i32
    return %c0_i32, %c0_i32_0, %c0_i32_1 : i32, i32, i32
  }
  func.func @transform_4(%arg0: i32) -> (i32, i32) {
    %c0_i32 = arith.constant 0 : i32
    %c0_i32_0 = arith.constant 0 : i32
    %c0_i32_1 = arith.constant 0 : i32
    return %c0_i32, %c0_i32_0 : i32, i32
  }
  func.func @transform_5(%arg0: i32) -> (i32, i32) {
    %c0_i32 = arith.constant 0 : i32
    %c0_i32_0 = arith.constant 0 : i32
    %c0_i32_1 = arith.constant 0 : i32
    return %c0_i32, %c0_i32_0 : i32, i32
  }
  func.func @transform_6(%arg0: i32) -> (i32, i32) {
    %c0_i32 = arith.constant 0 : i32
    %c0_i32_0 = arith.constant 0 : i32
    %c0_i32_1 = arith.constant 0 : i32
    return %c0_i32, %c0_i32_0 : i32, i32
  }
  func.func @transform_7(%arg0: i32) -> (i32, i32) {
    %c0_i32 = arith.constant 0 : i32
    %c0_i32_0 = arith.constant 0 : i32
    %c0_i32_1 = arith.constant 0 : i32
    return %c0_i32, %c0_i32_0 : i32, i32
  }
  func.func @transform_8(%arg0: i32) -> (i32, i32) {
    %c0_i32 = arith.constant 0 : i32
    %c0_i32_0 = arith.constant 0 : i32
    %c0_i32_1 = arith.constant 0 : i32
    return %c0_i32, %c0_i32_0 : i32, i32
  }
  func.func @transform_9(%arg0: i32) -> (i32, i32) {
    %c0_i32 = arith.constant 0 : i32
    %c0_i32_0 = arith.constant 0 : i32
    return %arg0, %c0_i32 : i32, i32
  }
}

</mosaic_0001>

<llo_original>
// kernel: lenet_forward.2
$region0: #{lenet_forward.2}
  #allocation0 [shape = 'u32[]', space=smem, size = 0x4, offset = 0x4, fixed_abs, tag = 'smem constant byte address 0x4 - core index']
  #allocation1 [shape = 'u32[144,128]{1,0:T(1,128)}', space=vmem, size = 0x12000, scoped, tag = 'internal scratch']
  %s0 = inlined_call_operand.vmem [shape: f32[4,1568,128], index: 0, kind: input, shape index: {}]
  %s1 = inlined_call_operand.vmem [shape: f32[128,128], index: 1, kind: input, shape index: {}]
  %s2 = inlined_call_operand.vmem [shape: f32[1,128], index: 2, kind: input, shape index: {}]
  %s3 = inlined_call_operand.vmem [shape: f32[1568,128], index: 3, kind: output, shape index: {}]
  %s4 = sld [smem:[#allocation0]]
  $region22: #{lenet_forward.2} parent=0
    _
  %s6 = ssub.s32 1, %s4
  %s7 = scalar_select 0, %s6, %s4
  // Predicated region
  $region2: #{lenet_forward.2} parent=0 // pred_check
    _
  $region3: #{lenet_forward.2} parent=0 // pred_check_branch
    %9 = sbr.rel (0) target = $region5
  $region4: #{lenet_forward.2} parent=0 // pred_region
    _
  $region5: #{lenet_forward.2} parent=0 // pred_fallthru
    _
  // Predicated region
  $region6: #{lenet_forward.2} parent=0 // pred_check
    _
  $region7: #{lenet_forward.2} parent=0 // pred_check_branch
    %11 = sbr.rel (0) target = $region9
  $region8: #{lenet_forward.2} parent=0 // pred_region
    _
  $region9: #{lenet_forward.2} parent=0 // pred_fallthru
    _
  // Predicated region
  $region10: #{lenet_forward.2} parent=0 // pred_check
    _
  $region11: #{lenet_forward.2} parent=0 // pred_check_branch
    %13 = sbr.rel (0) target = $region13
  $region12: #{lenet_forward.2} parent=0 // pred_region
    _
  $region13: #{lenet_forward.2} parent=0 // pred_fallthru
    _
  %v14 = vld [vmem:[%s1] sm:$0xff]
  %v15 = vld [vmem:[%s1 + $0x8] sm:$0xff]
  %v16 = vld [vmem:[%s1 + $0x10] sm:$0xff]
  %v17 = vld [vmem:[%s1 + $0x18] sm:$0xff]
  %v18 = vld [vmem:[%s1 + $0x20] sm:$0xff]
  %v19 = vld [vmem:[%s1 + $0x28] sm:$0xff]
  %v20 = vld [vmem:[%s1 + $0x30] sm:$0xff]
  %v21 = vld [vmem:[%s1 + $0x38] sm:$0xff]
  %v22 = vld [vmem:[%s1 + $0x40] sm:$0xff]
  %v23 = vld [vmem:[%s1 + $0x48] sm:$0xff]
  %v24 = vld [vmem:[%s1 + $0x50] sm:$0xff]
  %v25 = vld [vmem:[%s1 + $0x58] sm:$0xff]
  %v26 = vld [vmem:[%s1 + $0x60] sm:$0xff]
  %v27 = vld [vmem:[%s1 + $0x68] sm:$0xff]
  %v28 = vld [vmem:[%s1 + $0x70] sm:$0xff]
  %v29 = vld [vmem:[%s1 + $0x78] sm:$0xff]
  %v30 = vld [vmem:[%s0] sm:$0xff]
  %v31 = vld [vmem:[%s0 + $0x8] sm:$0xff]
  %v32 = vld [vmem:[%s0 + $0x10] sm:$0xff]
  %v33 = vld [vmem:[%s0 + $0x18] sm:$0xff]
  %v34 = vld [vmem:[%s0 + $0x20] sm:$0xff]
  %v35 = vld [vmem:[%s0 + $0x28] sm:$0xff]
  %v36 = vld [vmem:[%s0 + $0x30] sm:$0xff]
  %v37 = vld [vmem:[%s0 + $0x38] sm:$0xff]
  %v38 = vld [vmem:[%s0 + $0x40] sm:$0xff]
  %v39 = vld [vmem:[%s0 + $0x48] sm:$0xff]
  %v40 = vld [vmem:[%s0 + $0x50] sm:$0xff]
  %v41 = vld [vmem:[%s0 + $0x58] sm:$0xff]
  %v42 = vld [vmem:[%s0 + $0x60] sm:$0xff]
  %v43 = vld [vmem:[%s0 + $0x68] sm:$0xff]
  %v44 = vld [vmem:[%s0 + $0x70] sm:$0xff]
  %v45 = vld [vmem:[%s0 + $0x78] sm:$0xff]
  %v46 = vld [vmem:[%s0 + $0x80] sm:$0xff]
  %v47 = vld [vmem:[%s0 + $0x88] sm:$0xff]
  %v48 = vld [vmem:[%s0 + $0x90] sm:$0xff]
  %v49 = vld [vmem:[%s0 + $0x98] sm:$0xff]
  %v50 = vld [vmem:[%s0 + $0xa0] sm:$0xff]
  %v51 = vld [vmem:[%s0 + $0xa8] sm:$0xff]
  %v52 = vld [vmem:[%s0 + $0xb0] sm:$0xff]
  %v53 = vld [vmem:[%s0 + $0xb8] sm:$0xff]
  %v54 = vld [vmem:[%s0 + $0xc0] sm:$0xff]
  %v55 = vld [vmem:[%s0 + $0xc8] sm:$0xff]
  %v56 = vld [vmem:[%s0 + $0xd0] sm:$0xff]
  %v57 = vld [vmem:[%s0 + $0xd8] sm:$0xff]
  %v58 = vld [vmem:[%s0 + $0xe0] sm:$0xff]
  %v59 = vld [vmem:[%s0 + $0xe8] sm:$0xff]
  %v60 = vld [vmem:[%s0 + $0xf0] sm:$0xff]
  %v61 = vld [vmem:[%s0 + $0xf8] sm:$0xff]
  %v62 = vld [vmem:[%s0 + $0x100] sm:$0xff]
  %v63 = vld [vmem:[%s0 + $0x108] sm:$0xff]
  %v64 = vld [vmem:[%s0 + $0x110] sm:$0xff]
  %v65 = vld [vmem:[%s0 + $0x118] sm:$0xff]
  %v66 = vld [vmem:[%s0 + $0x120] sm:$0xff]
  %v67 = vld [vmem:[%s0 + $0x128] sm:$0xff]
  %v68 = vld [vmem:[%s0 + $0x130] sm:$0xff]
  %v69 = vld [vmem:[%s0 + $0x138] sm:$0xff]
  %v70 = vld [vmem:[%s0 + $0x140] sm:$0xff]
  %v71 = vld [vmem:[%s0 + $0x148] sm:$0xff]
  %v72 = vld [vmem:[%s0 + $0x150] sm:$0xff]
  %v73 = vld [vmem:[%s0 + $0x158] sm:$0xff]
  %v74 = vld [vmem:[%s0 + $0x160] sm:$0xff]
  %v75 = vld [vmem:[%s0 + $0x168] sm:$0xff]
  %v76 = vld [vmem:[%s0 + $0x170] sm:$0xff]
  %v77 = vld [vmem:[%s0 + $0x178] sm:$0xff]
  %v78 = vld [vmem:[%s0 + $0x180] sm:$0xff]
  %v79 = vld [vmem:[%s0 + $0x188] sm:$0xff]
  %v80 = vld [vmem:[%s0 + $0x190] sm:$0xff]
  %v81 = vld [vmem:[%s0 + $0x198] sm:$0xff]
  %v82 = vld [vmem:[%s0 + $0x1a0] sm:$0xff]
  %v83 = vld [vmem:[%s0 + $0x1a8] sm:$0xff]
  %v84 = vld [vmem:[%s0 + $0x1b0] sm:$0xff]
  %v85 = vld [vmem:[%s0 + $0x1b8] sm:$0xff]
  %v86 = vld [vmem:[%s0 + $0x1c0] sm:$0xff]
  %v87 = vld [vmem:[%s0 + $0x1c8] sm:$0xff]
  %v88 = vld [vmem:[%s0 + $0x1d0] sm:$0xff]
  %v89 = vld [vmem:[%s0 + $0x1d8] sm:$0xff]
  %v90 = vld [vmem:[%s0 + $0x1e0] sm:$0xff]
  %v91 = vld [vmem:[%s0 + $0x1e8] sm:$0xff]
  %v92 = vld [vmem:[%s0 + $0x1f0] sm:$0xff]
  %v93 = vld [vmem:[%s0 + $0x1f8] sm:$0xff]
  %v94 = vld [vmem:[%s0 + $0x200] sm:$0xff]
  %v95 = vld [vmem:[%s0 + $0x208] sm:$0xff]
  %v96 = vld [vmem:[%s0 + $0x210] sm:$0xff]
  %v97 = vld [vmem:[%s0 + $0x218] sm:$0xff]
  %v98 = vld [vmem:[%s0 + $0x220] sm:$0xff]
  %v99 = vld [vmem:[%s0 + $0x228] sm:$0xff]
  %v100 = vld [vmem:[%s0 + $0x230] sm:$0xff]
  %v101 = vld [vmem:[%s0 + $0x238] sm:$0xff]
  %v102 = vld [vmem:[%s0 + $0x240] sm:$0xff]
  %v103 = vld [vmem:[%s0 + $0x248] sm:$0xff]
  %v104 = vld [vmem:[%s0 + $0x250] sm:$0xff]
  %v105 = vld [vmem:[%s0 + $0x258] sm:$0xff]
  %v106 = vld [vmem:[%s0 + $0x260] sm:$0xff]
  %v107 = vld [vmem:[%s0 + $0x268] sm:$0xff]
  %v108 = vld [vmem:[%s0 + $0x270] sm:$0xff]
  %v109 = vld [vmem:[%s0 + $0x278] sm:$0xff]
  %v110 = vld [vmem:[%s0 + $0x280] sm:$0xff]
  %v111 = vld [vmem:[%s0 + $0x288] sm:$0xff]
  %v112 = vld [vmem:[%s0 + $0x290] sm:$0xff]
  %v113 = vld [vmem:[%s0 + $0x298] sm:$0xff]
  %v114 = vld [vmem:[%s0 + $0x2a0] sm:$0xff]
  %v115 = vld [vmem:[%s0 + $0x2a8] sm:$0xff]
  %v116 = vld [vmem:[%s0 + $0x2b0] sm:$0xff]
  %v117 = vld [vmem:[%s0 + $0x2b8] sm:$0xff]
  %v118 = vld [vmem:[%s0 + $0x2c0] sm:$0xff]
  %v119 = vld [vmem:[%s0 + $0x2c8] sm:$0xff]
  %v120 = vld [vmem:[%s0 + $0x2d0] sm:$0xff]
  %v121 = vld [vmem:[%s0 + $0x2d8] sm:$0xff]
  %v122 = vld [vmem:[%s0 + $0x2e0] sm:$0xff]
  %v123 = vld [vmem:[%s0 + $0x2e8] sm:$0xff]
  %v124 = vld [vmem:[%s0 + $0x2f0] sm:$0xff]
  %v125 = vld [vmem:[%s0 + $0x2f8] sm:$0xff]
  %v126 = vld [vmem:[%s0 + $0x300] sm:$0xff]
  %v127 = vld [vmem:[%s0 + $0x308] sm:$0xff]
  %v128 = vld [vmem:[%s0 + $0x310] sm:$0xff]
  %v129 = vld [vmem:[%s0 + $0x318] sm:$0xff]
  %v130 = vld [vmem:[%s0 + $0x320] sm:$0xff]
  %v131 = vld [vmem:[%s0 + $0x328] sm:$0xff]
  %v132 = vld [vmem:[%s0 + $0x330] sm:$0xff]
  %v133 = vld [vmem:[%s0 + $0x338] sm:$0xff]
  %v134 = vld [vmem:[%s0 + $0x340] sm:$0xff]
  %v135 = vld [vmem:[%s0 + $0x348] sm:$0xff]
  %v136 = vld [vmem:[%s0 + $0x350] sm:$0xff]
  %v137 = vld [vmem:[%s0 + $0x358] sm:$0xff]
  %v138 = vld [vmem:[%s0 + $0x360] sm:$0xff]
  %v139 = vld [vmem:[%s0 + $0x368] sm:$0xff]
  %v140 = vld [vmem:[%s0 + $0x370] sm:$0xff]
  %v141 = vld [vmem:[%s0 + $0x378] sm:$0xff]
  %v142 = vld [vmem:[%s0 + $0x380] sm:$0xff]
  %v143 = vld [vmem:[%s0 + $0x388] sm:$0xff]
  %v144 = vld [vmem:[%s0 + $0x390] sm:$0xff]
  %v145 = vld [vmem:[%s0 + $0x398] sm:$0xff]
  %v146 = vld [vmem:[%s0 + $0x3a0] sm:$0xff]
  %v147 = vld [vmem:[%s0 + $0x3a8] sm:$0xff]
  %v148 = vld [vmem:[%s0 + $0x3b0] sm:$0xff]
  %v149 = vld [vmem:[%s0 + $0x3b8] sm:$0xff]
  %v150 = vld [vmem:[%s0 + $0x3c0] sm:$0xff]
  %v151 = vld [vmem:[%s0 + $0x3c8] sm:$0xff]
  %v152 = vld [vmem:[%s0 + $0x3d0] sm:$0xff]
  %v153 = vld [vmem:[%s0 + $0x3d8] sm:$0xff]
  %v154 = vld [vmem:[%s0 + $0x3e0] sm:$0xff]
  %v155 = vld [vmem:[%s0 + $0x3e8] sm:$0xff]
  %v156 = vld [vmem:[%s0 + $0x3f0] sm:$0xff]
  %v157 = vld [vmem:[%s0 + $0x3f8] sm:$0xff]
  %v158 = vld [vmem:[%s0 + $0x400] sm:$0xff]
  %v159 = vld [vmem:[%s0 + $0x408] sm:$0xff]
  %v160 = vld [vmem:[%s0 + $0x410] sm:$0xff]
  %v161 = vld [vmem:[%s0 + $0x418] sm:$0xff]
  %v162 = vld [vmem:[%s0 + $0x420] sm:$0xff]
  %v163 = vld [vmem:[%s0 + $0x428] sm:$0xff]
  %v164 = vld [vmem:[%s0 + $0x430] sm:$0xff]
  %v165 = vld [vmem:[%s0 + $0x438] sm:$0xff]
  %v166 = vld [vmem:[%s0 + $0x440] sm:$0xff]
  %v167 = vld [vmem:[%s0 + $0x448] sm:$0xff]
  %v168 = vld [vmem:[%s0 + $0x450] sm:$0xff]
  %v169 = vld [vmem:[%s0 + $0x458] sm:$0xff]
  %v170 = vld [vmem:[%s0 + $0x460] sm:$0xff]
  %v171 = vld [vmem:[%s0 + $0x468] sm:$0xff]
  %v172 = vld [vmem:[%s0 + $0x470] sm:$0xff]
  %v173 = vld [vmem:[%s0 + $0x478] sm:$0xff]
  %v174 = vld [vmem:[%s0 + $0x480] sm:$0xff]
  %v175 = vld [vmem:[%s0 + $0x488] sm:$0xff]
  %v176 = vld [vmem:[%s0 + $0x490] sm:$0xff]
  %v177 = vld [vmem:[%s0 + $0x498] sm:$0xff]
  %v178 = vld [vmem:[%s0 + $0x4a0] sm:$0xff]
  %v179 = vld [vmem:[%s0 + $0x4a8] sm:$0xff]
  %v180 = vld [vmem:[%s0 + $0x4b0] sm:$0xff]
  %v181 = vld [vmem:[%s0 + $0x4b8] sm:$0xff]
  %v182 = vld [vmem:[%s0 + $0x4c0] sm:$0xff]
  %v183 = vld [vmem:[%s0 + $0x4c8] sm:$0xff]
  %v184 = vld [vmem:[%s0 + $0x4d0] sm:$0xff]
  %v185 = vld [vmem:[%s0 + $0x4d8] sm:$0xff]
  %v186 = vld [vmem:[%s0 + $0x4e0] sm:$0xff]
  %v187 = vld [vmem:[%s0 + $0x4e8] sm:$0xff]
  %v188 = vld [vmem:[%s0 + $0x4f0] sm:$0xff]
  %v189 = vld [vmem:[%s0 + $0x4f8] sm:$0xff]
  %v190 = vld [vmem:[%s0 + $0x500] sm:$0xff]
  %v191 = vld [vmem:[%s0 + $0x508] sm:$0xff]
  %v192 = vld [vmem:[%s0 + $0x510] sm:$0xff]
  %v193 = vld [vmem:[%s0 + $0x518] sm:$0xff]
  %v194 = vld [vmem:[%s0 + $0x520] sm:$0xff]
  %v195 = vld [vmem:[%s0 + $0x528] sm:$0xff]
  %v196 = vld [vmem:[%s0 + $0x530] sm:$0xff]
  %v197 = vld [vmem:[%s0 + $0x538] sm:$0xff]
  %v198 = vld [vmem:[%s0 + $0x540] sm:$0xff]
  %v199 = vld [vmem:[%s0 + $0x548] sm:$0xff]
  %v200 = vld [vmem:[%s0 + $0x550] sm:$0xff]
  %v201 = vld [vmem:[%s0 + $0x558] sm:$0xff]
  %v202 = vld [vmem:[%s0 + $0x560] sm:$0xff]
  %v203 = vld [vmem:[%s0 + $0x568] sm:$0xff]
  %v204 = vld [vmem:[%s0 + $0x570] sm:$0xff]
  %v205 = vld [vmem:[%s0 + $0x578] sm:$0xff]
  %v206 = vld [vmem:[%s0 + $0x580] sm:$0xff]
  %v207 = vld [vmem:[%s0 + $0x588] sm:$0xff]
  %v208 = vld [vmem:[%s0 + $0x590] sm:$0xff]
  %v209 = vld [vmem:[%s0 + $0x598] sm:$0xff]
  %v210 = vld [vmem:[%s0 + $0x5a0] sm:$0xff]
  %v211 = vld [vmem:[%s0 + $0x5a8] sm:$0xff]
  %v212 = vld [vmem:[%s0 + $0x5b0] sm:$0xff]
  %v213 = vld [vmem:[%s0 + $0x5b8] sm:$0xff]
  %v214 = vld [vmem:[%s0 + $0x5c0] sm:$0xff]
  %v215 = vld [vmem:[%s0 + $0x5c8] sm:$0xff]
  %v216 = vld [vmem:[%s0 + $0x5d0] sm:$0xff]
  %v217 = vld [vmem:[%s0 + $0x5d8] sm:$0xff]
  %v218 = vld [vmem:[%s0 + $0x5e0] sm:$0xff]
  %v219 = vld [vmem:[%s0 + $0x5e8] sm:$0xff]
  %v220 = vld [vmem:[%s0 + $0x5f0] sm:$0xff]
  %v221 = vld [vmem:[%s0 + $0x5f8] sm:$0xff]
  %v222 = vld [vmem:[%s0 + $0x600] sm:$0xff]
  %v223 = vld [vmem:[%s0 + $0x608] sm:$0xff]
  %v224 = vld [vmem:[%s0 + $0x610] sm:$0xff]
  %v225 = vld [vmem:[%s0 + $0x618] sm:$0xff]
  %226 = vmatprep.subr.mxu0 0.0
  %227 = vmatpush1.msra.mxu0 %v29
  %228 = vmatprep.subr.mxu0 0.0
  %229 = vmatpush1.msra.mxu0 %v28
  %230 = vmatprep.subr.mxu0 0.0
  %231 = vmatpush1.msra.mxu0 %v27
  %232 = vmatprep.subr.mxu0 0.0
  %233 = vmatpush1.msra.mxu0 %v26
  %234 = vmatprep.subr.mxu0 0.0
  %235 = vmatpush1.msra.mxu0 %v25
  %236 = vmatprep.subr.mxu0 0.0
  %237 = vmatpush1.msra.mxu0 %v24
  %238 = vmatprep.subr.mxu0 0.0
  %239 = vmatpush1.msra.mxu0 %v23
  %240 = vmatprep.subr.mxu0 0.0
  %241 = vmatpush1.msra.mxu0 %v22
  %242 = vmatprep.subr.mxu0 0.0
  %243 = vmatpush1.msra.mxu0 %v21
  %244 = vmatprep.subr.mxu0 0.0
  %245 = vmatpush1.msra.mxu0 %v20
  %246 = vmatprep.subr.mxu0 0.0
  %247 = vmatpush1.msra.mxu0 %v19
  %248 = vmatprep.subr.mxu0 0.0
  %249 = vmatpush1.msra.mxu0 %v18
  %250 = vmatprep.subr.mxu0 0.0
  %251 = vmatpush1.msra.mxu0 %v17
  %252 = vmatprep.subr.mxu0 0.0
  %253 = vmatpush1.msra.mxu0 %v16
  %254 = vmatprep.subr.mxu0 0.0
  %255 = vmatpush1.msra.mxu0 %v15
  %256 = vmatprep.subr.mxu0 0.0
  %257 = vmatpush1.msra.mxu0 %v14
  %258 = vmatprep.subr.mxu0 0.0
  %259 = vmatpush2.msra.mxu0 0.0
  %260 = vmatprep.subr.mxu0 0.0
  %261 = vmatpush2.msra.mxu0 0.0
  %262 = vmatprep.subr.mxu0 0.0
  %263 = vmatpush2.msra.mxu0 0.0
  %264 = vmatprep.subr.mxu0 0.0
  %265 = vmatpush2.msra.mxu0 0.0
  %266 = vmatprep.subr.mxu0 0.0
  %267 = vmatpush2.msra.mxu0 0.0
  %268 = vmatprep.subr.mxu0 0.0
  %269 = vmatpush2.msra.mxu0 0.0
  %270 = vmatprep.subr.mxu0 0.0
  %271 = vmatpush2.msra.mxu0 0.0
  %272 = vmatprep.subr.mxu0 0.0
  %273 = vmatpush2.msra.mxu0 0.0
  %274 = vmatprep.subr.mxu0 0.0
  %275 = vmatpush2.msra.mxu0 0.0
  %276 = vmatprep.subr.mxu0 0.0
  %277 = vmatpush2.msra.mxu0 0.0
  %278 = vmatprep.subr.mxu0 0.0
  %279 = vmatpush2.msra.mxu0 0.0
  %280 = vmatprep.subr.mxu0 0.0
  %281 = vmatpush2.msra.mxu0 0.0
  %282 = vmatprep.subr.mxu0 0.0
  %283 = vmatpush2.msra.mxu0 0.0
  %284 = vmatprep.subr.mxu0 0.0
  %285 = vmatpush2.msra.mxu0 0.0
  %286 = vmatprep.subr.mxu0 0.0
  %287 = vmatpush2.msra.mxu0 0.0
  %288 = vmatprep.subr.mxu0 0.0
  %289 = vmatpush2.msra.mxu0 0.0
  %290 = vmatprep.mubr.f32.mxu0 0.0
  %291 = vmatmul.mubr.f32.gmra.mxu0 %v30
  %v292 = vpop.f32.mrf.mxu0
  %v293 = vadd.f32 0.0, %v292
  %v294 = vpop.f32.mrf.mxu0
  %295 = vmatprep.mubr.f32.mxu0 0.0
  %296 = vmatmul.mubr.f32.gmra.mxu0 %v31
  %v297 = vpop.f32.mrf.mxu0
  %v298 = vadd.f32 0.0, %v297
  %v299 = vpop.f32.mrf.mxu0
  %300 = vmatprep.mubr.f32.mxu0 0.0
  %301 = vmatmul.mubr.f32.gmra.mxu0 %v32
  %v302 = vpop.f32.mrf.mxu0
  %v303 = vadd.f32 0.0, %v302
  %v304 = vpop.f32.mrf.mxu0
  %305 = vmatprep.mubr.f32.mxu0 0.0
  %306 = vmatmul.mubr.f32.gmra.mxu0 %v33
  %v307 = vpop.f32.mrf.mxu0
  %v308 = vadd.f32 0.0, %v307
  %v309 = vpop.f32.mrf.mxu0
  %310 = vmatprep.mubr.f32.mxu0 0.0
  %311 = vmatmul.mubr.f32.gmra.mxu0 %v34
  %v312 = vpop.f32.mrf.mxu0
  %v313 = vadd.f32 0.0, %v312
  %v314 = vpop.f32.mrf.mxu0
  %315 = vmatprep.mubr.f32.mxu0 0.0
  %316 = vmatmul.mubr.f32.gmra.mxu0 %v35
  %v317 = vpop.f32.mrf.mxu0
  %v318 = vadd.f32 0.0, %v317
  %v319 = vpop.f32.mrf.mxu0
  %320 = vmatprep.mubr.f32.mxu0 0.0
  %321 = vmatmul.mubr.f32.gmra.mxu0 %v36
  %v322 = vpop.f32.mrf.mxu0
  %v323 = vadd.f32 0.0, %v322
  %v324 = vpop.f32.mrf.mxu0
  %325 = vmatprep.mubr.f32.mxu0 0.0
  %326 = vmatmul.mubr.f32.gmra.mxu0 %v37
  %v327 = vpop.f32.mrf.mxu0
  %v328 = vadd.f32 0.0, %v327
  %v329 = vpop.f32.mrf.mxu0
  %330 = vmatprep.mubr.f32.mxu0 0.0
  %331 = vmatmul.mubr.f32.gmra.mxu0 %v38
  %v332 = vpop.f32.mrf.mxu0
  %v333 = vadd.f32 0.0, %v332
  %v334 = vpop.f32.mrf.mxu0
  %335 = vmatprep.mubr.f32.mxu0 0.0
  %336 = vmatmul.mubr.f32.gmra.mxu0 %v39
  %v337 = vpop.f32.mrf.mxu0
  %v338 = vadd.f32 0.0, %v337
  %v339 = vpop.f32.mrf.mxu0
  %340 = vmatprep.mubr.f32.mxu0 0.0
  %341 = vmatmul.mubr.f32.gmra.mxu0 %v40
  %v342 = vpop.f32.mrf.mxu0
  %v343 = vadd.f32 0.0, %v342
  %v344 = vpop.f32.mrf.mxu0
  %345 = vmatprep.mubr.f32.mxu0 0.0
  %346 = vmatmul.mubr.f32.gmra.mxu0 %v41
  %v347 = vpop.f32.mrf.mxu0
  %v348 = vadd.f32 0.0, %v347
  %v349 = vpop.f32.mrf.mxu0
  %350 = vmatprep.mubr.f32.mxu0 0.0
  %351 = vmatmul.mubr.f32.gmra.mxu0 %v42
  %v352 = vpop.f32.mrf.mxu0
  %v353 = vadd.f32 0.0, %v352
  %v354 = vpop.f32.mrf.mxu0
  %355 = vmatprep.mubr.f32.mxu0 0.0
  %356 = vmatmul.mubr.f32.gmra.mxu0 %v43
  %v357 = vpop.f32.mrf.mxu0
  %v358 = vadd.f32 0.0, %v357
  %v359 = vpop.f32.mrf.mxu0
  %360 = vmatprep.mubr.f32.mxu0 0.0
  %361 = vmatmul.mubr.f32.gmra.mxu0 %v44
  %v362 = vpop.f32.mrf.mxu0
  %v363 = vadd.f32 0.0, %v362
  %v364 = vpop.f32.mrf.mxu0
  %365 = vmatprep.mubr.f32.mxu0 0.0
  %366 = vmatmul.mubr.f32.gmra.mxu0 %v45
  %v367 = vpop.f32.mrf.mxu0
  %v368 = vadd.f32 0.0, %v367
  %v369 = vpop.f32.mrf.mxu0
  %370 = vmatprep.mubr.f32.mxu0 0.0
  %371 = vmatmul.mubr.f32.gmra.mxu0 %v46
  %v372 = vpop.f32.mrf.mxu0
  %v373 = vadd.f32 0.0, %v372
  %v374 = vpop.f32.mrf.mxu0
  %375 = vmatprep.mubr.f32.mxu0 0.0
  %376 = vmatmul.mubr.f32.gmra.mxu0 %v47
  %v377 = vpop.f32.mrf.mxu0
  %v378 = vadd.f32 0.0, %v377
  %v379 = vpop.f32.mrf.mxu0
  %380 = vmatprep.mubr.f32.mxu0 0.0
  %381 = vmatmul.mubr.f32.gmra.mxu0 %v48
  %v382 = vpop.f32.mrf.mxu0
  %v383 = vadd.f32 0.0, %v382
  %v384 = vpop.f32.mrf.mxu0
  %385 = vmatprep.mubr.f32.mxu0 0.0
  %386 = vmatmul.mubr.f32.gmra.mxu0 %v49
  %v387 = vpop.f32.mrf.mxu0
  %v388 = vadd.f32 0.0, %v387
  %v389 = vpop.f32.mrf.mxu0
  %390 = vmatprep.mubr.f32.mxu0 0.0
  %391 = vmatmul.mubr.f32.gmra.mxu0 %v50
  %v392 = vpop.f32.mrf.mxu0
  %v393 = vadd.f32 0.0, %v392
  %v394 = vpop.f32.mrf.mxu0
  %395 = vmatprep.mubr.f32.mxu0 0.0
  %396 = vmatmul.mubr.f32.gmra.mxu0 %v51
  %v397 = vpop.f32.mrf.mxu0
  %v398 = vadd.f32 0.0, %v397
  %v399 = vpop.f32.mrf.mxu0
  %400 = vmatprep.mubr.f32.mxu0 0.0
  %401 = vmatmul.mubr.f32.gmra.mxu0 %v52
  %v402 = vpop.f32.mrf.mxu0
  %v403 = vadd.f32 0.0, %v402
  %v404 = vpop.f32.mrf.mxu0
  %405 = vmatprep.mubr.f32.mxu0 0.0
  %406 = vmatmul.mubr.f32.gmra.mxu0 %v53
  %v407 = vpop.f32.mrf.mxu0
  %v408 = vadd.f32 0.0, %v407
  %v409 = vpop.f32.mrf.mxu0
  %410 = vmatprep.mubr.f32.mxu0 0.0
  %411 = vmatmul.mubr.f32.gmra.mxu0 %v54
  %v412 = vpop.f32.mrf.mxu0
  %v413 = vadd.f32 0.0, %v412
  %v414 = vpop.f32.mrf.mxu0
  %415 = vmatprep.mubr.f32.mxu0 0.0
  %416 = vmatmul.mubr.f32.gmra.mxu0 %v55
  %v417 = vpop.f32.mrf.mxu0
  %v418 = vadd.f32 0.0, %v417
  %v419 = vpop.f32.mrf.mxu0
  %420 = vmatprep.mubr.f32.mxu0 0.0
  %421 = vmatmul.mubr.f32.gmra.mxu0 %v56
  %v422 = vpop.f32.mrf.mxu0
  %v423 = vadd.f32 0.0, %v422
  %v424 = vpop.f32.mrf.mxu0
  %425 = vmatprep.mubr.f32.mxu0 0.0
  %426 = vmatmul.mubr.f32.gmra.mxu0 %v57
  %v427 = vpop.f32.mrf.mxu0
  %v428 = vadd.f32 0.0, %v427
  %v429 = vpop.f32.mrf.mxu0
  %430 = vmatprep.mubr.f32.mxu0 0.0
  %431 = vmatmul.mubr.f32.gmra.mxu0 %v58
  %v432 = vpop.f32.mrf.mxu0
  %v433 = vadd.f32 0.0, %v432
  %v434 = vpop.f32.mrf.mxu0
  %435 = vmatprep.mubr.f32.mxu0 0.0
  %436 = vmatmul.mubr.f32.gmra.mxu0 %v59
  %v437 = vpop.f32.mrf.mxu0
  %v438 = vadd.f32 0.0, %v437
  %v439 = vpop.f32.mrf.mxu0
  %440 = vmatprep.mubr.f32.mxu0 0.0
  %441 = vmatmul.mubr.f32.gmra.mxu0 %v60
  %v442 = vpop.f32.mrf.mxu0
  %v443 = vadd.f32 0.0, %v442
  %v444 = vpop.f32.mrf.mxu0
  %445 = vmatprep.mubr.f32.mxu0 0.0
  %446 = vmatmul.mubr.f32.gmra.mxu0 %v61
  %v447 = vpop.f32.mrf.mxu0
  %v448 = vadd.f32 0.0, %v447
  %v449 = vpop.f32.mrf.mxu0
  %450 = vmatprep.mubr.f32.mxu0 0.0
  %451 = vmatmul.mubr.f32.gmra.mxu0 %v62
  %v452 = vpop.f32.mrf.mxu0
  %v453 = vadd.f32 0.0, %v452
  %v454 = vpop.f32.mrf.mxu0
  %455 = vmatprep.mubr.f32.mxu0 0.0
  %456 = vmatmul.mubr.f32.gmra.mxu0 %v63
  %v457 = vpop.f32.mrf.mxu0
  %v458 = vadd.f32 0.0, %v457
  %v459 = vpop.f32.mrf.mxu0
  %460 = vmatprep.mubr.f32.mxu0 0.0
  %461 = vmatmul.mubr.f32.gmra.mxu0 %v64
  %v462 = vpop.f32.mrf.mxu0
  %v463 = vadd.f32 0.0, %v462
  %v464 = vpop.f32.mrf.mxu0
  %465 = vmatprep.mubr.f32.mxu0 0.0
  %466 = vmatmul.mubr.f32.gmra.mxu0 %v65
  %v467 = vpop.f32.mrf.mxu0
  %v468 = vadd.f32 0.0, %v467
  %v469 = vpop.f32.mrf.mxu0
  %470 = vmatprep.mubr.f32.mxu0 0.0
  %471 = vmatmul.mubr.f32.gmra.mxu0 %v66
  %v472 = vpop.f32.mrf.mxu0
  %v473 = vadd.f32 0.0, %v472
  %v474 = vpop.f32.mrf.mxu0
  %475 = vmatprep.mubr.f32.mxu0 0.0
  %476 = vmatmul.mubr.f32.gmra.mxu0 %v67
  %v477 = vpop.f32.mrf.mxu0
  %v478 = vadd.f32 0.0, %v477
  %v479 = vpop.f32.mrf.mxu0
  %480 = vmatprep.mubr.f32.mxu0 0.0
  %481 = vmatmul.mubr.f32.gmra.mxu0 %v68
  %v482 = vpop.f32.mrf.mxu0
  %v483 = vadd.f32 0.0, %v482
  %v484 = vpop.f32.mrf.mxu0
  %485 = vmatprep.mubr.f32.mxu0 0.0
  %486 = vmatmul.mubr.f32.gmra.mxu0 %v69
  %v487 = vpop.f32.mrf.mxu0
  %v488 = vadd.f32 0.0, %v487
  %v489 = vpop.f32.mrf.mxu0
  %490 = vmatprep.mubr.f32.mxu0 0.0
  %491 = vmatmul.mubr.f32.gmra.mxu0 %v70
  %v492 = vpop.f32.mrf.mxu0
  %v493 = vadd.f32 0.0, %v492
  %v494 = vpop.f32.mrf.mxu0
  %495 = vmatprep.mubr.f32.mxu0 0.0
  %496 = vmatmul.mubr.f32.gmra.mxu0 %v71
  %v497 = vpop.f32.mrf.mxu0
  %v498 = vadd.f32 0.0, %v497
  %v499 = vpop.f32.mrf.mxu0
  %500 = vmatprep.mubr.f32.mxu0 0.0
  %501 = vmatmul.mubr.f32.gmra.mxu0 %v72
  %v502 = vpop.f32.mrf.mxu0
  %v503 = vadd.f32 0.0, %v502
  %v504 = vpop.f32.mrf.mxu0
  %505 = vmatprep.mubr.f32.mxu0 0.0
  %506 = vmatmul.mubr.f32.gmra.mxu0 %v73
  %v507 = vpop.f32.mrf.mxu0
  %v508 = vadd.f32 0.0, %v507
  %v509 = vpop.f32.mrf.mxu0
  %510 = vmatprep.mubr.f32.mxu0 0.0
  %511 = vmatmul.mubr.f32.gmra.mxu0 %v74
  %v512 = vpop.f32.mrf.mxu0
  %v513 = vadd.f32 0.0, %v512
  %v514 = vpop.f32.mrf.mxu0
  %515 = vmatprep.mubr.f32.mxu0 0.0
  %516 = vmatmul.mubr.f32.gmra.mxu0 %v75
  %v517 = vpop.f32.mrf.mxu0
  %v518 = vadd.f32 0.0, %v517
  %v519 = vpop.f32.mrf.mxu0
  %520 = vmatprep.mubr.f32.mxu0 0.0
  %521 = vmatmul.mubr.f32.gmra.mxu0 %v76
  %v522 = vpop.f32.mrf.mxu0
  %v523 = vadd.f32 0.0, %v522
  %v524 = vpop.f32.mrf.mxu0
  %525 = vmatprep.mubr.f32.mxu0 0.0
  %526 = vmatmul.mubr.f32.gmra.mxu0 %v77
  %v527 = vpop.f32.mrf.mxu0
  %v528 = vadd.f32 0.0, %v527
  %v529 = vpop.f32.mrf.mxu0
  %530 = vmatprep.mubr.f32.mxu0 0.0
  %531 = vmatmul.mubr.f32.gmra.mxu0 %v78
  %v532 = vpop.f32.mrf.mxu0
  %v533 = vadd.f32 0.0, %v532
  %v534 = vpop.f32.mrf.mxu0
  %535 = vmatprep.mubr.f32.mxu0 0.0
  %536 = vmatmul.mubr.f32.gmra.mxu0 %v79
  %v537 = vpop.f32.mrf.mxu0
  %v538 = vadd.f32 0.0, %v537
  %v539 = vpop.f32.mrf.mxu0
  %540 = vmatprep.mubr.f32.mxu0 0.0
  %541 = vmatmul.mubr.f32.gmra.mxu0 %v80
  %v542 = vpop.f32.mrf.mxu0
  %v543 = vadd.f32 0.0, %v542
  %v544 = vpop.f32.mrf.mxu0
  %545 = vmatprep.mubr.f32.mxu0 0.0
  %546 = vmatmul.mubr.f32.gmra.mxu0 %v81
  %v547 = vpop.f32.mrf.mxu0
  %v548 = vadd.f32 0.0, %v547
  %v549 = vpop.f32.mrf.mxu0
  %550 = vmatprep.mubr.f32.mxu0 0.0
  %551 = vmatmul.mubr.f32.gmra.mxu0 %v82
  %v552 = vpop.f32.mrf.mxu0
  %v553 = vadd.f32 0.0, %v552
  %v554 = vpop.f32.mrf.mxu0
  %555 = vmatprep.mubr.f32.mxu0 0.0
  %556 = vmatmul.mubr.f32.gmra.mxu0 %v83
  %v557 = vpop.f32.mrf.mxu0
  %v558 = vadd.f32 0.0, %v557
  %v559 = vpop.f32.mrf.mxu0
  %560 = vmatprep.mubr.f32.mxu0 0.0
  %561 = vmatmul.mubr.f32.gmra.mxu0 %v84
  %v562 = vpop.f32.mrf.mxu0
  %v563 = vadd.f32 0.0, %v562
  %v564 = vpop.f32.mrf.mxu0
  %565 = vmatprep.mubr.f32.mxu0 0.0
  %566 = vmatmul.mubr.f32.gmra.mxu0 %v85
  %v567 = vpop.f32.mrf.mxu0
  %v568 = vadd.f32 0.0, %v567
  %v569 = vpop.f32.mrf.mxu0
  %570 = vmatprep.mubr.f32.mxu0 0.0
  %571 = vmatmul.mubr.f32.gmra.mxu0 %v86
  %v572 = vpop.f32.mrf.mxu0
  %v573 = vadd.f32 0.0, %v572
  %v574 = vpop.f32.mrf.mxu0
  %575 = vmatprep.mubr.f32.mxu0 0.0
  %576 = vmatmul.mubr.f32.gmra.mxu0 %v87
  %v577 = vpop.f32.mrf.mxu0
  %v578 = vadd.f32 0.0, %v577
  %v579 = vpop.f32.mrf.mxu0
  %580 = vmatprep.mubr.f32.mxu0 0.0
  %581 = vmatmul.mubr.f32.gmra.mxu0 %v88
  %v582 = vpop.f32.mrf.mxu0
  %v583 = vadd.f32 0.0, %v582
  %v584 = vpop.f32.mrf.mxu0
  %585 = vmatprep.mubr.f32.mxu0 0.0
  %586 = vmatmul.mubr.f32.gmra.mxu0 %v89
  %v587 = vpop.f32.mrf.mxu0
  %v588 = vadd.f32 0.0, %v587
  %v589 = vpop.f32.mrf.mxu0
  %590 = vmatprep.mubr.f32.mxu0 0.0
  %591 = vmatmul.mubr.f32.gmra.mxu0 %v90
  %v592 = vpop.f32.mrf.mxu0
  %v593 = vadd.f32 0.0, %v592
  %v594 = vpop.f32.mrf.mxu0
  %595 = vmatprep.mubr.f32.mxu0 0.0
  %596 = vmatmul.mubr.f32.gmra.mxu0 %v91
  %v597 = vpop.f32.mrf.mxu0
  %v598 = vadd.f32 0.0, %v597
  %v599 = vpop.f32.mrf.mxu0
  %600 = vmatprep.mubr.f32.mxu0 0.0
  %601 = vmatmul.mubr.f32.gmra.mxu0 %v92
  %v602 = vpop.f32.mrf.mxu0
  %v603 = vadd.f32 0.0, %v602
  %v604 = vpop.f32.mrf.mxu0
  %605 = vmatprep.mubr.f32.mxu0 0.0
  %606 = vmatmul.mubr.f32.gmra.mxu0 %v93
  %v607 = vpop.f32.mrf.mxu0
  %v608 = vadd.f32 0.0, %v607
  %v609 = vpop.f32.mrf.mxu0
  %610 = vmatprep.mubr.f32.mxu0 0.0
  %611 = vmatmul.mubr.f32.gmra.mxu0 %v94
  %v612 = vpop.f32.mrf.mxu0
  %v613 = vadd.f32 0.0, %v612
  %v614 = vpop.f32.mrf.mxu0
  %615 = vmatprep.mubr.f32.mxu0 0.0
  %616 = vmatmul.mubr.f32.gmra.mxu0 %v95
  %v617 = vpop.f32.mrf.mxu0
  %v618 = vadd.f32 0.0, %v617
  %v619 = vpop.f32.mrf.mxu0
  %620 = vmatprep.mubr.f32.mxu0 0.0
  %621 = vmatmul.mubr.f32.gmra.mxu0 %v96
  %v622 = vpop.f32.mrf.mxu0
  %v623 = vadd.f32 0.0, %v622
  %v624 = vpop.f32.mrf.mxu0
  %625 = vmatprep.mubr.f32.mxu0 0.0
  %626 = vmatmul.mubr.f32.gmra.mxu0 %v97
  %v627 = vpop.f32.mrf.mxu0
  %v628 = vadd.f32 0.0, %v627
  %v629 = vpop.f32.mrf.mxu0
  %630 = vmatprep.mubr.f32.mxu0 0.0
  %631 = vmatmul.mubr.f32.gmra.mxu0 %v98
  %v632 = vpop.f32.mrf.mxu0
  %v633 = vadd.f32 0.0, %v632
  %v634 = vpop.f32.mrf.mxu0
  %635 = vmatprep.mubr.f32.mxu0 0.0
  %636 = vmatmul.mubr.f32.gmra.mxu0 %v99
  %v637 = vpop.f32.mrf.mxu0
  %v638 = vadd.f32 0.0, %v637
  %v639 = vpop.f32.mrf.mxu0
  %640 = vmatprep.mubr.f32.mxu0 0.0
  %641 = vmatmul.mubr.f32.gmra.mxu0 %v100
  %v642 = vpop.f32.mrf.mxu0
  %v643 = vadd.f32 0.0, %v642
  %v644 = vpop.f32.mrf.mxu0
  %645 = vmatprep.mubr.f32.mxu0 0.0
  %646 = vmatmul.mubr.f32.gmra.mxu0 %v101
  %v647 = vpop.f32.mrf.mxu0
  %v648 = vadd.f32 0.0, %v647
  %v649 = vpop.f32.mrf.mxu0
  %650 = vmatprep.mubr.f32.mxu0 0.0
  %651 = vmatmul.mubr.f32.gmra.mxu0 %v102
  %v652 = vpop.f32.mrf.mxu0
  %v653 = vadd.f32 0.0, %v652
  %v654 = vpop.f32.mrf.mxu0
  %655 = vmatprep.mubr.f32.mxu0 0.0
  %656 = vmatmul.mubr.f32.gmra.mxu0 %v103
  %v657 = vpop.f32.mrf.mxu0
  %v658 = vadd.f32 0.0, %v657
  %v659 = vpop.f32.mrf.mxu0
  %660 = vmatprep.mubr.f32.mxu0 0.0
  %661 = vmatmul.mubr.f32.gmra.mxu0 %v104
  %v662 = vpop.f32.mrf.mxu0
  %v663 = vadd.f32 0.0, %v662
  %v664 = vpop.f32.mrf.mxu0
  %665 = vmatprep.mubr.f32.mxu0 0.0
  %666 = vmatmul.mubr.f32.gmra.mxu0 %v105
  %v667 = vpop.f32.mrf.mxu0
  %v668 = vadd.f32 0.0, %v667
  %v669 = vpop.f32.mrf.mxu0
  %670 = vmatprep.mubr.f32.mxu0 0.0
  %671 = vmatmul.mubr.f32.gmra.mxu0 %v106
  %v672 = vpop.f32.mrf.mxu0
  %v673 = vadd.f32 0.0, %v672
  %v674 = vpop.f32.mrf.mxu0
  %675 = vmatprep.mubr.f32.mxu0 0.0
  %676 = vmatmul.mubr.f32.gmra.mxu0 %v107
  %v677 = vpop.f32.mrf.mxu0
  %v678 = vadd.f32 0.0, %v677
  %v679 = vpop.f32.mrf.mxu0
  %680 = vmatprep.mubr.f32.mxu0 0.0
  %681 = vmatmul.mubr.f32.gmra.mxu0 %v108
  %v682 = vpop.f32.mrf.mxu0
  %v683 = vadd.f32 0.0, %v682
  %v684 = vpop.f32.mrf.mxu0
  %685 = vmatprep.mubr.f32.mxu0 0.0
  %686 = vmatmul.mubr.f32.gmra.mxu0 %v109
  %v687 = vpop.f32.mrf.mxu0
  %v688 = vadd.f32 0.0, %v687
  %v689 = vpop.f32.mrf.mxu0
  %690 = vmatprep.mubr.f32.mxu0 0.0
  %691 = vmatmul.mubr.f32.gmra.mxu0 %v110
  %v692 = vpop.f32.mrf.mxu0
  %v693 = vadd.f32 0.0, %v692
  %v694 = vpop.f32.mrf.mxu0
  %695 = vmatprep.mubr.f32.mxu0 0.0
  %696 = vmatmul.mubr.f32.gmra.mxu0 %v111
  %v697 = vpop.f32.mrf.mxu0
  %v698 = vadd.f32 0.0, %v697
  %v699 = vpop.f32.mrf.mxu0
  %700 = vmatprep.mubr.f32.mxu0 0.0
  %701 = vmatmul.mubr.f32.gmra.mxu0 %v112
  %v702 = vpop.f32.mrf.mxu0
  %v703 = vadd.f32 0.0, %v702
  %v704 = vpop.f32.mrf.mxu0
  %705 = vmatprep.mubr.f32.mxu0 0.0
  %706 = vmatmul.mubr.f32.gmra.mxu0 %v113
  %v707 = vpop.f32.mrf.mxu0
  %v708 = vadd.f32 0.0, %v707
  %v709 = vpop.f32.mrf.mxu0
  %710 = vmatprep.mubr.f32.mxu0 0.0
  %711 = vmatmul.mubr.f32.gmra.mxu0 %v114
  %v712 = vpop.f32.mrf.mxu0
  %v713 = vadd.f32 0.0, %v712
  %v714 = vpop.f32.mrf.mxu0
  %715 = vmatprep.mubr.f32.mxu0 0.0
  %716 = vmatmul.mubr.f32.gmra.mxu0 %v115
  %v717 = vpop.f32.mrf.mxu0
  %v718 = vadd.f32 0.0, %v717
  %v719 = vpop.f32.mrf.mxu0
  %720 = vmatprep.mubr.f32.mxu0 0.0
  %721 = vmatmul.mubr.f32.gmra.mxu0 %v116
  %v722 = vpop.f32.mrf.mxu0
  %v723 = vadd.f32 0.0, %v722
  %v724 = vpop.f32.mrf.mxu0
  %725 = vmatprep.mubr.f32.mxu0 0.0
  %726 = vmatmul.mubr.f32.gmra.mxu0 %v117
  %v727 = vpop.f32.mrf.mxu0
  %v728 = vadd.f32 0.0, %v727
  %v729 = vpop.f32.mrf.mxu0
  %730 = vmatprep.mubr.f32.mxu0 0.0
  %731 = vmatmul.mubr.f32.gmra.mxu0 %v118
  %v732 = vpop.f32.mrf.mxu0
  %v733 = vadd.f32 0.0, %v732
  %v734 = vpop.f32.mrf.mxu0
  %735 = vmatprep.mubr.f32.mxu0 0.0
  %736 = vmatmul.mubr.f32.gmra.mxu0 %v119
  %v737 = vpop.f32.mrf.mxu0
  %v738 = vadd.f32 0.0, %v737
  %v739 = vpop.f32.mrf.mxu0
  %740 = vmatprep.mubr.f32.mxu0 0.0
  %741 = vmatmul.mubr.f32.gmra.mxu0 %v120
  %v742 = vpop.f32.mrf.mxu0
  %v743 = vadd.f32 0.0, %v742
  %v744 = vpop.f32.mrf.mxu0
  %745 = vmatprep.mubr.f32.mxu0 0.0
  %746 = vmatmul.mubr.f32.gmra.mxu0 %v121
  %v747 = vpop.f32.mrf.mxu0
  %v748 = vadd.f32 0.0, %v747
  %v749 = vpop.f32.mrf.mxu0
  %750 = vmatprep.mubr.f32.mxu0 0.0
  %751 = vmatmul.mubr.f32.gmra.mxu0 %v122
  %v752 = vpop.f32.mrf.mxu0
  %v753 = vadd.f32 0.0, %v752
  %v754 = vpop.f32.mrf.mxu0
  %755 = vmatprep.mubr.f32.mxu0 0.0
  %756 = vmatmul.mubr.f32.gmra.mxu0 %v123
  %v757 = vpop.f32.mrf.mxu0
  %v758 = vadd.f32 0.0, %v757
  %v759 = vpop.f32.mrf.mxu0
  %760 = vmatprep.mubr.f32.mxu0 0.0
  %761 = vmatmul.mubr.f32.gmra.mxu0 %v124
  %v762 = vpop.f32.mrf.mxu0
  %v763 = vadd.f32 0.0, %v762
  %v764 = vpop.f32.mrf.mxu0
  %765 = vmatprep.mubr.f32.mxu0 0.0
  %766 = vmatmul.mubr.f32.gmra.mxu0 %v125
  %v767 = vpop.f32.mrf.mxu0
  %v768 = vadd.f32 0.0, %v767
  %v769 = vpop.f32.mrf.mxu0
  %770 = vmatprep.mubr.f32.mxu0 0.0
  %771 = vmatmul.mubr.f32.gmra.mxu0 %v126
  %v772 = vpop.f32.mrf.mxu0
  %v773 = vadd.f32 0.0, %v772
  %v774 = vpop.f32.mrf.mxu0
  %775 = vmatprep.mubr.f32.mxu0 0.0
  %776 = vmatmul.mubr.f32.gmra.mxu0 %v127
  %v777 = vpop.f32.mrf.mxu0
  %v778 = vadd.f32 0.0, %v777
  %v779 = vpop.f32.mrf.mxu0
  %780 = vmatprep.mubr.f32.mxu0 0.0
  %781 = vmatmul.mubr.f32.gmra.mxu0 %v128
  %v782 = vpop.f32.mrf.mxu0
  %v783 = vadd.f32 0.0, %v782
  %v784 = vpop.f32.mrf.mxu0
  %785 = vmatprep.mubr.f32.mxu0 0.0
  %786 = vmatmul.mubr.f32.gmra.mxu0 %v129
  %v787 = vpop.f32.mrf.mxu0
  %v788 = vadd.f32 0.0, %v787
  %v789 = vpop.f32.mrf.mxu0
  %790 = vmatprep.mubr.f32.mxu0 0.0
  %791 = vmatmul.mubr.f32.gmra.mxu0 %v130
  %v792 = vpop.f32.mrf.mxu0
  %v793 = vadd.f32 0.0, %v792
  %v794 = vpop.f32.mrf.mxu0
  %795 = vmatprep.mubr.f32.mxu0 0.0
  %796 = vmatmul.mubr.f32.gmra.mxu0 %v131
  %v797 = vpop.f32.mrf.mxu0
  %v798 = vadd.f32 0.0, %v797
  %v799 = vpop.f32.mrf.mxu0
  %800 = vmatprep.mubr.f32.mxu0 0.0
  %801 = vmatmul.mubr.f32.gmra.mxu0 %v132
  %v802 = vpop.f32.mrf.mxu0
  %v803 = vadd.f32 0.0, %v802
  %v804 = vpop.f32.mrf.mxu0
  %805 = vmatprep.mubr.f32.mxu0 0.0
  %806 = vmatmul.mubr.f32.gmra.mxu0 %v133
  %v807 = vpop.f32.mrf.mxu0
  %v808 = vadd.f32 0.0, %v807
  %v809 = vpop.f32.mrf.mxu0
  %810 = vmatprep.mubr.f32.mxu0 0.0
  %811 = vmatmul.mubr.f32.gmra.mxu0 %v134
  %v812 = vpop.f32.mrf.mxu0
  %v813 = vadd.f32 0.0, %v812
  %v814 = vpop.f32.mrf.mxu0
  %815 = vmatprep.mubr.f32.mxu0 0.0
  %816 = vmatmul.mubr.f32.gmra.mxu0 %v135
  %v817 = vpop.f32.mrf.mxu0
  %v818 = vadd.f32 0.0, %v817
  %v819 = vpop.f32.mrf.mxu0
  %820 = vmatprep.mubr.f32.mxu0 0.0
  %821 = vmatmul.mubr.f32.gmra.mxu0 %v136
  %v822 = vpop.f32.mrf.mxu0
  %v823 = vadd.f32 0.0, %v822
  %v824 = vpop.f32.mrf.mxu0
  %825 = vmatprep.mubr.f32.mxu0 0.0
  %826 = vmatmul.mubr.f32.gmra.mxu0 %v137
  %v827 = vpop.f32.mrf.mxu0
  %v828 = vadd.f32 0.0, %v827
  %v829 = vpop.f32.mrf.mxu0
  %830 = vmatprep.mubr.f32.mxu0 0.0
  %831 = vmatmul.mubr.f32.gmra.mxu0 %v138
  %v832 = vpop.f32.mrf.mxu0
  %v833 = vadd.f32 0.0, %v832
  %v834 = vpop.f32.mrf.mxu0
  %835 = vmatprep.mubr.f32.mxu0 0.0
  %836 = vmatmul.mubr.f32.gmra.mxu0 %v139
  %v837 = vpop.f32.mrf.mxu0
  %v838 = vadd.f32 0.0, %v837
  %v839 = vpop.f32.mrf.mxu0
  %840 = vmatprep.mubr.f32.mxu0 0.0
  %841 = vmatmul.mubr.f32.gmra.mxu0 %v140
  %v842 = vpop.f32.mrf.mxu0
  %v843 = vadd.f32 0.0, %v842
  %v844 = vpop.f32.mrf.mxu0
  %845 = vmatprep.mubr.f32.mxu0 0.0
  %846 = vmatmul.mubr.f32.gmra.mxu0 %v141
  %v847 = vpop.f32.mrf.mxu0
  %v848 = vadd.f32 0.0, %v847
  %v849 = vpop.f32.mrf.mxu0
  %850 = vmatprep.mubr.f32.mxu0 0.0
  %851 = vmatmul.mubr.f32.gmra.mxu0 %v142
  %v852 = vpop.f32.mrf.mxu0
  %v853 = vadd.f32 0.0, %v852
  %v854 = vpop.f32.mrf.mxu0
  %855 = vmatprep.mubr.f32.mxu0 0.0
  %856 = vmatmul.mubr.f32.gmra.mxu0 %v143
  %v857 = vpop.f32.mrf.mxu0
  %v858 = vadd.f32 0.0, %v857
  %v859 = vpop.f32.mrf.mxu0
  %860 = vmatprep.mubr.f32.mxu0 0.0
  %861 = vmatmul.mubr.f32.gmra.mxu0 %v144
  %v862 = vpop.f32.mrf.mxu0
  %v863 = vadd.f32 0.0, %v862
  %v864 = vpop.f32.mrf.mxu0
  %865 = vmatprep.mubr.f32.mxu0 0.0
  %866 = vmatmul.mubr.f32.gmra.mxu0 %v145
  %v867 = vpop.f32.mrf.mxu0
  %v868 = vadd.f32 0.0, %v867
  %v869 = vpop.f32.mrf.mxu0
  %870 = vmatprep.mubr.f32.mxu0 0.0
  %871 = vmatmul.mubr.f32.gmra.mxu0 %v146
  %v872 = vpop.f32.mrf.mxu0
  %v873 = vadd.f32 0.0, %v872
  %v874 = vpop.f32.mrf.mxu0
  %875 = vmatprep.mubr.f32.mxu0 0.0
  %876 = vmatmul.mubr.f32.gmra.mxu0 %v147
  %v877 = vpop.f32.mrf.mxu0
  %v878 = vadd.f32 0.0, %v877
  %v879 = vpop.f32.mrf.mxu0
  %880 = vmatprep.mubr.f32.mxu0 0.0
  %881 = vmatmul.mubr.f32.gmra.mxu0 %v148
  %v882 = vpop.f32.mrf.mxu0
  %v883 = vadd.f32 0.0, %v882
  %v884 = vpop.f32.mrf.mxu0
  %885 = vmatprep.mubr.f32.mxu0 0.0
  %886 = vmatmul.mubr.f32.gmra.mxu0 %v149
  %v887 = vpop.f32.mrf.mxu0
  %v888 = vadd.f32 0.0, %v887
  %v889 = vpop.f32.mrf.mxu0
  %890 = vmatprep.mubr.f32.mxu0 0.0
  %891 = vmatmul.mubr.f32.gmra.mxu0 %v150
  %v892 = vpop.f32.mrf.mxu0
  %v893 = vadd.f32 0.0, %v892
  %v894 = vpop.f32.mrf.mxu0
  %895 = vmatprep.mubr.f32.mxu0 0.0
  %896 = vmatmul.mubr.f32.gmra.mxu0 %v151
  %v897 = vpop.f32.mrf.mxu0
  %v898 = vadd.f32 0.0, %v897
  %v899 = vpop.f32.mrf.mxu0
  %900 = vmatprep.mubr.f32.mxu0 0.0
  %901 = vmatmul.mubr.f32.gmra.mxu0 %v152
  %v902 = vpop.f32.mrf.mxu0
  %v903 = vadd.f32 0.0, %v902
  %v904 = vpop.f32.mrf.mxu0
  %905 = vmatprep.mubr.f32.mxu0 0.0
  %906 = vmatmul.mubr.f32.gmra.mxu0 %v153
  %v907 = vpop.f32.mrf.mxu0
  %v908 = vadd.f32 0.0, %v907
  %v909 = vpop.f32.mrf.mxu0
  %910 = vmatprep.mubr.f32.mxu0 0.0
  %911 = vmatmul.mubr.f32.gmra.mxu0 %v154
  %v912 = vpop.f32.mrf.mxu0
  %v913 = vadd.f32 0.0, %v912
  %v914 = vpop.f32.mrf.mxu0
  %915 = vmatprep.mubr.f32.mxu0 0.0
  %916 = vmatmul.mubr.f32.gmra.mxu0 %v155
  %v917 = vpop.f32.mrf.mxu0
  %v918 = vadd.f32 0.0, %v917
  %v919 = vpop.f32.mrf.mxu0
  %920 = vmatprep.mubr.f32.mxu0 0.0
  %921 = vmatmul.mubr.f32.gmra.mxu0 %v156
  %v922 = vpop.f32.mrf.mxu0
  %v923 = vadd.f32 0.0, %v922
  %v924 = vpop.f32.mrf.mxu0
  %925 = vmatprep.mubr.f32.mxu0 0.0
  %926 = vmatmul.mubr.f32.gmra.mxu0 %v157
  %v927 = vpop.f32.mrf.mxu0
  %v928 = vadd.f32 0.0, %v927
  %v929 = vpop.f32.mrf.mxu0
  %930 = vmatprep.mubr.f32.mxu0 0.0
  %931 = vmatmul.mubr.f32.gmra.mxu0 %v158
  %v932 = vpop.f32.mrf.mxu0
  %v933 = vadd.f32 0.0, %v932
  %v934 = vpop.f32.mrf.mxu0
  %935 = vmatprep.mubr.f32.mxu0 0.0
  %936 = vmatmul.mubr.f32.gmra.mxu0 %v159
  %v937 = vpop.f32.mrf.mxu0
  %v938 = vadd.f32 0.0, %v937
  %v939 = vpop.f32.mrf.mxu0
  %940 = vmatprep.mubr.f32.mxu0 0.0
  %941 = vmatmul.mubr.f32.gmra.mxu0 %v160
  %v942 = vpop.f32.mrf.mxu0
  %v943 = vadd.f32 0.0, %v942
  %v944 = vpop.f32.mrf.mxu0
  %945 = vmatprep.mubr.f32.mxu0 0.0
  %946 = vmatmul.mubr.f32.gmra.mxu0 %v161
  %v947 = vpop.f32.mrf.mxu0
  %v948 = vadd.f32 0.0, %v947
  %v949 = vpop.f32.mrf.mxu0
  %950 = vmatprep.mubr.f32.mxu0 0.0
  %951 = vmatmul.mubr.f32.gmra.mxu0 %v162
  %v952 = vpop.f32.mrf.mxu0
  %v953 = vadd.f32 0.0, %v952
  %v954 = vpop.f32.mrf.mxu0
  %955 = vmatprep.mubr.f32.mxu0 0.0
  %956 = vmatmul.mubr.f32.gmra.mxu0 %v163
  %v957 = vpop.f32.mrf.mxu0
  %v958 = vadd.f32 0.0, %v957
  %v959 = vpop.f32.mrf.mxu0
  %960 = vmatprep.mubr.f32.mxu0 0.0
  %961 = vmatmul.mubr.f32.gmra.mxu0 %v164
  %v962 = vpop.f32.mrf.mxu0
  %v963 = vadd.f32 0.0, %v962
  %v964 = vpop.f32.mrf.mxu0
  %965 = vmatprep.mubr.f32.mxu0 0.0
  %966 = vmatmul.mubr.f32.gmra.mxu0 %v165
  %v967 = vpop.f32.mrf.mxu0
  %v968 = vadd.f32 0.0, %v967
  %v969 = vpop.f32.mrf.mxu0
  %970 = vmatprep.mubr.f32.mxu0 0.0
  %971 = vmatmul.mubr.f32.gmra.mxu0 %v166
  %v972 = vpop.f32.mrf.mxu0
  %v973 = vadd.f32 0.0, %v972
  %v974 = vpop.f32.mrf.mxu0
  %975 = vmatprep.mubr.f32.mxu0 0.0
  %976 = vmatmul.mubr.f32.gmra.mxu0 %v167
  %v977 = vpop.f32.mrf.mxu0
  %v978 = vadd.f32 0.0, %v977
  %v979 = vpop.f32.mrf.mxu0
  %980 = vmatprep.mubr.f32.mxu0 0.0
  %981 = vmatmul.mubr.f32.gmra.mxu0 %v168
  %v982 = vpop.f32.mrf.mxu0
  %v983 = vadd.f32 0.0, %v982
  %v984 = vpop.f32.mrf.mxu0
  %985 = vmatprep.mubr.f32.mxu0 0.0
  %986 = vmatmul.mubr.f32.gmra.mxu0 %v169
  %v987 = vpop.f32.mrf.mxu0
  %v988 = vadd.f32 0.0, %v987
  %v989 = vpop.f32.mrf.mxu0
  %990 = vmatprep.mubr.f32.mxu0 0.0
  %991 = vmatmul.mubr.f32.gmra.mxu0 %v170
  %v992 = vpop.f32.mrf.mxu0
  %v993 = vadd.f32 0.0, %v992
  %v994 = vpop.f32.mrf.mxu0
  %995 = vmatprep.mubr.f32.mxu0 0.0
  %996 = vmatmul.mubr.f32.gmra.mxu0 %v171
  %v997 = vpop.f32.mrf.mxu0
  %v998 = vadd.f32 0.0, %v997
  %v999 = vpop.f32.mrf.mxu0
  %1000 = vmatprep.mubr.f32.mxu0 0.0
  %1001 = vmatmul.mubr.f32.gmra.mxu0 %v172
  %v1002 = vpop.f32.mrf.mxu0
  %v1003 = vadd.f32 0.0, %v1002
  %v1004 = vpop.f32.mrf.mxu0
  %1005 = vmatprep.mubr.f32.mxu0 0.0
  %1006 = vmatmul.mubr.f32.gmra.mxu0 %v173
  %v1007 = vpop.f32.mrf.mxu0
  %v1008 = vadd.f32 0.0, %v1007
  %v1009 = vpop.f32.mrf.mxu0
  %1010 = vmatprep.mubr.f32.mxu0 0.0
  %1011 = vmatmul.mubr.f32.gmra.mxu0 %v174
  %v1012 = vpop.f32.mrf.mxu0
  %v1013 = vadd.f32 0.0, %v1012
  %v1014 = vpop.f32.mrf.mxu0
  %1015 = vmatprep.mubr.f32.mxu0 0.0
  %1016 = vmatmul.mubr.f32.gmra.mxu0 %v175
  %v1017 = vpop.f32.mrf.mxu0
  %v1018 = vadd.f32 0.0, %v1017
  %v1019 = vpop.f32.mrf.mxu0
  %1020 = vmatprep.mubr.f32.mxu0 0.0
  %1021 = vmatmul.mubr.f32.gmra.mxu0 %v176
  %v1022 = vpop.f32.mrf.mxu0
  %v1023 = vadd.f32 0.0, %v1022
  %v1024 = vpop.f32.mrf.mxu0
  %1025 = vmatprep.mubr.f32.mxu0 0.0
  %1026 = vmatmul.mubr.f32.gmra.mxu0 %v177
  %v1027 = vpop.f32.mrf.mxu0
  %v1028 = vadd.f32 0.0, %v1027
  %v1029 = vpop.f32.mrf.mxu0
  %1030 = vmatprep.mubr.f32.mxu0 0.0
  %1031 = vmatmul.mubr.f32.gmra.mxu0 %v178
  %v1032 = vpop.f32.mrf.mxu0
  %v1033 = vadd.f32 0.0, %v1032
  %v1034 = vpop.f32.mrf.mxu0
  %1035 = vmatprep.mubr.f32.mxu0 0.0
  %1036 = vmatmul.mubr.f32.gmra.mxu0 %v179
  %v1037 = vpop.f32.mrf.mxu0
  %v1038 = vadd.f32 0.0, %v1037
  %v1039 = vpop.f32.mrf.mxu0
  %1040 = vmatprep.mubr.f32.mxu0 0.0
  %1041 = vmatmul.mubr.f32.gmra.mxu0 %v180
  %v1042 = vpop.f32.mrf.mxu0
  %v1043 = vadd.f32 0.0, %v1042
  %v1044 = vpop.f32.mrf.mxu0
  %1045 = vmatprep.mubr.f32.mxu0 0.0
  %1046 = vmatmul.mubr.f32.gmra.mxu0 %v181
  %v1047 = vpop.f32.mrf.mxu0
  %v1048 = vadd.f32 0.0, %v1047
  %v1049 = vpop.f32.mrf.mxu0
  %1050 = vmatprep.mubr.f32.mxu0 0.0
  %1051 = vmatmul.mubr.f32.gmra.mxu0 %v182
  %v1052 = vpop.f32.mrf.mxu0
  %v1053 = vadd.f32 0.0, %v1052
  %v1054 = vpop.f32.mrf.mxu0
  %1055 = vmatprep.mubr.f32.mxu0 0.0
  %1056 = vmatmul.mubr.f32.gmra.mxu0 %v183
  %v1057 = vpop.f32.mrf.mxu0
  %v1058 = vadd.f32 0.0, %v1057
  %v1059 = vpop.f32.mrf.mxu0
  %1060 = vmatprep.mubr.f32.mxu0 0.0
  %1061 = vmatmul.mubr.f32.gmra.mxu0 %v184
  %v1062 = vpop.f32.mrf.mxu0
  %v1063 = vadd.f32 0.0, %v1062
  %v1064 = vpop.f32.mrf.mxu0
  %1065 = vmatprep.mubr.f32.mxu0 0.0
  %1066 = vmatmul.mubr.f32.gmra.mxu0 %v185
  %v1067 = vpop.f32.mrf.mxu0
  %v1068 = vadd.f32 0.0, %v1067
  %v1069 = vpop.f32.mrf.mxu0
  %1070 = vmatprep.mubr.f32.mxu0 0.0
  %1071 = vmatmul.mubr.f32.gmra.mxu0 %v186
  %v1072 = vpop.f32.mrf.mxu0
  %v1073 = vadd.f32 0.0, %v1072
  %v1074 = vpop.f32.mrf.mxu0
  %1075 = vmatprep.mubr.f32.mxu0 0.0
  %1076 = vmatmul.mubr.f32.gmra.mxu0 %v187
  %v1077 = vpop.f32.mrf.mxu0
  %v1078 = vadd.f32 0.0, %v1077
  %v1079 = vpop.f32.mrf.mxu0
  %1080 = vmatprep.mubr.f32.mxu0 0.0
  %1081 = vmatmul.mubr.f32.gmra.mxu0 %v188
  %v1082 = vpop.f32.mrf.mxu0
  %v1083 = vadd.f32 0.0, %v1082
  %v1084 = vpop.f32.mrf.mxu0
  %1085 = vmatprep.mubr.f32.mxu0 0.0
  %1086 = vmatmul.mubr.f32.gmra.mxu0 %v189
  %v1087 = vpop.f32.mrf.mxu0
  %v1088 = vadd.f32 0.0, %v1087
  %v1089 = vpop.f32.mrf.mxu0
  %1090 = vmatprep.mubr.f32.mxu0 0.0
  %1091 = vmatmul.mubr.f32.gmra.mxu0 %v190
  %v1092 = vpop.f32.mrf.mxu0
  %v1093 = vadd.f32 0.0, %v1092
  %v1094 = vpop.f32.mrf.mxu0
  %1095 = vmatprep.mubr.f32.mxu0 0.0
  %1096 = vmatmul.mubr.f32.gmra.mxu0 %v191
  %v1097 = vpop.f32.mrf.mxu0
  %v1098 = vadd.f32 0.0, %v1097
  %v1099 = vpop.f32.mrf.mxu0
  %1100 = vmatprep.mubr.f32.mxu0 0.0
  %1101 = vmatmul.mubr.f32.gmra.mxu0 %v192
  %v1102 = vpop.f32.mrf.mxu0
  %v1103 = vadd.f32 0.0, %v1102
  %v1104 = vpop.f32.mrf.mxu0
  %1105 = vmatprep.mubr.f32.mxu0 0.0
  %1106 = vmatmul.mubr.f32.gmra.mxu0 %v193
  %v1107 = vpop.f32.mrf.mxu0
  %v1108 = vadd.f32 0.0, %v1107
  %v1109 = vpop.f32.mrf.mxu0
  %1110 = vmatprep.mubr.f32.mxu0 0.0
  %1111 = vmatmul.mubr.f32.gmra.mxu0 %v194
  %v1112 = vpop.f32.mrf.mxu0
  %v1113 = vadd.f32 0.0, %v1112
  %v1114 = vpop.f32.mrf.mxu0
  %1115 = vmatprep.mubr.f32.mxu0 0.0
  %1116 = vmatmul.mubr.f32.gmra.mxu0 %v195
  %v1117 = vpop.f32.mrf.mxu0
  %v1118 = vadd.f32 0.0, %v1117
  %v1119 = vpop.f32.mrf.mxu0
  %1120 = vmatprep.mubr.f32.mxu0 0.0
  %1121 = vmatmul.mubr.f32.gmra.mxu0 %v196
  %v1122 = vpop.f32.mrf.mxu0
  %v1123 = vadd.f32 0.0, %v1122
  %v1124 = vpop.f32.mrf.mxu0
  %1125 = vmatprep.mubr.f32.mxu0 0.0
  %1126 = vmatmul.mubr.f32.gmra.mxu0 %v197
  %v1127 = vpop.f32.mrf.mxu0
  %v1128 = vadd.f32 0.0, %v1127
  %v1129 = vpop.f32.mrf.mxu0
  %1130 = vmatprep.mubr.f32.mxu0 0.0
  %1131 = vmatmul.mubr.f32.gmra.mxu0 %v198
  %v1132 = vpop.f32.mrf.mxu0
  %v1133 = vadd.f32 0.0, %v1132
  %v1134 = vpop.f32.mrf.mxu0
  %1135 = vmatprep.mubr.f32.mxu0 0.0
  %1136 = vmatmul.mubr.f32.gmra.mxu0 %v199
  %v1137 = vpop.f32.mrf.mxu0
  %v1138 = vadd.f32 0.0, %v1137
  %v1139 = vpop.f32.mrf.mxu0
  %1140 = vmatprep.mubr.f32.mxu0 0.0
  %1141 = vmatmul.mubr.f32.gmra.mxu0 %v200
  %v1142 = vpop.f32.mrf.mxu0
  %v1143 = vadd.f32 0.0, %v1142
  %v1144 = vpop.f32.mrf.mxu0
  %1145 = vmatprep.mubr.f32.mxu0 0.0
  %1146 = vmatmul.mubr.f32.gmra.mxu0 %v201
  %v1147 = vpop.f32.mrf.mxu0
  %v1148 = vadd.f32 0.0, %v1147
  %v1149 = vpop.f32.mrf.mxu0
  %1150 = vmatprep.mubr.f32.mxu0 0.0
  %1151 = vmatmul.mubr.f32.gmra.mxu0 %v202
  %v1152 = vpop.f32.mrf.mxu0
  %v1153 = vadd.f32 0.0, %v1152
  %v1154 = vpop.f32.mrf.mxu0
  %1155 = vmatprep.mubr.f32.mxu0 0.0
  %1156 = vmatmul.mubr.f32.gmra.mxu0 %v203
  %v1157 = vpop.f32.mrf.mxu0
  %v1158 = vadd.f32 0.0, %v1157
  %v1159 = vpop.f32.mrf.mxu0
  %1160 = vmatprep.mubr.f32.mxu0 0.0
  %1161 = vmatmul.mubr.f32.gmra.mxu0 %v204
  %v1162 = vpop.f32.mrf.mxu0
  %v1163 = vadd.f32 0.0, %v1162
  %v1164 = vpop.f32.mrf.mxu0
  %1165 = vmatprep.mubr.f32.mxu0 0.0
  %1166 = vmatmul.mubr.f32.gmra.mxu0 %v205
  %v1167 = vpop.f32.mrf.mxu0
  %v1168 = vadd.f32 0.0, %v1167
  %v1169 = vpop.f32.mrf.mxu0
  %1170 = vmatprep.mubr.f32.mxu0 0.0
  %1171 = vmatmul.mubr.f32.gmra.mxu0 %v206
  %v1172 = vpop.f32.mrf.mxu0
  %v1173 = vadd.f32 0.0, %v1172
  %v1174 = vpop.f32.mrf.mxu0
  %1175 = vmatprep.mubr.f32.mxu0 0.0
  %1176 = vmatmul.mubr.f32.gmra.mxu0 %v207
  %v1177 = vpop.f32.mrf.mxu0
  %v1178 = vadd.f32 0.0, %v1177
  %v1179 = vpop.f32.mrf.mxu0
  %1180 = vmatprep.mubr.f32.mxu0 0.0
  %1181 = vmatmul.mubr.f32.gmra.mxu0 %v208
  %v1182 = vpop.f32.mrf.mxu0
  %v1183 = vadd.f32 0.0, %v1182
  %v1184 = vpop.f32.mrf.mxu0
  %1185 = vmatprep.mubr.f32.mxu0 0.0
  %1186 = vmatmul.mubr.f32.gmra.mxu0 %v209
  %v1187 = vpop.f32.mrf.mxu0
  %v1188 = vadd.f32 0.0, %v1187
  %v1189 = vpop.f32.mrf.mxu0
  %1190 = vmatprep.mubr.f32.mxu0 0.0
  %1191 = vmatmul.mubr.f32.gmra.mxu0 %v210
  %v1192 = vpop.f32.mrf.mxu0
  %v1193 = vadd.f32 0.0, %v1192
  %v1194 = vpop.f32.mrf.mxu0
  %1195 = vmatprep.mubr.f32.mxu0 0.0
  %1196 = vmatmul.mubr.f32.gmra.mxu0 %v211
  %v1197 = vpop.f32.mrf.mxu0
  %v1198 = vadd.f32 0.0, %v1197
  %v1199 = vpop.f32.mrf.mxu0
  %1200 = vmatprep.mubr.f32.mxu0 0.0
  %1201 = vmatmul.mubr.f32.gmra.mxu0 %v212
  %v1202 = vpop.f32.mrf.mxu0
  %v1203 = vadd.f32 0.0, %v1202
  %v1204 = vpop.f32.mrf.mxu0
  %1205 = vmatprep.mubr.f32.mxu0 0.0
  %1206 = vmatmul.mubr.f32.gmra.mxu0 %v213
  %v1207 = vpop.f32.mrf.mxu0
  %v1208 = vadd.f32 0.0, %v1207
  %v1209 = vpop.f32.mrf.mxu0
  %1210 = vmatprep.mubr.f32.mxu0 0.0
  %1211 = vmatmul.mubr.f32.gmra.mxu0 %v214
  %v1212 = vpop.f32.mrf.mxu0
  %v1213 = vadd.f32 0.0, %v1212
  %v1214 = vpop.f32.mrf.mxu0
  %1215 = vmatprep.mubr.f32.mxu0 0.0
  %1216 = vmatmul.mubr.f32.gmra.mxu0 %v215
  %v1217 = vpop.f32.mrf.mxu0
  %v1218 = vadd.f32 0.0, %v1217
  %v1219 = vpop.f32.mrf.mxu0
  %1220 = vmatprep.mubr.f32.mxu0 0.0
  %1221 = vmatmul.mubr.f32.gmra.mxu0 %v216
  %v1222 = vpop.f32.mrf.mxu0
  %v1223 = vadd.f32 0.0, %v1222
  %v1224 = vpop.f32.mrf.mxu0
  %1225 = vmatprep.mubr.f32.mxu0 0.0
  %1226 = vmatmul.mubr.f32.gmra.mxu0 %v217
  %v1227 = vpop.f32.mrf.mxu0
  %v1228 = vadd.f32 0.0, %v1227
  %v1229 = vpop.f32.mrf.mxu0
  %1230 = vmatprep.mubr.f32.mxu0 0.0
  %1231 = vmatmul.mubr.f32.gmra.mxu0 %v218
  %v1232 = vpop.f32.mrf.mxu0
  %v1233 = vadd.f32 0.0, %v1232
  %v1234 = vpop.f32.mrf.mxu0
  %1235 = vmatprep.mubr.f32.mxu0 0.0
  %1236 = vmatmul.mubr.f32.gmra.mxu0 %v219
  %v1237 = vpop.f32.mrf.mxu0
  %v1238 = vadd.f32 0.0, %v1237
  %v1239 = vpop.f32.mrf.mxu0
  %1240 = vmatprep.mubr.f32.mxu0 0.0
  %1241 = vmatmul.mubr.f32.gmra.mxu0 %v220
  %v1242 = vpop.f32.mrf.mxu0
  %v1243 = vadd.f32 0.0, %v1242
  %v1244 = vpop.f32.mrf.mxu0
  %1245 = vmatprep.mubr.f32.mxu0 0.0
  %1246 = vmatmul.mubr.f32.gmra.mxu0 %v221
  %v1247 = vpop.f32.mrf.mxu0
  %v1248 = vadd.f32 0.0, %v1247
  %v1249 = vpop.f32.mrf.mxu0
  %1250 = vmatprep.mubr.f32.mxu0 0.0
  %1251 = vmatmul.mubr.f32.gmra.mxu0 %v222
  %v1252 = vpop.f32.mrf.mxu0
  %v1253 = vadd.f32 0.0, %v1252
  %v1254 = vpop.f32.mrf.mxu0
  %1255 = vmatprep.mubr.f32.mxu0 0.0
  %1256 = vmatmul.mubr.f32.gmra.mxu0 %v223
  %v1257 = vpop.f32.mrf.mxu0
  %v1258 = vadd.f32 0.0, %v1257
  %v1259 = vpop.f32.mrf.mxu0
  %1260 = vmatprep.mubr.f32.mxu0 0.0
  %1261 = vmatmul.mubr.f32.gmra.mxu0 %v224
  %v1262 = vpop.f32.mrf.mxu0
  %v1263 = vadd.f32 0.0, %v1262
  %v1264 = vpop.f32.mrf.mxu0
  %1265 = vmatprep.mubr.f32.mxu0 0.0
  %1266 = vmatmul.mubr.f32.gmra.mxu0 %v225
  %v1267 = vpop.f32.mrf.mxu0
  %v1268 = vadd.f32 0.0, %v1267
  %v1269 = vpop.f32.mrf.mxu0
  %1270 = vdwg.mxu0
  %s1271 = scalar_lea.vmem %s0, 1568
  %v1272 = vld [vmem:[%s1271] sm:$0xff]
  %v1273 = vld [vmem:[%s1271 + $0x8] sm:$0xff]
  %v1274 = vld [vmem:[%s1271 + $0x10] sm:$0xff]
  %v1275 = vld [vmem:[%s1271 + $0x18] sm:$0xff]
  %v1276 = vld [vmem:[%s1271 + $0x20] sm:$0xff]
  %v1277 = vld [vmem:[%s1271 + $0x28] sm:$0xff]
  %v1278 = vld [vmem:[%s1271 + $0x30] sm:$0xff]
  %v1279 = vld [vmem:[%s1271 + $0x38] sm:$0xff]
  %v1280 = vld [vmem:[%s1271 + $0x40] sm:$0xff]
  %v1281 = vld [vmem:[%s1271 + $0x48] sm:$0xff]
  %v1282 = vld [vmem:[%s1271 + $0x50] sm:$0xff]
  %v1283 = vld [vmem:[%s1271 + $0x58] sm:$0xff]
  %v1284 = vld [vmem:[%s1271 + $0x60] sm:$0xff]
  %v1285 = vld [vmem:[%s1271 + $0x68] sm:$0xff]
  %v1286 = vld [vmem:[%s1271 + $0x70] sm:$0xff]
  %v1287 = vld [vmem:[%s1271 + $0x78] sm:$0xff]
  %v1288 = vld [vmem:[%s1271 + $0x80] sm:$0xff]
  %v1289 = vld [vmem:[%s1271 + $0x88] sm:$0xff]
  %v1290 = vld [vmem:[%s1271 + $0x90] sm:$0xff]
  %v1291 = vld [vmem:[%s1271 + $0x98] sm:$0xff]
  %v1292 = vld [vmem:[%s1271 + $0xa0] sm:$0xff]
  %v1293 = vld [vmem:[%s1271 + $0xa8] sm:$0xff]
  %v1294 = vld [vmem:[%s1271 + $0xb0] sm:$0xff]
  %v1295 = vld [vmem:[%s1271 + $0xb8] sm:$0xff]
  %v1296 = vld [vmem:[%s1271 + $0xc0] sm:$0xff]
  %v1297 = vld [vmem:[%s1271 + $0xc8] sm:$0xff]
  %v1298 = vld [vmem:[%s1271 + $0xd0] sm:$0xff]
  %v1299 = vld [vmem:[%s1271 + $0xd8] sm:$0xff]
  %v1300 = vld [vmem:[%s1271 + $0xe0] sm:$0xff]
  %v1301 = vld [vmem:[%s1271 + $0xe8] sm:$0xff]
  %v1302 = vld [vmem:[%s1271 + $0xf0] sm:$0xff]
  %v1303 = vld [vmem:[%s1271 + $0xf8] sm:$0xff]
  %v1304 = vld [vmem:[%s1271 + $0x100] sm:$0xff]
  %v1305 = vld [vmem:[%s1271 + $0x108] sm:$0xff]
  %v1306 = vld [vmem:[%s1271 + $0x110] sm:$0xff]
  %v1307 = vld [vmem:[%s1271 + $0x118] sm:$0xff]
  %v1308 = vld [vmem:[%s1271 + $0x120] sm:$0xff]
  %v1309 = vld [vmem:[%s1271 + $0x128] sm:$0xff]
  %v1310 = vld [vmem:[%s1271 + $0x130] sm:$0xff]
  %v1311 = vld [vmem:[%s1271 + $0x138] sm:$0xff]
  %v1312 = vld [vmem:[%s1271 + $0x140] sm:$0xff]
  %v1313 = vld [vmem:[%s1271 + $0x148] sm:$0xff]
  %v1314 = vld [vmem:[%s1271 + $0x150] sm:$0xff]
  %v1315 = vld [vmem:[%s1271 + $0x158] sm:$0xff]
  %v1316 = vld [vmem:[%s1271 + $0x160] sm:$0xff]
  %v1317 = vld [vmem:[%s1271 + $0x168] sm:$0xff]
  %v1318 = vld [vmem:[%s1271 + $0x170] sm:$0xff]
  %v1319 = vld [vmem:[%s1271 + $0x178] sm:$0xff]
  %v1320 = vld [vmem:[%s1271 + $0x180] sm:$0xff]
  %v1321 = vld [vmem:[%s1271 + $0x188] sm:$0xff]
  %v1322 = vld [vmem:[%s1271 + $0x190] sm:$0xff]
  %v1323 = vld [vmem:[%s1271 + $0x198] sm:$0xff]
  %v1324 = vld [vmem:[%s1271 + $0x1a0] sm:$0xff]
  %v1325 = vld [vmem:[%s1271 + $0x1a8] sm:$0xff]
  %v1326 = vld [vmem:[%s1271 + $0x1b0] sm:$0xff]
  %v1327 = vld [vmem:[%s1271 + $0x1b8] sm:$0xff]
  %v1328 = vld [vmem:[%s1271 + $0x1c0] sm:$0xff]
  %v1329 = vld [vmem:[%s1271 + $0x1c8] sm:$0xff]
  %v1330 = vld [vmem:[%s1271 + $0x1d0] sm:$0xff]
  %v1331 = vld [vmem:[%s1271 + $0x1d8] sm:$0xff]
  %v1332 = vld [vmem:[%s1271 + $0x1e0] sm:$0xff]
  %v1333 = vld [vmem:[%s1271 + $0x1e8] sm:$0xff]
  %v1334 = vld [vmem:[%s1271 + $0x1f0] sm:$0xff]
  %v1335 = vld [vmem:[%s1271 + $0x1f8] sm:$0xff]
  %v1336 = vld [vmem:[%s1271 + $0x200] sm:$0xff]
  %v1337 = vld [vmem:[%s1271 + $0x208] sm:$0xff]
  %v1338 = vld [vmem:[%s1271 + $0x210] sm:$0xff]
  %v1339 = vld [vmem:[%s1271 + $0x218] sm:$0xff]
  %v1340 = vld [vmem:[%s1271 + $0x220] sm:$0xff]
  %v1341 = vld [vmem:[%s1271 + $0x228] sm:$0xff]
  %v1342 = vld [vmem:[%s1271 + $0x230] sm:$0xff]
  %v1343 = vld [vmem:[%s1271 + $0x238] sm:$0xff]
  %v1344 = vld [vmem:[%s1271 + $0x240] sm:$0xff]
  %v1345 = vld [vmem:[%s1271 + $0x248] sm:$0xff]
  %v1346 = vld [vmem:[%s1271 + $0x250] sm:$0xff]
  %v1347 = vld [vmem:[%s1271 + $0x258] sm:$0xff]
  %v1348 = vld [vmem:[%s1271 + $0x260] sm:$0xff]
  %v1349 = vld [vmem:[%s1271 + $0x268] sm:$0xff]
  %v1350 = vld [vmem:[%s1271 + $0x270] sm:$0xff]
  %v1351 = vld [vmem:[%s1271 + $0x278] sm:$0xff]
  %v1352 = vld [vmem:[%s1271 + $0x280] sm:$0xff]
  %v1353 = vld [vmem:[%s1271 + $0x288] sm:$0xff]
  %v1354 = vld [vmem:[%s1271 + $0x290] sm:$0xff]
  %v1355 = vld [vmem:[%s1271 + $0x298] sm:$0xff]
  %v1356 = vld [vmem:[%s1271 + $0x2a0] sm:$0xff]
  %v1357 = vld [vmem:[%s1271 + $0x2a8] sm:$0xff]
  %v1358 = vld [vmem:[%s1271 + $0x2b0] sm:$0xff]
  %v1359 = vld [vmem:[%s1271 + $0x2b8] sm:$0xff]
  %v1360 = vld [vmem:[%s1271 + $0x2c0] sm:$0xff]
  %v1361 = vld [vmem:[%s1271 + $0x2c8] sm:$0xff]
  %v1362 = vld [vmem:[%s1271 + $0x2d0] sm:$0xff]
  %v1363 = vld [vmem:[%s1271 + $0x2d8] sm:$0xff]
  %v1364 = vld [vmem:[%s1271 + $0x2e0] sm:$0xff]
  %v1365 = vld [vmem:[%s1271 + $0x2e8] sm:$0xff]
  %v1366 = vld [vmem:[%s1271 + $0x2f0] sm:$0xff]
  %v1367 = vld [vmem:[%s1271 + $0x2f8] sm:$0xff]
  %v1368 = vld [vmem:[%s1271 + $0x300] sm:$0xff]
  %v1369 = vld [vmem:[%s1271 + $0x308] sm:$0xff]
  %v1370 = vld [vmem:[%s1271 + $0x310] sm:$0xff]
  %v1371 = vld [vmem:[%s1271 + $0x318] sm:$0xff]
  %v1372 = vld [vmem:[%s1271 + $0x320] sm:$0xff]
  %v1373 = vld [vmem:[%s1271 + $0x328] sm:$0xff]
  %v1374 = vld [vmem:[%s1271 + $0x330] sm:$0xff]
  %v1375 = vld [vmem:[%s1271 + $0x338] sm:$0xff]
  %v1376 = vld [vmem:[%s1271 + $0x340] sm:$0xff]
  %v1377 = vld [vmem:[%s1271 + $0x348] sm:$0xff]
  %v1378 = vld [vmem:[%s1271 + $0x350] sm:$0xff]
  %v1379 = vld [vmem:[%s1271 + $0x358] sm:$0xff]
  %v1380 = vld [vmem:[%s1271 + $0x360] sm:$0xff]
  %v1381 = vld [vmem:[%s1271 + $0x368] sm:$0xff]
  %v1382 = vld [vmem:[%s1271 + $0x370] sm:$0xff]
  %v1383 = vld [vmem:[%s1271 + $0x378] sm:$0xff]
  %v1384 = vld [vmem:[%s1271 + $0x380] sm:$0xff]
  %v1385 = vld [vmem:[%s1271 + $0x388] sm:$0xff]
  %v1386 = vld [vmem:[%s1271 + $0x390] sm:$0xff]
  %v1387 = vld [vmem:[%s1271 + $0x398] sm:$0xff]
  %v1388 = vld [vmem:[%s1271 + $0x3a0] sm:$0xff]
  %v1389 = vld [vmem:[%s1271 + $0x3a8] sm:$0xff]
  %v1390 = vld [vmem:[%s1271 + $0x3b0] sm:$0xff]
  %v1391 = vld [vmem:[%s1271 + $0x3b8] sm:$0xff]
  %v1392 = vld [vmem:[%s1271 + $0x3c0] sm:$0xff]
  %v1393 = vld [vmem:[%s1271 + $0x3c8] sm:$0xff]
  %v1394 = vld [vmem:[%s1271 + $0x3d0] sm:$0xff]
  %v1395 = vld [vmem:[%s1271 + $0x3d8] sm:$0xff]
  %v1396 = vld [vmem:[%s1271 + $0x3e0] sm:$0xff]
  %v1397 = vld [vmem:[%s1271 + $0x3e8] sm:$0xff]
  %v1398 = vld [vmem:[%s1271 + $0x3f0] sm:$0xff]
  %v1399 = vld [vmem:[%s1271 + $0x3f8] sm:$0xff]
  %v1400 = vld [vmem:[%s1271 + $0x400] sm:$0xff]
  %v1401 = vld [vmem:[%s1271 + $0x408] sm:$0xff]
  %v1402 = vld [vmem:[%s1271 + $0x410] sm:$0xff]
  %v1403 = vld [vmem:[%s1271 + $0x418] sm:$0xff]
  %v1404 = vld [vmem:[%s1271 + $0x420] sm:$0xff]
  %v1405 = vld [vmem:[%s1271 + $0x428] sm:$0xff]
  %v1406 = vld [vmem:[%s1271 + $0x430] sm:$0xff]
  %v1407 = vld [vmem:[%s1271 + $0x438] sm:$0xff]
  %v1408 = vld [vmem:[%s1271 + $0x440] sm:$0xff]
  %v1409 = vld [vmem:[%s1271 + $0x448] sm:$0xff]
  %v1410 = vld [vmem:[%s1271 + $0x450] sm:$0xff]
  %v1411 = vld [vmem:[%s1271 + $0x458] sm:$0xff]
  %v1412 = vld [vmem:[%s1271 + $0x460] sm:$0xff]
  %v1413 = vld [vmem:[%s1271 + $0x468] sm:$0xff]
  %v1414 = vld [vmem:[%s1271 + $0x470] sm:$0xff]
  %v1415 = vld [vmem:[%s1271 + $0x478] sm:$0xff]
  %v1416 = vld [vmem:[%s1271 + $0x480] sm:$0xff]
  %v1417 = vld [vmem:[%s1271 + $0x488] sm:$0xff]
  %v1418 = vld [vmem:[%s1271 + $0x490] sm:$0xff]
  %v1419 = vld [vmem:[%s1271 + $0x498] sm:$0xff]
  %v1420 = vld [vmem:[%s1271 + $0x4a0] sm:$0xff]
  %v1421 = vld [vmem:[%s1271 + $0x4a8] sm:$0xff]
  %v1422 = vld [vmem:[%s1271 + $0x4b0] sm:$0xff]
  %v1423 = vld [vmem:[%s1271 + $0x4b8] sm:$0xff]
  %v1424 = vld [vmem:[%s1271 + $0x4c0] sm:$0xff]
  %v1425 = vld [vmem:[%s1271 + $0x4c8] sm:$0xff]
  %v1426 = vld [vmem:[%s1271 + $0x4d0] sm:$0xff]
  %v1427 = vld [vmem:[%s1271 + $0x4d8] sm:$0xff]
  %v1428 = vld [vmem:[%s1271 + $0x4e0] sm:$0xff]
  %v1429 = vld [vmem:[%s1271 + $0x4e8] sm:$0xff]
  %v1430 = vld [vmem:[%s1271 + $0x4f0] sm:$0xff]
  %v1431 = vld [vmem:[%s1271 + $0x4f8] sm:$0xff]
  %v1432 = vld [vmem:[%s1271 + $0x500] sm:$0xff]
  %v1433 = vld [vmem:[%s1271 + $0x508] sm:$0xff]
  %v1434 = vld [vmem:[%s1271 + $0x510] sm:$0xff]
  %v1435 = vld [vmem:[%s1271 + $0x518] sm:$0xff]
  %v1436 = vld [vmem:[%s1271 + $0x520] sm:$0xff]
  %v1437 = vld [vmem:[%s1271 + $0x528] sm:$0xff]
  %v1438 = vld [vmem:[%s1271 + $0x530] sm:$0xff]
  %v1439 = vld [vmem:[%s1271 + $0x538] sm:$0xff]
  %v1440 = vld [vmem:[%s1271 + $0x540] sm:$0xff]
  %v1441 = vld [vmem:[%s1271 + $0x548] sm:$0xff]
  %v1442 = vld [vmem:[%s1271 + $0x550] sm:$0xff]
  %v1443 = vld [vmem:[%s1271 + $0x558] sm:$0xff]
  %v1444 = vld [vmem:[%s1271 + $0x560] sm:$0xff]
  %v1445 = vld [vmem:[%s1271 + $0x568] sm:$0xff]
  %v1446 = vld [vmem:[%s1271 + $0x570] sm:$0xff]
  %v1447 = vld [vmem:[%s1271 + $0x578] sm:$0xff]
  %v1448 = vld [vmem:[%s1271 + $0x580] sm:$0xff]
  %v1449 = vld [vmem:[%s1271 + $0x588] sm:$0xff]
  %v1450 = vld [vmem:[%s1271 + $0x590] sm:$0xff]
  %v1451 = vld [vmem:[%s1271 + $0x598] sm:$0xff]
  %v1452 = vld [vmem:[%s1271 + $0x5a0] sm:$0xff]
  %v1453 = vld [vmem:[%s1271 + $0x5a8] sm:$0xff]
  %v1454 = vld [vmem:[%s1271 + $0x5b0] sm:$0xff]
  %v1455 = vld [vmem:[%s1271 + $0x5b8] sm:$0xff]
  %v1456 = vld [vmem:[%s1271 + $0x5c0] sm:$0xff]
  %v1457 = vld [vmem:[%s1271 + $0x5c8] sm:$0xff]
  %v1458 = vld [vmem:[%s1271 + $0x5d0] sm:$0xff]
  %v1459 = vld [vmem:[%s1271 + $0x5d8] sm:$0xff]
  %v1460 = vld [vmem:[%s1271 + $0x5e0] sm:$0xff]
  %v1461 = vld [vmem:[%s1271 + $0x5e8] sm:$0xff]
  %v1462 = vld [vmem:[%s1271 + $0x5f0] sm:$0xff]
  %v1463 = vld [vmem:[%s1271 + $0x5f8] sm:$0xff]
  %v1464 = vld [vmem:[%s1271 + $0x600] sm:$0xff]
  %v1465 = vld [vmem:[%s1271 + $0x608] sm:$0xff]
  %v1466 = vld [vmem:[%s1271 + $0x610] sm:$0xff]
  %v1467 = vld [vmem:[%s1271 + $0x618] sm:$0xff]
  %1468 = vmatprep.subr.mxu0 0.0
  %1469 = vmatpush1.msra.mxu0 %v29
  %1470 = vmatprep.subr.mxu0 0.0
  %1471 = vmatpush1.msra.mxu0 %v28
  %1472 = vmatprep.subr.mxu0 0.0
  %1473 = vmatpush1.msra.mxu0 %v27
  %1474 = vmatprep.subr.mxu0 0.0
  %1475 = vmatpush1.msra.mxu0 %v26
  %1476 = vmatprep.subr.mxu0 0.0
  %1477 = vmatpush1.msra.mxu0 %v25
  %1478 = vmatprep.subr.mxu0 0.0
  %1479 = vmatpush1.msra.mxu0 %v24
  %1480 = vmatprep.subr.mxu0 0.0
  %1481 = vmatpush1.msra.mxu0 %v23
  %1482 = vmatprep.subr.mxu0 0.0
  %1483 = vmatpush1.msra.mxu0 %v22
  %1484 = vmatprep.subr.mxu0 0.0
  %1485 = vmatpush1.msra.mxu0 %v21
  %1486 = vmatprep.subr.mxu0 0.0
  %1487 = vmatpush1.msra.mxu0 %v20
  %1488 = vmatprep.subr.mxu0 0.0
  %1489 = vmatpush1.msra.mxu0 %v19
  %1490 = vmatprep.subr.mxu0 0.0
  %1491 = vmatpush1.msra.mxu0 %v18
  %1492 = vmatprep.subr.mxu0 0.0
  %1493 = vmatpush1.msra.mxu0 %v17
  %1494 = vmatprep.subr.mxu0 0.0
  %1495 = vmatpush1.msra.mxu0 %v16
  %1496 = vmatprep.subr.mxu0 0.0
  %1497 = vmatpush1.msra.mxu0 %v15
  %1498 = vmatprep.subr.mxu0 0.0
  %1499 = vmatpush1.msra.mxu0 %v14
  %1500 = vmatprep.subr.mxu0 0.0
  %1501 = vmatpush2.msra.mxu0 0.0
  %1502 = vmatprep.subr.mxu0 0.0
  %1503 = vmatpush2.msra.mxu0 0.0
  %1504 = vmatprep.subr.mxu0 0.0
  %1505 = vmatpush2.msra.mxu0 0.0
  %1506 = vmatprep.subr.mxu0 0.0
  %1507 = vmatpush2.msra.mxu0 0.0
  %1508 = vmatprep.subr.mxu0 0.0
  %1509 = vmatpush2.msra.mxu0 0.0
  %1510 = vmatprep.subr.mxu0 0.0
  %1511 = vmatpush2.msra.mxu0 0.0
  %1512 = vmatprep.subr.mxu0 0.0
  %1513 = vmatpush2.msra.mxu0 0.0
  %1514 = vmatprep.subr.mxu0 0.0
  %1515 = vmatpush2.msra.mxu0 0.0
  %1516 = vmatprep.subr.mxu0 0.0
  %1517 = vmatpush2.msra.mxu0 0.0
  %1518 = vmatprep.subr.mxu0 0.0
  %1519 = vmatpush2.msra.mxu0 0.0
  %1520 = vmatprep.subr.mxu0 0.0
  %1521 = vmatpush2.msra.mxu0 0.0
  %1522 = vmatprep.subr.mxu0 0.0
  %1523 = vmatpush2.msra.mxu0 0.0
  %1524 = vmatprep.subr.mxu0 0.0
  %1525 = vmatpush2.msra.mxu0 0.0
  %1526 = vmatprep.subr.mxu0 0.0
  %1527 = vmatpush2.msra.mxu0 0.0
  %1528 = vmatprep.subr.mxu0 0.0
  %1529 = vmatpush2.msra.mxu0 0.0
  %1530 = vmatprep.subr.mxu0 0.0
  %1531 = vmatpush2.msra.mxu0 0.0
  %1532 = vmatprep.mubr.f32.mxu0 0.0
  %1533 = vmatmul.mubr.f32.gmra.mxu0 %v1272
  %v1534 = vpop.f32.mrf.mxu0
  %v1535 = vadd.f32 0.0, %v1534
  %v1536 = vpop.f32.mrf.mxu0
  %1537 = vmatprep.mubr.f32.mxu0 0.0
  %1538 = vmatmul.mubr.f32.gmra.mxu0 %v1273
  %v1539 = vpop.f32.mrf.mxu0
  %v1540 = vadd.f32 0.0, %v1539
  %v1541 = vpop.f32.mrf.mxu0
  %1542 = vmatprep.mubr.f32.mxu0 0.0
  %1543 = vmatmul.mubr.f32.gmra.mxu0 %v1274
  %v1544 = vpop.f32.mrf.mxu0
  %v1545 = vadd.f32 0.0, %v1544
  %v1546 = vpop.f32.mrf.mxu0
  %1547 = vmatprep.mubr.f32.mxu0 0.0
  %1548 = vmatmul.mubr.f32.gmra.mxu0 %v1275
  %v1549 = vpop.f32.mrf.mxu0
  %v1550 = vadd.f32 0.0, %v1549
  %v1551 = vpop.f32.mrf.mxu0
  %1552 = vmatprep.mubr.f32.mxu0 0.0
  %1553 = vmatmul.mubr.f32.gmra.mxu0 %v1276
  %v1554 = vpop.f32.mrf.mxu0
  %v1555 = vadd.f32 0.0, %v1554
  %v1556 = vpop.f32.mrf.mxu0
  %1557 = vmatprep.mubr.f32.mxu0 0.0
  %1558 = vmatmul.mubr.f32.gmra.mxu0 %v1277
  %v1559 = vpop.f32.mrf.mxu0
  %v1560 = vadd.f32 0.0, %v1559
  %v1561 = vpop.f32.mrf.mxu0
  %1562 = vmatprep.mubr.f32.mxu0 0.0
  %1563 = vmatmul.mubr.f32.gmra.mxu0 %v1278
  %v1564 = vpop.f32.mrf.mxu0
  %v1565 = vadd.f32 0.0, %v1564
  %v1566 = vpop.f32.mrf.mxu0
  %1567 = vmatprep.mubr.f32.mxu0 0.0
  %1568 = vmatmul.mubr.f32.gmra.mxu0 %v1279
  %v1569 = vpop.f32.mrf.mxu0
  %v1570 = vadd.f32 0.0, %v1569
  %v1571 = vpop.f32.mrf.mxu0
  %1572 = vmatprep.mubr.f32.mxu0 0.0
  %1573 = vmatmul.mubr.f32.gmra.mxu0 %v1280
  %v1574 = vpop.f32.mrf.mxu0
  %v1575 = vadd.f32 0.0, %v1574
  %v1576 = vpop.f32.mrf.mxu0
  %1577 = vmatprep.mubr.f32.mxu0 0.0
  %1578 = vmatmul.mubr.f32.gmra.mxu0 %v1281
  %v1579 = vpop.f32.mrf.mxu0
  %v1580 = vadd.f32 0.0, %v1579
  %v1581 = vpop.f32.mrf.mxu0
  %1582 = vmatprep.mubr.f32.mxu0 0.0
  %1583 = vmatmul.mubr.f32.gmra.mxu0 %v1282
  %v1584 = vpop.f32.mrf.mxu0
  %v1585 = vadd.f32 0.0, %v1584
  %v1586 = vpop.f32.mrf.mxu0
  %1587 = vmatprep.mubr.f32.mxu0 0.0
  %1588 = vmatmul.mubr.f32.gmra.mxu0 %v1283
  %v1589 = vpop.f32.mrf.mxu0
  %v1590 = vadd.f32 0.0, %v1589
  %v1591 = vpop.f32.mrf.mxu0
  %1592 = vmatprep.mubr.f32.mxu0 0.0
  %1593 = vmatmul.mubr.f32.gmra.mxu0 %v1284
  %v1594 = vpop.f32.mrf.mxu0
  %v1595 = vadd.f32 0.0, %v1594
  %v1596 = vpop.f32.mrf.mxu0
  %1597 = vmatprep.mubr.f32.mxu0 0.0
  %1598 = vmatmul.mubr.f32.gmra.mxu0 %v1285
  %v1599 = vpop.f32.mrf.mxu0
  %v1600 = vadd.f32 0.0, %v1599
  %v1601 = vpop.f32.mrf.mxu0
  %1602 = vmatprep.mubr.f32.mxu0 0.0
  %1603 = vmatmul.mubr.f32.gmra.mxu0 %v1286
  %v1604 = vpop.f32.mrf.mxu0
  %v1605 = vadd.f32 0.0, %v1604
  %v1606 = vpop.f32.mrf.mxu0
  %1607 = vmatprep.mubr.f32.mxu0 0.0
  %1608 = vmatmul.mubr.f32.gmra.mxu0 %v1287
  %v1609 = vpop.f32.mrf.mxu0
  %v1610 = vadd.f32 0.0, %v1609
  %v1611 = vpop.f32.mrf.mxu0
  %1612 = vmatprep.mubr.f32.mxu0 0.0
  %1613 = vmatmul.mubr.f32.gmra.mxu0 %v1288
  %v1614 = vpop.f32.mrf.mxu0
  %v1615 = vadd.f32 0.0, %v1614
  %v1616 = vpop.f32.mrf.mxu0
  %1617 = vmatprep.mubr.f32.mxu0 0.0
  %1618 = vmatmul.mubr.f32.gmra.mxu0 %v1289
  %v1619 = vpop.f32.mrf.mxu0
  %v1620 = vadd.f32 0.0, %v1619
  %v1621 = vpop.f32.mrf.mxu0
  %1622 = vmatprep.mubr.f32.mxu0 0.0
  %1623 = vmatmul.mubr.f32.gmra.mxu0 %v1290
  %v1624 = vpop.f32.mrf.mxu0
  %v1625 = vadd.f32 0.0, %v1624
  %v1626 = vpop.f32.mrf.mxu0
  %1627 = vmatprep.mubr.f32.mxu0 0.0
  %1628 = vmatmul.mubr.f32.gmra.mxu0 %v1291
  %v1629 = vpop.f32.mrf.mxu0
  %v1630 = vadd.f32 0.0, %v1629
  %v1631 = vpop.f32.mrf.mxu0
  %1632 = vmatprep.mubr.f32.mxu0 0.0
  %1633 = vmatmul.mubr.f32.gmra.mxu0 %v1292
  %v1634 = vpop.f32.mrf.mxu0
  %v1635 = vadd.f32 0.0, %v1634
  %v1636 = vpop.f32.mrf.mxu0
  %1637 = vmatprep.mubr.f32.mxu0 0.0
  %1638 = vmatmul.mubr.f32.gmra.mxu0 %v1293
  %v1639 = vpop.f32.mrf.mxu0
  %v1640 = vadd.f32 0.0, %v1639
  %v1641 = vpop.f32.mrf.mxu0
  %1642 = vmatprep.mubr.f32.mxu0 0.0
  %1643 = vmatmul.mubr.f32.gmra.mxu0 %v1294
  %v1644 = vpop.f32.mrf.mxu0
  %v1645 = vadd.f32 0.0, %v1644
  %v1646 = vpop.f32.mrf.mxu0
  %1647 = vmatprep.mubr.f32.mxu0 0.0
  %1648 = vmatmul.mubr.f32.gmra.mxu0 %v1295
  %v1649 = vpop.f32.mrf.mxu0
  %v1650 = vadd.f32 0.0, %v1649
  %v1651 = vpop.f32.mrf.mxu0
  %1652 = vmatprep.mubr.f32.mxu0 0.0
  %1653 = vmatmul.mubr.f32.gmra.mxu0 %v1296
  %v1654 = vpop.f32.mrf.mxu0
  %v1655 = vadd.f32 0.0, %v1654
  %v1656 = vpop.f32.mrf.mxu0
  %1657 = vmatprep.mubr.f32.mxu0 0.0
  %1658 = vmatmul.mubr.f32.gmra.mxu0 %v1297
  %v1659 = vpop.f32.mrf.mxu0
  %v1660 = vadd.f32 0.0, %v1659
  %v1661 = vpop.f32.mrf.mxu0
  %1662 = vmatprep.mubr.f32.mxu0 0.0
  %1663 = vmatmul.mubr.f32.gmra.mxu0 %v1298
  %v1664 = vpop.f32.mrf.mxu0
  %v1665 = vadd.f32 0.0, %v1664
  %v1666 = vpop.f32.mrf.mxu0
  %1667 = vmatprep.mubr.f32.mxu0 0.0
  %1668 = vmatmul.mubr.f32.gmra.mxu0 %v1299
  %v1669 = vpop.f32.mrf.mxu0
  %v1670 = vadd.f32 0.0, %v1669
  %v1671 = vpop.f32.mrf.mxu0
  %1672 = vmatprep.mubr.f32.mxu0 0.0
  %1673 = vmatmul.mubr.f32.gmra.mxu0 %v1300
  %v1674 = vpop.f32.mrf.mxu0
  %v1675 = vadd.f32 0.0, %v1674
  %v1676 = vpop.f32.mrf.mxu0
  %1677 = vmatprep.mubr.f32.mxu0 0.0
  %1678 = vmatmul.mubr.f32.gmra.mxu0 %v1301
  %v1679 = vpop.f32.mrf.mxu0
  %v1680 = vadd.f32 0.0, %v1679
  %v1681 = vpop.f32.mrf.mxu0
  %1682 = vmatprep.mubr.f32.mxu0 0.0
  %1683 = vmatmul.mubr.f32.gmra.mxu0 %v1302
  %v1684 = vpop.f32.mrf.mxu0
  %v1685 = vadd.f32 0.0, %v1684
  %v1686 = vpop.f32.mrf.mxu0
  %1687 = vmatprep.mubr.f32.mxu0 0.0
  %1688 = vmatmul.mubr.f32.gmra.mxu0 %v1303
  %v1689 = vpop.f32.mrf.mxu0
  %v1690 = vadd.f32 0.0, %v1689
  %v1691 = vpop.f32.mrf.mxu0
  %1692 = vmatprep.mubr.f32.mxu0 0.0
  %1693 = vmatmul.mubr.f32.gmra.mxu0 %v1304
  %v1694 = vpop.f32.mrf.mxu0
  %v1695 = vadd.f32 0.0, %v1694
  %v1696 = vpop.f32.mrf.mxu0
  %1697 = vmatprep.mubr.f32.mxu0 0.0
  %1698 = vmatmul.mubr.f32.gmra.mxu0 %v1305
  %v1699 = vpop.f32.mrf.mxu0
  %v1700 = vadd.f32 0.0, %v1699
  %v1701 = vpop.f32.mrf.mxu0
  %1702 = vmatprep.mubr.f32.mxu0 0.0
  %1703 = vmatmul.mubr.f32.gmra.mxu0 %v1306
  %v1704 = vpop.f32.mrf.mxu0
  %v1705 = vadd.f32 0.0, %v1704
  %v1706 = vpop.f32.mrf.mxu0
  %1707 = vmatprep.mubr.f32.mxu0 0.0
  %1708 = vmatmul.mubr.f32.gmra.mxu0 %v1307
  %v1709 = vpop.f32.mrf.mxu0
  %v1710 = vadd.f32 0.0, %v1709
  %v1711 = vpop.f32.mrf.mxu0
  %1712 = vmatprep.mubr.f32.mxu0 0.0
  %1713 = vmatmul.mubr.f32.gmra.mxu0 %v1308
  %v1714 = vpop.f32.mrf.mxu0
  %v1715 = vadd.f32 0.0, %v1714
  %v1716 = vpop.f32.mrf.mxu0
  %1717 = vmatprep.mubr.f32.mxu0 0.0
  %1718 = vmatmul.mubr.f32.gmra.mxu0 %v1309
  %v1719 = vpop.f32.mrf.mxu0
  %v1720 = vadd.f32 0.0, %v1719
  %v1721 = vpop.f32.mrf.mxu0
  %1722 = vmatprep.mubr.f32.mxu0 0.0
  %1723 = vmatmul.mubr.f32.gmra.mxu0 %v1310
  %v1724 = vpop.f32.mrf.mxu0
  %v1725 = vadd.f32 0.0, %v1724
  %v1726 = vpop.f32.mrf.mxu0
  %1727 = vmatprep.mubr.f32.mxu0 0.0
  %1728 = vmatmul.mubr.f32.gmra.mxu0 %v1311
  %v1729 = vpop.f32.mrf.mxu0
  %v1730 = vadd.f32 0.0, %v1729
  %v1731 = vpop.f32.mrf.mxu0
  %1732 = vmatprep.mubr.f32.mxu0 0.0
  %1733 = vmatmul.mubr.f32.gmra.mxu0 %v1312
  %v1734 = vpop.f32.mrf.mxu0
  %v1735 = vadd.f32 0.0, %v1734
  %v1736 = vpop.f32.mrf.mxu0
  %1737 = vmatprep.mubr.f32.mxu0 0.0
  %1738 = vmatmul.mubr.f32.gmra.mxu0 %v1313
  %v1739 = vpop.f32.mrf.mxu0
  %v1740 = vadd.f32 0.0, %v1739
  %v1741 = vpop.f32.mrf.mxu0
  %1742 = vmatprep.mubr.f32.mxu0 0.0
  %1743 = vmatmul.mubr.f32.gmra.mxu0 %v1314
  %v1744 = vpop.f32.mrf.mxu0
  %v1745 = vadd.f32 0.0, %v1744
  %v1746 = vpop.f32.mrf.mxu0
  %1747 = vmatprep.mubr.f32.mxu0 0.0
  %1748 = vmatmul.mubr.f32.gmra.mxu0 %v1315
  %v1749 = vpop.f32.mrf.mxu0
  %v1750 = vadd.f32 0.0, %v1749
  %v1751 = vpop.f32.mrf.mxu0
  %1752 = vmatprep.mubr.f32.mxu0 0.0
  %1753 = vmatmul.mubr.f32.gmra.mxu0 %v1316
  %v1754 = vpop.f32.mrf.mxu0
  %v1755 = vadd.f32 0.0, %v1754
  %v1756 = vpop.f32.mrf.mxu0
  %1757 = vmatprep.mubr.f32.mxu0 0.0
  %1758 = vmatmul.mubr.f32.gmra.mxu0 %v1317
  %v1759 = vpop.f32.mrf.mxu0
  %v1760 = vadd.f32 0.0, %v1759
  %v1761 = vpop.f32.mrf.mxu0
  %1762 = vmatprep.mubr.f32.mxu0 0.0
  %1763 = vmatmul.mubr.f32.gmra.mxu0 %v1318
  %v1764 = vpop.f32.mrf.mxu0
  %v1765 = vadd.f32 0.0, %v1764
  %v1766 = vpop.f32.mrf.mxu0
  %1767 = vmatprep.mubr.f32.mxu0 0.0
  %1768 = vmatmul.mubr.f32.gmra.mxu0 %v1319
  %v1769 = vpop.f32.mrf.mxu0
  %v1770 = vadd.f32 0.0, %v1769
  %v1771 = vpop.f32.mrf.mxu0
  %1772 = vmatprep.mubr.f32.mxu0 0.0
  %1773 = vmatmul.mubr.f32.gmra.mxu0 %v1320
  %v1774 = vpop.f32.mrf.mxu0
  %v1775 = vadd.f32 0.0, %v1774
  %v1776 = vpop.f32.mrf.mxu0
  %1777 = vmatprep.mubr.f32.mxu0 0.0
  %1778 = vmatmul.mubr.f32.gmra.mxu0 %v1321
  %v1779 = vpop.f32.mrf.mxu0
  %v1780 = vadd.f32 0.0, %v1779
  %v1781 = vpop.f32.mrf.mxu0
  %1782 = vmatprep.mubr.f32.mxu0 0.0
  %1783 = vmatmul.mubr.f32.gmra.mxu0 %v1322
  %v1784 = vpop.f32.mrf.mxu0
  %v1785 = vadd.f32 0.0, %v1784
  %v1786 = vpop.f32.mrf.mxu0
  %1787 = vmatprep.mubr.f32.mxu0 0.0
  %1788 = vmatmul.mubr.f32.gmra.mxu0 %v1323
  %v1789 = vpop.f32.mrf.mxu0
  %v1790 = vadd.f32 0.0, %v1789
  %v1791 = vpop.f32.mrf.mxu0
  %1792 = vmatprep.mubr.f32.mxu0 0.0
  %1793 = vmatmul.mubr.f32.gmra.mxu0 %v1324
  %v1794 = vpop.f32.mrf.mxu0
  %v1795 = vadd.f32 0.0, %v1794
  %v1796 = vpop.f32.mrf.mxu0
  %1797 = vmatprep.mubr.f32.mxu0 0.0
  %1798 = vmatmul.mubr.f32.gmra.mxu0 %v1325
  %v1799 = vpop.f32.mrf.mxu0
  %v1800 = vadd.f32 0.0, %v1799
  %v1801 = vpop.f32.mrf.mxu0
  %1802 = vmatprep.mubr.f32.mxu0 0.0
  %1803 = vmatmul.mubr.f32.gmra.mxu0 %v1326
  %v1804 = vpop.f32.mrf.mxu0
  %v1805 = vadd.f32 0.0, %v1804
  %v1806 = vpop.f32.mrf.mxu0
  %1807 = vmatprep.mubr.f32.mxu0 0.0
  %1808 = vmatmul.mubr.f32.gmra.mxu0 %v1327
  %v1809 = vpop.f32.mrf.mxu0
  %v1810 = vadd.f32 0.0, %v1809
  %v1811 = vpop.f32.mrf.mxu0
  %1812 = vmatprep.mubr.f32.mxu0 0.0
  %1813 = vmatmul.mubr.f32.gmra.mxu0 %v1328
  %v1814 = vpop.f32.mrf.mxu0
  %v1815 = vadd.f32 0.0, %v1814
  %v1816 = vpop.f32.mrf.mxu0
  %1817 = vmatprep.mubr.f32.mxu0 0.0
  %1818 = vmatmul.mubr.f32.gmra.mxu0 %v1329
  %v1819 = vpop.f32.mrf.mxu0
  %v1820 = vadd.f32 0.0, %v1819
  %v1821 = vpop.f32.mrf.mxu0
  %1822 = vmatprep.mubr.f32.mxu0 0.0
  %1823 = vmatmul.mubr.f32.gmra.mxu0 %v1330
  %v1824 = vpop.f32.mrf.mxu0
  %v1825 = vadd.f32 0.0, %v1824
  %v1826 = vpop.f32.mrf.mxu0
  %1827 = vmatprep.mubr.f32.mxu0 0.0
  %1828 = vmatmul.mubr.f32.gmra.mxu0 %v1331
  %v1829 = vpop.f32.mrf.mxu0
  %v1830 = vadd.f32 0.0, %v1829
  %v1831 = vpop.f32.mrf.mxu0
  %1832 = vmatprep.mubr.f32.mxu0 0.0
  %1833 = vmatmul.mubr.f32.gmra.mxu0 %v1332
  %v1834 = vpop.f32.mrf.mxu0
  %v1835 = vadd.f32 0.0, %v1834
  %v1836 = vpop.f32.mrf.mxu0
  %1837 = vmatprep.mubr.f32.mxu0 0.0
  %1838 = vmatmul.mubr.f32.gmra.mxu0 %v1333
  %v1839 = vpop.f32.mrf.mxu0
  %v1840 = vadd.f32 0.0, %v1839
  %v1841 = vpop.f32.mrf.mxu0
  %1842 = vmatprep.mubr.f32.mxu0 0.0
  %1843 = vmatmul.mubr.f32.gmra.mxu0 %v1334
  %v1844 = vpop.f32.mrf.mxu0
  %v1845 = vadd.f32 0.0, %v1844
  %v1846 = vpop.f32.mrf.mxu0
  %1847 = vmatprep.mubr.f32.mxu0 0.0
  %1848 = vmatmul.mubr.f32.gmra.mxu0 %v1335
  %v1849 = vpop.f32.mrf.mxu0
  %v1850 = vadd.f32 0.0, %v1849
  %v1851 = vpop.f32.mrf.mxu0
  %1852 = vmatprep.mubr.f32.mxu0 0.0
  %1853 = vmatmul.mubr.f32.gmra.mxu0 %v1336
  %v1854 = vpop.f32.mrf.mxu0
  %v1855 = vadd.f32 0.0, %v1854
  %v1856 = vpop.f32.mrf.mxu0
  %1857 = vmatprep.mubr.f32.mxu0 0.0
  %1858 = vmatmul.mubr.f32.gmra.mxu0 %v1337
  %v1859 = vpop.f32.mrf.mxu0
  %v1860 = vadd.f32 0.0, %v1859
  %v1861 = vpop.f32.mrf.mxu0
  %1862 = vmatprep.mubr.f32.mxu0 0.0
  %1863 = vmatmul.mubr.f32.gmra.mxu0 %v1338
  %v1864 = vpop.f32.mrf.mxu0
  %v1865 = vadd.f32 0.0, %v1864
  %v1866 = vpop.f32.mrf.mxu0
  %1867 = vmatprep.mubr.f32.mxu0 0.0
  %1868 = vmatmul.mubr.f32.gmra.mxu0 %v1339
  %v1869 = vpop.f32.mrf.mxu0
  %v1870 = vadd.f32 0.0, %v1869
  %v1871 = vpop.f32.mrf.mxu0
  %1872 = vmatprep.mubr.f32.mxu0 0.0
  %1873 = vmatmul.mubr.f32.gmra.mxu0 %v1340
  %v1874 = vpop.f32.mrf.mxu0
  %v1875 = vadd.f32 0.0, %v1874
  %v1876 = vpop.f32.mrf.mxu0
  %1877 = vmatprep.mubr.f32.mxu0 0.0
  %1878 = vmatmul.mubr.f32.gmra.mxu0 %v1341
  %v1879 = vpop.f32.mrf.mxu0
  %v1880 = vadd.f32 0.0, %v1879
  %v1881 = vpop.f32.mrf.mxu0
  %1882 = vmatprep.mubr.f32.mxu0 0.0
  %1883 = vmatmul.mubr.f32.gmra.mxu0 %v1342
  %v1884 = vpop.f32.mrf.mxu0
  %v1885 = vadd.f32 0.0, %v1884
  %v1886 = vpop.f32.mrf.mxu0
  %1887 = vmatprep.mubr.f32.mxu0 0.0
  %1888 = vmatmul.mubr.f32.gmra.mxu0 %v1343
  %v1889 = vpop.f32.mrf.mxu0
  %v1890 = vadd.f32 0.0, %v1889
  %v1891 = vpop.f32.mrf.mxu0
  %1892 = vmatprep.mubr.f32.mxu0 0.0
  %1893 = vmatmul.mubr.f32.gmra.mxu0 %v1344
  %v1894 = vpop.f32.mrf.mxu0
  %v1895 = vadd.f32 0.0, %v1894
  %v1896 = vpop.f32.mrf.mxu0
  %1897 = vmatprep.mubr.f32.mxu0 0.0
  %1898 = vmatmul.mubr.f32.gmra.mxu0 %v1345
  %v1899 = vpop.f32.mrf.mxu0
  %v1900 = vadd.f32 0.0, %v1899
  %v1901 = vpop.f32.mrf.mxu0
  %1902 = vmatprep.mubr.f32.mxu0 0.0
  %1903 = vmatmul.mubr.f32.gmra.mxu0 %v1346
  %v1904 = vpop.f32.mrf.mxu0
  %v1905 = vadd.f32 0.0, %v1904
  %v1906 = vpop.f32.mrf.mxu0
  %1907 = vmatprep.mubr.f32.mxu0 0.0
  %1908 = vmatmul.mubr.f32.gmra.mxu0 %v1347
  %v1909 = vpop.f32.mrf.mxu0
  %v1910 = vadd.f32 0.0, %v1909
  %v1911 = vpop.f32.mrf.mxu0
  %1912 = vmatprep.mubr.f32.mxu0 0.0
  %1913 = vmatmul.mubr.f32.gmra.mxu0 %v1348
  %v1914 = vpop.f32.mrf.mxu0
  %v1915 = vadd.f32 0.0, %v1914
  %v1916 = vpop.f32.mrf.mxu0
  %1917 = vmatprep.mubr.f32.mxu0 0.0
  %1918 = vmatmul.mubr.f32.gmra.mxu0 %v1349
  %v1919 = vpop.f32.mrf.mxu0
  %v1920 = vadd.f32 0.0, %v1919
  %v1921 = vpop.f32.mrf.mxu0
  %1922 = vmatprep.mubr.f32.mxu0 0.0
  %1923 = vmatmul.mubr.f32.gmra.mxu0 %v1350
  %v1924 = vpop.f32.mrf.mxu0
  %v1925 = vadd.f32 0.0, %v1924
  %v1926 = vpop.f32.mrf.mxu0
  %1927 = vmatprep.mubr.f32.mxu0 0.0
  %1928 = vmatmul.mubr.f32.gmra.mxu0 %v1351
  %v1929 = vpop.f32.mrf.mxu0
  %v1930 = vadd.f32 0.0, %v1929
  %v1931 = vpop.f32.mrf.mxu0
  %1932 = vmatprep.mubr.f32.mxu0 0.0
  %1933 = vmatmul.mubr.f32.gmra.mxu0 %v1352
  %v1934 = vpop.f32.mrf.mxu0
  %v1935 = vadd.f32 0.0, %v1934
  %v1936 = vpop.f32.mrf.mxu0
  %1937 = vmatprep.mubr.f32.mxu0 0.0
  %1938 = vmatmul.mubr.f32.gmra.mxu0 %v1353
  %v1939 = vpop.f32.mrf.mxu0
  %v1940 = vadd.f32 0.0, %v1939
  %v1941 = vpop.f32.mrf.mxu0
  %1942 = vmatprep.mubr.f32.mxu0 0.0
  %1943 = vmatmul.mubr.f32.gmra.mxu0 %v1354
  %v1944 = vpop.f32.mrf.mxu0
  %v1945 = vadd.f32 0.0, %v1944
  %v1946 = vpop.f32.mrf.mxu0
  %1947 = vmatprep.mubr.f32.mxu0 0.0
  %1948 = vmatmul.mubr.f32.gmra.mxu0 %v1355
  %v1949 = vpop.f32.mrf.mxu0
  %v1950 = vadd.f32 0.0, %v1949
  %v1951 = vpop.f32.mrf.mxu0
  %1952 = vmatprep.mubr.f32.mxu0 0.0
  %1953 = vmatmul.mubr.f32.gmra.mxu0 %v1356
  %v1954 = vpop.f32.mrf.mxu0
  %v1955 = vadd.f32 0.0, %v1954
  %v1956 = vpop.f32.mrf.mxu0
  %1957 = vmatprep.mubr.f32.mxu0 0.0
  %1958 = vmatmul.mubr.f32.gmra.mxu0 %v1357
  %v1959 = vpop.f32.mrf.mxu0
  %v1960 = vadd.f32 0.0, %v1959
  %v1961 = vpop.f32.mrf.mxu0
  %1962 = vmatprep.mubr.f32.mxu0 0.0
  %1963 = vmatmul.mubr.f32.gmra.mxu0 %v1358
  %v1964 = vpop.f32.mrf.mxu0
  %v1965 = vadd.f32 0.0, %v1964
  %v1966 = vpop.f32.mrf.mxu0
  %1967 = vmatprep.mubr.f32.mxu0 0.0
  %1968 = vmatmul.mubr.f32.gmra.mxu0 %v1359
  %v1969 = vpop.f32.mrf.mxu0
  %v1970 = vadd.f32 0.0, %v1969
  %v1971 = vpop.f32.mrf.mxu0
  %1972 = vmatprep.mubr.f32.mxu0 0.0
  %1973 = vmatmul.mubr.f32.gmra.mxu0 %v1360
  %v1974 = vpop.f32.mrf.mxu0
  %v1975 = vadd.f32 0.0, %v1974
  %v1976 = vpop.f32.mrf.mxu0
  %1977 = vmatprep.mubr.f32.mxu0 0.0
  %1978 = vmatmul.mubr.f32.gmra.mxu0 %v1361
  %v1979 = vpop.f32.mrf.mxu0
  %v1980 = vadd.f32 0.0, %v1979
  %v1981 = vpop.f32.mrf.mxu0
  %1982 = vmatprep.mubr.f32.mxu0 0.0
  %1983 = vmatmul.mubr.f32.gmra.mxu0 %v1362
  %v1984 = vpop.f32.mrf.mxu0
  %v1985 = vadd.f32 0.0, %v1984
  %v1986 = vpop.f32.mrf.mxu0
  %1987 = vmatprep.mubr.f32.mxu0 0.0
  %1988 = vmatmul.mubr.f32.gmra.mxu0 %v1363
  %v1989 = vpop.f32.mrf.mxu0
  %v1990 = vadd.f32 0.0, %v1989
  %v1991 = vpop.f32.mrf.mxu0
  %1992 = vmatprep.mubr.f32.mxu0 0.0
  %1993 = vmatmul.mubr.f32.gmra.mxu0 %v1364
  %v1994 = vpop.f32.mrf.mxu0
  %v1995 = vadd.f32 0.0, %v1994
  %v1996 = vpop.f32.mrf.mxu0
  %1997 = vmatprep.mubr.f32.mxu0 0.0
  %1998 = vmatmul.mubr.f32.gmra.mxu0 %v1365
  %v1999 = vpop.f32.mrf.mxu0
  %v2000 = vadd.f32 0.0, %v1999
  %v2001 = vpop.f32.mrf.mxu0
  %2002 = vmatprep.mubr.f32.mxu0 0.0
  %2003 = vmatmul.mubr.f32.gmra.mxu0 %v1366
  %v2004 = vpop.f32.mrf.mxu0
  %v2005 = vadd.f32 0.0, %v2004
  %v2006 = vpop.f32.mrf.mxu0
  %2007 = vmatprep.mubr.f32.mxu0 0.0
  %2008 = vmatmul.mubr.f32.gmra.mxu0 %v1367
  %v2009 = vpop.f32.mrf.mxu0
  %v2010 = vadd.f32 0.0, %v2009
  %v2011 = vpop.f32.mrf.mxu0
  %2012 = vmatprep.mubr.f32.mxu0 0.0
  %2013 = vmatmul.mubr.f32.gmra.mxu0 %v1368
  %v2014 = vpop.f32.mrf.mxu0
  %v2015 = vadd.f32 0.0, %v2014
  %v2016 = vpop.f32.mrf.mxu0
  %2017 = vmatprep.mubr.f32.mxu0 0.0
  %2018 = vmatmul.mubr.f32.gmra.mxu0 %v1369
  %v2019 = vpop.f32.mrf.mxu0
  %v2020 = vadd.f32 0.0, %v2019
  %v2021 = vpop.f32.mrf.mxu0
  %2022 = vmatprep.mubr.f32.mxu0 0.0
  %2023 = vmatmul.mubr.f32.gmra.mxu0 %v1370
  %v2024 = vpop.f32.mrf.mxu0
  %v2025 = vadd.f32 0.0, %v2024
  %v2026 = vpop.f32.mrf.mxu0
  %2027 = vmatprep.mubr.f32.mxu0 0.0
  %2028 = vmatmul.mubr.f32.gmra.mxu0 %v1371
  %v2029 = vpop.f32.mrf.mxu0
  %v2030 = vadd.f32 0.0, %v2029
  %v2031 = vpop.f32.mrf.mxu0
  %2032 = vmatprep.mubr.f32.mxu0 0.0
  %2033 = vmatmul.mubr.f32.gmra.mxu0 %v1372
  %v2034 = vpop.f32.mrf.mxu0
  %v2035 = vadd.f32 0.0, %v2034
  %v2036 = vpop.f32.mrf.mxu0
  %2037 = vmatprep.mubr.f32.mxu0 0.0
  %2038 = vmatmul.mubr.f32.gmra.mxu0 %v1373
  %v2039 = vpop.f32.mrf.mxu0
  %v2040 = vadd.f32 0.0, %v2039
  %v2041 = vpop.f32.mrf.mxu0
  %2042 = vmatprep.mubr.f32.mxu0 0.0
  %2043 = vmatmul.mubr.f32.gmra.mxu0 %v1374
  %v2044 = vpop.f32.mrf.mxu0
  %v2045 = vadd.f32 0.0, %v2044
  %v2046 = vpop.f32.mrf.mxu0
  %2047 = vmatprep.mubr.f32.mxu0 0.0
  %2048 = vmatmul.mubr.f32.gmra.mxu0 %v1375
  %v2049 = vpop.f32.mrf.mxu0
  %v2050 = vadd.f32 0.0, %v2049
  %v2051 = vpop.f32.mrf.mxu0
  %2052 = vmatprep.mubr.f32.mxu0 0.0
  %2053 = vmatmul.mubr.f32.gmra.mxu0 %v1376
  %v2054 = vpop.f32.mrf.mxu0
  %v2055 = vadd.f32 0.0, %v2054
  %v2056 = vpop.f32.mrf.mxu0
  %2057 = vmatprep.mubr.f32.mxu0 0.0
  %2058 = vmatmul.mubr.f32.gmra.mxu0 %v1377
  %v2059 = vpop.f32.mrf.mxu0
  %v2060 = vadd.f32 0.0, %v2059
  %v2061 = vpop.f32.mrf.mxu0
  %2062 = vmatprep.mubr.f32.mxu0 0.0
  %2063 = vmatmul.mubr.f32.gmra.mxu0 %v1378
  %v2064 = vpop.f32.mrf.mxu0
  %v2065 = vadd.f32 0.0, %v2064
  %v2066 = vpop.f32.mrf.mxu0
  %2067 = vmatprep.mubr.f32.mxu0 0.0
  %2068 = vmatmul.mubr.f32.gmra.mxu0 %v1379
  %v2069 = vpop.f32.mrf.mxu0
  %v2070 = vadd.f32 0.0, %v2069
  %v2071 = vpop.f32.mrf.mxu0
  %2072 = vmatprep.mubr.f32.mxu0 0.0
  %2073 = vmatmul.mubr.f32.gmra.mxu0 %v1380
  %v2074 = vpop.f32.mrf.mxu0
  %v2075 = vadd.f32 0.0, %v2074
  %v2076 = vpop.f32.mrf.mxu0
  %2077 = vmatprep.mubr.f32.mxu0 0.0
  %2078 = vmatmul.mubr.f32.gmra.mxu0 %v1381
  %v2079 = vpop.f32.mrf.mxu0
  %v2080 = vadd.f32 0.0, %v2079
  %v2081 = vpop.f32.mrf.mxu0
  %2082 = vmatprep.mubr.f32.mxu0 0.0
  %2083 = vmatmul.mubr.f32.gmra.mxu0 %v1382
  %v2084 = vpop.f32.mrf.mxu0
  %v2085 = vadd.f32 0.0, %v2084
  %v2086 = vpop.f32.mrf.mxu0
  %2087 = vmatprep.mubr.f32.mxu0 0.0
  %2088 = vmatmul.mubr.f32.gmra.mxu0 %v1383
  %v2089 = vpop.f32.mrf.mxu0
  %v2090 = vadd.f32 0.0, %v2089
  %v2091 = vpop.f32.mrf.mxu0
  %2092 = vmatprep.mubr.f32.mxu0 0.0
  %2093 = vmatmul.mubr.f32.gmra.mxu0 %v1384
  %v2094 = vpop.f32.mrf.mxu0
  %v2095 = vadd.f32 0.0, %v2094
  %v2096 = vpop.f32.mrf.mxu0
  %2097 = vmatprep.mubr.f32.mxu0 0.0
  %2098 = vmatmul.mubr.f32.gmra.mxu0 %v1385
  %v2099 = vpop.f32.mrf.mxu0
  %v2100 = vadd.f32 0.0, %v2099
  %v2101 = vpop.f32.mrf.mxu0
  %2102 = vmatprep.mubr.f32.mxu0 0.0
  %2103 = vmatmul.mubr.f32.gmra.mxu0 %v1386
  %v2104 = vpop.f32.mrf.mxu0
  %v2105 = vadd.f32 0.0, %v2104
  %v2106 = vpop.f32.mrf.mxu0
  %2107 = vmatprep.mubr.f32.mxu0 0.0
  %2108 = vmatmul.mubr.f32.gmra.mxu0 %v1387
  %v2109 = vpop.f32.mrf.mxu0
  %v2110 = vadd.f32 0.0, %v2109
  %v2111 = vpop.f32.mrf.mxu0
  %2112 = vmatprep.mubr.f32.mxu0 0.0
  %2113 = vmatmul.mubr.f32.gmra.mxu0 %v1388
  %v2114 = vpop.f32.mrf.mxu0
  %v2115 = vadd.f32 0.0, %v2114
  %v2116 = vpop.f32.mrf.mxu0
  %2117 = vmatprep.mubr.f32.mxu0 0.0
  %2118 = vmatmul.mubr.f32.gmra.mxu0 %v1389
  %v2119 = vpop.f32.mrf.mxu0
  %v2120 = vadd.f32 0.0, %v2119
  %v2121 = vpop.f32.mrf.mxu0
  %2122 = vmatprep.mubr.f32.mxu0 0.0
  %2123 = vmatmul.mubr.f32.gmra.mxu0 %v1390
  %v2124 = vpop.f32.mrf.mxu0
  %v2125 = vadd.f32 0.0, %v2124
  %v2126 = vpop.f32.mrf.mxu0
  %2127 = vmatprep.mubr.f32.mxu0 0.0
  %2128 = vmatmul.mubr.f32.gmra.mxu0 %v1391
  %v2129 = vpop.f32.mrf.mxu0
  %v2130 = vadd.f32 0.0, %v2129
  %v2131 = vpop.f32.mrf.mxu0
  %2132 = vmatprep.mubr.f32.mxu0 0.0
  %2133 = vmatmul.mubr.f32.gmra.mxu0 %v1392
  %v2134 = vpop.f32.mrf.mxu0
  %v2135 = vadd.f32 0.0, %v2134
  %v2136 = vpop.f32.mrf.mxu0
  %2137 = vmatprep.mubr.f32.mxu0 0.0
  %2138 = vmatmul.mubr.f32.gmra.mxu0 %v1393
  %v2139 = vpop.f32.mrf.mxu0
  %v2140 = vadd.f32 0.0, %v2139
  %v2141 = vpop.f32.mrf.mxu0
  %2142 = vmatprep.mubr.f32.mxu0 0.0
  %2143 = vmatmul.mubr.f32.gmra.mxu0 %v1394
  %v2144 = vpop.f32.mrf.mxu0
  %v2145 = vadd.f32 0.0, %v2144
  %v2146 = vpop.f32.mrf.mxu0
  %2147 = vmatprep.mubr.f32.mxu0 0.0
  %2148 = vmatmul.mubr.f32.gmra.mxu0 %v1395
  %v2149 = vpop.f32.mrf.mxu0
  %v2150 = vadd.f32 0.0, %v2149
  %v2151 = vpop.f32.mrf.mxu0
  %2152 = vmatprep.mubr.f32.mxu0 0.0
  %2153 = vmatmul.mubr.f32.gmra.mxu0 %v1396
  %v2154 = vpop.f32.mrf.mxu0
  %v2155 = vadd.f32 0.0, %v2154
  %v2156 = vpop.f32.mrf.mxu0
  %2157 = vmatprep.mubr.f32.mxu0 0.0
  %2158 = vmatmul.mubr.f32.gmra.mxu0 %v1397
  %v2159 = vpop.f32.mrf.mxu0
  %v2160 = vadd.f32 0.0, %v2159
  %v2161 = vpop.f32.mrf.mxu0
  %2162 = vmatprep.mubr.f32.mxu0 0.0
  %2163 = vmatmul.mubr.f32.gmra.mxu0 %v1398
  %v2164 = vpop.f32.mrf.mxu0
  %v2165 = vadd.f32 0.0, %v2164
  %v2166 = vpop.f32.mrf.mxu0
  %2167 = vmatprep.mubr.f32.mxu0 0.0
  %2168 = vmatmul.mubr.f32.gmra.mxu0 %v1399
  %v2169 = vpop.f32.mrf.mxu0
  %v2170 = vadd.f32 0.0, %v2169
  %v2171 = vpop.f32.mrf.mxu0
  %2172 = vmatprep.mubr.f32.mxu0 0.0
  %2173 = vmatmul.mubr.f32.gmra.mxu0 %v1400
  %v2174 = vpop.f32.mrf.mxu0
  %v2175 = vadd.f32 0.0, %v2174
  %v2176 = vpop.f32.mrf.mxu0
  %2177 = vmatprep.mubr.f32.mxu0 0.0
  %2178 = vmatmul.mubr.f32.gmra.mxu0 %v1401
  %v2179 = vpop.f32.mrf.mxu0
  %v2180 = vadd.f32 0.0, %v2179
  %v2181 = vpop.f32.mrf.mxu0
  %2182 = vmatprep.mubr.f32.mxu0 0.0
  %2183 = vmatmul.mubr.f32.gmra.mxu0 %v1402
  %v2184 = vpop.f32.mrf.mxu0
  %v2185 = vadd.f32 0.0, %v2184
  %v2186 = vpop.f32.mrf.mxu0
  %2187 = vmatprep.mubr.f32.mxu0 0.0
  %2188 = vmatmul.mubr.f32.gmra.mxu0 %v1403
  %v2189 = vpop.f32.mrf.mxu0
  %v2190 = vadd.f32 0.0, %v2189
  %v2191 = vpop.f32.mrf.mxu0
  %2192 = vmatprep.mubr.f32.mxu0 0.0
  %2193 = vmatmul.mubr.f32.gmra.mxu0 %v1404
  %v2194 = vpop.f32.mrf.mxu0
  %v2195 = vadd.f32 0.0, %v2194
  %v2196 = vpop.f32.mrf.mxu0
  %2197 = vmatprep.mubr.f32.mxu0 0.0
  %2198 = vmatmul.mubr.f32.gmra.mxu0 %v1405
  %v2199 = vpop.f32.mrf.mxu0
  %v2200 = vadd.f32 0.0, %v2199
  %v2201 = vpop.f32.mrf.mxu0
  %2202 = vmatprep.mubr.f32.mxu0 0.0
  %2203 = vmatmul.mubr.f32.gmra.mxu0 %v1406
  %v2204 = vpop.f32.mrf.mxu0
  %v2205 = vadd.f32 0.0, %v2204
  %v2206 = vpop.f32.mrf.mxu0
  %2207 = vmatprep.mubr.f32.mxu0 0.0
  %2208 = vmatmul.mubr.f32.gmra.mxu0 %v1407
  %v2209 = vpop.f32.mrf.mxu0
  %v2210 = vadd.f32 0.0, %v2209
  %v2211 = vpop.f32.mrf.mxu0
  %2212 = vmatprep.mubr.f32.mxu0 0.0
  %2213 = vmatmul.mubr.f32.gmra.mxu0 %v1408
  %v2214 = vpop.f32.mrf.mxu0
  %v2215 = vadd.f32 0.0, %v2214
  %v2216 = vpop.f32.mrf.mxu0
  %2217 = vmatprep.mubr.f32.mxu0 0.0
  %2218 = vmatmul.mubr.f32.gmra.mxu0 %v1409
  %v2219 = vpop.f32.mrf.mxu0
  %v2220 = vadd.f32 0.0, %v2219
  %v2221 = vpop.f32.mrf.mxu0
  %2222 = vmatprep.mubr.f32.mxu0 0.0
  %2223 = vmatmul.mubr.f32.gmra.mxu0 %v1410
  %v2224 = vpop.f32.mrf.mxu0
  %v2225 = vadd.f32 0.0, %v2224
  %v2226 = vpop.f32.mrf.mxu0
  %2227 = vmatprep.mubr.f32.mxu0 0.0
  %2228 = vmatmul.mubr.f32.gmra.mxu0 %v1411
  %v2229 = vpop.f32.mrf.mxu0
  %v2230 = vadd.f32 0.0, %v2229
  %v2231 = vpop.f32.mrf.mxu0
  %2232 = vmatprep.mubr.f32.mxu0 0.0
  %2233 = vmatmul.mubr.f32.gmra.mxu0 %v1412
  %v2234 = vpop.f32.mrf.mxu0
  %v2235 = vadd.f32 0.0, %v2234
  %v2236 = vpop.f32.mrf.mxu0
  %2237 = vmatprep.mubr.f32.mxu0 0.0
  %2238 = vmatmul.mubr.f32.gmra.mxu0 %v1413
  %v2239 = vpop.f32.mrf.mxu0
  %v2240 = vadd.f32 0.0, %v2239
  %v2241 = vpop.f32.mrf.mxu0
  %2242 = vmatprep.mubr.f32.mxu0 0.0
  %2243 = vmatmul.mubr.f32.gmra.mxu0 %v1414
  %v2244 = vpop.f32.mrf.mxu0
  %v2245 = vadd.f32 0.0, %v2244
  %v2246 = vpop.f32.mrf.mxu0
  %2247 = vmatprep.mubr.f32.mxu0 0.0
  %2248 = vmatmul.mubr.f32.gmra.mxu0 %v1415
  %v2249 = vpop.f32.mrf.mxu0
  %v2250 = vadd.f32 0.0, %v2249
  %v2251 = vpop.f32.mrf.mxu0
  %2252 = vmatprep.mubr.f32.mxu0 0.0
  %2253 = vmatmul.mubr.f32.gmra.mxu0 %v1416
  %v2254 = vpop.f32.mrf.mxu0
  %v2255 = vadd.f32 0.0, %v2254
  %v2256 = vpop.f32.mrf.mxu0
  %2257 = vmatprep.mubr.f32.mxu0 0.0
  %2258 = vmatmul.mubr.f32.gmra.mxu0 %v1417
  %v2259 = vpop.f32.mrf.mxu0
  %v2260 = vadd.f32 0.0, %v2259
  %v2261 = vpop.f32.mrf.mxu0
  %2262 = vmatprep.mubr.f32.mxu0 0.0
  %2263 = vmatmul.mubr.f32.gmra.mxu0 %v1418
  %v2264 = vpop.f32.mrf.mxu0
  %v2265 = vadd.f32 0.0, %v2264
  %v2266 = vpop.f32.mrf.mxu0
  %2267 = vmatprep.mubr.f32.mxu0 0.0
  %2268 = vmatmul.mubr.f32.gmra.mxu0 %v1419
  %v2269 = vpop.f32.mrf.mxu0
  %v2270 = vadd.f32 0.0, %v2269
  %v2271 = vpop.f32.mrf.mxu0
  %2272 = vmatprep.mubr.f32.mxu0 0.0
  %2273 = vmatmul.mubr.f32.gmra.mxu0 %v1420
  %v2274 = vpop.f32.mrf.mxu0
  %v2275 = vadd.f32 0.0, %v2274
  %v2276 = vpop.f32.mrf.mxu0
  %2277 = vmatprep.mubr.f32.mxu0 0.0
  %2278 = vmatmul.mubr.f32.gmra.mxu0 %v1421
  %v2279 = vpop.f32.mrf.mxu0
  %v2280 = vadd.f32 0.0, %v2279
  %v2281 = vpop.f32.mrf.mxu0
  %2282 = vmatprep.mubr.f32.mxu0 0.0
  %2283 = vmatmul.mubr.f32.gmra.mxu0 %v1422
  %v2284 = vpop.f32.mrf.mxu0
  %v2285 = vadd.f32 0.0, %v2284
  %v2286 = vpop.f32.mrf.mxu0
  %2287 = vmatprep.mubr.f32.mxu0 0.0
  %2288 = vmatmul.mubr.f32.gmra.mxu0 %v1423
  %v2289 = vpop.f32.mrf.mxu0
  %v2290 = vadd.f32 0.0, %v2289
  %v2291 = vpop.f32.mrf.mxu0
  %2292 = vmatprep.mubr.f32.mxu0 0.0
  %2293 = vmatmul.mubr.f32.gmra.mxu0 %v1424
  %v2294 = vpop.f32.mrf.mxu0
  %v2295 = vadd.f32 0.0, %v2294
  %v2296 = vpop.f32.mrf.mxu0
  %2297 = vmatprep.mubr.f32.mxu0 0.0
  %2298 = vmatmul.mubr.f32.gmra.mxu0 %v1425
  %v2299 = vpop.f32.mrf.mxu0
  %v2300 = vadd.f32 0.0, %v2299
  %v2301 = vpop.f32.mrf.mxu0
  %2302 = vmatprep.mubr.f32.mxu0 0.0
  %2303 = vmatmul.mubr.f32.gmra.mxu0 %v1426
  %v2304 = vpop.f32.mrf.mxu0
  %v2305 = vadd.f32 0.0, %v2304
  %v2306 = vpop.f32.mrf.mxu0
  %2307 = vmatprep.mubr.f32.mxu0 0.0
  %2308 = vmatmul.mubr.f32.gmra.mxu0 %v1427
  %v2309 = vpop.f32.mrf.mxu0
  %v2310 = vadd.f32 0.0, %v2309
  %v2311 = vpop.f32.mrf.mxu0
  %2312 = vmatprep.mubr.f32.mxu0 0.0
  %2313 = vmatmul.mubr.f32.gmra.mxu0 %v1428
  %v2314 = vpop.f32.mrf.mxu0
  %v2315 = vadd.f32 0.0, %v2314
  %v2316 = vpop.f32.mrf.mxu0
  %2317 = vmatprep.mubr.f32.mxu0 0.0
  %2318 = vmatmul.mubr.f32.gmra.mxu0 %v1429
  %v2319 = vpop.f32.mrf.mxu0
  %v2320 = vadd.f32 0.0, %v2319
  %v2321 = vpop.f32.mrf.mxu0
  %2322 = vmatprep.mubr.f32.mxu0 0.0
  %2323 = vmatmul.mubr.f32.gmra.mxu0 %v1430
  %v2324 = vpop.f32.mrf.mxu0
  %v2325 = vadd.f32 0.0, %v2324
  %v2326 = vpop.f32.mrf.mxu0
  %2327 = vmatprep.mubr.f32.mxu0 0.0
  %2328 = vmatmul.mubr.f32.gmra.mxu0 %v1431
  %v2329 = vpop.f32.mrf.mxu0
  %v2330 = vadd.f32 0.0, %v2329
  %v2331 = vpop.f32.mrf.mxu0
  %2332 = vmatprep.mubr.f32.mxu0 0.0
  %2333 = vmatmul.mubr.f32.gmra.mxu0 %v1432
  %v2334 = vpop.f32.mrf.mxu0
  %v2335 = vadd.f32 0.0, %v2334
  %v2336 = vpop.f32.mrf.mxu0
  %2337 = vmatprep.mubr.f32.mxu0 0.0
  %2338 = vmatmul.mubr.f32.gmra.mxu0 %v1433
  %v2339 = vpop.f32.mrf.mxu0
  %v2340 = vadd.f32 0.0, %v2339
  %v2341 = vpop.f32.mrf.mxu0
  %2342 = vmatprep.mubr.f32.mxu0 0.0
  %2343 = vmatmul.mubr.f32.gmra.mxu0 %v1434
  %v2344 = vpop.f32.mrf.mxu0
  %v2345 = vadd.f32 0.0, %v2344
  %v2346 = vpop.f32.mrf.mxu0
  %2347 = vmatprep.mubr.f32.mxu0 0.0
  %2348 = vmatmul.mubr.f32.gmra.mxu0 %v1435
  %v2349 = vpop.f32.mrf.mxu0
  %v2350 = vadd.f32 0.0, %v2349
  %v2351 = vpop.f32.mrf.mxu0
  %2352 = vmatprep.mubr.f32.mxu0 0.0
  %2353 = vmatmul.mubr.f32.gmra.mxu0 %v1436
  %v2354 = vpop.f32.mrf.mxu0
  %v2355 = vadd.f32 0.0, %v2354
  %v2356 = vpop.f32.mrf.mxu0
  %2357 = vmatprep.mubr.f32.mxu0 0.0
  %2358 = vmatmul.mubr.f32.gmra.mxu0 %v1437
  %v2359 = vpop.f32.mrf.mxu0
  %v2360 = vadd.f32 0.0, %v2359
  %v2361 = vpop.f32.mrf.mxu0
  %2362 = vmatprep.mubr.f32.mxu0 0.0
  %2363 = vmatmul.mubr.f32.gmra.mxu0 %v1438
  %v2364 = vpop.f32.mrf.mxu0
  %v2365 = vadd.f32 0.0, %v2364
  %v2366 = vpop.f32.mrf.mxu0
  %2367 = vmatprep.mubr.f32.mxu0 0.0
  %2368 = vmatmul.mubr.f32.gmra.mxu0 %v1439
  %v2369 = vpop.f32.mrf.mxu0
  %v2370 = vadd.f32 0.0, %v2369
  %v2371 = vpop.f32.mrf.mxu0
  %2372 = vmatprep.mubr.f32.mxu0 0.0
  %2373 = vmatmul.mubr.f32.gmra.mxu0 %v1440
  %v2374 = vpop.f32.mrf.mxu0
  %v2375 = vadd.f32 0.0, %v2374
  %v2376 = vpop.f32.mrf.mxu0
  %2377 = vmatprep.mubr.f32.mxu0 0.0
  %2378 = vmatmul.mubr.f32.gmra.mxu0 %v1441
  %v2379 = vpop.f32.mrf.mxu0
  %v2380 = vadd.f32 0.0, %v2379
  %v2381 = vpop.f32.mrf.mxu0
  %2382 = vmatprep.mubr.f32.mxu0 0.0
  %2383 = vmatmul.mubr.f32.gmra.mxu0 %v1442
  %v2384 = vpop.f32.mrf.mxu0
  %v2385 = vadd.f32 0.0, %v2384
  %v2386 = vpop.f32.mrf.mxu0
  %2387 = vmatprep.mubr.f32.mxu0 0.0
  %2388 = vmatmul.mubr.f32.gmra.mxu0 %v1443
  %v2389 = vpop.f32.mrf.mxu0
  %v2390 = vadd.f32 0.0, %v2389
  %v2391 = vpop.f32.mrf.mxu0
  %2392 = vmatprep.mubr.f32.mxu0 0.0
  %2393 = vmatmul.mubr.f32.gmra.mxu0 %v1444
  %v2394 = vpop.f32.mrf.mxu0
  %v2395 = vadd.f32 0.0, %v2394
  %v2396 = vpop.f32.mrf.mxu0
  %2397 = vmatprep.mubr.f32.mxu0 0.0
  %2398 = vmatmul.mubr.f32.gmra.mxu0 %v1445
  %v2399 = vpop.f32.mrf.mxu0
  %v2400 = vadd.f32 0.0, %v2399
  %v2401 = vpop.f32.mrf.mxu0
  %2402 = vmatprep.mubr.f32.mxu0 0.0
  %2403 = vmatmul.mubr.f32.gmra.mxu0 %v1446
  %v2404 = vpop.f32.mrf.mxu0
  %v2405 = vadd.f32 0.0, %v2404
  %v2406 = vpop.f32.mrf.mxu0
  %2407 = vmatprep.mubr.f32.mxu0 0.0
  %2408 = vmatmul.mubr.f32.gmra.mxu0 %v1447
  %v2409 = vpop.f32.mrf.mxu0
  %v2410 = vadd.f32 0.0, %v2409
  %v2411 = vpop.f32.mrf.mxu0
  %2412 = vmatprep.mubr.f32.mxu0 0.0
  %2413 = vmatmul.mubr.f32.gmra.mxu0 %v1448
  %v2414 = vpop.f32.mrf.mxu0
  %v2415 = vadd.f32 0.0, %v2414
  %v2416 = vpop.f32.mrf.mxu0
  %2417 = vmatprep.mubr.f32.mxu0 0.0
  %2418 = vmatmul.mubr.f32.gmra.mxu0 %v1449
  %v2419 = vpop.f32.mrf.mxu0
  %v2420 = vadd.f32 0.0, %v2419
  %v2421 = vpop.f32.mrf.mxu0
  %2422 = vmatprep.mubr.f32.mxu0 0.0
  %2423 = vmatmul.mubr.f32.gmra.mxu0 %v1450
  %v2424 = vpop.f32.mrf.mxu0
  %v2425 = vadd.f32 0.0, %v2424
  %v2426 = vpop.f32.mrf.mxu0
  %2427 = vmatprep.mubr.f32.mxu0 0.0
  %2428 = vmatmul.mubr.f32.gmra.mxu0 %v1451
  %v2429 = vpop.f32.mrf.mxu0
  %v2430 = vadd.f32 0.0, %v2429
  %v2431 = vpop.f32.mrf.mxu0
  %2432 = vmatprep.mubr.f32.mxu0 0.0
  %2433 = vmatmul.mubr.f32.gmra.mxu0 %v1452
  %v2434 = vpop.f32.mrf.mxu0
  %v2435 = vadd.f32 0.0, %v2434
  %v2436 = vpop.f32.mrf.mxu0
  %2437 = vmatprep.mubr.f32.mxu0 0.0
  %2438 = vmatmul.mubr.f32.gmra.mxu0 %v1453
  %v2439 = vpop.f32.mrf.mxu0
  %v2440 = vadd.f32 0.0, %v2439
  %v2441 = vpop.f32.mrf.mxu0
  %2442 = vmatprep.mubr.f32.mxu0 0.0
  %2443 = vmatmul.mubr.f32.gmra.mxu0 %v1454
  %v2444 = vpop.f32.mrf.mxu0
  %v2445 = vadd.f32 0.0, %v2444
  %v2446 = vpop.f32.mrf.mxu0
  %2447 = vmatprep.mubr.f32.mxu0 0.0
  %2448 = vmatmul.mubr.f32.gmra.mxu0 %v1455
  %v2449 = vpop.f32.mrf.mxu0
  %v2450 = vadd.f32 0.0, %v2449
  %v2451 = vpop.f32.mrf.mxu0
  %2452 = vmatprep.mubr.f32.mxu0 0.0
  %2453 = vmatmul.mubr.f32.gmra.mxu0 %v1456
  %v2454 = vpop.f32.mrf.mxu0
  %v2455 = vadd.f32 0.0, %v2454
  %v2456 = vpop.f32.mrf.mxu0
  %2457 = vmatprep.mubr.f32.mxu0 0.0
  %2458 = vmatmul.mubr.f32.gmra.mxu0 %v1457
  %v2459 = vpop.f32.mrf.mxu0
  %v2460 = vadd.f32 0.0, %v2459
  %v2461 = vpop.f32.mrf.mxu0
  %2462 = vmatprep.mubr.f32.mxu0 0.0
  %2463 = vmatmul.mubr.f32.gmra.mxu0 %v1458
  %v2464 = vpop.f32.mrf.mxu0
  %v2465 = vadd.f32 0.0, %v2464
  %v2466 = vpop.f32.mrf.mxu0
  %2467 = vmatprep.mubr.f32.mxu0 0.0
  %2468 = vmatmul.mubr.f32.gmra.mxu0 %v1459
  %v2469 = vpop.f32.mrf.mxu0
  %v2470 = vadd.f32 0.0, %v2469
  %v2471 = vpop.f32.mrf.mxu0
  %2472 = vmatprep.mubr.f32.mxu0 0.0
  %2473 = vmatmul.mubr.f32.gmra.mxu0 %v1460
  %v2474 = vpop.f32.mrf.mxu0
  %v2475 = vadd.f32 0.0, %v2474
  %v2476 = vpop.f32.mrf.mxu0
  %2477 = vmatprep.mubr.f32.mxu0 0.0
  %2478 = vmatmul.mubr.f32.gmra.mxu0 %v1461
  %v2479 = vpop.f32.mrf.mxu0
  %v2480 = vadd.f32 0.0, %v2479
  %v2481 = vpop.f32.mrf.mxu0
  %2482 = vmatprep.mubr.f32.mxu0 0.0
  %2483 = vmatmul.mubr.f32.gmra.mxu0 %v1462
  %v2484 = vpop.f32.mrf.mxu0
  %v2485 = vadd.f32 0.0, %v2484
  %v2486 = vpop.f32.mrf.mxu0
  %2487 = vmatprep.mubr.f32.mxu0 0.0
  %2488 = vmatmul.mubr.f32.gmra.mxu0 %v1463
  %v2489 = vpop.f32.mrf.mxu0
  %v2490 = vadd.f32 0.0, %v2489
  %v2491 = vpop.f32.mrf.mxu0
  %2492 = vmatprep.mubr.f32.mxu0 0.0
  %2493 = vmatmul.mubr.f32.gmra.mxu0 %v1464
  %v2494 = vpop.f32.mrf.mxu0
  %v2495 = vadd.f32 0.0, %v2494
  %v2496 = vpop.f32.mrf.mxu0
  %2497 = vmatprep.mubr.f32.mxu0 0.0
  %2498 = vmatmul.mubr.f32.gmra.mxu0 %v1465
  %v2499 = vpop.f32.mrf.mxu0
  %v2500 = vadd.f32 0.0, %v2499
  %v2501 = vpop.f32.mrf.mxu0
  %2502 = vmatprep.mubr.f32.mxu0 0.0
  %2503 = vmatmul.mubr.f32.gmra.mxu0 %v1466
  %v2504 = vpop.f32.mrf.mxu0
  %v2505 = vadd.f32 0.0, %v2504
  %v2506 = vpop.f32.mrf.mxu0
  %2507 = vmatprep.mubr.f32.mxu0 0.0
  %2508 = vmatmul.mubr.f32.gmra.mxu0 %v1467
  %v2509 = vpop.f32.mrf.mxu0
  %v2510 = vadd.f32 0.0, %v2509
  %v2511 = vpop.f32.mrf.mxu0
  %2512 = vdwg.mxu0
  %v2513 = vmax.f32 %v293, %v1535
  %v2514 = vmax.f32 %v298, %v1540
  %v2515 = vmax.f32 %v303, %v1545
  %v2516 = vmax.f32 %v308, %v1550
  %v2517 = vmax.f32 %v313, %v1555
  %v2518 = vmax.f32 %v318, %v1560
  %v2519 = vmax.f32 %v323, %v1565
  %v2520 = vmax.f32 %v328, %v1570
  %v2521 = vmax.f32 %v333, %v1575
  %v2522 = vmax.f32 %v338, %v1580
  %v2523 = vmax.f32 %v343, %v1585
  %v2524 = vmax.f32 %v348, %v1590
  %v2525 = vmax.f32 %v353, %v1595
  %v2526 = vmax.f32 %v358, %v1600
  %v2527 = vmax.f32 %v363, %v1605
  %v2528 = vmax.f32 %v368, %v1610
  %v2529 = vmax.f32 %v373, %v1615
  %v2530 = vmax.f32 %v378, %v1620
  %v2531 = vmax.f32 %v383, %v1625
  %v2532 = vmax.f32 %v388, %v1630
  %v2533 = vmax.f32 %v393, %v1635
  %v2534 = vmax.f32 %v398, %v1640
  %v2535 = vmax.f32 %v403, %v1645
  %v2536 = vmax.f32 %v408, %v1650
  %v2537 = vmax.f32 %v413, %v1655
  %v2538 = vmax.f32 %v418, %v1660
  %v2539 = vmax.f32 %v423, %v1665
  %v2540 = vmax.f32 %v428, %v1670
  %v2541 = vmax.f32 %v433, %v1675
  %v2542 = vmax.f32 %v438, %v1680
  %v2543 = vmax.f32 %v443, %v1685
  %v2544 = vmax.f32 %v448, %v1690
  %v2545 = vmax.f32 %v453, %v1695
  %v2546 = vmax.f32 %v458, %v1700
  %v2547 = vmax.f32 %v463, %v1705
  %v2548 = vmax.f32 %v468, %v1710
  %v2549 = vmax.f32 %v473, %v1715
  %v2550 = vmax.f32 %v478, %v1720
  %v2551 = vmax.f32 %v483, %v1725
  %v2552 = vmax.f32 %v488, %v1730
  %v2553 = vmax.f32 %v493, %v1735
  %v2554 = vmax.f32 %v498, %v1740
  %v2555 = vmax.f32 %v503, %v1745
  %v2556 = vmax.f32 %v508, %v1750
  %v2557 = vmax.f32 %v513, %v1755
  %v2558 = vmax.f32 %v518, %v1760
  %v2559 = vmax.f32 %v523, %v1765
  %v2560 = vmax.f32 %v528, %v1770
  %v2561 = vmax.f32 %v533, %v1775
  %v2562 = vmax.f32 %v538, %v1780
  %v2563 = vmax.f32 %v543, %v1785
  %v2564 = vmax.f32 %v548, %v1790
  %v2565 = vmax.f32 %v553, %v1795
  %v2566 = vmax.f32 %v558, %v1800
  %v2567 = vmax.f32 %v563, %v1805
  %v2568 = vmax.f32 %v568, %v1810
  %v2569 = vmax.f32 %v573, %v1815
  %v2570 = vmax.f32 %v578, %v1820
  %v2571 = vmax.f32 %v583, %v1825
  %v2572 = vmax.f32 %v588, %v1830
  %v2573 = vmax.f32 %v593, %v1835
  %v2574 = vmax.f32 %v598, %v1840
  %v2575 = vmax.f32 %v603, %v1845
  %v2576 = vmax.f32 %v608, %v1850
  %v2577 = vmax.f32 %v613, %v1855
  %v2578 = vmax.f32 %v618, %v1860
  %v2579 = vmax.f32 %v623, %v1865
  %v2580 = vmax.f32 %v628, %v1870
  %v2581 = vmax.f32 %v633, %v1875
  %v2582 = vmax.f32 %v638, %v1880
  %v2583 = vmax.f32 %v643, %v1885
  %v2584 = vmax.f32 %v648, %v1890
  %v2585 = vmax.f32 %v653, %v1895
  %v2586 = vmax.f32 %v658, %v1900
  %v2587 = vmax.f32 %v663, %v1905
  %v2588 = vmax.f32 %v668, %v1910
  %v2589 = vmax.f32 %v673, %v1915
  %v2590 = vmax.f32 %v678, %v1920
  %v2591 = vmax.f32 %v683, %v1925
  %v2592 = vmax.f32 %v688, %v1930
  %v2593 = vmax.f32 %v693, %v1935
  %v2594 = vmax.f32 %v698, %v1940
  %v2595 = vmax.f32 %v703, %v1945
  %v2596 = vmax.f32 %v708, %v1950
  %v2597 = vmax.f32 %v713, %v1955
  %v2598 = vmax.f32 %v718, %v1960
  %v2599 = vmax.f32 %v723, %v1965
  %v2600 = vmax.f32 %v728, %v1970
  %v2601 = vmax.f32 %v733, %v1975
  %v2602 = vmax.f32 %v738, %v1980
  %v2603 = vmax.f32 %v743, %v1985
  %v2604 = vmax.f32 %v748, %v1990
  %v2605 = vmax.f32 %v753, %v1995
  %v2606 = vmax.f32 %v758, %v2000
  %v2607 = vmax.f32 %v763, %v2005
  %v2608 = vmax.f32 %v768, %v2010
  %v2609 = vmax.f32 %v773, %v2015
  %v2610 = vmax.f32 %v778, %v2020
  %v2611 = vmax.f32 %v783, %v2025
  %v2612 = vmax.f32 %v788, %v2030
  %v2613 = vmax.f32 %v793, %v2035
  %v2614 = vmax.f32 %v798, %v2040
  %v2615 = vmax.f32 %v803, %v2045
  %v2616 = vmax.f32 %v808, %v2050
  %v2617 = vmax.f32 %v813, %v2055
  %v2618 = vmax.f32 %v818, %v2060
  %v2619 = vmax.f32 %v823, %v2065
  %v2620 = vmax.f32 %v828, %v2070
  %v2621 = vmax.f32 %v833, %v2075
  %v2622 = vmax.f32 %v838, %v2080
  %v2623 = vmax.f32 %v843, %v2085
  %v2624 = vmax.f32 %v848, %v2090
  %v2625 = vmax.f32 %v853, %v2095
  %v2626 = vmax.f32 %v858, %v2100
  %v2627 = vmax.f32 %v863, %v2105
  %v2628 = vmax.f32 %v868, %v2110
  %v2629 = vmax.f32 %v873, %v2115
  %v2630 = vmax.f32 %v878, %v2120
  %v2631 = vmax.f32 %v883, %v2125
  %v2632 = vmax.f32 %v888, %v2130
  %v2633 = vmax.f32 %v893, %v2135
  %v2634 = vmax.f32 %v898, %v2140
  %v2635 = vmax.f32 %v903, %v2145
  %v2636 = vmax.f32 %v908, %v2150
  %v2637 = vmax.f32 %v913, %v2155
  %v2638 = vmax.f32 %v918, %v2160
  %v2639 = vmax.f32 %v923, %v2165
  %v2640 = vmax.f32 %v928, %v2170
  %v2641 = vmax.f32 %v933, %v2175
  %v2642 = vmax.f32 %v938, %v2180
  %v2643 = vmax.f32 %v943, %v2185
  %v2644 = vmax.f32 %v948, %v2190
  %v2645 = vmax.f32 %v953, %v2195
  %v2646 = vmax.f32 %v958, %v2200
  %v2647 = vmax.f32 %v963, %v2205
  %v2648 = vmax.f32 %v968, %v2210
  %v2649 = vmax.f32 %v973, %v2215
  %v2650 = vmax.f32 %v978, %v2220
  %v2651 = vmax.f32 %v983, %v2225
  %v2652 = vmax.f32 %v988, %v2230
  %v2653 = vmax.f32 %v993, %v2235
  %v2654 = vmax.f32 %v998, %v2240
  %v2655 = vmax.f32 %v1003, %v2245
  %v2656 = vmax.f32 %v1008, %v2250
  %v2657 = vmax.f32 %v1013, %v2255
  %v2658 = vmax.f32 %v1018, %v2260
  %v2659 = vmax.f32 %v1023, %v2265
  %v2660 = vmax.f32 %v1028, %v2270
  %v2661 = vmax.f32 %v1033, %v2275
  %v2662 = vmax.f32 %v1038, %v2280
  %v2663 = vmax.f32 %v1043, %v2285
  %v2664 = vmax.f32 %v1048, %v2290
  %v2665 = vmax.f32 %v1053, %v2295
  %v2666 = vmax.f32 %v1058, %v2300
  %v2667 = vmax.f32 %v1063, %v2305
  %v2668 = vmax.f32 %v1068, %v2310
  %v2669 = vmax.f32 %v1073, %v2315
  %v2670 = vmax.f32 %v1078, %v2320
  %v2671 = vmax.f32 %v1083, %v2325
  %v2672 = vmax.f32 %v1088, %v2330
  %v2673 = vmax.f32 %v1093, %v2335
  %v2674 = vmax.f32 %v1098, %v2340
  %v2675 = vmax.f32 %v1103, %v2345
  %v2676 = vmax.f32 %v1108, %v2350
  %v2677 = vmax.f32 %v1113, %v2355
  %v2678 = vmax.f32 %v1118, %v2360
  %v2679 = vmax.f32 %v1123, %v2365
  %v2680 = vmax.f32 %v1128, %v2370
  %v2681 = vmax.f32 %v1133, %v2375
  %v2682 = vmax.f32 %v1138, %v2380
  %v2683 = vmax.f32 %v1143, %v2385
  %v2684 = vmax.f32 %v1148, %v2390
  %v2685 = vmax.f32 %v1153, %v2395
  %v2686 = vmax.f32 %v1158, %v2400
  %v2687 = vmax.f32 %v1163, %v2405
  %v2688 = vmax.f32 %v1168, %v2410
  %v2689 = vmax.f32 %v1173, %v2415
  %v2690 = vmax.f32 %v1178, %v2420
  %v2691 = vmax.f32 %v1183, %v2425
  %v2692 = vmax.f32 %v1188, %v2430
  %v2693 = vmax.f32 %v1193, %v2435
  %v2694 = vmax.f32 %v1198, %v2440
  %v2695 = vmax.f32 %v1203, %v2445
  %v2696 = vmax.f32 %v1208, %v2450
  %v2697 = vmax.f32 %v1213, %v2455
  %v2698 = vmax.f32 %v1218, %v2460
  %v2699 = vmax.f32 %v1223, %v2465
  %v2700 = vmax.f32 %v1228, %v2470
  %v2701 = vmax.f32 %v1233, %v2475
  %v2702 = vmax.f32 %v1238, %v2480
  %v2703 = vmax.f32 %v1243, %v2485
  %v2704 = vmax.f32 %v1248, %v2490
  %v2705 = vmax.f32 %v1253, %v2495
  %v2706 = vmax.f32 %v1258, %v2500
  %v2707 = vmax.f32 %v1263, %v2505
  %v2708 = vmax.f32 %v1268, %v2510
  %s2709 = scalar_lea.vmem %s0, 3136
  %v2710 = vld [vmem:[%s2709] sm:$0xff]
  %v2711 = vld [vmem:[%s2709 + $0x8] sm:$0xff]
  %v2712 = vld [vmem:[%s2709 + $0x10] sm:$0xff]
  %v2713 = vld [vmem:[%s2709 + $0x18] sm:$0xff]
  %v2714 = vld [vmem:[%s2709 + $0x20] sm:$0xff]
  %v2715 = vld [vmem:[%s2709 + $0x28] sm:$0xff]
  %v2716 = vld [vmem:[%s2709 + $0x30] sm:$0xff]
  %v2717 = vld [vmem:[%s2709 + $0x38] sm:$0xff]
  %v2718 = vld [vmem:[%s2709 + $0x40] sm:$0xff]
  %v2719 = vld [vmem:[%s2709 + $0x48] sm:$0xff]
  %v2720 = vld [vmem:[%s2709 + $0x50] sm:$0xff]
  %v2721 = vld [vmem:[%s2709 + $0x58] sm:$0xff]
  %v2722 = vld [vmem:[%s2709 + $0x60] sm:$0xff]
  %v2723 = vld [vmem:[%s2709 + $0x68] sm:$0xff]
  %v2724 = vld [vmem:[%s2709 + $0x70] sm:$0xff]
  %v2725 = vld [vmem:[%s2709 + $0x78] sm:$0xff]
  %v2726 = vld [vmem:[%s2709 + $0x80] sm:$0xff]
  %v2727 = vld [vmem:[%s2709 + $0x88] sm:$0xff]
  %v2728 = vld [vmem:[%s2709 + $0x90] sm:$0xff]
  %v2729 = vld [vmem:[%s2709 + $0x98] sm:$0xff]
  %v2730 = vld [vmem:[%s2709 + $0xa0] sm:$0xff]
  %v2731 = vld [vmem:[%s2709 + $0xa8] sm:$0xff]
  %v2732 = vld [vmem:[%s2709 + $0xb0] sm:$0xff]
  %v2733 = vld [vmem:[%s2709 + $0xb8] sm:$0xff]
  %v2734 = vld [vmem:[%s2709 + $0xc0] sm:$0xff]
  %v2735 = vld [vmem:[%s2709 + $0xc8] sm:$0xff]
  %v2736 = vld [vmem:[%s2709 + $0xd0] sm:$0xff]
  %v2737 = vld [vmem:[%s2709 + $0xd8] sm:$0xff]
  %v2738 = vld [vmem:[%s2709 + $0xe0] sm:$0xff]
  %v2739 = vld [vmem:[%s2709 + $0xe8] sm:$0xff]
  %v2740 = vld [vmem:[%s2709 + $0xf0] sm:$0xff]
  %v2741 = vld [vmem:[%s2709 + $0xf8] sm:$0xff]
  %v2742 = vld [vmem:[%s2709 + $0x100] sm:$0xff]
  %v2743 = vld [vmem:[%s2709 + $0x108] sm:$0xff]
  %v2744 = vld [vmem:[%s2709 + $0x110] sm:$0xff]
  %v2745 = vld [vmem:[%s2709 + $0x118] sm:$0xff]
  %v2746 = vld [vmem:[%s2709 + $0x120] sm:$0xff]
  %v2747 = vld [vmem:[%s2709 + $0x128] sm:$0xff]
  %v2748 = vld [vmem:[%s2709 + $0x130] sm:$0xff]
  %v2749 = vld [vmem:[%s2709 + $0x138] sm:$0xff]
  %v2750 = vld [vmem:[%s2709 + $0x140] sm:$0xff]
  %v2751 = vld [vmem:[%s2709 + $0x148] sm:$0xff]
  %v2752 = vld [vmem:[%s2709 + $0x150] sm:$0xff]
  %v2753 = vld [vmem:[%s2709 + $0x158] sm:$0xff]
  %v2754 = vld [vmem:[%s2709 + $0x160] sm:$0xff]
  %v2755 = vld [vmem:[%s2709 + $0x168] sm:$0xff]
  %v2756 = vld [vmem:[%s2709 + $0x170] sm:$0xff]
  %v2757 = vld [vmem:[%s2709 + $0x178] sm:$0xff]
  %v2758 = vld [vmem:[%s2709 + $0x180] sm:$0xff]
  %v2759 = vld [vmem:[%s2709 + $0x188] sm:$0xff]
  %v2760 = vld [vmem:[%s2709 + $0x190] sm:$0xff]
  %v2761 = vld [vmem:[%s2709 + $0x198] sm:$0xff]
  %v2762 = vld [vmem:[%s2709 + $0x1a0] sm:$0xff]
  %v2763 = vld [vmem:[%s2709 + $0x1a8] sm:$0xff]
  %v2764 = vld [vmem:[%s2709 + $0x1b0] sm:$0xff]
  %v2765 = vld [vmem:[%s2709 + $0x1b8] sm:$0xff]
  %v2766 = vld [vmem:[%s2709 + $0x1c0] sm:$0xff]
  %v2767 = vld [vmem:[%s2709 + $0x1c8] sm:$0xff]
  %v2768 = vld [vmem:[%s2709 + $0x1d0] sm:$0xff]
  %v2769 = vld [vmem:[%s2709 + $0x1d8] sm:$0xff]
  %v2770 = vld [vmem:[%s2709 + $0x1e0] sm:$0xff]
  %v2771 = vld [vmem:[%s2709 + $0x1e8] sm:$0xff]
  %v2772 = vld [vmem:[%s2709 + $0x1f0] sm:$0xff]
  %v2773 = vld [vmem:[%s2709 + $0x1f8] sm:$0xff]
  %v2774 = vld [vmem:[%s2709 + $0x200] sm:$0xff]
  %v2775 = vld [vmem:[%s2709 + $0x208] sm:$0xff]
  %v2776 = vld [vmem:[%s2709 + $0x210] sm:$0xff]
  %v2777 = vld [vmem:[%s2709 + $0x218] sm:$0xff]
  %v2778 = vld [vmem:[%s2709 + $0x220] sm:$0xff]
  %v2779 = vld [vmem:[%s2709 + $0x228] sm:$0xff]
  %v2780 = vld [vmem:[%s2709 + $0x230] sm:$0xff]
  %v2781 = vld [vmem:[%s2709 + $0x238] sm:$0xff]
  %v2782 = vld [vmem:[%s2709 + $0x240] sm:$0xff]
  %v2783 = vld [vmem:[%s2709 + $0x248] sm:$0xff]
  %v2784 = vld [vmem:[%s2709 + $0x250] sm:$0xff]
  %v2785 = vld [vmem:[%s2709 + $0x258] sm:$0xff]
  %v2786 = vld [vmem:[%s2709 + $0x260] sm:$0xff]
  %v2787 = vld [vmem:[%s2709 + $0x268] sm:$0xff]
  %v2788 = vld [vmem:[%s2709 + $0x270] sm:$0xff]
  %v2789 = vld [vmem:[%s2709 + $0x278] sm:$0xff]
  %v2790 = vld [vmem:[%s2709 + $0x280] sm:$0xff]
  %v2791 = vld [vmem:[%s2709 + $0x288] sm:$0xff]
  %v2792 = vld [vmem:[%s2709 + $0x290] sm:$0xff]
  %v2793 = vld [vmem:[%s2709 + $0x298] sm:$0xff]
  %v2794 = vld [vmem:[%s2709 + $0x2a0] sm:$0xff]
  %v2795 = vld [vmem:[%s2709 + $0x2a8] sm:$0xff]
  %v2796 = vld [vmem:[%s2709 + $0x2b0] sm:$0xff]
  %v2797 = vld [vmem:[%s2709 + $0x2b8] sm:$0xff]
  %v2798 = vld [vmem:[%s2709 + $0x2c0] sm:$0xff]
  %v2799 = vld [vmem:[%s2709 + $0x2c8] sm:$0xff]
  %v2800 = vld [vmem:[%s2709 + $0x2d0] sm:$0xff]
  %v2801 = vld [vmem:[%s2709 + $0x2d8] sm:$0xff]
  %v2802 = vld [vmem:[%s2709 + $0x2e0] sm:$0xff]
  %v2803 = vld [vmem:[%s2709 + $0x2e8] sm:$0xff]
  %v2804 = vld [vmem:[%s2709 + $0x2f0] sm:$0xff]
  %v2805 = vld [vmem:[%s2709 + $0x2f8] sm:$0xff]
  %v2806 = vld [vmem:[%s2709 + $0x300] sm:$0xff]
  %v2807 = vld [vmem:[%s2709 + $0x308] sm:$0xff]
  %v2808 = vld [vmem:[%s2709 + $0x310] sm:$0xff]
  %v2809 = vld [vmem:[%s2709 + $0x318] sm:$0xff]
  %v2810 = vld [vmem:[%s2709 + $0x320] sm:$0xff]
  %v2811 = vld [vmem:[%s2709 + $0x328] sm:$0xff]
  %v2812 = vld [vmem:[%s2709 + $0x330] sm:$0xff]
  %v2813 = vld [vmem:[%s2709 + $0x338] sm:$0xff]
  %v2814 = vld [vmem:[%s2709 + $0x340] sm:$0xff]
  %v2815 = vld [vmem:[%s2709 + $0x348] sm:$0xff]
  %v2816 = vld [vmem:[%s2709 + $0x350] sm:$0xff]
  %v2817 = vld [vmem:[%s2709 + $0x358] sm:$0xff]
  %v2818 = vld [vmem:[%s2709 + $0x360] sm:$0xff]
  %v2819 = vld [vmem:[%s2709 + $0x368] sm:$0xff]
  %v2820 = vld [vmem:[%s2709 + $0x370] sm:$0xff]
  %v2821 = vld [vmem:[%s2709 + $0x378] sm:$0xff]
  %v2822 = vld [vmem:[%s2709 + $0x380] sm:$0xff]
  %v2823 = vld [vmem:[%s2709 + $0x388] sm:$0xff]
  %v2824 = vld [vmem:[%s2709 + $0x390] sm:$0xff]
  %v2825 = vld [vmem:[%s2709 + $0x398] sm:$0xff]
  %v2826 = vld [vmem:[%s2709 + $0x3a0] sm:$0xff]
  %v2827 = vld [vmem:[%s2709 + $0x3a8] sm:$0xff]
  %v2828 = vld [vmem:[%s2709 + $0x3b0] sm:$0xff]
  %v2829 = vld [vmem:[%s2709 + $0x3b8] sm:$0xff]
  %v2830 = vld [vmem:[%s2709 + $0x3c0] sm:$0xff]
  %v2831 = vld [vmem:[%s2709 + $0x3c8] sm:$0xff]
  %v2832 = vld [vmem:[%s2709 + $0x3d0] sm:$0xff]
  %v2833 = vld [vmem:[%s2709 + $0x3d8] sm:$0xff]
  %v2834 = vld [vmem:[%s2709 + $0x3e0] sm:$0xff]
  %v2835 = vld [vmem:[%s2709 + $0x3e8] sm:$0xff]
  %v2836 = vld [vmem:[%s2709 + $0x3f0] sm:$0xff]
  %v2837 = vld [vmem:[%s2709 + $0x3f8] sm:$0xff]
  %v2838 = vld [vmem:[%s2709 + $0x400] sm:$0xff]
  %v2839 = vld [vmem:[%s2709 + $0x408] sm:$0xff]
  %v2840 = vld [vmem:[%s2709 + $0x410] sm:$0xff]
  %v2841 = vld [vmem:[%s2709 + $0x418] sm:$0xff]
  %v2842 = vld [vmem:[%s2709 + $0x420] sm:$0xff]
  %v2843 = vld [vmem:[%s2709 + $0x428] sm:$0xff]
  %v2844 = vld [vmem:[%s2709 + $0x430] sm:$0xff]
  %v2845 = vld [vmem:[%s2709 + $0x438] sm:$0xff]
  %v2846 = vld [vmem:[%s2709 + $0x440] sm:$0xff]
  %v2847 = vld [vmem:[%s2709 + $0x448] sm:$0xff]
  %v2848 = vld [vmem:[%s2709 + $0x450] sm:$0xff]
  %v2849 = vld [vmem:[%s2709 + $0x458] sm:$0xff]
  %v2850 = vld [vmem:[%s2709 + $0x460] sm:$0xff]
  %v2851 = vld [vmem:[%s2709 + $0x468] sm:$0xff]
  %v2852 = vld [vmem:[%s2709 + $0x470] sm:$0xff]
  %v2853 = vld [vmem:[%s2709 + $0x478] sm:$0xff]
  %v2854 = vld [vmem:[%s2709 + $0x480] sm:$0xff]
  %v2855 = vld [vmem:[%s2709 + $0x488] sm:$0xff]
  %v2856 = vld [vmem:[%s2709 + $0x490] sm:$0xff]
  %v2857 = vld [vmem:[%s2709 + $0x498] sm:$0xff]
  %v2858 = vld [vmem:[%s2709 + $0x4a0] sm:$0xff]
  %v2859 = vld [vmem:[%s2709 + $0x4a8] sm:$0xff]
  %v2860 = vld [vmem:[%s2709 + $0x4b0] sm:$0xff]
  %v2861 = vld [vmem:[%s2709 + $0x4b8] sm:$0xff]
  %v2862 = vld [vmem:[%s2709 + $0x4c0] sm:$0xff]
  %v2863 = vld [vmem:[%s2709 + $0x4c8] sm:$0xff]
  %v2864 = vld [vmem:[%s2709 + $0x4d0] sm:$0xff]
  %v2865 = vld [vmem:[%s2709 + $0x4d8] sm:$0xff]
  %v2866 = vld [vmem:[%s2709 + $0x4e0] sm:$0xff]
  %v2867 = vld [vmem:[%s2709 + $0x4e8] sm:$0xff]
  %v2868 = vld [vmem:[%s2709 + $0x4f0] sm:$0xff]
  %v2869 = vld [vmem:[%s2709 + $0x4f8] sm:$0xff]
  %v2870 = vld [vmem:[%s2709 + $0x500] sm:$0xff]
  %v2871 = vld [vmem:[%s2709 + $0x508] sm:$0xff]
  %v2872 = vld [vmem:[%s2709 + $0x510] sm:$0xff]
  %v2873 = vld [vmem:[%s2709 + $0x518] sm:$0xff]
  %v2874 = vld [vmem:[%s2709 + $0x520] sm:$0xff]
  %v2875 = vld [vmem:[%s2709 + $0x528] sm:$0xff]
  %v2876 = vld [vmem:[%s2709 + $0x530] sm:$0xff]
  %v2877 = vld [vmem:[%s2709 + $0x538] sm:$0xff]
  %v2878 = vld [vmem:[%s2709 + $0x540] sm:$0xff]
  %v2879 = vld [vmem:[%s2709 + $0x548] sm:$0xff]
  %v2880 = vld [vmem:[%s2709 + $0x550] sm:$0xff]
  %v2881 = vld [vmem:[%s2709 + $0x558] sm:$0xff]
  %v2882 = vld [vmem:[%s2709 + $0x560] sm:$0xff]
  %v2883 = vld [vmem:[%s2709 + $0x568] sm:$0xff]
  %v2884 = vld [vmem:[%s2709 + $0x570] sm:$0xff]
  %v2885 = vld [vmem:[%s2709 + $0x578] sm:$0xff]
  %v2886 = vld [vmem:[%s2709 + $0x580] sm:$0xff]
  %v2887 = vld [vmem:[%s2709 + $0x588] sm:$0xff]
  %v2888 = vld [vmem:[%s2709 + $0x590] sm:$0xff]
  %v2889 = vld [vmem:[%s2709 + $0x598] sm:$0xff]
  %v2890 = vld [vmem:[%s2709 + $0x5a0] sm:$0xff]
  %v2891 = vld [vmem:[%s2709 + $0x5a8] sm:$0xff]
  %v2892 = vld [vmem:[%s2709 + $0x5b0] sm:$0xff]
  %v2893 = vld [vmem:[%s2709 + $0x5b8] sm:$0xff]
  %v2894 = vld [vmem:[%s2709 + $0x5c0] sm:$0xff]
  %v2895 = vld [vmem:[%s2709 + $0x5c8] sm:$0xff]
  %v2896 = vld [vmem:[%s2709 + $0x5d0] sm:$0xff]
  %v2897 = vld [vmem:[%s2709 + $0x5d8] sm:$0xff]
  %v2898 = vld [vmem:[%s2709 + $0x5e0] sm:$0xff]
  %v2899 = vld [vmem:[%s2709 + $0x5e8] sm:$0xff]
  %v2900 = vld [vmem:[%s2709 + $0x5f0] sm:$0xff]
  %v2901 = vld [vmem:[%s2709 + $0x5f8] sm:$0xff]
  %v2902 = vld [vmem:[%s2709 + $0x600] sm:$0xff]
  %v2903 = vld [vmem:[%s2709 + $0x608] sm:$0xff]
  %v2904 = vld [vmem:[%s2709 + $0x610] sm:$0xff]
  %v2905 = vld [vmem:[%s2709 + $0x618] sm:$0xff]
  %2906 = vmatprep.subr.mxu0 0.0
  %2907 = vmatpush1.msra.mxu0 %v29
  %2908 = vmatprep.subr.mxu0 0.0
  %2909 = vmatpush1.msra.mxu0 %v28
  %2910 = vmatprep.subr.mxu0 0.0
  %2911 = vmatpush1.msra.mxu0 %v27
  %2912 = vmatprep.subr.mxu0 0.0
  %2913 = vmatpush1.msra.mxu0 %v26
  %2914 = vmatprep.subr.mxu0 0.0
  %2915 = vmatpush1.msra.mxu0 %v25
  %2916 = vmatprep.subr.mxu0 0.0
  %2917 = vmatpush1.msra.mxu0 %v24
  %2918 = vmatprep.subr.mxu0 0.0
  %2919 = vmatpush1.msra.mxu0 %v23
  %2920 = vmatprep.subr.mxu0 0.0
  %2921 = vmatpush1.msra.mxu0 %v22
  %2922 = vmatprep.subr.mxu0 0.0
  %2923 = vmatpush1.msra.mxu0 %v21
  %2924 = vmatprep.subr.mxu0 0.0
  %2925 = vmatpush1.msra.mxu0 %v20
  %2926 = vmatprep.subr.mxu0 0.0
  %2927 = vmatpush1.msra.mxu0 %v19
  %2928 = vmatprep.subr.mxu0 0.0
  %2929 = vmatpush1.msra.mxu0 %v18
  %2930 = vmatprep.subr.mxu0 0.0
  %2931 = vmatpush1.msra.mxu0 %v17
  %2932 = vmatprep.subr.mxu0 0.0
  %2933 = vmatpush1.msra.mxu0 %v16
  %2934 = vmatprep.subr.mxu0 0.0
  %2935 = vmatpush1.msra.mxu0 %v15
  %2936 = vmatprep.subr.mxu0 0.0
  %2937 = vmatpush1.msra.mxu0 %v14
  %2938 = vmatprep.subr.mxu0 0.0
  %2939 = vmatpush2.msra.mxu0 0.0
  %2940 = vmatprep.subr.mxu0 0.0
  %2941 = vmatpush2.msra.mxu0 0.0
  %2942 = vmatprep.subr.mxu0 0.0
  %2943 = vmatpush2.msra.mxu0 0.0
  %2944 = vmatprep.subr.mxu0 0.0
  %2945 = vmatpush2.msra.mxu0 0.0
  %2946 = vmatprep.subr.mxu0 0.0
  %2947 = vmatpush2.msra.mxu0 0.0
  %2948 = vmatprep.subr.mxu0 0.0
  %2949 = vmatpush2.msra.mxu0 0.0
  %2950 = vmatprep.subr.mxu0 0.0
  %2951 = vmatpush2.msra.mxu0 0.0
  %2952 = vmatprep.subr.mxu0 0.0
  %2953 = vmatpush2.msra.mxu0 0.0
  %2954 = vmatprep.subr.mxu0 0.0
  %2955 = vmatpush2.msra.mxu0 0.0
  %2956 = vmatprep.subr.mxu0 0.0
  %2957 = vmatpush2.msra.mxu0 0.0
  %2958 = vmatprep.subr.mxu0 0.0
  %2959 = vmatpush2.msra.mxu0 0.0
  %2960 = vmatprep.subr.mxu0 0.0
  %2961 = vmatpush2.msra.mxu0 0.0
  %2962 = vmatprep.subr.mxu0 0.0
  %2963 = vmatpush2.msra.mxu0 0.0
  %2964 = vmatprep.subr.mxu0 0.0
  %2965 = vmatpush2.msra.mxu0 0.0
  %2966 = vmatprep.subr.mxu0 0.0
  %2967 = vmatpush2.msra.mxu0 0.0
  %2968 = vmatprep.subr.mxu0 0.0
  %2969 = vmatpush2.msra.mxu0 0.0
  %2970 = vmatprep.mubr.f32.mxu0 0.0
  %2971 = vmatmul.mubr.f32.gmra.mxu0 %v2710
  %v2972 = vpop.f32.mrf.mxu0
  %v2973 = vadd.f32 0.0, %v2972
  %v2974 = vpop.f32.mrf.mxu0
  %2975 = vmatprep.mubr.f32.mxu0 0.0
  %2976 = vmatmul.mubr.f32.gmra.mxu0 %v2711
  %v2977 = vpop.f32.mrf.mxu0
  %v2978 = vadd.f32 0.0, %v2977
  %v2979 = vpop.f32.mrf.mxu0
  %2980 = vmatprep.mubr.f32.mxu0 0.0
  %2981 = vmatmul.mubr.f32.gmra.mxu0 %v2712
  %v2982 = vpop.f32.mrf.mxu0
  %v2983 = vadd.f32 0.0, %v2982
  %v2984 = vpop.f32.mrf.mxu0
  %2985 = vmatprep.mubr.f32.mxu0 0.0
  %2986 = vmatmul.mubr.f32.gmra.mxu0 %v2713
  %v2987 = vpop.f32.mrf.mxu0
  %v2988 = vadd.f32 0.0, %v2987
  %v2989 = vpop.f32.mrf.mxu0
  %2990 = vmatprep.mubr.f32.mxu0 0.0
  %2991 = vmatmul.mubr.f32.gmra.mxu0 %v2714
  %v2992 = vpop.f32.mrf.mxu0
  %v2993 = vadd.f32 0.0, %v2992
  %v2994 = vpop.f32.mrf.mxu0
  %2995 = vmatprep.mubr.f32.mxu0 0.0
  %2996 = vmatmul.mubr.f32.gmra.mxu0 %v2715
  %v2997 = vpop.f32.mrf.mxu0
  %v2998 = vadd.f32 0.0, %v2997
  %v2999 = vpop.f32.mrf.mxu0
  %3000 = vmatprep.mubr.f32.mxu0 0.0
  %3001 = vmatmul.mubr.f32.gmra.mxu0 %v2716
  %v3002 = vpop.f32.mrf.mxu0
  %v3003 = vadd.f32 0.0, %v3002
  %v3004 = vpop.f32.mrf.mxu0
  %3005 = vmatprep.mubr.f32.mxu0 0.0
  %3006 = vmatmul.mubr.f32.gmra.mxu0 %v2717
  %v3007 = vpop.f32.mrf.mxu0
  %v3008 = vadd.f32 0.0, %v3007
  %v3009 = vpop.f32.mrf.mxu0
  %3010 = vmatprep.mubr.f32.mxu0 0.0
  %3011 = vmatmul.mubr.f32.gmra.mxu0 %v2718
  %v3012 = vpop.f32.mrf.mxu0
  %v3013 = vadd.f32 0.0, %v3012
  %v3014 = vpop.f32.mrf.mxu0
  %3015 = vmatprep.mubr.f32.mxu0 0.0
  %3016 = vmatmul.mubr.f32.gmra.mxu0 %v2719
  %v3017 = vpop.f32.mrf.mxu0
  %v3018 = vadd.f32 0.0, %v3017
  %v3019 = vpop.f32.mrf.mxu0
  %3020 = vmatprep.mubr.f32.mxu0 0.0
  %3021 = vmatmul.mubr.f32.gmra.mxu0 %v2720
  %v3022 = vpop.f32.mrf.mxu0
  %v3023 = vadd.f32 0.0, %v3022
  %v3024 = vpop.f32.mrf.mxu0
  %3025 = vmatprep.mubr.f32.mxu0 0.0
  %3026 = vmatmul.mubr.f32.gmra.mxu0 %v2721
  %v3027 = vpop.f32.mrf.mxu0
  %v3028 = vadd.f32 0.0, %v3027
  %v3029 = vpop.f32.mrf.mxu0
  %3030 = vmatprep.mubr.f32.mxu0 0.0
  %3031 = vmatmul.mubr.f32.gmra.mxu0 %v2722
  %v3032 = vpop.f32.mrf.mxu0
  %v3033 = vadd.f32 0.0, %v3032
  %v3034 = vpop.f32.mrf.mxu0
  %3035 = vmatprep.mubr.f32.mxu0 0.0
  %3036 = vmatmul.mubr.f32.gmra.mxu0 %v2723
  %v3037 = vpop.f32.mrf.mxu0
  %v3038 = vadd.f32 0.0, %v3037
  %v3039 = vpop.f32.mrf.mxu0
  %3040 = vmatprep.mubr.f32.mxu0 0.0
  %3041 = vmatmul.mubr.f32.gmra.mxu0 %v2724
  %v3042 = vpop.f32.mrf.mxu0
  %v3043 = vadd.f32 0.0, %v3042
  %v3044 = vpop.f32.mrf.mxu0
  %3045 = vmatprep.mubr.f32.mxu0 0.0
  %3046 = vmatmul.mubr.f32.gmra.mxu0 %v2725
  %v3047 = vpop.f32.mrf.mxu0
  %v3048 = vadd.f32 0.0, %v3047
  %v3049 = vpop.f32.mrf.mxu0
  %3050 = vmatprep.mubr.f32.mxu0 0.0
  %3051 = vmatmul.mubr.f32.gmra.mxu0 %v2726
  %v3052 = vpop.f32.mrf.mxu0
  %v3053 = vadd.f32 0.0, %v3052
  %v3054 = vpop.f32.mrf.mxu0
  %3055 = vmatprep.mubr.f32.mxu0 0.0
  %3056 = vmatmul.mubr.f32.gmra.mxu0 %v2727
  %v3057 = vpop.f32.mrf.mxu0
  %v3058 = vadd.f32 0.0, %v3057
  %v3059 = vpop.f32.mrf.mxu0
  %3060 = vmatprep.mubr.f32.mxu0 0.0
  %3061 = vmatmul.mubr.f32.gmra.mxu0 %v2728
  %v3062 = vpop.f32.mrf.mxu0
  %v3063 = vadd.f32 0.0, %v3062
  %v3064 = vpop.f32.mrf.mxu0
  %3065 = vmatprep.mubr.f32.mxu0 0.0
  %3066 = vmatmul.mubr.f32.gmra.mxu0 %v2729
  %v3067 = vpop.f32.mrf.mxu0
  %v3068 = vadd.f32 0.0, %v3067
  %v3069 = vpop.f32.mrf.mxu0
  %3070 = vmatprep.mubr.f32.mxu0 0.0
  %3071 = vmatmul.mubr.f32.gmra.mxu0 %v2730
  %v3072 = vpop.f32.mrf.mxu0
  %v3073 = vadd.f32 0.0, %v3072
  %v3074 = vpop.f32.mrf.mxu0
  %3075 = vmatprep.mubr.f32.mxu0 0.0
  %3076 = vmatmul.mubr.f32.gmra.mxu0 %v2731
  %v3077 = vpop.f32.mrf.mxu0
  %v3078 = vadd.f32 0.0, %v3077
  %v3079 = vpop.f32.mrf.mxu0
  %3080 = vmatprep.mubr.f32.mxu0 0.0
  %3081 = vmatmul.mubr.f32.gmra.mxu0 %v2732
  %v3082 = vpop.f32.mrf.mxu0
  %v3083 = vadd.f32 0.0, %v3082
  %v3084 = vpop.f32.mrf.mxu0
  %3085 = vmatprep.mubr.f32.mxu0 0.0
  %3086 = vmatmul.mubr.f32.gmra.mxu0 %v2733
  %v3087 = vpop.f32.mrf.mxu0
  %v3088 = vadd.f32 0.0, %v3087
  %v3089 = vpop.f32.mrf.mxu0
  %3090 = vmatprep.mubr.f32.mxu0 0.0
  %3091 = vmatmul.mubr.f32.gmra.mxu0 %v2734
  %v3092 = vpop.f32.mrf.mxu0
  %v3093 = vadd.f32 0.0, %v3092
  %v3094 = vpop.f32.mrf.mxu0
  %3095 = vmatprep.mubr.f32.mxu0 0.0
  %3096 = vmatmul.mubr.f32.gmra.mxu0 %v2735
  %v3097 = vpop.f32.mrf.mxu0
  %v3098 = vadd.f32 0.0, %v3097
  %v3099 = vpop.f32.mrf.mxu0
  %3100 = vmatprep.mubr.f32.mxu0 0.0
  %3101 = vmatmul.mubr.f32.gmra.mxu0 %v2736
  %v3102 = vpop.f32.mrf.mxu0
  %v3103 = vadd.f32 0.0, %v3102
  %v3104 = vpop.f32.mrf.mxu0
  %3105 = vmatprep.mubr.f32.mxu0 0.0
  %3106 = vmatmul.mubr.f32.gmra.mxu0 %v2737
  %v3107 = vpop.f32.mrf.mxu0
  %v3108 = vadd.f32 0.0, %v3107
  %v3109 = vpop.f32.mrf.mxu0
  %3110 = vmatprep.mubr.f32.mxu0 0.0
  %3111 = vmatmul.mubr.f32.gmra.mxu0 %v2738
  %v3112 = vpop.f32.mrf.mxu0
  %v3113 = vadd.f32 0.0, %v3112
  %v3114 = vpop.f32.mrf.mxu0
  %3115 = vmatprep.mubr.f32.mxu0 0.0
  %3116 = vmatmul.mubr.f32.gmra.mxu0 %v2739
  %v3117 = vpop.f32.mrf.mxu0
  %v3118 = vadd.f32 0.0, %v3117
  %v3119 = vpop.f32.mrf.mxu0
  %3120 = vmatprep.mubr.f32.mxu0 0.0
  %3121 = vmatmul.mubr.f32.gmra.mxu0 %v2740
  %v3122 = vpop.f32.mrf.mxu0
  %v3123 = vadd.f32 0.0, %v3122
  %v3124 = vpop.f32.mrf.mxu0
  %3125 = vmatprep.mubr.f32.mxu0 0.0
  %3126 = vmatmul.mubr.f32.gmra.mxu0 %v2741
  %v3127 = vpop.f32.mrf.mxu0
  %v3128 = vadd.f32 0.0, %v3127
  %v3129 = vpop.f32.mrf.mxu0
  %3130 = vmatprep.mubr.f32.mxu0 0.0
  %3131 = vmatmul.mubr.f32.gmra.mxu0 %v2742
  %v3132 = vpop.f32.mrf.mxu0
  %v3133 = vadd.f32 0.0, %v3132
  %v3134 = vpop.f32.mrf.mxu0
  %3135 = vmatprep.mubr.f32.mxu0 0.0
  %3136 = vmatmul.mubr.f32.gmra.mxu0 %v2743
  %v3137 = vpop.f32.mrf.mxu0
  %v3138 = vadd.f32 0.0, %v3137
  %v3139 = vpop.f32.mrf.mxu0
  %3140 = vmatprep.mubr.f32.mxu0 0.0
  %3141 = vmatmul.mubr.f32.gmra.mxu0 %v2744
  %v3142 = vpop.f32.mrf.mxu0
  %v3143 = vadd.f32 0.0, %v3142
  %v3144 = vpop.f32.mrf.mxu0
  %3145 = vmatprep.mubr.f32.mxu0 0.0
  %3146 = vmatmul.mubr.f32.gmra.mxu0 %v2745
  %v3147 = vpop.f32.mrf.mxu0
  %v3148 = vadd.f32 0.0, %v3147
  %v3149 = vpop.f32.mrf.mxu0
  %3150 = vmatprep.mubr.f32.mxu0 0.0
  %3151 = vmatmul.mubr.f32.gmra.mxu0 %v2746
  %v3152 = vpop.f32.mrf.mxu0
  %v3153 = vadd.f32 0.0, %v3152
  %v3154 = vpop.f32.mrf.mxu0
  %3155 = vmatprep.mubr.f32.mxu0 0.0
  %3156 = vmatmul.mubr.f32.gmra.mxu0 %v2747
  %v3157 = vpop.f32.mrf.mxu0
  %v3158 = vadd.f32 0.0, %v3157
  %v3159 = vpop.f32.mrf.mxu0
  %3160 = vmatprep.mubr.f32.mxu0 0.0
  %3161 = vmatmul.mubr.f32.gmra.mxu0 %v2748
  %v3162 = vpop.f32.mrf.mxu0
  %v3163 = vadd.f32 0.0, %v3162
  %v3164 = vpop.f32.mrf.mxu0
  %3165 = vmatprep.mubr.f32.mxu0 0.0
  %3166 = vmatmul.mubr.f32.gmra.mxu0 %v2749
  %v3167 = vpop.f32.mrf.mxu0
  %v3168 = vadd.f32 0.0, %v3167
  %v3169 = vpop.f32.mrf.mxu0
  %3170 = vmatprep.mubr.f32.mxu0 0.0
  %3171 = vmatmul.mubr.f32.gmra.mxu0 %v2750
  %v3172 = vpop.f32.mrf.mxu0
  %v3173 = vadd.f32 0.0, %v3172
  %v3174 = vpop.f32.mrf.mxu0
  %3175 = vmatprep.mubr.f32.mxu0 0.0
  %3176 = vmatmul.mubr.f32.gmra.mxu0 %v2751
  %v3177 = vpop.f32.mrf.mxu0
  %v3178 = vadd.f32 0.0, %v3177
  %v3179 = vpop.f32.mrf.mxu0
  %3180 = vmatprep.mubr.f32.mxu0 0.0
  %3181 = vmatmul.mubr.f32.gmra.mxu0 %v2752
  %v3182 = vpop.f32.mrf.mxu0
  %v3183 = vadd.f32 0.0, %v3182
  %v3184 = vpop.f32.mrf.mxu0
  %3185 = vmatprep.mubr.f32.mxu0 0.0
  %3186 = vmatmul.mubr.f32.gmra.mxu0 %v2753
  %v3187 = vpop.f32.mrf.mxu0
  %v3188 = vadd.f32 0.0, %v3187
  %v3189 = vpop.f32.mrf.mxu0
  %3190 = vmatprep.mubr.f32.mxu0 0.0
  %3191 = vmatmul.mubr.f32.gmra.mxu0 %v2754
  %v3192 = vpop.f32.mrf.mxu0
  %v3193 = vadd.f32 0.0, %v3192
  %v3194 = vpop.f32.mrf.mxu0
  %3195 = vmatprep.mubr.f32.mxu0 0.0
  %3196 = vmatmul.mubr.f32.gmra.mxu0 %v2755
  %v3197 = vpop.f32.mrf.mxu0
  %v3198 = vadd.f32 0.0, %v3197
  %v3199 = vpop.f32.mrf.mxu0
  %3200 = vmatprep.mubr.f32.mxu0 0.0
  %3201 = vmatmul.mubr.f32.gmra.mxu0 %v2756
  %v3202 = vpop.f32.mrf.mxu0
  %v3203 = vadd.f32 0.0, %v3202
  %v3204 = vpop.f32.mrf.mxu0
  %3205 = vmatprep.mubr.f32.mxu0 0.0
  %3206 = vmatmul.mubr.f32.gmra.mxu0 %v2757
  %v3207 = vpop.f32.mrf.mxu0
  %v3208 = vadd.f32 0.0, %v3207
  %v3209 = vpop.f32.mrf.mxu0
  %3210 = vmatprep.mubr.f32.mxu0 0.0
  %3211 = vmatmul.mubr.f32.gmra.mxu0 %v2758
  %v3212 = vpop.f32.mrf.mxu0
  %v3213 = vadd.f32 0.0, %v3212
  %v3214 = vpop.f32.mrf.mxu0
  %3215 = vmatprep.mubr.f32.mxu0 0.0
  %3216 = vmatmul.mubr.f32.gmra.mxu0 %v2759
  %v3217 = vpop.f32.mrf.mxu0
  %v3218 = vadd.f32 0.0, %v3217
  %v3219 = vpop.f32.mrf.mxu0
  %3220 = vmatprep.mubr.f32.mxu0 0.0
  %3221 = vmatmul.mubr.f32.gmra.mxu0 %v2760
  %v3222 = vpop.f32.mrf.mxu0
  %v3223 = vadd.f32 0.0, %v3222
  %v3224 = vpop.f32.mrf.mxu0
  %3225 = vmatprep.mubr.f32.mxu0 0.0
  %3226 = vmatmul.mubr.f32.gmra.mxu0 %v2761
  %v3227 = vpop.f32.mrf.mxu0
  %v3228 = vadd.f32 0.0, %v3227
  %v3229 = vpop.f32.mrf.mxu0
  %3230 = vmatprep.mubr.f32.mxu0 0.0
  %3231 = vmatmul.mubr.f32.gmra.mxu0 %v2762
  %v3232 = vpop.f32.mrf.mxu0
  %v3233 = vadd.f32 0.0, %v3232
  %v3234 = vpop.f32.mrf.mxu0
  %3235 = vmatprep.mubr.f32.mxu0 0.0
  %3236 = vmatmul.mubr.f32.gmra.mxu0 %v2763
  %v3237 = vpop.f32.mrf.mxu0
  %v3238 = vadd.f32 0.0, %v3237
  %v3239 = vpop.f32.mrf.mxu0
  %3240 = vmatprep.mubr.f32.mxu0 0.0
  %3241 = vmatmul.mubr.f32.gmra.mxu0 %v2764
  %v3242 = vpop.f32.mrf.mxu0
  %v3243 = vadd.f32 0.0, %v3242
  %v3244 = vpop.f32.mrf.mxu0
  %3245 = vmatprep.mubr.f32.mxu0 0.0
  %3246 = vmatmul.mubr.f32.gmra.mxu0 %v2765
  %v3247 = vpop.f32.mrf.mxu0
  %v3248 = vadd.f32 0.0, %v3247
  %v3249 = vpop.f32.mrf.mxu0
  %3250 = vmatprep.mubr.f32.mxu0 0.0
  %3251 = vmatmul.mubr.f32.gmra.mxu0 %v2766
  %v3252 = vpop.f32.mrf.mxu0
  %v3253 = vadd.f32 0.0, %v3252
  %v3254 = vpop.f32.mrf.mxu0
  %3255 = vmatprep.mubr.f32.mxu0 0.0
  %3256 = vmatmul.mubr.f32.gmra.mxu0 %v2767
  %v3257 = vpop.f32.mrf.mxu0
  %v3258 = vadd.f32 0.0, %v3257
  %v3259 = vpop.f32.mrf.mxu0
  %3260 = vmatprep.mubr.f32.mxu0 0.0
  %3261 = vmatmul.mubr.f32.gmra.mxu0 %v2768
  %v3262 = vpop.f32.mrf.mxu0
  %v3263 = vadd.f32 0.0, %v3262
  %v3264 = vpop.f32.mrf.mxu0
  %3265 = vmatprep.mubr.f32.mxu0 0.0
  %3266 = vmatmul.mubr.f32.gmra.mxu0 %v2769
  %v3267 = vpop.f32.mrf.mxu0
  %v3268 = vadd.f32 0.0, %v3267
  %v3269 = vpop.f32.mrf.mxu0
  %3270 = vmatprep.mubr.f32.mxu0 0.0
  %3271 = vmatmul.mubr.f32.gmra.mxu0 %v2770
  %v3272 = vpop.f32.mrf.mxu0
  %v3273 = vadd.f32 0.0, %v3272
  %v3274 = vpop.f32.mrf.mxu0
  %3275 = vmatprep.mubr.f32.mxu0 0.0
  %3276 = vmatmul.mubr.f32.gmra.mxu0 %v2771
  %v3277 = vpop.f32.mrf.mxu0
  %v3278 = vadd.f32 0.0, %v3277
  %v3279 = vpop.f32.mrf.mxu0
  %3280 = vmatprep.mubr.f32.mxu0 0.0
  %3281 = vmatmul.mubr.f32.gmra.mxu0 %v2772
  %v3282 = vpop.f32.mrf.mxu0
  %v3283 = vadd.f32 0.0, %v3282
  %v3284 = vpop.f32.mrf.mxu0
  %3285 = vmatprep.mubr.f32.mxu0 0.0
  %3286 = vmatmul.mubr.f32.gmra.mxu0 %v2773
  %v3287 = vpop.f32.mrf.mxu0
  %v3288 = vadd.f32 0.0, %v3287
  %v3289 = vpop.f32.mrf.mxu0
  %3290 = vmatprep.mubr.f32.mxu0 0.0
  %3291 = vmatmul.mubr.f32.gmra.mxu0 %v2774
  %v3292 = vpop.f32.mrf.mxu0
  %v3293 = vadd.f32 0.0, %v3292
  %v3294 = vpop.f32.mrf.mxu0
  %3295 = vmatprep.mubr.f32.mxu0 0.0
  %3296 = vmatmul.mubr.f32.gmra.mxu0 %v2775
  %v3297 = vpop.f32.mrf.mxu0
  %v3298 = vadd.f32 0.0, %v3297
  %v3299 = vpop.f32.mrf.mxu0
  %3300 = vmatprep.mubr.f32.mxu0 0.0
  %3301 = vmatmul.mubr.f32.gmra.mxu0 %v2776
  %v3302 = vpop.f32.mrf.mxu0
  %v3303 = vadd.f32 0.0, %v3302
  %v3304 = vpop.f32.mrf.mxu0
  %3305 = vmatprep.mubr.f32.mxu0 0.0
  %3306 = vmatmul.mubr.f32.gmra.mxu0 %v2777
  %v3307 = vpop.f32.mrf.mxu0
  %v3308 = vadd.f32 0.0, %v3307
  %v3309 = vpop.f32.mrf.mxu0
  %3310 = vmatprep.mubr.f32.mxu0 0.0
  %3311 = vmatmul.mubr.f32.gmra.mxu0 %v2778
  %v3312 = vpop.f32.mrf.mxu0
  %v3313 = vadd.f32 0.0, %v3312
  %v3314 = vpop.f32.mrf.mxu0
  %3315 = vmatprep.mubr.f32.mxu0 0.0
  %3316 = vmatmul.mubr.f32.gmra.mxu0 %v2779
  %v3317 = vpop.f32.mrf.mxu0
  %v3318 = vadd.f32 0.0, %v3317
  %v3319 = vpop.f32.mrf.mxu0
  %3320 = vmatprep.mubr.f32.mxu0 0.0
  %3321 = vmatmul.mubr.f32.gmra.mxu0 %v2780
  %v3322 = vpop.f32.mrf.mxu0
  %v3323 = vadd.f32 0.0, %v3322
  %v3324 = vpop.f32.mrf.mxu0
  %3325 = vmatprep.mubr.f32.mxu0 0.0
  %3326 = vmatmul.mubr.f32.gmra.mxu0 %v2781
  %v3327 = vpop.f32.mrf.mxu0
  %v3328 = vadd.f32 0.0, %v3327
  %v3329 = vpop.f32.mrf.mxu0
  %3330 = vmatprep.mubr.f32.mxu0 0.0
  %3331 = vmatmul.mubr.f32.gmra.mxu0 %v2782
  %v3332 = vpop.f32.mrf.mxu0
  %v3333 = vadd.f32 0.0, %v3332
  %v3334 = vpop.f32.mrf.mxu0
  %3335 = vmatprep.mubr.f32.mxu0 0.0
  %3336 = vmatmul.mubr.f32.gmra.mxu0 %v2783
  %v3337 = vpop.f32.mrf.mxu0
  %v3338 = vadd.f32 0.0, %v3337
  %v3339 = vpop.f32.mrf.mxu0
  %3340 = vmatprep.mubr.f32.mxu0 0.0
  %3341 = vmatmul.mubr.f32.gmra.mxu0 %v2784
  %v3342 = vpop.f32.mrf.mxu0
  %v3343 = vadd.f32 0.0, %v3342
  %v3344 = vpop.f32.mrf.mxu0
  %3345 = vmatprep.mubr.f32.mxu0 0.0
  %3346 = vmatmul.mubr.f32.gmra.mxu0 %v2785
  %v3347 = vpop.f32.mrf.mxu0
  %v3348 = vadd.f32 0.0, %v3347
  %v3349 = vpop.f32.mrf.mxu0
  %3350 = vmatprep.mubr.f32.mxu0 0.0
  %3351 = vmatmul.mubr.f32.gmra.mxu0 %v2786
  %v3352 = vpop.f32.mrf.mxu0
  %v3353 = vadd.f32 0.0, %v3352
  %v3354 = vpop.f32.mrf.mxu0
  %3355 = vmatprep.mubr.f32.mxu0 0.0
  %3356 = vmatmul.mubr.f32.gmra.mxu0 %v2787
  %v3357 = vpop.f32.mrf.mxu0
  %v3358 = vadd.f32 0.0, %v3357
  %v3359 = vpop.f32.mrf.mxu0
  %3360 = vmatprep.mubr.f32.mxu0 0.0
  %3361 = vmatmul.mubr.f32.gmra.mxu0 %v2788
  %v3362 = vpop.f32.mrf.mxu0
  %v3363 = vadd.f32 0.0, %v3362
  %v3364 = vpop.f32.mrf.mxu0
  %3365 = vmatprep.mubr.f32.mxu0 0.0
  %3366 = vmatmul.mubr.f32.gmra.mxu0 %v2789
  %v3367 = vpop.f32.mrf.mxu0
  %v3368 = vadd.f32 0.0, %v3367
  %v3369 = vpop.f32.mrf.mxu0
  %3370 = vmatprep.mubr.f32.mxu0 0.0
  %3371 = vmatmul.mubr.f32.gmra.mxu0 %v2790
  %v3372 = vpop.f32.mrf.mxu0
  %v3373 = vadd.f32 0.0, %v3372
  %v3374 = vpop.f32.mrf.mxu0
  %3375 = vmatprep.mubr.f32.mxu0 0.0
  %3376 = vmatmul.mubr.f32.gmra.mxu0 %v2791
  %v3377 = vpop.f32.mrf.mxu0
  %v3378 = vadd.f32 0.0, %v3377
  %v3379 = vpop.f32.mrf.mxu0
  %3380 = vmatprep.mubr.f32.mxu0 0.0
  %3381 = vmatmul.mubr.f32.gmra.mxu0 %v2792
  %v3382 = vpop.f32.mrf.mxu0
  %v3383 = vadd.f32 0.0, %v3382
  %v3384 = vpop.f32.mrf.mxu0
  %3385 = vmatprep.mubr.f32.mxu0 0.0
  %3386 = vmatmul.mubr.f32.gmra.mxu0 %v2793
  %v3387 = vpop.f32.mrf.mxu0
  %v3388 = vadd.f32 0.0, %v3387
  %v3389 = vpop.f32.mrf.mxu0
  %3390 = vmatprep.mubr.f32.mxu0 0.0
  %3391 = vmatmul.mubr.f32.gmra.mxu0 %v2794
  %v3392 = vpop.f32.mrf.mxu0
  %v3393 = vadd.f32 0.0, %v3392
  %v3394 = vpop.f32.mrf.mxu0
  %3395 = vmatprep.mubr.f32.mxu0 0.0
  %3396 = vmatmul.mubr.f32.gmra.mxu0 %v2795
  %v3397 = vpop.f32.mrf.mxu0
  %v3398 = vadd.f32 0.0, %v3397
  %v3399 = vpop.f32.mrf.mxu0
  %3400 = vmatprep.mubr.f32.mxu0 0.0
  %3401 = vmatmul.mubr.f32.gmra.mxu0 %v2796
  %v3402 = vpop.f32.mrf.mxu0
  %v3403 = vadd.f32 0.0, %v3402
  %v3404 = vpop.f32.mrf.mxu0
  %3405 = vmatprep.mubr.f32.mxu0 0.0
  %3406 = vmatmul.mubr.f32.gmra.mxu0 %v2797
  %v3407 = vpop.f32.mrf.mxu0
  %v3408 = vadd.f32 0.0, %v3407
  %v3409 = vpop.f32.mrf.mxu0
  %3410 = vmatprep.mubr.f32.mxu0 0.0
  %3411 = vmatmul.mubr.f32.gmra.mxu0 %v2798
  %v3412 = vpop.f32.mrf.mxu0
  %v3413 = vadd.f32 0.0, %v3412
  %v3414 = vpop.f32.mrf.mxu0
  %3415 = vmatprep.mubr.f32.mxu0 0.0
  %3416 = vmatmul.mubr.f32.gmra.mxu0 %v2799
  %v3417 = vpop.f32.mrf.mxu0
  %v3418 = vadd.f32 0.0, %v3417
  %v3419 = vpop.f32.mrf.mxu0
  %3420 = vmatprep.mubr.f32.mxu0 0.0
  %3421 = vmatmul.mubr.f32.gmra.mxu0 %v2800
  %v3422 = vpop.f32.mrf.mxu0
  %v3423 = vadd.f32 0.0, %v3422
  %v3424 = vpop.f32.mrf.mxu0
  %3425 = vmatprep.mubr.f32.mxu0 0.0
  %3426 = vmatmul.mubr.f32.gmra.mxu0 %v2801
  %v3427 = vpop.f32.mrf.mxu0
  %v3428 = vadd.f32 0.0, %v3427
  %v3429 = vpop.f32.mrf.mxu0
  %3430 = vmatprep.mubr.f32.mxu0 0.0
  %3431 = vmatmul.mubr.f32.gmra.mxu0 %v2802
  %v3432 = vpop.f32.mrf.mxu0
  %v3433 = vadd.f32 0.0, %v3432
  %v3434 = vpop.f32.mrf.mxu0
  %3435 = vmatprep.mubr.f32.mxu0 0.0
  %3436 = vmatmul.mubr.f32.gmra.mxu0 %v2803
  %v3437 = vpop.f32.mrf.mxu0
  %v3438 = vadd.f32 0.0, %v3437
  %v3439 = vpop.f32.mrf.mxu0
  %3440 = vmatprep.mubr.f32.mxu0 0.0
  %3441 = vmatmul.mubr.f32.gmra.mxu0 %v2804
  %v3442 = vpop.f32.mrf.mxu0
  %v3443 = vadd.f32 0.0, %v3442
  %v3444 = vpop.f32.mrf.mxu0
  %3445 = vmatprep.mubr.f32.mxu0 0.0
  %3446 = vmatmul.mubr.f32.gmra.mxu0 %v2805
  %v3447 = vpop.f32.mrf.mxu0
  %v3448 = vadd.f32 0.0, %v3447
  %v3449 = vpop.f32.mrf.mxu0
  %3450 = vmatprep.mubr.f32.mxu0 0.0
  %3451 = vmatmul.mubr.f32.gmra.mxu0 %v2806
  %v3452 = vpop.f32.mrf.mxu0
  %v3453 = vadd.f32 0.0, %v3452
  %v3454 = vpop.f32.mrf.mxu0
  %3455 = vmatprep.mubr.f32.mxu0 0.0
  %3456 = vmatmul.mubr.f32.gmra.mxu0 %v2807
  %v3457 = vpop.f32.mrf.mxu0
  %v3458 = vadd.f32 0.0, %v3457
  %v3459 = vpop.f32.mrf.mxu0
  %3460 = vmatprep.mubr.f32.mxu0 0.0
  %3461 = vmatmul.mubr.f32.gmra.mxu0 %v2808
  %v3462 = vpop.f32.mrf.mxu0
  %v3463 = vadd.f32 0.0, %v3462
  %v3464 = vpop.f32.mrf.mxu0
  %3465 = vmatprep.mubr.f32.mxu0 0.0
  %3466 = vmatmul.mubr.f32.gmra.mxu0 %v2809
  %v3467 = vpop.f32.mrf.mxu0
  %v3468 = vadd.f32 0.0, %v3467
  %v3469 = vpop.f32.mrf.mxu0
  %3470 = vmatprep.mubr.f32.mxu0 0.0
  %3471 = vmatmul.mubr.f32.gmra.mxu0 %v2810
  %v3472 = vpop.f32.mrf.mxu0
  %v3473 = vadd.f32 0.0, %v3472
  %v3474 = vpop.f32.mrf.mxu0
  %3475 = vmatprep.mubr.f32.mxu0 0.0
  %3476 = vmatmul.mubr.f32.gmra.mxu0 %v2811
  %v3477 = vpop.f32.mrf.mxu0
  %v3478 = vadd.f32 0.0, %v3477
  %v3479 = vpop.f32.mrf.mxu0
  %3480 = vmatprep.mubr.f32.mxu0 0.0
  %3481 = vmatmul.mubr.f32.gmra.mxu0 %v2812
  %v3482 = vpop.f32.mrf.mxu0
  %v3483 = vadd.f32 0.0, %v3482
  %v3484 = vpop.f32.mrf.mxu0
  %3485 = vmatprep.mubr.f32.mxu0 0.0
  %3486 = vmatmul.mubr.f32.gmra.mxu0 %v2813
  %v3487 = vpop.f32.mrf.mxu0
  %v3488 = vadd.f32 0.0, %v3487
  %v3489 = vpop.f32.mrf.mxu0
  %3490 = vmatprep.mubr.f32.mxu0 0.0
  %3491 = vmatmul.mubr.f32.gmra.mxu0 %v2814
  %v3492 = vpop.f32.mrf.mxu0
  %v3493 = vadd.f32 0.0, %v3492
  %v3494 = vpop.f32.mrf.mxu0
  %3495 = vmatprep.mubr.f32.mxu0 0.0
  %3496 = vmatmul.mubr.f32.gmra.mxu0 %v2815
  %v3497 = vpop.f32.mrf.mxu0
  %v3498 = vadd.f32 0.0, %v3497
  %v3499 = vpop.f32.mrf.mxu0
  %3500 = vmatprep.mubr.f32.mxu0 0.0
  %3501 = vmatmul.mubr.f32.gmra.mxu0 %v2816
  %v3502 = vpop.f32.mrf.mxu0
  %v3503 = vadd.f32 0.0, %v3502
  %v3504 = vpop.f32.mrf.mxu0
  %3505 = vmatprep.mubr.f32.mxu0 0.0
  %3506 = vmatmul.mubr.f32.gmra.mxu0 %v2817
  %v3507 = vpop.f32.mrf.mxu0
  %v3508 = vadd.f32 0.0, %v3507
  %v3509 = vpop.f32.mrf.mxu0
  %3510 = vmatprep.mubr.f32.mxu0 0.0
  %3511 = vmatmul.mubr.f32.gmra.mxu0 %v2818
  %v3512 = vpop.f32.mrf.mxu0
  %v3513 = vadd.f32 0.0, %v3512
  %v3514 = vpop.f32.mrf.mxu0
  %3515 = vmatprep.mubr.f32.mxu0 0.0
  %3516 = vmatmul.mubr.f32.gmra.mxu0 %v2819
  %v3517 = vpop.f32.mrf.mxu0
  %v3518 = vadd.f32 0.0, %v3517
  %v3519 = vpop.f32.mrf.mxu0
  %3520 = vmatprep.mubr.f32.mxu0 0.0
  %3521 = vmatmul.mubr.f32.gmra.mxu0 %v2820
  %v3522 = vpop.f32.mrf.mxu0
  %v3523 = vadd.f32 0.0, %v3522
  %v3524 = vpop.f32.mrf.mxu0
  %3525 = vmatprep.mubr.f32.mxu0 0.0
  %3526 = vmatmul.mubr.f32.gmra.mxu0 %v2821
  %v3527 = vpop.f32.mrf.mxu0
  %v3528 = vadd.f32 0.0, %v3527
  %v3529 = vpop.f32.mrf.mxu0
  %3530 = vmatprep.mubr.f32.mxu0 0.0
  %3531 = vmatmul.mubr.f32.gmra.mxu0 %v2822
  %v3532 = vpop.f32.mrf.mxu0
  %v3533 = vadd.f32 0.0, %v3532
  %v3534 = vpop.f32.mrf.mxu0
  %3535 = vmatprep.mubr.f32.mxu0 0.0
  %3536 = vmatmul.mubr.f32.gmra.mxu0 %v2823
  %v3537 = vpop.f32.mrf.mxu0
  %v3538 = vadd.f32 0.0, %v3537
  %v3539 = vpop.f32.mrf.mxu0
  %3540 = vmatprep.mubr.f32.mxu0 0.0
  %3541 = vmatmul.mubr.f32.gmra.mxu0 %v2824
  %v3542 = vpop.f32.mrf.mxu0
  %v3543 = vadd.f32 0.0, %v3542
  %v3544 = vpop.f32.mrf.mxu0
  %3545 = vmatprep.mubr.f32.mxu0 0.0
  %3546 = vmatmul.mubr.f32.gmra.mxu0 %v2825
  %v3547 = vpop.f32.mrf.mxu0
  %v3548 = vadd.f32 0.0, %v3547
  %v3549 = vpop.f32.mrf.mxu0
  %3550 = vmatprep.mubr.f32.mxu0 0.0
  %3551 = vmatmul.mubr.f32.gmra.mxu0 %v2826
  %v3552 = vpop.f32.mrf.mxu0
  %v3553 = vadd.f32 0.0, %v3552
  %v3554 = vpop.f32.mrf.mxu0
  %3555 = vmatprep.mubr.f32.mxu0 0.0
  %3556 = vmatmul.mubr.f32.gmra.mxu0 %v2827
  %v3557 = vpop.f32.mrf.mxu0
  %v3558 = vadd.f32 0.0, %v3557
  %v3559 = vpop.f32.mrf.mxu0
  %3560 = vmatprep.mubr.f32.mxu0 0.0
  %3561 = vmatmul.mubr.f32.gmra.mxu0 %v2828
  %v3562 = vpop.f32.mrf.mxu0
  %v3563 = vadd.f32 0.0, %v3562
  %v3564 = vpop.f32.mrf.mxu0
  %3565 = vmatprep.mubr.f32.mxu0 0.0
  %3566 = vmatmul.mubr.f32.gmra.mxu0 %v2829
  %v3567 = vpop.f32.mrf.mxu0
  %v3568 = vadd.f32 0.0, %v3567
  %v3569 = vpop.f32.mrf.mxu0
  %3570 = vmatprep.mubr.f32.mxu0 0.0
  %3571 = vmatmul.mubr.f32.gmra.mxu0 %v2830
  %v3572 = vpop.f32.mrf.mxu0
  %v3573 = vadd.f32 0.0, %v3572
  %v3574 = vpop.f32.mrf.mxu0
  %3575 = vmatprep.mubr.f32.mxu0 0.0
  %3576 = vmatmul.mubr.f32.gmra.mxu0 %v2831
  %v3577 = vpop.f32.mrf.mxu0
  %v3578 = vadd.f32 0.0, %v3577
  %v3579 = vpop.f32.mrf.mxu0
  %3580 = vmatprep.mubr.f32.mxu0 0.0
  %3581 = vmatmul.mubr.f32.gmra.mxu0 %v2832
  %v3582 = vpop.f32.mrf.mxu0
  %v3583 = vadd.f32 0.0, %v3582
  %v3584 = vpop.f32.mrf.mxu0
  %3585 = vmatprep.mubr.f32.mxu0 0.0
  %3586 = vmatmul.mubr.f32.gmra.mxu0 %v2833
  %v3587 = vpop.f32.mrf.mxu0
  %v3588 = vadd.f32 0.0, %v3587
  %v3589 = vpop.f32.mrf.mxu0
  %3590 = vmatprep.mubr.f32.mxu0 0.0
  %3591 = vmatmul.mubr.f32.gmra.mxu0 %v2834
  %v3592 = vpop.f32.mrf.mxu0
  %v3593 = vadd.f32 0.0, %v3592
  %v3594 = vpop.f32.mrf.mxu0
  %3595 = vmatprep.mubr.f32.mxu0 0.0
  %3596 = vmatmul.mubr.f32.gmra.mxu0 %v2835
  %v3597 = vpop.f32.mrf.mxu0
  %v3598 = vadd.f32 0.0, %v3597
  %v3599 = vpop.f32.mrf.mxu0
  %3600 = vmatprep.mubr.f32.mxu0 0.0
  %3601 = vmatmul.mubr.f32.gmra.mxu0 %v2836
  %v3602 = vpop.f32.mrf.mxu0
  %v3603 = vadd.f32 0.0, %v3602
  %v3604 = vpop.f32.mrf.mxu0
  %3605 = vmatprep.mubr.f32.mxu0 0.0
  %3606 = vmatmul.mubr.f32.gmra.mxu0 %v2837
  %v3607 = vpop.f32.mrf.mxu0
  %v3608 = vadd.f32 0.0, %v3607
  %v3609 = vpop.f32.mrf.mxu0
  %3610 = vmatprep.mubr.f32.mxu0 0.0
  %3611 = vmatmul.mubr.f32.gmra.mxu0 %v2838
  %v3612 = vpop.f32.mrf.mxu0
  %v3613 = vadd.f32 0.0, %v3612
  %v3614 = vpop.f32.mrf.mxu0
  %3615 = vmatprep.mubr.f32.mxu0 0.0
  %3616 = vmatmul.mubr.f32.gmra.mxu0 %v2839
  %v3617 = vpop.f32.mrf.mxu0
  %v3618 = vadd.f32 0.0, %v3617
  %v3619 = vpop.f32.mrf.mxu0
  %3620 = vmatprep.mubr.f32.mxu0 0.0
  %3621 = vmatmul.mubr.f32.gmra.mxu0 %v2840
  %v3622 = vpop.f32.mrf.mxu0
  %v3623 = vadd.f32 0.0, %v3622
  %v3624 = vpop.f32.mrf.mxu0
  %3625 = vmatprep.mubr.f32.mxu0 0.0
  %3626 = vmatmul.mubr.f32.gmra.mxu0 %v2841
  %v3627 = vpop.f32.mrf.mxu0
  %v3628 = vadd.f32 0.0, %v3627
  %v3629 = vpop.f32.mrf.mxu0
  %3630 = vmatprep.mubr.f32.mxu0 0.0
  %3631 = vmatmul.mubr.f32.gmra.mxu0 %v2842
  %v3632 = vpop.f32.mrf.mxu0
  %v3633 = vadd.f32 0.0, %v3632
  %v3634 = vpop.f32.mrf.mxu0
  %3635 = vmatprep.mubr.f32.mxu0 0.0
  %3636 = vmatmul.mubr.f32.gmra.mxu0 %v2843
  %v3637 = vpop.f32.mrf.mxu0
  %v3638 = vadd.f32 0.0, %v3637
  %v3639 = vpop.f32.mrf.mxu0
  %3640 = vmatprep.mubr.f32.mxu0 0.0
  %3641 = vmatmul.mubr.f32.gmra.mxu0 %v2844
  %v3642 = vpop.f32.mrf.mxu0
  %v3643 = vadd.f32 0.0, %v3642
  %v3644 = vpop.f32.mrf.mxu0
  %3645 = vmatprep.mubr.f32.mxu0 0.0
  %3646 = vmatmul.mubr.f32.gmra.mxu0 %v2845
  %v3647 = vpop.f32.mrf.mxu0
  %v3648 = vadd.f32 0.0, %v3647
  %v3649 = vpop.f32.mrf.mxu0
  %3650 = vmatprep.mubr.f32.mxu0 0.0
  %3651 = vmatmul.mubr.f32.gmra.mxu0 %v2846
  %v3652 = vpop.f32.mrf.mxu0
  %v3653 = vadd.f32 0.0, %v3652
  %v3654 = vpop.f32.mrf.mxu0
  %3655 = vmatprep.mubr.f32.mxu0 0.0
  %3656 = vmatmul.mubr.f32.gmra.mxu0 %v2847
  %v3657 = vpop.f32.mrf.mxu0
  %v3658 = vadd.f32 0.0, %v3657
  %v3659 = vpop.f32.mrf.mxu0
  %3660 = vmatprep.mubr.f32.mxu0 0.0
  %3661 = vmatmul.mubr.f32.gmra.mxu0 %v2848
  %v3662 = vpop.f32.mrf.mxu0
  %v3663 = vadd.f32 0.0, %v3662
  %v3664 = vpop.f32.mrf.mxu0
  %3665 = vmatprep.mubr.f32.mxu0 0.0
  %3666 = vmatmul.mubr.f32.gmra.mxu0 %v2849
  %v3667 = vpop.f32.mrf.mxu0
  %v3668 = vadd.f32 0.0, %v3667
  %v3669 = vpop.f32.mrf.mxu0
  %3670 = vmatprep.mubr.f32.mxu0 0.0
  %3671 = vmatmul.mubr.f32.gmra.mxu0 %v2850
  %v3672 = vpop.f32.mrf.mxu0
  %v3673 = vadd.f32 0.0, %v3672
  %v3674 = vpop.f32.mrf.mxu0
  %3675 = vmatprep.mubr.f32.mxu0 0.0
  %3676 = vmatmul.mubr.f32.gmra.mxu0 %v2851
  %v3677 = vpop.f32.mrf.mxu0
  %v3678 = vadd.f32 0.0, %v3677
  %v3679 = vpop.f32.mrf.mxu0
  %3680 = vmatprep.mubr.f32.mxu0 0.0
  %3681 = vmatmul.mubr.f32.gmra.mxu0 %v2852
  %v3682 = vpop.f32.mrf.mxu0
  %v3683 = vadd.f32 0.0, %v3682
  %v3684 = vpop.f32.mrf.mxu0
  %3685 = vmatprep.mubr.f32.mxu0 0.0
  %3686 = vmatmul.mubr.f32.gmra.mxu0 %v2853
  %v3687 = vpop.f32.mrf.mxu0
  %v3688 = vadd.f32 0.0, %v3687
  %v3689 = vpop.f32.mrf.mxu0
  %3690 = vmatprep.mubr.f32.mxu0 0.0
  %3691 = vmatmul.mubr.f32.gmra.mxu0 %v2854
  %v3692 = vpop.f32.mrf.mxu0
  %v3693 = vadd.f32 0.0, %v3692
  %v3694 = vpop.f32.mrf.mxu0
  %3695 = vmatprep.mubr.f32.mxu0 0.0
  %3696 = vmatmul.mubr.f32.gmra.mxu0 %v2855
  %v3697 = vpop.f32.mrf.mxu0
  %v3698 = vadd.f32 0.0, %v3697
  %v3699 = vpop.f32.mrf.mxu0
  %3700 = vmatprep.mubr.f32.mxu0 0.0
  %3701 = vmatmul.mubr.f32.gmra.mxu0 %v2856
  %v3702 = vpop.f32.mrf.mxu0
  %v3703 = vadd.f32 0.0, %v3702
  %v3704 = vpop.f32.mrf.mxu0
  %3705 = vmatprep.mubr.f32.mxu0 0.0
  %3706 = vmatmul.mubr.f32.gmra.mxu0 %v2857
  %v3707 = vpop.f32.mrf.mxu0
  %v3708 = vadd.f32 0.0, %v3707
  %v3709 = vpop.f32.mrf.mxu0
  %3710 = vmatprep.mubr.f32.mxu0 0.0
  %3711 = vmatmul.mubr.f32.gmra.mxu0 %v2858
  %v3712 = vpop.f32.mrf.mxu0
  %v3713 = vadd.f32 0.0, %v3712
  %v3714 = vpop.f32.mrf.mxu0
  %3715 = vmatprep.mubr.f32.mxu0 0.0
  %3716 = vmatmul.mubr.f32.gmra.mxu0 %v2859
  %v3717 = vpop.f32.mrf.mxu0
  %v3718 = vadd.f32 0.0, %v3717
  %v3719 = vpop.f32.mrf.mxu0
  %3720 = vmatprep.mubr.f32.mxu0 0.0
  %3721 = vmatmul.mubr.f32.gmra.mxu0 %v2860
  %v3722 = vpop.f32.mrf.mxu0
  %v3723 = vadd.f32 0.0, %v3722
  %v3724 = vpop.f32.mrf.mxu0
  %3725 = vmatprep.mubr.f32.mxu0 0.0
  %3726 = vmatmul.mubr.f32.gmra.mxu0 %v2861
  %v3727 = vpop.f32.mrf.mxu0
  %v3728 = vadd.f32 0.0, %v3727
  %v3729 = vpop.f32.mrf.mxu0
  %3730 = vmatprep.mubr.f32.mxu0 0.0
  %3731 = vmatmul.mubr.f32.gmra.mxu0 %v2862
  %v3732 = vpop.f32.mrf.mxu0
  %v3733 = vadd.f32 0.0, %v3732
  %v3734 = vpop.f32.mrf.mxu0
  %3735 = vmatprep.mubr.f32.mxu0 0.0
  %3736 = vmatmul.mubr.f32.gmra.mxu0 %v2863
  %v3737 = vpop.f32.mrf.mxu0
  %v3738 = vadd.f32 0.0, %v3737
  %v3739 = vpop.f32.mrf.mxu0
  %3740 = vmatprep.mubr.f32.mxu0 0.0
  %3741 = vmatmul.mubr.f32.gmra.mxu0 %v2864
  %v3742 = vpop.f32.mrf.mxu0
  %v3743 = vadd.f32 0.0, %v3742
  %v3744 = vpop.f32.mrf.mxu0
  %3745 = vmatprep.mubr.f32.mxu0 0.0
  %3746 = vmatmul.mubr.f32.gmra.mxu0 %v2865
  %v3747 = vpop.f32.mrf.mxu0
  %v3748 = vadd.f32 0.0, %v3747
  %v3749 = vpop.f32.mrf.mxu0
  %3750 = vmatprep.mubr.f32.mxu0 0.0
  %3751 = vmatmul.mubr.f32.gmra.mxu0 %v2866
  %v3752 = vpop.f32.mrf.mxu0
  %v3753 = vadd.f32 0.0, %v3752
  %v3754 = vpop.f32.mrf.mxu0
  %3755 = vmatprep.mubr.f32.mxu0 0.0
  %3756 = vmatmul.mubr.f32.gmra.mxu0 %v2867
  %v3757 = vpop.f32.mrf.mxu0
  %v3758 = vadd.f32 0.0, %v3757
  %v3759 = vpop.f32.mrf.mxu0
  %3760 = vmatprep.mubr.f32.mxu0 0.0
  %3761 = vmatmul.mubr.f32.gmra.mxu0 %v2868
  %v3762 = vpop.f32.mrf.mxu0
  %v3763 = vadd.f32 0.0, %v3762
  %v3764 = vpop.f32.mrf.mxu0
  %3765 = vmatprep.mubr.f32.mxu0 0.0
  %3766 = vmatmul.mubr.f32.gmra.mxu0 %v2869
  %v3767 = vpop.f32.mrf.mxu0
  %v3768 = vadd.f32 0.0, %v3767
  %v3769 = vpop.f32.mrf.mxu0
  %3770 = vmatprep.mubr.f32.mxu0 0.0
  %3771 = vmatmul.mubr.f32.gmra.mxu0 %v2870
  %v3772 = vpop.f32.mrf.mxu0
  %v3773 = vadd.f32 0.0, %v3772
  %v3774 = vpop.f32.mrf.mxu0
  %3775 = vmatprep.mubr.f32.mxu0 0.0
  %3776 = vmatmul.mubr.f32.gmra.mxu0 %v2871
  %v3777 = vpop.f32.mrf.mxu0
  %v3778 = vadd.f32 0.0, %v3777
  %v3779 = vpop.f32.mrf.mxu0
  %3780 = vmatprep.mubr.f32.mxu0 0.0
  %3781 = vmatmul.mubr.f32.gmra.mxu0 %v2872
  %v3782 = vpop.f32.mrf.mxu0
  %v3783 = vadd.f32 0.0, %v3782
  %v3784 = vpop.f32.mrf.mxu0
  %3785 = vmatprep.mubr.f32.mxu0 0.0
  %3786 = vmatmul.mubr.f32.gmra.mxu0 %v2873
  %v3787 = vpop.f32.mrf.mxu0
  %v3788 = vadd.f32 0.0, %v3787
  %v3789 = vpop.f32.mrf.mxu0
  %3790 = vmatprep.mubr.f32.mxu0 0.0
  %3791 = vmatmul.mubr.f32.gmra.mxu0 %v2874
  %v3792 = vpop.f32.mrf.mxu0
  %v3793 = vadd.f32 0.0, %v3792
  %v3794 = vpop.f32.mrf.mxu0
  %3795 = vmatprep.mubr.f32.mxu0 0.0
  %3796 = vmatmul.mubr.f32.gmra.mxu0 %v2875
  %v3797 = vpop.f32.mrf.mxu0
  %v3798 = vadd.f32 0.0, %v3797
  %v3799 = vpop.f32.mrf.mxu0
  %3800 = vmatprep.mubr.f32.mxu0 0.0
  %3801 = vmatmul.mubr.f32.gmra.mxu0 %v2876
  %v3802 = vpop.f32.mrf.mxu0
  %v3803 = vadd.f32 0.0, %v3802
  %v3804 = vpop.f32.mrf.mxu0
  %3805 = vmatprep.mubr.f32.mxu0 0.0
  %3806 = vmatmul.mubr.f32.gmra.mxu0 %v2877
  %v3807 = vpop.f32.mrf.mxu0
  %v3808 = vadd.f32 0.0, %v3807
  %v3809 = vpop.f32.mrf.mxu0
  %3810 = vmatprep.mubr.f32.mxu0 0.0
  %3811 = vmatmul.mubr.f32.gmra.mxu0 %v2878
  %v3812 = vpop.f32.mrf.mxu0
  %v3813 = vadd.f32 0.0, %v3812
  %v3814 = vpop.f32.mrf.mxu0
  %3815 = vmatprep.mubr.f32.mxu0 0.0
  %3816 = vmatmul.mubr.f32.gmra.mxu0 %v2879
  %v3817 = vpop.f32.mrf.mxu0
  %v3818 = vadd.f32 0.0, %v3817
  %v3819 = vpop.f32.mrf.mxu0
  %3820 = vmatprep.mubr.f32.mxu0 0.0
  %3821 = vmatmul.mubr.f32.gmra.mxu0 %v2880
  %v3822 = vpop.f32.mrf.mxu0
  %v3823 = vadd.f32 0.0, %v3822
  %v3824 = vpop.f32.mrf.mxu0
  %3825 = vmatprep.mubr.f32.mxu0 0.0
  %3826 = vmatmul.mubr.f32.gmra.mxu0 %v2881
  %v3827 = vpop.f32.mrf.mxu0
  %v3828 = vadd.f32 0.0, %v3827
  %v3829 = vpop.f32.mrf.mxu0
  %3830 = vmatprep.mubr.f32.mxu0 0.0
  %3831 = vmatmul.mubr.f32.gmra.mxu0 %v2882
  %v3832 = vpop.f32.mrf.mxu0
  %v3833 = vadd.f32 0.0, %v3832
  %v3834 = vpop.f32.mrf.mxu0
  %3835 = vmatprep.mubr.f32.mxu0 0.0
  %3836 = vmatmul.mubr.f32.gmra.mxu0 %v2883
  %v3837 = vpop.f32.mrf.mxu0
  %v3838 = vadd.f32 0.0, %v3837
  %v3839 = vpop.f32.mrf.mxu0
  %3840 = vmatprep.mubr.f32.mxu0 0.0
  %3841 = vmatmul.mubr.f32.gmra.mxu0 %v2884
  %v3842 = vpop.f32.mrf.mxu0
  %v3843 = vadd.f32 0.0, %v3842
  %v3844 = vpop.f32.mrf.mxu0
  %3845 = vmatprep.mubr.f32.mxu0 0.0
  %3846 = vmatmul.mubr.f32.gmra.mxu0 %v2885
  %v3847 = vpop.f32.mrf.mxu0
  %v3848 = vadd.f32 0.0, %v3847
  %v3849 = vpop.f32.mrf.mxu0
  %3850 = vmatprep.mubr.f32.mxu0 0.0
  %3851 = vmatmul.mubr.f32.gmra.mxu0 %v2886
  %v3852 = vpop.f32.mrf.mxu0
  %v3853 = vadd.f32 0.0, %v3852
  %v3854 = vpop.f32.mrf.mxu0
  %3855 = vmatprep.mubr.f32.mxu0 0.0
  %3856 = vmatmul.mubr.f32.gmra.mxu0 %v2887
  %v3857 = vpop.f32.mrf.mxu0
  %v3858 = vadd.f32 0.0, %v3857
  %v3859 = vpop.f32.mrf.mxu0
  %3860 = vmatprep.mubr.f32.mxu0 0.0
  %3861 = vmatmul.mubr.f32.gmra.mxu0 %v2888
  %v3862 = vpop.f32.mrf.mxu0
  %v3863 = vadd.f32 0.0, %v3862
  %v3864 = vpop.f32.mrf.mxu0
  %3865 = vmatprep.mubr.f32.mxu0 0.0
  %3866 = vmatmul.mubr.f32.gmra.mxu0 %v2889
  %v3867 = vpop.f32.mrf.mxu0
  %v3868 = vadd.f32 0.0, %v3867
  %v3869 = vpop.f32.mrf.mxu0
  %3870 = vmatprep.mubr.f32.mxu0 0.0
  %3871 = vmatmul.mubr.f32.gmra.mxu0 %v2890
  %v3872 = vpop.f32.mrf.mxu0
  %v3873 = vadd.f32 0.0, %v3872
  %v3874 = vpop.f32.mrf.mxu0
  %3875 = vmatprep.mubr.f32.mxu0 0.0
  %3876 = vmatmul.mubr.f32.gmra.mxu0 %v2891
  %v3877 = vpop.f32.mrf.mxu0
  %v3878 = vadd.f32 0.0, %v3877
  %v3879 = vpop.f32.mrf.mxu0
  %3880 = vmatprep.mubr.f32.mxu0 0.0
  %3881 = vmatmul.mubr.f32.gmra.mxu0 %v2892
  %v3882 = vpop.f32.mrf.mxu0
  %v3883 = vadd.f32 0.0, %v3882
  %v3884 = vpop.f32.mrf.mxu0
  %3885 = vmatprep.mubr.f32.mxu0 0.0
  %3886 = vmatmul.mubr.f32.gmra.mxu0 %v2893
  %v3887 = vpop.f32.mrf.mxu0
  %v3888 = vadd.f32 0.0, %v3887
  %v3889 = vpop.f32.mrf.mxu0
  %3890 = vmatprep.mubr.f32.mxu0 0.0
  %3891 = vmatmul.mubr.f32.gmra.mxu0 %v2894
  %v3892 = vpop.f32.mrf.mxu0
  %v3893 = vadd.f32 0.0, %v3892
  %v3894 = vpop.f32.mrf.mxu0
  %3895 = vmatprep.mubr.f32.mxu0 0.0
  %3896 = vmatmul.mubr.f32.gmra.mxu0 %v2895
  %v3897 = vpop.f32.mrf.mxu0
  %v3898 = vadd.f32 0.0, %v3897
  %v3899 = vpop.f32.mrf.mxu0
  %3900 = vmatprep.mubr.f32.mxu0 0.0
  %3901 = vmatmul.mubr.f32.gmra.mxu0 %v2896
  %v3902 = vpop.f32.mrf.mxu0
  %v3903 = vadd.f32 0.0, %v3902
  %v3904 = vpop.f32.mrf.mxu0
  %3905 = vmatprep.mubr.f32.mxu0 0.0
  %3906 = vmatmul.mubr.f32.gmra.mxu0 %v2897
  %v3907 = vpop.f32.mrf.mxu0
  %v3908 = vadd.f32 0.0, %v3907
  %v3909 = vpop.f32.mrf.mxu0
  %3910 = vmatprep.mubr.f32.mxu0 0.0
  %3911 = vmatmul.mubr.f32.gmra.mxu0 %v2898
  %v3912 = vpop.f32.mrf.mxu0
  %v3913 = vadd.f32 0.0, %v3912
  %v3914 = vpop.f32.mrf.mxu0
  %3915 = vmatprep.mubr.f32.mxu0 0.0
  %3916 = vmatmul.mubr.f32.gmra.mxu0 %v2899
  %v3917 = vpop.f32.mrf.mxu0
  %v3918 = vadd.f32 0.0, %v3917
  %v3919 = vpop.f32.mrf.mxu0
  %3920 = vmatprep.mubr.f32.mxu0 0.0
  %3921 = vmatmul.mubr.f32.gmra.mxu0 %v2900
  %v3922 = vpop.f32.mrf.mxu0
  %v3923 = vadd.f32 0.0, %v3922
  %v3924 = vpop.f32.mrf.mxu0
  %3925 = vmatprep.mubr.f32.mxu0 0.0
  %3926 = vmatmul.mubr.f32.gmra.mxu0 %v2901
  %v3927 = vpop.f32.mrf.mxu0
  %v3928 = vadd.f32 0.0, %v3927
  %v3929 = vpop.f32.mrf.mxu0
  %3930 = vmatprep.mubr.f32.mxu0 0.0
  %3931 = vmatmul.mubr.f32.gmra.mxu0 %v2902
  %v3932 = vpop.f32.mrf.mxu0
  %v3933 = vadd.f32 0.0, %v3932
  %v3934 = vpop.f32.mrf.mxu0
  %3935 = vmatprep.mubr.f32.mxu0 0.0
  %3936 = vmatmul.mubr.f32.gmra.mxu0 %v2903
  %v3937 = vpop.f32.mrf.mxu0
  %v3938 = vadd.f32 0.0, %v3937
  %v3939 = vpop.f32.mrf.mxu0
  %3940 = vmatprep.mubr.f32.mxu0 0.0
  %3941 = vmatmul.mubr.f32.gmra.mxu0 %v2904
  %v3942 = vpop.f32.mrf.mxu0
  %v3943 = vadd.f32 0.0, %v3942
  %v3944 = vpop.f32.mrf.mxu0
  %3945 = vmatprep.mubr.f32.mxu0 0.0
  %3946 = vmatmul.mubr.f32.gmra.mxu0 %v2905
  %v3947 = vpop.f32.mrf.mxu0
  %v3948 = vadd.f32 0.0, %v3947
  %v3949 = vpop.f32.mrf.mxu0
  %3950 = vdwg.mxu0
  %v3951 = vmax.f32 %v2513, %v2973
  %v3952 = vmax.f32 %v2514, %v2978
  %v3953 = vmax.f32 %v2515, %v2983
  %v3954 = vmax.f32 %v2516, %v2988
  %v3955 = vmax.f32 %v2517, %v2993
  %v3956 = vmax.f32 %v2518, %v2998
  %v3957 = vmax.f32 %v2519, %v3003
  %v3958 = vmax.f32 %v2520, %v3008
  %v3959 = vmax.f32 %v2521, %v3013
  %v3960 = vmax.f32 %v2522, %v3018
  %v3961 = vmax.f32 %v2523, %v3023
  %v3962 = vmax.f32 %v2524, %v3028
  %v3963 = vmax.f32 %v2525, %v3033
  %v3964 = vmax.f32 %v2526, %v3038
  %v3965 = vmax.f32 %v2527, %v3043
  %v3966 = vmax.f32 %v2528, %v3048
  %v3967 = vmax.f32 %v2529, %v3053
  %v3968 = vmax.f32 %v2530, %v3058
  %v3969 = vmax.f32 %v2531, %v3063
  %v3970 = vmax.f32 %v2532, %v3068
  %v3971 = vmax.f32 %v2533, %v3073
  %v3972 = vmax.f32 %v2534, %v3078
  %v3973 = vmax.f32 %v2535, %v3083
  %v3974 = vmax.f32 %v2536, %v3088
  %v3975 = vmax.f32 %v2537, %v3093
  %v3976 = vmax.f32 %v2538, %v3098
  %v3977 = vmax.f32 %v2539, %v3103
  %v3978 = vmax.f32 %v2540, %v3108
  %v3979 = vmax.f32 %v2541, %v3113
  %v3980 = vmax.f32 %v2542, %v3118
  %v3981 = vmax.f32 %v2543, %v3123
  %v3982 = vmax.f32 %v2544, %v3128
  %v3983 = vmax.f32 %v2545, %v3133
  %v3984 = vmax.f32 %v2546, %v3138
  %v3985 = vmax.f32 %v2547, %v3143
  %v3986 = vmax.f32 %v2548, %v3148
  %v3987 = vmax.f32 %v2549, %v3153
  %v3988 = vmax.f32 %v2550, %v3158
  %v3989 = vmax.f32 %v2551, %v3163
  %v3990 = vmax.f32 %v2552, %v3168
  %v3991 = vmax.f32 %v2553, %v3173
  %v3992 = vmax.f32 %v2554, %v3178
  %v3993 = vmax.f32 %v2555, %v3183
  %v3994 = vmax.f32 %v2556, %v3188
  %v3995 = vmax.f32 %v2557, %v3193
  %v3996 = vmax.f32 %v2558, %v3198
  %v3997 = vmax.f32 %v2559, %v3203
  %v3998 = vmax.f32 %v2560, %v3208
  %v3999 = vmax.f32 %v2561, %v3213
  %v4000 = vmax.f32 %v2562, %v3218
  %v4001 = vmax.f32 %v2563, %v3223
  %v4002 = vmax.f32 %v2564, %v3228
  %v4003 = vmax.f32 %v2565, %v3233
  %v4004 = vmax.f32 %v2566, %v3238
  %v4005 = vmax.f32 %v2567, %v3243
  %v4006 = vmax.f32 %v2568, %v3248
  %v4007 = vmax.f32 %v2569, %v3253
  %v4008 = vmax.f32 %v2570, %v3258
  %v4009 = vmax.f32 %v2571, %v3263
  %v4010 = vmax.f32 %v2572, %v3268
  %v4011 = vmax.f32 %v2573, %v3273
  %v4012 = vmax.f32 %v2574, %v3278
  %v4013 = vmax.f32 %v2575, %v3283
  %v4014 = vmax.f32 %v2576, %v3288
  %v4015 = vmax.f32 %v2577, %v3293
  %v4016 = vmax.f32 %v2578, %v3298
  %v4017 = vmax.f32 %v2579, %v3303
  %v4018 = vmax.f32 %v2580, %v3308
  %v4019 = vmax.f32 %v2581, %v3313
  %v4020 = vmax.f32 %v2582, %v3318
  %v4021 = vmax.f32 %v2583, %v3323
  %v4022 = vmax.f32 %v2584, %v3328
  %v4023 = vmax.f32 %v2585, %v3333
  %v4024 = vmax.f32 %v2586, %v3338
  %v4025 = vmax.f32 %v2587, %v3343
  %v4026 = vmax.f32 %v2588, %v3348
  %v4027 = vmax.f32 %v2589, %v3353
  %v4028 = vmax.f32 %v2590, %v3358
  %v4029 = vmax.f32 %v2591, %v3363
  %v4030 = vmax.f32 %v2592, %v3368
  %v4031 = vmax.f32 %v2593, %v3373
  %v4032 = vmax.f32 %v2594, %v3378
  %v4033 = vmax.f32 %v2595, %v3383
  %v4034 = vmax.f32 %v2596, %v3388
  %v4035 = vmax.f32 %v2597, %v3393
  %v4036 = vmax.f32 %v2598, %v3398
  %v4037 = vmax.f32 %v2599, %v3403
  %v4038 = vmax.f32 %v2600, %v3408
  %v4039 = vmax.f32 %v2601, %v3413
  %v4040 = vmax.f32 %v2602, %v3418
  %v4041 = vmax.f32 %v2603, %v3423
  %v4042 = vmax.f32 %v2604, %v3428
  %v4043 = vmax.f32 %v2605, %v3433
  %v4044 = vmax.f32 %v2606, %v3438
  %v4045 = vmax.f32 %v2607, %v3443
  %v4046 = vmax.f32 %v2608, %v3448
  %v4047 = vmax.f32 %v2609, %v3453
  %v4048 = vmax.f32 %v2610, %v3458
  %v4049 = vmax.f32 %v2611, %v3463
  %v4050 = vmax.f32 %v2612, %v3468
  %v4051 = vmax.f32 %v2613, %v3473
  %v4052 = vmax.f32 %v2614, %v3478
  %v4053 = vmax.f32 %v2615, %v3483
  %v4054 = vmax.f32 %v2616, %v3488
  %v4055 = vmax.f32 %v2617, %v3493
  %v4056 = vmax.f32 %v2618, %v3498
  %v4057 = vmax.f32 %v2619, %v3503
  %v4058 = vmax.f32 %v2620, %v3508
  %v4059 = vmax.f32 %v2621, %v3513
  %v4060 = vmax.f32 %v2622, %v3518
  %v4061 = vmax.f32 %v2623, %v3523
  %v4062 = vmax.f32 %v2624, %v3528
  %v4063 = vmax.f32 %v2625, %v3533
  %v4064 = vmax.f32 %v2626, %v3538
  %v4065 = vmax.f32 %v2627, %v3543
  %v4066 = vmax.f32 %v2628, %v3548
  %v4067 = vmax.f32 %v2629, %v3553
  %v4068 = vmax.f32 %v2630, %v3558
  %v4069 = vmax.f32 %v2631, %v3563
  %v4070 = vmax.f32 %v2632, %v3568
  %v4071 = vmax.f32 %v2633, %v3573
  %v4072 = vmax.f32 %v2634, %v3578
  %v4073 = vmax.f32 %v2635, %v3583
  %v4074 = vmax.f32 %v2636, %v3588
  %v4075 = vmax.f32 %v2637, %v3593
  %v4076 = vmax.f32 %v2638, %v3598
  %v4077 = vmax.f32 %v2639, %v3603
  %v4078 = vmax.f32 %v2640, %v3608
  %v4079 = vmax.f32 %v2641, %v3613
  %v4080 = vmax.f32 %v2642, %v3618
  %v4081 = vmax.f32 %v2643, %v3623
  %v4082 = vmax.f32 %v2644, %v3628
  %v4083 = vmax.f32 %v2645, %v3633
  %v4084 = vmax.f32 %v2646, %v3638
  %v4085 = vmax.f32 %v2647, %v3643
  %v4086 = vmax.f32 %v2648, %v3648
  %v4087 = vmax.f32 %v2649, %v3653
  %v4088 = vmax.f32 %v2650, %v3658
  %v4089 = vmax.f32 %v2651, %v3663
  %v4090 = vmax.f32 %v2652, %v3668
  %v4091 = vmax.f32 %v2653, %v3673
  %v4092 = vmax.f32 %v2654, %v3678
  %v4093 = vmax.f32 %v2655, %v3683
  %v4094 = vmax.f32 %v2656, %v3688
  %v4095 = vmax.f32 %v2657, %v3693
  %v4096 = vmax.f32 %v2658, %v3698
  %v4097 = vmax.f32 %v2659, %v3703
  %v4098 = vmax.f32 %v2660, %v3708
  %v4099 = vmax.f32 %v2661, %v3713
  %v4100 = vmax.f32 %v2662, %v3718
  %v4101 = vmax.f32 %v2663, %v3723
  %v4102 = vmax.f32 %v2664, %v3728
  %v4103 = vmax.f32 %v2665, %v3733
  %v4104 = vmax.f32 %v2666, %v3738
  %v4105 = vmax.f32 %v2667, %v3743
  %v4106 = vmax.f32 %v2668, %v3748
  %v4107 = vmax.f32 %v2669, %v3753
  %v4108 = vmax.f32 %v2670, %v3758
  %v4109 = vmax.f32 %v2671, %v3763
  %v4110 = vmax.f32 %v2672, %v3768
  %v4111 = vmax.f32 %v2673, %v3773
  %v4112 = vmax.f32 %v2674, %v3778
  %v4113 = vmax.f32 %v2675, %v3783
  %v4114 = vmax.f32 %v2676, %v3788
  %v4115 = vmax.f32 %v2677, %v3793
  %v4116 = vmax.f32 %v2678, %v3798
  %v4117 = vmax.f32 %v2679, %v3803
  %v4118 = vmax.f32 %v2680, %v3808
  %v4119 = vmax.f32 %v2681, %v3813
  %v4120 = vmax.f32 %v2682, %v3818
  %v4121 = vmax.f32 %v2683, %v3823
  %v4122 = vmax.f32 %v2684, %v3828
  %v4123 = vmax.f32 %v2685, %v3833
  %v4124 = vmax.f32 %v2686, %v3838
  %v4125 = vmax.f32 %v2687, %v3843
  %v4126 = vmax.f32 %v2688, %v3848
  %v4127 = vmax.f32 %v2689, %v3853
  %v4128 = vmax.f32 %v2690, %v3858
  %v4129 = vmax.f32 %v2691, %v3863
  %v4130 = vmax.f32 %v2692, %v3868
  %v4131 = vmax.f32 %v2693, %v3873
  %v4132 = vmax.f32 %v2694, %v3878
  %v4133 = vmax.f32 %v2695, %v3883
  %v4134 = vmax.f32 %v2696, %v3888
  %v4135 = vmax.f32 %v2697, %v3893
  %v4136 = vmax.f32 %v2698, %v3898
  %v4137 = vmax.f32 %v2699, %v3903
  %v4138 = vmax.f32 %v2700, %v3908
  %v4139 = vmax.f32 %v2701, %v3913
  %v4140 = vmax.f32 %v2702, %v3918
  %v4141 = vmax.f32 %v2703, %v3923
  %v4142 = vmax.f32 %v2704, %v3928
  %v4143 = vmax.f32 %v2705, %v3933
  %v4144 = vmax.f32 %v2706, %v3938
  %v4145 = vmax.f32 %v2707, %v3943
  %v4146 = vmax.f32 %v2708, %v3948
  %s4147 = scalar_lea.vmem %s0, 4704
  %v4148 = vld [vmem:[%s4147] sm:$0xff]
  %v4149 = vld [vmem:[%s4147 + $0x8] sm:$0xff]
  %v4150 = vld [vmem:[%s4147 + $0x10] sm:$0xff]
  %v4151 = vld [vmem:[%s4147 + $0x18] sm:$0xff]
  %v4152 = vld [vmem:[%s4147 + $0x20] sm:$0xff]
  %v4153 = vld [vmem:[%s4147 + $0x28] sm:$0xff]
  %v4154 = vld [vmem:[%s4147 + $0x30] sm:$0xff]
  %v4155 = vld [vmem:[%s4147 + $0x38] sm:$0xff]
  %v4156 = vld [vmem:[%s4147 + $0x40] sm:$0xff]
  %v4157 = vld [vmem:[%s4147 + $0x48] sm:$0xff]
  %v4158 = vld [vmem:[%s4147 + $0x50] sm:$0xff]
  %v4159 = vld [vmem:[%s4147 + $0x58] sm:$0xff]
  %v4160 = vld [vmem:[%s4147 + $0x60] sm:$0xff]
  %v4161 = vld [vmem:[%s4147 + $0x68] sm:$0xff]
  %v4162 = vld [vmem:[%s4147 + $0x70] sm:$0xff]
  %v4163 = vld [vmem:[%s4147 + $0x78] sm:$0xff]
  %v4164 = vld [vmem:[%s4147 + $0x80] sm:$0xff]
  %v4165 = vld [vmem:[%s4147 + $0x88] sm:$0xff]
  %v4166 = vld [vmem:[%s4147 + $0x90] sm:$0xff]
  %v4167 = vld [vmem:[%s4147 + $0x98] sm:$0xff]
  %v4168 = vld [vmem:[%s4147 + $0xa0] sm:$0xff]
  %v4169 = vld [vmem:[%s4147 + $0xa8] sm:$0xff]
  %v4170 = vld [vmem:[%s4147 + $0xb0] sm:$0xff]
  %v4171 = vld [vmem:[%s4147 + $0xb8] sm:$0xff]
  %v4172 = vld [vmem:[%s4147 + $0xc0] sm:$0xff]
  %v4173 = vld [vmem:[%s4147 + $0xc8] sm:$0xff]
  %v4174 = vld [vmem:[%s4147 + $0xd0] sm:$0xff]
  %v4175 = vld [vmem:[%s4147 + $0xd8] sm:$0xff]
  %v4176 = vld [vmem:[%s4147 + $0xe0] sm:$0xff]
  %v4177 = vld [vmem:[%s4147 + $0xe8] sm:$0xff]
  %v4178 = vld [vmem:[%s4147 + $0xf0] sm:$0xff]
  %v4179 = vld [vmem:[%s4147 + $0xf8] sm:$0xff]
  %v4180 = vld [vmem:[%s4147 + $0x100] sm:$0xff]
  %v4181 = vld [vmem:[%s4147 + $0x108] sm:$0xff]
  %v4182 = vld [vmem:[%s4147 + $0x110] sm:$0xff]
  %v4183 = vld [vmem:[%s4147 + $0x118] sm:$0xff]
  %v4184 = vld [vmem:[%s4147 + $0x120] sm:$0xff]
  %v4185 = vld [vmem:[%s4147 + $0x128] sm:$0xff]
  %v4186 = vld [vmem:[%s4147 + $0x130] sm:$0xff]
  %v4187 = vld [vmem:[%s4147 + $0x138] sm:$0xff]
  %v4188 = vld [vmem:[%s4147 + $0x140] sm:$0xff]
  %v4189 = vld [vmem:[%s4147 + $0x148] sm:$0xff]
  %v4190 = vld [vmem:[%s4147 + $0x150] sm:$0xff]
  %v4191 = vld [vmem:[%s4147 + $0x158] sm:$0xff]
  %v4192 = vld [vmem:[%s4147 + $0x160] sm:$0xff]
  %v4193 = vld [vmem:[%s4147 + $0x168] sm:$0xff]
  %v4194 = vld [vmem:[%s4147 + $0x170] sm:$0xff]
  %v4195 = vld [vmem:[%s4147 + $0x178] sm:$0xff]
  %v4196 = vld [vmem:[%s4147 + $0x180] sm:$0xff]
  %v4197 = vld [vmem:[%s4147 + $0x188] sm:$0xff]
  %v4198 = vld [vmem:[%s4147 + $0x190] sm:$0xff]
  %v4199 = vld [vmem:[%s4147 + $0x198] sm:$0xff]
  %v4200 = vld [vmem:[%s4147 + $0x1a0] sm:$0xff]
  %v4201 = vld [vmem:[%s4147 + $0x1a8] sm:$0xff]
  %v4202 = vld [vmem:[%s4147 + $0x1b0] sm:$0xff]
  %v4203 = vld [vmem:[%s4147 + $0x1b8] sm:$0xff]
  %v4204 = vld [vmem:[%s4147 + $0x1c0] sm:$0xff]
  %v4205 = vld [vmem:[%s4147 + $0x1c8] sm:$0xff]
  %v4206 = vld [vmem:[%s4147 + $0x1d0] sm:$0xff]
  %v4207 = vld [vmem:[%s4147 + $0x1d8] sm:$0xff]
  %v4208 = vld [vmem:[%s4147 + $0x1e0] sm:$0xff]
  %v4209 = vld [vmem:[%s4147 + $0x1e8] sm:$0xff]
  %v4210 = vld [vmem:[%s4147 + $0x1f0] sm:$0xff]
  %v4211 = vld [vmem:[%s4147 + $0x1f8] sm:$0xff]
  %v4212 = vld [vmem:[%s4147 + $0x200] sm:$0xff]
  %v4213 = vld [vmem:[%s4147 + $0x208] sm:$0xff]
  %v4214 = vld [vmem:[%s4147 + $0x210] sm:$0xff]
  %v4215 = vld [vmem:[%s4147 + $0x218] sm:$0xff]
  %v4216 = vld [vmem:[%s4147 + $0x220] sm:$0xff]
  %v4217 = vld [vmem:[%s4147 + $0x228] sm:$0xff]
  %v4218 = vld [vmem:[%s4147 + $0x230] sm:$0xff]
  %v4219 = vld [vmem:[%s4147 + $0x238] sm:$0xff]
  %v4220 = vld [vmem:[%s4147 + $0x240] sm:$0xff]
  %v4221 = vld [vmem:[%s4147 + $0x248] sm:$0xff]
  %v4222 = vld [vmem:[%s4147 + $0x250] sm:$0xff]
  %v4223 = vld [vmem:[%s4147 + $0x258] sm:$0xff]
  %v4224 = vld [vmem:[%s4147 + $0x260] sm:$0xff]
  %v4225 = vld [vmem:[%s4147 + $0x268] sm:$0xff]
  %v4226 = vld [vmem:[%s4147 + $0x270] sm:$0xff]
  %v4227 = vld [vmem:[%s4147 + $0x278] sm:$0xff]
  %v4228 = vld [vmem:[%s4147 + $0x280] sm:$0xff]
  %v4229 = vld [vmem:[%s4147 + $0x288] sm:$0xff]
  %v4230 = vld [vmem:[%s4147 + $0x290] sm:$0xff]
  %v4231 = vld [vmem:[%s4147 + $0x298] sm:$0xff]
  %v4232 = vld [vmem:[%s4147 + $0x2a0] sm:$0xff]
  %v4233 = vld [vmem:[%s4147 + $0x2a8] sm:$0xff]
  %v4234 = vld [vmem:[%s4147 + $0x2b0] sm:$0xff]
  %v4235 = vld [vmem:[%s4147 + $0x2b8] sm:$0xff]
  %v4236 = vld [vmem:[%s4147 + $0x2c0] sm:$0xff]
  %v4237 = vld [vmem:[%s4147 + $0x2c8] sm:$0xff]
  %v4238 = vld [vmem:[%s4147 + $0x2d0] sm:$0xff]
  %v4239 = vld [vmem:[%s4147 + $0x2d8] sm:$0xff]
  %v4240 = vld [vmem:[%s4147 + $0x2e0] sm:$0xff]
  %v4241 = vld [vmem:[%s4147 + $0x2e8] sm:$0xff]
  %v4242 = vld [vmem:[%s4147 + $0x2f0] sm:$0xff]
  %v4243 = vld [vmem:[%s4147 + $0x2f8] sm:$0xff]
  %v4244 = vld [vmem:[%s4147 + $0x300] sm:$0xff]
  %v4245 = vld [vmem:[%s4147 + $0x308] sm:$0xff]
  %v4246 = vld [vmem:[%s4147 + $0x310] sm:$0xff]
  %v4247 = vld [vmem:[%s4147 + $0x318] sm:$0xff]
  %v4248 = vld [vmem:[%s4147 + $0x320] sm:$0xff]
  %v4249 = vld [vmem:[%s4147 + $0x328] sm:$0xff]
  %v4250 = vld [vmem:[%s4147 + $0x330] sm:$0xff]
  %v4251 = vld [vmem:[%s4147 + $0x338] sm:$0xff]
  %v4252 = vld [vmem:[%s4147 + $0x340] sm:$0xff]
  %v4253 = vld [vmem:[%s4147 + $0x348] sm:$0xff]
  %v4254 = vld [vmem:[%s4147 + $0x350] sm:$0xff]
  %v4255 = vld [vmem:[%s4147 + $0x358] sm:$0xff]
  %v4256 = vld [vmem:[%s4147 + $0x360] sm:$0xff]
  %v4257 = vld [vmem:[%s4147 + $0x368] sm:$0xff]
  %v4258 = vld [vmem:[%s4147 + $0x370] sm:$0xff]
  %v4259 = vld [vmem:[%s4147 + $0x378] sm:$0xff]
  %v4260 = vld [vmem:[%s4147 + $0x380] sm:$0xff]
  %v4261 = vld [vmem:[%s4147 + $0x388] sm:$0xff]
  %v4262 = vld [vmem:[%s4147 + $0x390] sm:$0xff]
  %v4263 = vld [vmem:[%s4147 + $0x398] sm:$0xff]
  %v4264 = vld [vmem:[%s4147 + $0x3a0] sm:$0xff]
  %v4265 = vld [vmem:[%s4147 + $0x3a8] sm:$0xff]
  %v4266 = vld [vmem:[%s4147 + $0x3b0] sm:$0xff]
  %v4267 = vld [vmem:[%s4147 + $0x3b8] sm:$0xff]
  %v4268 = vld [vmem:[%s4147 + $0x3c0] sm:$0xff]
  %v4269 = vld [vmem:[%s4147 + $0x3c8] sm:$0xff]
  %v4270 = vld [vmem:[%s4147 + $0x3d0] sm:$0xff]
  %v4271 = vld [vmem:[%s4147 + $0x3d8] sm:$0xff]
  %v4272 = vld [vmem:[%s4147 + $0x3e0] sm:$0xff]
  %v4273 = vld [vmem:[%s4147 + $0x3e8] sm:$0xff]
  %v4274 = vld [vmem:[%s4147 + $0x3f0] sm:$0xff]
  %v4275 = vld [vmem:[%s4147 + $0x3f8] sm:$0xff]
  %v4276 = vld [vmem:[%s4147 + $0x400] sm:$0xff]
  %v4277 = vld [vmem:[%s4147 + $0x408] sm:$0xff]
  %v4278 = vld [vmem:[%s4147 + $0x410] sm:$0xff]
  %v4279 = vld [vmem:[%s4147 + $0x418] sm:$0xff]
  %v4280 = vld [vmem:[%s4147 + $0x420] sm:$0xff]
  %v4281 = vld [vmem:[%s4147 + $0x428] sm:$0xff]
  %v4282 = vld [vmem:[%s4147 + $0x430] sm:$0xff]
  %v4283 = vld [vmem:[%s4147 + $0x438] sm:$0xff]
  %v4284 = vld [vmem:[%s4147 + $0x440] sm:$0xff]
  %v4285 = vld [vmem:[%s4147 + $0x448] sm:$0xff]
  %v4286 = vld [vmem:[%s4147 + $0x450] sm:$0xff]
  %v4287 = vld [vmem:[%s4147 + $0x458] sm:$0xff]
  %v4288 = vld [vmem:[%s4147 + $0x460] sm:$0xff]
  %v4289 = vld [vmem:[%s4147 + $0x468] sm:$0xff]
  %v4290 = vld [vmem:[%s4147 + $0x470] sm:$0xff]
  %v4291 = vld [vmem:[%s4147 + $0x478] sm:$0xff]
  %v4292 = vld [vmem:[%s4147 + $0x480] sm:$0xff]
  %v4293 = vld [vmem:[%s4147 + $0x488] sm:$0xff]
  %v4294 = vld [vmem:[%s4147 + $0x490] sm:$0xff]
  %v4295 = vld [vmem:[%s4147 + $0x498] sm:$0xff]
  %v4296 = vld [vmem:[%s4147 + $0x4a0] sm:$0xff]
  %v4297 = vld [vmem:[%s4147 + $0x4a8] sm:$0xff]
  %v4298 = vld [vmem:[%s4147 + $0x4b0] sm:$0xff]
  %v4299 = vld [vmem:[%s4147 + $0x4b8] sm:$0xff]
  %v4300 = vld [vmem:[%s4147 + $0x4c0] sm:$0xff]
  %v4301 = vld [vmem:[%s4147 + $0x4c8] sm:$0xff]
  %v4302 = vld [vmem:[%s4147 + $0x4d0] sm:$0xff]
  %v4303 = vld [vmem:[%s4147 + $0x4d8] sm:$0xff]
  %v4304 = vld [vmem:[%s4147 + $0x4e0] sm:$0xff]
  %v4305 = vld [vmem:[%s4147 + $0x4e8] sm:$0xff]
  %v4306 = vld [vmem:[%s4147 + $0x4f0] sm:$0xff]
  %v4307 = vld [vmem:[%s4147 + $0x4f8] sm:$0xff]
  %v4308 = vld [vmem:[%s4147 + $0x500] sm:$0xff]
  %v4309 = vld [vmem:[%s4147 + $0x508] sm:$0xff]
  %v4310 = vld [vmem:[%s4147 + $0x510] sm:$0xff]
  %v4311 = vld [vmem:[%s4147 + $0x518] sm:$0xff]
  %v4312 = vld [vmem:[%s4147 + $0x520] sm:$0xff]
  %v4313 = vld [vmem:[%s4147 + $0x528] sm:$0xff]
  %v4314 = vld [vmem:[%s4147 + $0x530] sm:$0xff]
  %v4315 = vld [vmem:[%s4147 + $0x538] sm:$0xff]
  %v4316 = vld [vmem:[%s4147 + $0x540] sm:$0xff]
  %v4317 = vld [vmem:[%s4147 + $0x548] sm:$0xff]
  %v4318 = vld [vmem:[%s4147 + $0x550] sm:$0xff]
  %v4319 = vld [vmem:[%s4147 + $0x558] sm:$0xff]
  %v4320 = vld [vmem:[%s4147 + $0x560] sm:$0xff]
  %v4321 = vld [vmem:[%s4147 + $0x568] sm:$0xff]
  %v4322 = vld [vmem:[%s4147 + $0x570] sm:$0xff]
  %v4323 = vld [vmem:[%s4147 + $0x578] sm:$0xff]
  %v4324 = vld [vmem:[%s4147 + $0x580] sm:$0xff]
  %v4325 = vld [vmem:[%s4147 + $0x588] sm:$0xff]
  %v4326 = vld [vmem:[%s4147 + $0x590] sm:$0xff]
  %v4327 = vld [vmem:[%s4147 + $0x598] sm:$0xff]
  %v4328 = vld [vmem:[%s4147 + $0x5a0] sm:$0xff]
  %v4329 = vld [vmem:[%s4147 + $0x5a8] sm:$0xff]
  %v4330 = vld [vmem:[%s4147 + $0x5b0] sm:$0xff]
  %v4331 = vld [vmem:[%s4147 + $0x5b8] sm:$0xff]
  %v4332 = vld [vmem:[%s4147 + $0x5c0] sm:$0xff]
  %v4333 = vld [vmem:[%s4147 + $0x5c8] sm:$0xff]
  %v4334 = vld [vmem:[%s4147 + $0x5d0] sm:$0xff]
  %v4335 = vld [vmem:[%s4147 + $0x5d8] sm:$0xff]
  %v4336 = vld [vmem:[%s4147 + $0x5e0] sm:$0xff]
  %v4337 = vld [vmem:[%s4147 + $0x5e8] sm:$0xff]
  %v4338 = vld [vmem:[%s4147 + $0x5f0] sm:$0xff]
  %v4339 = vld [vmem:[%s4147 + $0x5f8] sm:$0xff]
  %v4340 = vld [vmem:[%s4147 + $0x600] sm:$0xff]
  %v4341 = vld [vmem:[%s4147 + $0x608] sm:$0xff]
  %v4342 = vld [vmem:[%s4147 + $0x610] sm:$0xff]
  %v4343 = vld [vmem:[%s4147 + $0x618] sm:$0xff]
  %4344 = vmatprep.subr.mxu0 0.0
  %4345 = vmatpush1.msra.mxu0 %v29
  %4346 = vmatprep.subr.mxu0 0.0
  %4347 = vmatpush1.msra.mxu0 %v28
  %4348 = vmatprep.subr.mxu0 0.0
  %4349 = vmatpush1.msra.mxu0 %v27
  %4350 = vmatprep.subr.mxu0 0.0
  %4351 = vmatpush1.msra.mxu0 %v26
  %4352 = vmatprep.subr.mxu0 0.0
  %4353 = vmatpush1.msra.mxu0 %v25
  %4354 = vmatprep.subr.mxu0 0.0
  %4355 = vmatpush1.msra.mxu0 %v24
  %4356 = vmatprep.subr.mxu0 0.0
  %4357 = vmatpush1.msra.mxu0 %v23
  %4358 = vmatprep.subr.mxu0 0.0
  %4359 = vmatpush1.msra.mxu0 %v22
  %4360 = vmatprep.subr.mxu0 0.0
  %4361 = vmatpush1.msra.mxu0 %v21
  %4362 = vmatprep.subr.mxu0 0.0
  %4363 = vmatpush1.msra.mxu0 %v20
  %4364 = vmatprep.subr.mxu0 0.0
  %4365 = vmatpush1.msra.mxu0 %v19
  %4366 = vmatprep.subr.mxu0 0.0
  %4367 = vmatpush1.msra.mxu0 %v18
  %4368 = vmatprep.subr.mxu0 0.0
  %4369 = vmatpush1.msra.mxu0 %v17
  %4370 = vmatprep.subr.mxu0 0.0
  %4371 = vmatpush1.msra.mxu0 %v16
  %4372 = vmatprep.subr.mxu0 0.0
  %4373 = vmatpush1.msra.mxu0 %v15
  %4374 = vmatprep.subr.mxu0 0.0
  %4375 = vmatpush1.msra.mxu0 %v14
  %4376 = vmatprep.subr.mxu0 0.0
  %4377 = vmatpush2.msra.mxu0 0.0
  %4378 = vmatprep.subr.mxu0 0.0
  %4379 = vmatpush2.msra.mxu0 0.0
  %4380 = vmatprep.subr.mxu0 0.0
  %4381 = vmatpush2.msra.mxu0 0.0
  %4382 = vmatprep.subr.mxu0 0.0
  %4383 = vmatpush2.msra.mxu0 0.0
  %4384 = vmatprep.subr.mxu0 0.0
  %4385 = vmatpush2.msra.mxu0 0.0
  %4386 = vmatprep.subr.mxu0 0.0
  %4387 = vmatpush2.msra.mxu0 0.0
  %4388 = vmatprep.subr.mxu0 0.0
  %4389 = vmatpush2.msra.mxu0 0.0
  %4390 = vmatprep.subr.mxu0 0.0
  %4391 = vmatpush2.msra.mxu0 0.0
  %4392 = vmatprep.subr.mxu0 0.0
  %4393 = vmatpush2.msra.mxu0 0.0
  %4394 = vmatprep.subr.mxu0 0.0
  %4395 = vmatpush2.msra.mxu0 0.0
  %4396 = vmatprep.subr.mxu0 0.0
  %4397 = vmatpush2.msra.mxu0 0.0
  %4398 = vmatprep.subr.mxu0 0.0
  %4399 = vmatpush2.msra.mxu0 0.0
  %4400 = vmatprep.subr.mxu0 0.0
  %4401 = vmatpush2.msra.mxu0 0.0
  %4402 = vmatprep.subr.mxu0 0.0
  %4403 = vmatpush2.msra.mxu0 0.0
  %4404 = vmatprep.subr.mxu0 0.0
  %4405 = vmatpush2.msra.mxu0 0.0
  %4406 = vmatprep.subr.mxu0 0.0
  %4407 = vmatpush2.msra.mxu0 0.0
  %4408 = vmatprep.mubr.f32.mxu0 0.0
  %4409 = vmatmul.mubr.f32.gmra.mxu0 %v4148
  %v4410 = vpop.f32.mrf.mxu0
  %v4411 = vadd.f32 0.0, %v4410
  %v4412 = vpop.f32.mrf.mxu0
  %4413 = vmatprep.mubr.f32.mxu0 0.0
  %4414 = vmatmul.mubr.f32.gmra.mxu0 %v4149
  %v4415 = vpop.f32.mrf.mxu0
  %v4416 = vadd.f32 0.0, %v4415
  %v4417 = vpop.f32.mrf.mxu0
  %4418 = vmatprep.mubr.f32.mxu0 0.0
  %4419 = vmatmul.mubr.f32.gmra.mxu0 %v4150
  %v4420 = vpop.f32.mrf.mxu0
  %v4421 = vadd.f32 0.0, %v4420
  %v4422 = vpop.f32.mrf.mxu0
  %4423 = vmatprep.mubr.f32.mxu0 0.0
  %4424 = vmatmul.mubr.f32.gmra.mxu0 %v4151
  %v4425 = vpop.f32.mrf.mxu0
  %v4426 = vadd.f32 0.0, %v4425
  %v4427 = vpop.f32.mrf.mxu0
  %4428 = vmatprep.mubr.f32.mxu0 0.0
  %4429 = vmatmul.mubr.f32.gmra.mxu0 %v4152
  %v4430 = vpop.f32.mrf.mxu0
  %v4431 = vadd.f32 0.0, %v4430
  %v4432 = vpop.f32.mrf.mxu0
  %4433 = vmatprep.mubr.f32.mxu0 0.0
  %4434 = vmatmul.mubr.f32.gmra.mxu0 %v4153
  %v4435 = vpop.f32.mrf.mxu0
  %v4436 = vadd.f32 0.0, %v4435
  %v4437 = vpop.f32.mrf.mxu0
  %4438 = vmatprep.mubr.f32.mxu0 0.0
  %4439 = vmatmul.mubr.f32.gmra.mxu0 %v4154
  %v4440 = vpop.f32.mrf.mxu0
  %v4441 = vadd.f32 0.0, %v4440
  %v4442 = vpop.f32.mrf.mxu0
  %4443 = vmatprep.mubr.f32.mxu0 0.0
  %4444 = vmatmul.mubr.f32.gmra.mxu0 %v4155
  %v4445 = vpop.f32.mrf.mxu0
  %v4446 = vadd.f32 0.0, %v4445
  %v4447 = vpop.f32.mrf.mxu0
  %4448 = vmatprep.mubr.f32.mxu0 0.0
  %4449 = vmatmul.mubr.f32.gmra.mxu0 %v4156
  %v4450 = vpop.f32.mrf.mxu0
  %v4451 = vadd.f32 0.0, %v4450
  %v4452 = vpop.f32.mrf.mxu0
  %4453 = vmatprep.mubr.f32.mxu0 0.0
  %4454 = vmatmul.mubr.f32.gmra.mxu0 %v4157
  %v4455 = vpop.f32.mrf.mxu0
  %v4456 = vadd.f32 0.0, %v4455
  %v4457 = vpop.f32.mrf.mxu0
  %4458 = vmatprep.mubr.f32.mxu0 0.0
  %4459 = vmatmul.mubr.f32.gmra.mxu0 %v4158
  %v4460 = vpop.f32.mrf.mxu0
  %v4461 = vadd.f32 0.0, %v4460
  %v4462 = vpop.f32.mrf.mxu0
  %4463 = vmatprep.mubr.f32.mxu0 0.0
  %4464 = vmatmul.mubr.f32.gmra.mxu0 %v4159
  %v4465 = vpop.f32.mrf.mxu0
  %v4466 = vadd.f32 0.0, %v4465
  %v4467 = vpop.f32.mrf.mxu0
  %4468 = vmatprep.mubr.f32.mxu0 0.0
  %4469 = vmatmul.mubr.f32.gmra.mxu0 %v4160
  %v4470 = vpop.f32.mrf.mxu0
  %v4471 = vadd.f32 0.0, %v4470
  %v4472 = vpop.f32.mrf.mxu0
  %4473 = vmatprep.mubr.f32.mxu0 0.0
  %4474 = vmatmul.mubr.f32.gmra.mxu0 %v4161
  %v4475 = vpop.f32.mrf.mxu0
  %v4476 = vadd.f32 0.0, %v4475
  %v4477 = vpop.f32.mrf.mxu0
  %4478 = vmatprep.mubr.f32.mxu0 0.0
  %4479 = vmatmul.mubr.f32.gmra.mxu0 %v4162
  %v4480 = vpop.f32.mrf.mxu0
  %v4481 = vadd.f32 0.0, %v4480
  %v4482 = vpop.f32.mrf.mxu0
  %4483 = vmatprep.mubr.f32.mxu0 0.0
  %4484 = vmatmul.mubr.f32.gmra.mxu0 %v4163
  %v4485 = vpop.f32.mrf.mxu0
  %v4486 = vadd.f32 0.0, %v4485
  %v4487 = vpop.f32.mrf.mxu0
  %4488 = vmatprep.mubr.f32.mxu0 0.0
  %4489 = vmatmul.mubr.f32.gmra.mxu0 %v4164
  %v4490 = vpop.f32.mrf.mxu0
  %v4491 = vadd.f32 0.0, %v4490
  %v4492 = vpop.f32.mrf.mxu0
  %4493 = vmatprep.mubr.f32.mxu0 0.0
  %4494 = vmatmul.mubr.f32.gmra.mxu0 %v4165
  %v4495 = vpop.f32.mrf.mxu0
  %v4496 = vadd.f32 0.0, %v4495
  %v4497 = vpop.f32.mrf.mxu0
  %4498 = vmatprep.mubr.f32.mxu0 0.0
  %4499 = vmatmul.mubr.f32.gmra.mxu0 %v4166
  %v4500 = vpop.f32.mrf.mxu0
  %v4501 = vadd.f32 0.0, %v4500
  %v4502 = vpop.f32.mrf.mxu0
  %4503 = vmatprep.mubr.f32.mxu0 0.0
  %4504 = vmatmul.mubr.f32.gmra.mxu0 %v4167
  %v4505 = vpop.f32.mrf.mxu0
  %v4506 = vadd.f32 0.0, %v4505
  %v4507 = vpop.f32.mrf.mxu0
  %4508 = vmatprep.mubr.f32.mxu0 0.0
  %4509 = vmatmul.mubr.f32.gmra.mxu0 %v4168
  %v4510 = vpop.f32.mrf.mxu0
  %v4511 = vadd.f32 0.0, %v4510
  %v4512 = vpop.f32.mrf.mxu0
  %4513 = vmatprep.mubr.f32.mxu0 0.0
  %4514 = vmatmul.mubr.f32.gmra.mxu0 %v4169
  %v4515 = vpop.f32.mrf.mxu0
  %v4516 = vadd.f32 0.0, %v4515
  %v4517 = vpop.f32.mrf.mxu0
  %4518 = vmatprep.mubr.f32.mxu0 0.0
  %4519 = vmatmul.mubr.f32.gmra.mxu0 %v4170
  %v4520 = vpop.f32.mrf.mxu0
  %v4521 = vadd.f32 0.0, %v4520
  %v4522 = vpop.f32.mrf.mxu0
  %4523 = vmatprep.mubr.f32.mxu0 0.0
  %4524 = vmatmul.mubr.f32.gmra.mxu0 %v4171
  %v4525 = vpop.f32.mrf.mxu0
  %v4526 = vadd.f32 0.0, %v4525
  %v4527 = vpop.f32.mrf.mxu0
  %4528 = vmatprep.mubr.f32.mxu0 0.0
  %4529 = vmatmul.mubr.f32.gmra.mxu0 %v4172
  %v4530 = vpop.f32.mrf.mxu0
  %v4531 = vadd.f32 0.0, %v4530
  %v4532 = vpop.f32.mrf.mxu0
  %4533 = vmatprep.mubr.f32.mxu0 0.0
  %4534 = vmatmul.mubr.f32.gmra.mxu0 %v4173
  %v4535 = vpop.f32.mrf.mxu0
  %v4536 = vadd.f32 0.0, %v4535
  %v4537 = vpop.f32.mrf.mxu0
  %4538 = vmatprep.mubr.f32.mxu0 0.0
  %4539 = vmatmul.mubr.f32.gmra.mxu0 %v4174
  %v4540 = vpop.f32.mrf.mxu0
  %v4541 = vadd.f32 0.0, %v4540
  %v4542 = vpop.f32.mrf.mxu0
  %4543 = vmatprep.mubr.f32.mxu0 0.0
  %4544 = vmatmul.mubr.f32.gmra.mxu0 %v4175
  %v4545 = vpop.f32.mrf.mxu0
  %v4546 = vadd.f32 0.0, %v4545
  %v4547 = vpop.f32.mrf.mxu0
  %4548 = vmatprep.mubr.f32.mxu0 0.0
  %4549 = vmatmul.mubr.f32.gmra.mxu0 %v4176
  %v4550 = vpop.f32.mrf.mxu0
  %v4551 = vadd.f32 0.0, %v4550
  %v4552 = vpop.f32.mrf.mxu0
  %4553 = vmatprep.mubr.f32.mxu0 0.0
  %4554 = vmatmul.mubr.f32.gmra.mxu0 %v4177
  %v4555 = vpop.f32.mrf.mxu0
  %v4556 = vadd.f32 0.0, %v4555
  %v4557 = vpop.f32.mrf.mxu0
  %4558 = vmatprep.mubr.f32.mxu0 0.0
  %4559 = vmatmul.mubr.f32.gmra.mxu0 %v4178
  %v4560 = vpop.f32.mrf.mxu0
  %v4561 = vadd.f32 0.0, %v4560
  %v4562 = vpop.f32.mrf.mxu0
  %4563 = vmatprep.mubr.f32.mxu0 0.0
  %4564 = vmatmul.mubr.f32.gmra.mxu0 %v4179
  %v4565 = vpop.f32.mrf.mxu0
  %v4566 = vadd.f32 0.0, %v4565
  %v4567 = vpop.f32.mrf.mxu0
  %4568 = vmatprep.mubr.f32.mxu0 0.0
  %4569 = vmatmul.mubr.f32.gmra.mxu0 %v4180
  %v4570 = vpop.f32.mrf.mxu0
  %v4571 = vadd.f32 0.0, %v4570
  %v4572 = vpop.f32.mrf.mxu0
  %4573 = vmatprep.mubr.f32.mxu0 0.0
  %4574 = vmatmul.mubr.f32.gmra.mxu0 %v4181
  %v4575 = vpop.f32.mrf.mxu0
  %v4576 = vadd.f32 0.0, %v4575
  %v4577 = vpop.f32.mrf.mxu0
  %4578 = vmatprep.mubr.f32.mxu0 0.0
  %4579 = vmatmul.mubr.f32.gmra.mxu0 %v4182
  %v4580 = vpop.f32.mrf.mxu0
  %v4581 = vadd.f32 0.0, %v4580
  %v4582 = vpop.f32.mrf.mxu0
  %4583 = vmatprep.mubr.f32.mxu0 0.0
  %4584 = vmatmul.mubr.f32.gmra.mxu0 %v4183
  %v4585 = vpop.f32.mrf.mxu0
  %v4586 = vadd.f32 0.0, %v4585
  %v4587 = vpop.f32.mrf.mxu0
  %4588 = vmatprep.mubr.f32.mxu0 0.0
  %4589 = vmatmul.mubr.f32.gmra.mxu0 %v4184
  %v4590 = vpop.f32.mrf.mxu0
  %v4591 = vadd.f32 0.0, %v4590
  %v4592 = vpop.f32.mrf.mxu0
  %4593 = vmatprep.mubr.f32.mxu0 0.0
  %4594 = vmatmul.mubr.f32.gmra.mxu0 %v4185
  %v4595 = vpop.f32.mrf.mxu0
  %v4596 = vadd.f32 0.0, %v4595
  %v4597 = vpop.f32.mrf.mxu0
  %4598 = vmatprep.mubr.f32.mxu0 0.0
  %4599 = vmatmul.mubr.f32.gmra.mxu0 %v4186
  %v4600 = vpop.f32.mrf.mxu0
  %v4601 = vadd.f32 0.0, %v4600
  %v4602 = vpop.f32.mrf.mxu0
  %4603 = vmatprep.mubr.f32.mxu0 0.0
  %4604 = vmatmul.mubr.f32.gmra.mxu0 %v4187
  %v4605 = vpop.f32.mrf.mxu0
  %v4606 = vadd.f32 0.0, %v4605
  %v4607 = vpop.f32.mrf.mxu0
  %4608 = vmatprep.mubr.f32.mxu0 0.0
  %4609 = vmatmul.mubr.f32.gmra.mxu0 %v4188
  %v4610 = vpop.f32.mrf.mxu0
  %v4611 = vadd.f32 0.0, %v4610
  %v4612 = vpop.f32.mrf.mxu0
  %4613 = vmatprep.mubr.f32.mxu0 0.0
  %4614 = vmatmul.mubr.f32.gmra.mxu0 %v4189
  %v4615 = vpop.f32.mrf.mxu0
  %v4616 = vadd.f32 0.0, %v4615
  %v4617 = vpop.f32.mrf.mxu0
  %4618 = vmatprep.mubr.f32.mxu0 0.0
  %4619 = vmatmul.mubr.f32.gmra.mxu0 %v4190
  %v4620 = vpop.f32.mrf.mxu0
  %v4621 = vadd.f32 0.0, %v4620
  %v4622 = vpop.f32.mrf.mxu0
  %4623 = vmatprep.mubr.f32.mxu0 0.0
  %4624 = vmatmul.mubr.f32.gmra.mxu0 %v4191
  %v4625 = vpop.f32.mrf.mxu0
  %v4626 = vadd.f32 0.0, %v4625
  %v4627 = vpop.f32.mrf.mxu0
  %4628 = vmatprep.mubr.f32.mxu0 0.0
  %4629 = vmatmul.mubr.f32.gmra.mxu0 %v4192
  %v4630 = vpop.f32.mrf.mxu0
  %v4631 = vadd.f32 0.0, %v4630
  %v4632 = vpop.f32.mrf.mxu0
  %4633 = vmatprep.mubr.f32.mxu0 0.0
  %4634 = vmatmul.mubr.f32.gmra.mxu0 %v4193
  %v4635 = vpop.f32.mrf.mxu0
  %v4636 = vadd.f32 0.0, %v4635
  %v4637 = vpop.f32.mrf.mxu0
  %4638 = vmatprep.mubr.f32.mxu0 0.0
  %4639 = vmatmul.mubr.f32.gmra.mxu0 %v4194
  %v4640 = vpop.f32.mrf.mxu0
  %v4641 = vadd.f32 0.0, %v4640
  %v4642 = vpop.f32.mrf.mxu0
  %4643 = vmatprep.mubr.f32.mxu0 0.0
  %4644 = vmatmul.mubr.f32.gmra.mxu0 %v4195
  %v4645 = vpop.f32.mrf.mxu0
  %v4646 = vadd.f32 0.0, %v4645
  %v4647 = vpop.f32.mrf.mxu0
  %4648 = vmatprep.mubr.f32.mxu0 0.0
  %4649 = vmatmul.mubr.f32.gmra.mxu0 %v4196
  %v4650 = vpop.f32.mrf.mxu0
  %v4651 = vadd.f32 0.0, %v4650
  %v4652 = vpop.f32.mrf.mxu0
  %4653 = vmatprep.mubr.f32.mxu0 0.0
  %4654 = vmatmul.mubr.f32.gmra.mxu0 %v4197
  %v4655 = vpop.f32.mrf.mxu0
  %v4656 = vadd.f32 0.0, %v4655
  %v4657 = vpop.f32.mrf.mxu0
  %4658 = vmatprep.mubr.f32.mxu0 0.0
  %4659 = vmatmul.mubr.f32.gmra.mxu0 %v4198
  %v4660 = vpop.f32.mrf.mxu0
  %v4661 = vadd.f32 0.0, %v4660
  %v4662 = vpop.f32.mrf.mxu0
  %4663 = vmatprep.mubr.f32.mxu0 0.0
  %4664 = vmatmul.mubr.f32.gmra.mxu0 %v4199
  %v4665 = vpop.f32.mrf.mxu0
  %v4666 = vadd.f32 0.0, %v4665
  %v4667 = vpop.f32.mrf.mxu0
  %4668 = vmatprep.mubr.f32.mxu0 0.0
  %4669 = vmatmul.mubr.f32.gmra.mxu0 %v4200
  %v4670 = vpop.f32.mrf.mxu0
  %v4671 = vadd.f32 0.0, %v4670
  %v4672 = vpop.f32.mrf.mxu0
  %4673 = vmatprep.mubr.f32.mxu0 0.0
  %4674 = vmatmul.mubr.f32.gmra.mxu0 %v4201
  %v4675 = vpop.f32.mrf.mxu0
  %v4676 = vadd.f32 0.0, %v4675
  %v4677 = vpop.f32.mrf.mxu0
  %4678 = vmatprep.mubr.f32.mxu0 0.0
  %4679 = vmatmul.mubr.f32.gmra.mxu0 %v4202
  %v4680 = vpop.f32.mrf.mxu0
  %v4681 = vadd.f32 0.0, %v4680
  %v4682 = vpop.f32.mrf.mxu0
  %4683 = vmatprep.mubr.f32.mxu0 0.0
  %4684 = vmatmul.mubr.f32.gmra.mxu0 %v4203
  %v4685 = vpop.f32.mrf.mxu0
  %v4686 = vadd.f32 0.0, %v4685
  %v4687 = vpop.f32.mrf.mxu0
  %4688 = vmatprep.mubr.f32.mxu0 0.0
  %4689 = vmatmul.mubr.f32.gmra.mxu0 %v4204
  %v4690 = vpop.f32.mrf.mxu0
  %v4691 = vadd.f32 0.0, %v4690
  %v4692 = vpop.f32.mrf.mxu0
  %4693 = vmatprep.mubr.f32.mxu0 0.0
  %4694 = vmatmul.mubr.f32.gmra.mxu0 %v4205
  %v4695 = vpop.f32.mrf.mxu0
  %v4696 = vadd.f32 0.0, %v4695
  %v4697 = vpop.f32.mrf.mxu0
  %4698 = vmatprep.mubr.f32.mxu0 0.0
  %4699 = vmatmul.mubr.f32.gmra.mxu0 %v4206
  %v4700 = vpop.f32.mrf.mxu0
  %v4701 = vadd.f32 0.0, %v4700
  %v4702 = vpop.f32.mrf.mxu0
  %4703 = vmatprep.mubr.f32.mxu0 0.0
  %4704 = vmatmul.mubr.f32.gmra.mxu0 %v4207
  %v4705 = vpop.f32.mrf.mxu0
  %v4706 = vadd.f32 0.0, %v4705
  %v4707 = vpop.f32.mrf.mxu0
  %4708 = vmatprep.mubr.f32.mxu0 0.0
  %4709 = vmatmul.mubr.f32.gmra.mxu0 %v4208
  %v4710 = vpop.f32.mrf.mxu0
  %v4711 = vadd.f32 0.0, %v4710
  %v4712 = vpop.f32.mrf.mxu0
  %4713 = vmatprep.mubr.f32.mxu0 0.0
  %4714 = vmatmul.mubr.f32.gmra.mxu0 %v4209
  %v4715 = vpop.f32.mrf.mxu0
  %v4716 = vadd.f32 0.0, %v4715
  %v4717 = vpop.f32.mrf.mxu0
  %4718 = vmatprep.mubr.f32.mxu0 0.0
  %4719 = vmatmul.mubr.f32.gmra.mxu0 %v4210
  %v4720 = vpop.f32.mrf.mxu0
  %v4721 = vadd.f32 0.0, %v4720
  %v4722 = vpop.f32.mrf.mxu0
  %4723 = vmatprep.mubr.f32.mxu0 0.0
  %4724 = vmatmul.mubr.f32.gmra.mxu0 %v4211
  %v4725 = vpop.f32.mrf.mxu0
  %v4726 = vadd.f32 0.0, %v4725
  %v4727 = vpop.f32.mrf.mxu0
  %4728 = vmatprep.mubr.f32.mxu0 0.0
  %4729 = vmatmul.mubr.f32.gmra.mxu0 %v4212
  %v4730 = vpop.f32.mrf.mxu0
  %v4731 = vadd.f32 0.0, %v4730
  %v4732 = vpop.f32.mrf.mxu0
  %4733 = vmatprep.mubr.f32.mxu0 0.0
  %4734 = vmatmul.mubr.f32.gmra.mxu0 %v4213
  %v4735 = vpop.f32.mrf.mxu0
  %v4736 = vadd.f32 0.0, %v4735
  %v4737 = vpop.f32.mrf.mxu0
  %4738 = vmatprep.mubr.f32.mxu0 0.0
  %4739 = vmatmul.mubr.f32.gmra.mxu0 %v4214
  %v4740 = vpop.f32.mrf.mxu0
  %v4741 = vadd.f32 0.0, %v4740
  %v4742 = vpop.f32.mrf.mxu0
  %4743 = vmatprep.mubr.f32.mxu0 0.0
  %4744 = vmatmul.mubr.f32.gmra.mxu0 %v4215
  %v4745 = vpop.f32.mrf.mxu0
  %v4746 = vadd.f32 0.0, %v4745
  %v4747 = vpop.f32.mrf.mxu0
  %4748 = vmatprep.mubr.f32.mxu0 0.0
  %4749 = vmatmul.mubr.f32.gmra.mxu0 %v4216
  %v4750 = vpop.f32.mrf.mxu0
  %v4751 = vadd.f32 0.0, %v4750
  %v4752 = vpop.f32.mrf.mxu0
  %4753 = vmatprep.mubr.f32.mxu0 0.0
  %4754 = vmatmul.mubr.f32.gmra.mxu0 %v4217
  %v4755 = vpop.f32.mrf.mxu0
  %v4756 = vadd.f32 0.0, %v4755
  %v4757 = vpop.f32.mrf.mxu0
  %4758 = vmatprep.mubr.f32.mxu0 0.0
  %4759 = vmatmul.mubr.f32.gmra.mxu0 %v4218
  %v4760 = vpop.f32.mrf.mxu0
  %v4761 = vadd.f32 0.0, %v4760
  %v4762 = vpop.f32.mrf.mxu0
  %4763 = vmatprep.mubr.f32.mxu0 0.0
  %4764 = vmatmul.mubr.f32.gmra.mxu0 %v4219
  %v4765 = vpop.f32.mrf.mxu0
  %v4766 = vadd.f32 0.0, %v4765
  %v4767 = vpop.f32.mrf.mxu0
  %4768 = vmatprep.mubr.f32.mxu0 0.0
  %4769 = vmatmul.mubr.f32.gmra.mxu0 %v4220
  %v4770 = vpop.f32.mrf.mxu0
  %v4771 = vadd.f32 0.0, %v4770
  %v4772 = vpop.f32.mrf.mxu0
  %4773 = vmatprep.mubr.f32.mxu0 0.0
  %4774 = vmatmul.mubr.f32.gmra.mxu0 %v4221
  %v4775 = vpop.f32.mrf.mxu0
  %v4776 = vadd.f32 0.0, %v4775
  %v4777 = vpop.f32.mrf.mxu0
  %4778 = vmatprep.mubr.f32.mxu0 0.0
  %4779 = vmatmul.mubr.f32.gmra.mxu0 %v4222
  %v4780 = vpop.f32.mrf.mxu0
  %v4781 = vadd.f32 0.0, %v4780
  %v4782 = vpop.f32.mrf.mxu0
  %4783 = vmatprep.mubr.f32.mxu0 0.0
  %4784 = vmatmul.mubr.f32.gmra.mxu0 %v4223
  %v4785 = vpop.f32.mrf.mxu0
  %v4786 = vadd.f32 0.0, %v4785
  %v4787 = vpop.f32.mrf.mxu0
  %4788 = vmatprep.mubr.f32.mxu0 0.0
  %4789 = vmatmul.mubr.f32.gmra.mxu0 %v4224
  %v4790 = vpop.f32.mrf.mxu0
  %v4791 = vadd.f32 0.0, %v4790
  %v4792 = vpop.f32.mrf.mxu0
  %4793 = vmatprep.mubr.f32.mxu0 0.0
  %4794 = vmatmul.mubr.f32.gmra.mxu0 %v4225
  %v4795 = vpop.f32.mrf.mxu0
  %v4796 = vadd.f32 0.0, %v4795
  %v4797 = vpop.f32.mrf.mxu0
  %4798 = vmatprep.mubr.f32.mxu0 0.0
  %4799 = vmatmul.mubr.f32.gmra.mxu0 %v4226
  %v4800 = vpop.f32.mrf.mxu0
  %v4801 = vadd.f32 0.0, %v4800
  %v4802 = vpop.f32.mrf.mxu0
  %4803 = vmatprep.mubr.f32.mxu0 0.0
  %4804 = vmatmul.mubr.f32.gmra.mxu0 %v4227
  %v4805 = vpop.f32.mrf.mxu0
  %v4806 = vadd.f32 0.0, %v4805
  %v4807 = vpop.f32.mrf.mxu0
  %4808 = vmatprep.mubr.f32.mxu0 0.0
  %4809 = vmatmul.mubr.f32.gmra.mxu0 %v4228
  %v4810 = vpop.f32.mrf.mxu0
  %v4811 = vadd.f32 0.0, %v4810
  %v4812 = vpop.f32.mrf.mxu0
  %4813 = vmatprep.mubr.f32.mxu0 0.0
  %4814 = vmatmul.mubr.f32.gmra.mxu0 %v4229
  %v4815 = vpop.f32.mrf.mxu0
  %v4816 = vadd.f32 0.0, %v4815
  %v4817 = vpop.f32.mrf.mxu0
  %4818 = vmatprep.mubr.f32.mxu0 0.0
  %4819 = vmatmul.mubr.f32.gmra.mxu0 %v4230
  %v4820 = vpop.f32.mrf.mxu0
  %v4821 = vadd.f32 0.0, %v4820
  %v4822 = vpop.f32.mrf.mxu0
  %4823 = vmatprep.mubr.f32.mxu0 0.0
  %4824 = vmatmul.mubr.f32.gmra.mxu0 %v4231
  %v4825 = vpop.f32.mrf.mxu0
  %v4826 = vadd.f32 0.0, %v4825
  %v4827 = vpop.f32.mrf.mxu0
  %4828 = vmatprep.mubr.f32.mxu0 0.0
  %4829 = vmatmul.mubr.f32.gmra.mxu0 %v4232
  %v4830 = vpop.f32.mrf.mxu0
  %v4831 = vadd.f32 0.0, %v4830
  %v4832 = vpop.f32.mrf.mxu0
  %4833 = vmatprep.mubr.f32.mxu0 0.0
  %4834 = vmatmul.mubr.f32.gmra.mxu0 %v4233
  %v4835 = vpop.f32.mrf.mxu0
  %v4836 = vadd.f32 0.0, %v4835
  %v4837 = vpop.f32.mrf.mxu0
  %4838 = vmatprep.mubr.f32.mxu0 0.0
  %4839 = vmatmul.mubr.f32.gmra.mxu0 %v4234
  %v4840 = vpop.f32.mrf.mxu0
  %v4841 = vadd.f32 0.0, %v4840
  %v4842 = vpop.f32.mrf.mxu0
  %4843 = vmatprep.mubr.f32.mxu0 0.0
  %4844 = vmatmul.mubr.f32.gmra.mxu0 %v4235
  %v4845 = vpop.f32.mrf.mxu0
  %v4846 = vadd.f32 0.0, %v4845
  %v4847 = vpop.f32.mrf.mxu0
  %4848 = vmatprep.mubr.f32.mxu0 0.0
  %4849 = vmatmul.mubr.f32.gmra.mxu0 %v4236
  %v4850 = vpop.f32.mrf.mxu0
  %v4851 = vadd.f32 0.0, %v4850
  %v4852 = vpop.f32.mrf.mxu0
  %4853 = vmatprep.mubr.f32.mxu0 0.0
  %4854 = vmatmul.mubr.f32.gmra.mxu0 %v4237
  %v4855 = vpop.f32.mrf.mxu0
  %v4856 = vadd.f32 0.0, %v4855
  %v4857 = vpop.f32.mrf.mxu0
  %4858 = vmatprep.mubr.f32.mxu0 0.0
  %4859 = vmatmul.mubr.f32.gmra.mxu0 %v4238
  %v4860 = vpop.f32.mrf.mxu0
  %v4861 = vadd.f32 0.0, %v4860
  %v4862 = vpop.f32.mrf.mxu0
  %4863 = vmatprep.mubr.f32.mxu0 0.0
  %4864 = vmatmul.mubr.f32.gmra.mxu0 %v4239
  %v4865 = vpop.f32.mrf.mxu0
  %v4866 = vadd.f32 0.0, %v4865
  %v4867 = vpop.f32.mrf.mxu0
  %4868 = vmatprep.mubr.f32.mxu0 0.0
  %4869 = vmatmul.mubr.f32.gmra.mxu0 %v4240
  %v4870 = vpop.f32.mrf.mxu0
  %v4871 = vadd.f32 0.0, %v4870
  %v4872 = vpop.f32.mrf.mxu0
  %4873 = vmatprep.mubr.f32.mxu0 0.0
  %4874 = vmatmul.mubr.f32.gmra.mxu0 %v4241
  %v4875 = vpop.f32.mrf.mxu0
  %v4876 = vadd.f32 0.0, %v4875
  %v4877 = vpop.f32.mrf.mxu0
  %4878 = vmatprep.mubr.f32.mxu0 0.0
  %4879 = vmatmul.mubr.f32.gmra.mxu0 %v4242
  %v4880 = vpop.f32.mrf.mxu0
  %v4881 = vadd.f32 0.0, %v4880
  %v4882 = vpop.f32.mrf.mxu0
  %4883 = vmatprep.mubr.f32.mxu0 0.0
  %4884 = vmatmul.mubr.f32.gmra.mxu0 %v4243
  %v4885 = vpop.f32.mrf.mxu0
  %v4886 = vadd.f32 0.0, %v4885
  %v4887 = vpop.f32.mrf.mxu0
  %4888 = vmatprep.mubr.f32.mxu0 0.0
  %4889 = vmatmul.mubr.f32.gmra.mxu0 %v4244
  %v4890 = vpop.f32.mrf.mxu0
  %v4891 = vadd.f32 0.0, %v4890
  %v4892 = vpop.f32.mrf.mxu0
  %4893 = vmatprep.mubr.f32.mxu0 0.0
  %4894 = vmatmul.mubr.f32.gmra.mxu0 %v4245
  %v4895 = vpop.f32.mrf.mxu0
  %v4896 = vadd.f32 0.0, %v4895
  %v4897 = vpop.f32.mrf.mxu0
  %4898 = vmatprep.mubr.f32.mxu0 0.0
  %4899 = vmatmul.mubr.f32.gmra.mxu0 %v4246
  %v4900 = vpop.f32.mrf.mxu0
  %v4901 = vadd.f32 0.0, %v4900
  %v4902 = vpop.f32.mrf.mxu0
  %4903 = vmatprep.mubr.f32.mxu0 0.0
  %4904 = vmatmul.mubr.f32.gmra.mxu0 %v4247
  %v4905 = vpop.f32.mrf.mxu0
  %v4906 = vadd.f32 0.0, %v4905
  %v4907 = vpop.f32.mrf.mxu0
  %4908 = vmatprep.mubr.f32.mxu0 0.0
  %4909 = vmatmul.mubr.f32.gmra.mxu0 %v4248
  %v4910 = vpop.f32.mrf.mxu0
  %v4911 = vadd.f32 0.0, %v4910
  %v4912 = vpop.f32.mrf.mxu0
  %4913 = vmatprep.mubr.f32.mxu0 0.0
  %4914 = vmatmul.mubr.f32.gmra.mxu0 %v4249
  %v4915 = vpop.f32.mrf.mxu0
  %v4916 = vadd.f32 0.0, %v4915
  %v4917 = vpop.f32.mrf.mxu0
  %4918 = vmatprep.mubr.f32.mxu0 0.0
  %4919 = vmatmul.mubr.f32.gmra.mxu0 %v4250
  %v4920 = vpop.f32.mrf.mxu0
  %v4921 = vadd.f32 0.0, %v4920
  %v4922 = vpop.f32.mrf.mxu0
  %4923 = vmatprep.mubr.f32.mxu0 0.0
  %4924 = vmatmul.mubr.f32.gmra.mxu0 %v4251
  %v4925 = vpop.f32.mrf.mxu0
  %v4926 = vadd.f32 0.0, %v4925
  %v4927 = vpop.f32.mrf.mxu0
  %4928 = vmatprep.mubr.f32.mxu0 0.0
  %4929 = vmatmul.mubr.f32.gmra.mxu0 %v4252
  %v4930 = vpop.f32.mrf.mxu0
  %v4931 = vadd.f32 0.0, %v4930
  %v4932 = vpop.f32.mrf.mxu0
  %4933 = vmatprep.mubr.f32.mxu0 0.0
  %4934 = vmatmul.mubr.f32.gmra.mxu0 %v4253
  %v4935 = vpop.f32.mrf.mxu0
  %v4936 = vadd.f32 0.0, %v4935
  %v4937 = vpop.f32.mrf.mxu0
  %4938 = vmatprep.mubr.f32.mxu0 0.0
  %4939 = vmatmul.mubr.f32.gmra.mxu0 %v4254
  %v4940 = vpop.f32.mrf.mxu0
  %v4941 = vadd.f32 0.0, %v4940
  %v4942 = vpop.f32.mrf.mxu0
  %4943 = vmatprep.mubr.f32.mxu0 0.0
  %4944 = vmatmul.mubr.f32.gmra.mxu0 %v4255
  %v4945 = vpop.f32.mrf.mxu0
  %v4946 = vadd.f32 0.0, %v4945
  %v4947 = vpop.f32.mrf.mxu0
  %4948 = vmatprep.mubr.f32.mxu0 0.0
  %4949 = vmatmul.mubr.f32.gmra.mxu0 %v4256
  %v4950 = vpop.f32.mrf.mxu0
  %v4951 = vadd.f32 0.0, %v4950
  %v4952 = vpop.f32.mrf.mxu0
  %4953 = vmatprep.mubr.f32.mxu0 0.0
  %4954 = vmatmul.mubr.f32.gmra.mxu0 %v4257
  %v4955 = vpop.f32.mrf.mxu0
  %v4956 = vadd.f32 0.0, %v4955
  %v4957 = vpop.f32.mrf.mxu0
  %4958 = vmatprep.mubr.f32.mxu0 0.0
  %4959 = vmatmul.mubr.f32.gmra.mxu0 %v4258
  %v4960 = vpop.f32.mrf.mxu0
  %v4961 = vadd.f32 0.0, %v4960
  %v4962 = vpop.f32.mrf.mxu0
  %4963 = vmatprep.mubr.f32.mxu0 0.0
  %4964 = vmatmul.mubr.f32.gmra.mxu0 %v4259
  %v4965 = vpop.f32.mrf.mxu0
  %v4966 = vadd.f32 0.0, %v4965
  %v4967 = vpop.f32.mrf.mxu0
  %4968 = vmatprep.mubr.f32.mxu0 0.0
  %4969 = vmatmul.mubr.f32.gmra.mxu0 %v4260
  %v4970 = vpop.f32.mrf.mxu0
  %v4971 = vadd.f32 0.0, %v4970
  %v4972 = vpop.f32.mrf.mxu0
  %4973 = vmatprep.mubr.f32.mxu0 0.0
  %4974 = vmatmul.mubr.f32.gmra.mxu0 %v4261
  %v4975 = vpop.f32.mrf.mxu0
  %v4976 = vadd.f32 0.0, %v4975
  %v4977 = vpop.f32.mrf.mxu0
  %4978 = vmatprep.mubr.f32.mxu0 0.0
  %4979 = vmatmul.mubr.f32.gmra.mxu0 %v4262
  %v4980 = vpop.f32.mrf.mxu0
  %v4981 = vadd.f32 0.0, %v4980
  %v4982 = vpop.f32.mrf.mxu0
  %4983 = vmatprep.mubr.f32.mxu0 0.0
  %4984 = vmatmul.mubr.f32.gmra.mxu0 %v4263
  %v4985 = vpop.f32.mrf.mxu0
  %v4986 = vadd.f32 0.0, %v4985
  %v4987 = vpop.f32.mrf.mxu0
  %4988 = vmatprep.mubr.f32.mxu0 0.0
  %4989 = vmatmul.mubr.f32.gmra.mxu0 %v4264
  %v4990 = vpop.f32.mrf.mxu0
  %v4991 = vadd.f32 0.0, %v4990
  %v4992 = vpop.f32.mrf.mxu0
  %4993 = vmatprep.mubr.f32.mxu0 0.0
  %4994 = vmatmul.mubr.f32.gmra.mxu0 %v4265
  %v4995 = vpop.f32.mrf.mxu0
  %v4996 = vadd.f32 0.0, %v4995
  %v4997 = vpop.f32.mrf.mxu0
  %4998 = vmatprep.mubr.f32.mxu0 0.0
  %4999 = vmatmul.mubr.f32.gmra.mxu0 %v4266
  %v5000 = vpop.f32.mrf.mxu0
  %v5001 = vadd.f32 0.0, %v5000
  %v5002 = vpop.f32.mrf.mxu0
  %5003 = vmatprep.mubr.f32.mxu0 0.0
  %5004 = vmatmul.mubr.f32.gmra.mxu0 %v4267
  %v5005 = vpop.f32.mrf.mxu0
  %v5006 = vadd.f32 0.0, %v5005
  %v5007 = vpop.f32.mrf.mxu0
  %5008 = vmatprep.mubr.f32.mxu0 0.0
  %5009 = vmatmul.mubr.f32.gmra.mxu0 %v4268
  %v5010 = vpop.f32.mrf.mxu0
  %v5011 = vadd.f32 0.0, %v5010
  %v5012 = vpop.f32.mrf.mxu0
  %5013 = vmatprep.mubr.f32.mxu0 0.0
  %5014 = vmatmul.mubr.f32.gmra.mxu0 %v4269
  %v5015 = vpop.f32.mrf.mxu0
  %v5016 = vadd.f32 0.0, %v5015
  %v5017 = vpop.f32.mrf.mxu0
  %5018 = vmatprep.mubr.f32.mxu0 0.0
  %5019 = vmatmul.mubr.f32.gmra.mxu0 %v4270
  %v5020 = vpop.f32.mrf.mxu0
  %v5021 = vadd.f32 0.0, %v5020
  %v5022 = vpop.f32.mrf.mxu0
  %5023 = vmatprep.mubr.f32.mxu0 0.0
  %5024 = vmatmul.mubr.f32.gmra.mxu0 %v4271
  %v5025 = vpop.f32.mrf.mxu0
  %v5026 = vadd.f32 0.0, %v5025
  %v5027 = vpop.f32.mrf.mxu0
  %5028 = vmatprep.mubr.f32.mxu0 0.0
  %5029 = vmatmul.mubr.f32.gmra.mxu0 %v4272
  %v5030 = vpop.f32.mrf.mxu0
  %v5031 = vadd.f32 0.0, %v5030
  %v5032 = vpop.f32.mrf.mxu0
  %5033 = vmatprep.mubr.f32.mxu0 0.0
  %5034 = vmatmul.mubr.f32.gmra.mxu0 %v4273
  %v5035 = vpop.f32.mrf.mxu0
  %v5036 = vadd.f32 0.0, %v5035
  %v5037 = vpop.f32.mrf.mxu0
  %5038 = vmatprep.mubr.f32.mxu0 0.0
  %5039 = vmatmul.mubr.f32.gmra.mxu0 %v4274
  %v5040 = vpop.f32.mrf.mxu0
  %v5041 = vadd.f32 0.0, %v5040
  %v5042 = vpop.f32.mrf.mxu0
  %5043 = vmatprep.mubr.f32.mxu0 0.0
  %5044 = vmatmul.mubr.f32.gmra.mxu0 %v4275
  %v5045 = vpop.f32.mrf.mxu0
  %v5046 = vadd.f32 0.0, %v5045
  %v5047 = vpop.f32.mrf.mxu0
  %5048 = vmatprep.mubr.f32.mxu0 0.0
  %5049 = vmatmul.mubr.f32.gmra.mxu0 %v4276
  %v5050 = vpop.f32.mrf.mxu0
  %v5051 = vadd.f32 0.0, %v5050
  %v5052 = vpop.f32.mrf.mxu0
  %5053 = vmatprep.mubr.f32.mxu0 0.0
  %5054 = vmatmul.mubr.f32.gmra.mxu0 %v4277
  %v5055 = vpop.f32.mrf.mxu0
  %v5056 = vadd.f32 0.0, %v5055
  %v5057 = vpop.f32.mrf.mxu0
  %5058 = vmatprep.mubr.f32.mxu0 0.0
  %5059 = vmatmul.mubr.f32.gmra.mxu0 %v4278
  %v5060 = vpop.f32.mrf.mxu0
  %v5061 = vadd.f32 0.0, %v5060
  %v5062 = vpop.f32.mrf.mxu0
  %5063 = vmatprep.mubr.f32.mxu0 0.0
  %5064 = vmatmul.mubr.f32.gmra.mxu0 %v4279
  %v5065 = vpop.f32.mrf.mxu0
  %v5066 = vadd.f32 0.0, %v5065
  %v5067 = vpop.f32.mrf.mxu0
  %5068 = vmatprep.mubr.f32.mxu0 0.0
  %5069 = vmatmul.mubr.f32.gmra.mxu0 %v4280
  %v5070 = vpop.f32.mrf.mxu0
  %v5071 = vadd.f32 0.0, %v5070
  %v5072 = vpop.f32.mrf.mxu0
  %5073 = vmatprep.mubr.f32.mxu0 0.0
  %5074 = vmatmul.mubr.f32.gmra.mxu0 %v4281
  %v5075 = vpop.f32.mrf.mxu0
  %v5076 = vadd.f32 0.0, %v5075
  %v5077 = vpop.f32.mrf.mxu0
  %5078 = vmatprep.mubr.f32.mxu0 0.0
  %5079 = vmatmul.mubr.f32.gmra.mxu0 %v4282
  %v5080 = vpop.f32.mrf.mxu0
  %v5081 = vadd.f32 0.0, %v5080
  %v5082 = vpop.f32.mrf.mxu0
  %5083 = vmatprep.mubr.f32.mxu0 0.0
  %5084 = vmatmul.mubr.f32.gmra.mxu0 %v4283
  %v5085 = vpop.f32.mrf.mxu0
  %v5086 = vadd.f32 0.0, %v5085
  %v5087 = vpop.f32.mrf.mxu0
  %5088 = vmatprep.mubr.f32.mxu0 0.0
  %5089 = vmatmul.mubr.f32.gmra.mxu0 %v4284
  %v5090 = vpop.f32.mrf.mxu0
  %v5091 = vadd.f32 0.0, %v5090
  %v5092 = vpop.f32.mrf.mxu0
  %5093 = vmatprep.mubr.f32.mxu0 0.0
  %5094 = vmatmul.mubr.f32.gmra.mxu0 %v4285
  %v5095 = vpop.f32.mrf.mxu0
  %v5096 = vadd.f32 0.0, %v5095
  %v5097 = vpop.f32.mrf.mxu0
  %5098 = vmatprep.mubr.f32.mxu0 0.0
  %5099 = vmatmul.mubr.f32.gmra.mxu0 %v4286
  %v5100 = vpop.f32.mrf.mxu0
  %v5101 = vadd.f32 0.0, %v5100
  %v5102 = vpop.f32.mrf.mxu0
  %5103 = vmatprep.mubr.f32.mxu0 0.0
  %5104 = vmatmul.mubr.f32.gmra.mxu0 %v4287
  %v5105 = vpop.f32.mrf.mxu0
  %v5106 = vadd.f32 0.0, %v5105
  %v5107 = vpop.f32.mrf.mxu0
  %5108 = vmatprep.mubr.f32.mxu0 0.0
  %5109 = vmatmul.mubr.f32.gmra.mxu0 %v4288
  %v5110 = vpop.f32.mrf.mxu0
  %v5111 = vadd.f32 0.0, %v5110
  %v5112 = vpop.f32.mrf.mxu0
  %5113 = vmatprep.mubr.f32.mxu0 0.0
  %5114 = vmatmul.mubr.f32.gmra.mxu0 %v4289
  %v5115 = vpop.f32.mrf.mxu0
  %v5116 = vadd.f32 0.0, %v5115
  %v5117 = vpop.f32.mrf.mxu0
  %5118 = vmatprep.mubr.f32.mxu0 0.0
  %5119 = vmatmul.mubr.f32.gmra.mxu0 %v4290
  %v5120 = vpop.f32.mrf.mxu0
  %v5121 = vadd.f32 0.0, %v5120
  %v5122 = vpop.f32.mrf.mxu0
  %5123 = vmatprep.mubr.f32.mxu0 0.0
  %5124 = vmatmul.mubr.f32.gmra.mxu0 %v4291
  %v5125 = vpop.f32.mrf.mxu0
  %v5126 = vadd.f32 0.0, %v5125
  %v5127 = vpop.f32.mrf.mxu0
  %5128 = vmatprep.mubr.f32.mxu0 0.0
  %5129 = vmatmul.mubr.f32.gmra.mxu0 %v4292
  %v5130 = vpop.f32.mrf.mxu0
  %v5131 = vadd.f32 0.0, %v5130
  %v5132 = vpop.f32.mrf.mxu0
  %5133 = vmatprep.mubr.f32.mxu0 0.0
  %5134 = vmatmul.mubr.f32.gmra.mxu0 %v4293
  %v5135 = vpop.f32.mrf.mxu0
  %v5136 = vadd.f32 0.0, %v5135
  %v5137 = vpop.f32.mrf.mxu0
  %5138 = vmatprep.mubr.f32.mxu0 0.0
  %5139 = vmatmul.mubr.f32.gmra.mxu0 %v4294
  %v5140 = vpop.f32.mrf.mxu0
  %v5141 = vadd.f32 0.0, %v5140
  %v5142 = vpop.f32.mrf.mxu0
  %5143 = vmatprep.mubr.f32.mxu0 0.0
  %5144 = vmatmul.mubr.f32.gmra.mxu0 %v4295
  %v5145 = vpop.f32.mrf.mxu0
  %v5146 = vadd.f32 0.0, %v5145
  %v5147 = vpop.f32.mrf.mxu0
  %5148 = vmatprep.mubr.f32.mxu0 0.0
  %5149 = vmatmul.mubr.f32.gmra.mxu0 %v4296
  %v5150 = vpop.f32.mrf.mxu0
  %v5151 = vadd.f32 0.0, %v5150
  %v5152 = vpop.f32.mrf.mxu0
  %5153 = vmatprep.mubr.f32.mxu0 0.0
  %5154 = vmatmul.mubr.f32.gmra.mxu0 %v4297
  %v5155 = vpop.f32.mrf.mxu0
  %v5156 = vadd.f32 0.0, %v5155
  %v5157 = vpop.f32.mrf.mxu0
  %5158 = vmatprep.mubr.f32.mxu0 0.0
  %5159 = vmatmul.mubr.f32.gmra.mxu0 %v4298
  %v5160 = vpop.f32.mrf.mxu0
  %v5161 = vadd.f32 0.0, %v5160
  %v5162 = vpop.f32.mrf.mxu0
  %5163 = vmatprep.mubr.f32.mxu0 0.0
  %5164 = vmatmul.mubr.f32.gmra.mxu0 %v4299
  %v5165 = vpop.f32.mrf.mxu0
  %v5166 = vadd.f32 0.0, %v5165
  %v5167 = vpop.f32.mrf.mxu0
  %5168 = vmatprep.mubr.f32.mxu0 0.0
  %5169 = vmatmul.mubr.f32.gmra.mxu0 %v4300
  %v5170 = vpop.f32.mrf.mxu0
  %v5171 = vadd.f32 0.0, %v5170
  %v5172 = vpop.f32.mrf.mxu0
  %5173 = vmatprep.mubr.f32.mxu0 0.0
  %5174 = vmatmul.mubr.f32.gmra.mxu0 %v4301
  %v5175 = vpop.f32.mrf.mxu0
  %v5176 = vadd.f32 0.0, %v5175
  %v5177 = vpop.f32.mrf.mxu0
  %5178 = vmatprep.mubr.f32.mxu0 0.0
  %5179 = vmatmul.mubr.f32.gmra.mxu0 %v4302
  %v5180 = vpop.f32.mrf.mxu0
  %v5181 = vadd.f32 0.0, %v5180
  %v5182 = vpop.f32.mrf.mxu0
  %5183 = vmatprep.mubr.f32.mxu0 0.0
  %5184 = vmatmul.mubr.f32.gmra.mxu0 %v4303
  %v5185 = vpop.f32.mrf.mxu0
  %v5186 = vadd.f32 0.0, %v5185
  %v5187 = vpop.f32.mrf.mxu0
  %5188 = vmatprep.mubr.f32.mxu0 0.0
  %5189 = vmatmul.mubr.f32.gmra.mxu0 %v4304
  %v5190 = vpop.f32.mrf.mxu0
  %v5191 = vadd.f32 0.0, %v5190
  %v5192 = vpop.f32.mrf.mxu0
  %5193 = vmatprep.mubr.f32.mxu0 0.0
  %5194 = vmatmul.mubr.f32.gmra.mxu0 %v4305
  %v5195 = vpop.f32.mrf.mxu0
  %v5196 = vadd.f32 0.0, %v5195
  %v5197 = vpop.f32.mrf.mxu0
  %5198 = vmatprep.mubr.f32.mxu0 0.0
  %5199 = vmatmul.mubr.f32.gmra.mxu0 %v4306
  %v5200 = vpop.f32.mrf.mxu0
  %v5201 = vadd.f32 0.0, %v5200
  %v5202 = vpop.f32.mrf.mxu0
  %5203 = vmatprep.mubr.f32.mxu0 0.0
  %5204 = vmatmul.mubr.f32.gmra.mxu0 %v4307
  %v5205 = vpop.f32.mrf.mxu0
  %v5206 = vadd.f32 0.0, %v5205
  %v5207 = vpop.f32.mrf.mxu0
  %5208 = vmatprep.mubr.f32.mxu0 0.0
  %5209 = vmatmul.mubr.f32.gmra.mxu0 %v4308
  %v5210 = vpop.f32.mrf.mxu0
  %v5211 = vadd.f32 0.0, %v5210
  %v5212 = vpop.f32.mrf.mxu0
  %5213 = vmatprep.mubr.f32.mxu0 0.0
  %5214 = vmatmul.mubr.f32.gmra.mxu0 %v4309
  %v5215 = vpop.f32.mrf.mxu0
  %v5216 = vadd.f32 0.0, %v5215
  %v5217 = vpop.f32.mrf.mxu0
  %5218 = vmatprep.mubr.f32.mxu0 0.0
  %5219 = vmatmul.mubr.f32.gmra.mxu0 %v4310
  %v5220 = vpop.f32.mrf.mxu0
  %v5221 = vadd.f32 0.0, %v5220
  %v5222 = vpop.f32.mrf.mxu0
  %5223 = vmatprep.mubr.f32.mxu0 0.0
  %5224 = vmatmul.mubr.f32.gmra.mxu0 %v4311
  %v5225 = vpop.f32.mrf.mxu0
  %v5226 = vadd.f32 0.0, %v5225
  %v5227 = vpop.f32.mrf.mxu0
  %5228 = vmatprep.mubr.f32.mxu0 0.0
  %5229 = vmatmul.mubr.f32.gmra.mxu0 %v4312
  %v5230 = vpop.f32.mrf.mxu0
  %v5231 = vadd.f32 0.0, %v5230
  %v5232 = vpop.f32.mrf.mxu0
  %5233 = vmatprep.mubr.f32.mxu0 0.0
  %5234 = vmatmul.mubr.f32.gmra.mxu0 %v4313
  %v5235 = vpop.f32.mrf.mxu0
  %v5236 = vadd.f32 0.0, %v5235
  %v5237 = vpop.f32.mrf.mxu0
  %5238 = vmatprep.mubr.f32.mxu0 0.0
  %5239 = vmatmul.mubr.f32.gmra.mxu0 %v4314
  %v5240 = vpop.f32.mrf.mxu0
  %v5241 = vadd.f32 0.0, %v5240
  %v5242 = vpop.f32.mrf.mxu0
  %5243 = vmatprep.mubr.f32.mxu0 0.0
  %5244 = vmatmul.mubr.f32.gmra.mxu0 %v4315
  %v5245 = vpop.f32.mrf.mxu0
  %v5246 = vadd.f32 0.0, %v5245
  %v5247 = vpop.f32.mrf.mxu0
  %5248 = vmatprep.mubr.f32.mxu0 0.0
  %5249 = vmatmul.mubr.f32.gmra.mxu0 %v4316
  %v5250 = vpop.f32.mrf.mxu0
  %v5251 = vadd.f32 0.0, %v5250
  %v5252 = vpop.f32.mrf.mxu0
  %5253 = vmatprep.mubr.f32.mxu0 0.0
  %5254 = vmatmul.mubr.f32.gmra.mxu0 %v4317
  %v5255 = vpop.f32.mrf.mxu0
  %v5256 = vadd.f32 0.0, %v5255
  %v5257 = vpop.f32.mrf.mxu0
  %5258 = vmatprep.mubr.f32.mxu0 0.0
  %5259 = vmatmul.mubr.f32.gmra.mxu0 %v4318
  %v5260 = vpop.f32.mrf.mxu0
  %v5261 = vadd.f32 0.0, %v5260
  %v5262 = vpop.f32.mrf.mxu0
  %5263 = vmatprep.mubr.f32.mxu0 0.0
  %5264 = vmatmul.mubr.f32.gmra.mxu0 %v4319
  %v5265 = vpop.f32.mrf.mxu0
  %v5266 = vadd.f32 0.0, %v5265
  %v5267 = vpop.f32.mrf.mxu0
  %5268 = vmatprep.mubr.f32.mxu0 0.0
  %5269 = vmatmul.mubr.f32.gmra.mxu0 %v4320
  %v5270 = vpop.f32.mrf.mxu0
  %v5271 = vadd.f32 0.0, %v5270
  %v5272 = vpop.f32.mrf.mxu0
  %5273 = vmatprep.mubr.f32.mxu0 0.0
  %5274 = vmatmul.mubr.f32.gmra.mxu0 %v4321
  %v5275 = vpop.f32.mrf.mxu0
  %v5276 = vadd.f32 0.0, %v5275
  %v5277 = vpop.f32.mrf.mxu0
  %5278 = vmatprep.mubr.f32.mxu0 0.0
  %5279 = vmatmul.mubr.f32.gmra.mxu0 %v4322
  %v5280 = vpop.f32.mrf.mxu0
  %v5281 = vadd.f32 0.0, %v5280
  %v5282 = vpop.f32.mrf.mxu0
  %5283 = vmatprep.mubr.f32.mxu0 0.0
  %5284 = vmatmul.mubr.f32.gmra.mxu0 %v4323
  %v5285 = vpop.f32.mrf.mxu0
  %v5286 = vadd.f32 0.0, %v5285
  %v5287 = vpop.f32.mrf.mxu0
  %5288 = vmatprep.mubr.f32.mxu0 0.0
  %5289 = vmatmul.mubr.f32.gmra.mxu0 %v4324
  %v5290 = vpop.f32.mrf.mxu0
  %v5291 = vadd.f32 0.0, %v5290
  %v5292 = vpop.f32.mrf.mxu0
  %5293 = vmatprep.mubr.f32.mxu0 0.0
  %5294 = vmatmul.mubr.f32.gmra.mxu0 %v4325
  %v5295 = vpop.f32.mrf.mxu0
  %v5296 = vadd.f32 0.0, %v5295
  %v5297 = vpop.f32.mrf.mxu0
  %5298 = vmatprep.mubr.f32.mxu0 0.0
  %5299 = vmatmul.mubr.f32.gmra.mxu0 %v4326
  %v5300 = vpop.f32.mrf.mxu0
  %v5301 = vadd.f32 0.0, %v5300
  %v5302 = vpop.f32.mrf.mxu0
  %5303 = vmatprep.mubr.f32.mxu0 0.0
  %5304 = vmatmul.mubr.f32.gmra.mxu0 %v4327
  %v5305 = vpop.f32.mrf.mxu0
  %v5306 = vadd.f32 0.0, %v5305
  %v5307 = vpop.f32.mrf.mxu0
  %5308 = vmatprep.mubr.f32.mxu0 0.0
  %5309 = vmatmul.mubr.f32.gmra.mxu0 %v4328
  %v5310 = vpop.f32.mrf.mxu0
  %v5311 = vadd.f32 0.0, %v5310
  %v5312 = vpop.f32.mrf.mxu0
  %5313 = vmatprep.mubr.f32.mxu0 0.0
  %5314 = vmatmul.mubr.f32.gmra.mxu0 %v4329
  %v5315 = vpop.f32.mrf.mxu0
  %v5316 = vadd.f32 0.0, %v5315
  %v5317 = vpop.f32.mrf.mxu0
  %5318 = vmatprep.mubr.f32.mxu0 0.0
  %5319 = vmatmul.mubr.f32.gmra.mxu0 %v4330
  %v5320 = vpop.f32.mrf.mxu0
  %v5321 = vadd.f32 0.0, %v5320
  %v5322 = vpop.f32.mrf.mxu0
  %5323 = vmatprep.mubr.f32.mxu0 0.0
  %5324 = vmatmul.mubr.f32.gmra.mxu0 %v4331
  %v5325 = vpop.f32.mrf.mxu0
  %v5326 = vadd.f32 0.0, %v5325
  %v5327 = vpop.f32.mrf.mxu0
  %5328 = vmatprep.mubr.f32.mxu0 0.0
  %5329 = vmatmul.mubr.f32.gmra.mxu0 %v4332
  %v5330 = vpop.f32.mrf.mxu0
  %v5331 = vadd.f32 0.0, %v5330
  %v5332 = vpop.f32.mrf.mxu0
  %5333 = vmatprep.mubr.f32.mxu0 0.0
  %5334 = vmatmul.mubr.f32.gmra.mxu0 %v4333
  %v5335 = vpop.f32.mrf.mxu0
  %v5336 = vadd.f32 0.0, %v5335
  %v5337 = vpop.f32.mrf.mxu0
  %5338 = vmatprep.mubr.f32.mxu0 0.0
  %5339 = vmatmul.mubr.f32.gmra.mxu0 %v4334
  %v5340 = vpop.f32.mrf.mxu0
  %v5341 = vadd.f32 0.0, %v5340
  %v5342 = vpop.f32.mrf.mxu0
  %5343 = vmatprep.mubr.f32.mxu0 0.0
  %5344 = vmatmul.mubr.f32.gmra.mxu0 %v4335
  %v5345 = vpop.f32.mrf.mxu0
  %v5346 = vadd.f32 0.0, %v5345
  %v5347 = vpop.f32.mrf.mxu0
  %5348 = vmatprep.mubr.f32.mxu0 0.0
  %5349 = vmatmul.mubr.f32.gmra.mxu0 %v4336
  %v5350 = vpop.f32.mrf.mxu0
  %v5351 = vadd.f32 0.0, %v5350
  %v5352 = vpop.f32.mrf.mxu0
  %5353 = vmatprep.mubr.f32.mxu0 0.0
  %5354 = vmatmul.mubr.f32.gmra.mxu0 %v4337
  %v5355 = vpop.f32.mrf.mxu0
  %v5356 = vadd.f32 0.0, %v5355
  %v5357 = vpop.f32.mrf.mxu0
  %5358 = vmatprep.mubr.f32.mxu0 0.0
  %5359 = vmatmul.mubr.f32.gmra.mxu0 %v4338
  %v5360 = vpop.f32.mrf.mxu0
  %v5361 = vadd.f32 0.0, %v5360
  %v5362 = vpop.f32.mrf.mxu0
  %5363 = vmatprep.mubr.f32.mxu0 0.0
  %5364 = vmatmul.mubr.f32.gmra.mxu0 %v4339
  %v5365 = vpop.f32.mrf.mxu0
  %v5366 = vadd.f32 0.0, %v5365
  %v5367 = vpop.f32.mrf.mxu0
  %5368 = vmatprep.mubr.f32.mxu0 0.0
  %5369 = vmatmul.mubr.f32.gmra.mxu0 %v4340
  %v5370 = vpop.f32.mrf.mxu0
  %v5371 = vadd.f32 0.0, %v5370
  %v5372 = vpop.f32.mrf.mxu0
  %5373 = vmatprep.mubr.f32.mxu0 0.0
  %5374 = vmatmul.mubr.f32.gmra.mxu0 %v4341
  %v5375 = vpop.f32.mrf.mxu0
  %v5376 = vadd.f32 0.0, %v5375
  %v5377 = vpop.f32.mrf.mxu0
  %5378 = vmatprep.mubr.f32.mxu0 0.0
  %5379 = vmatmul.mubr.f32.gmra.mxu0 %v4342
  %v5380 = vpop.f32.mrf.mxu0
  %v5381 = vadd.f32 0.0, %v5380
  %v5382 = vpop.f32.mrf.mxu0
  %5383 = vmatprep.mubr.f32.mxu0 0.0
  %5384 = vmatmul.mubr.f32.gmra.mxu0 %v4343
  %v5385 = vpop.f32.mrf.mxu0
  %v5386 = vadd.f32 0.0, %v5385
  %v5387 = vpop.f32.mrf.mxu0
  %5388 = vdwg.mxu0
  %v5389 = vmax.f32 %v3951, %v4411
  %v5390 = vmax.f32 %v3952, %v4416
  %v5391 = vmax.f32 %v3953, %v4421
  %v5392 = vmax.f32 %v3954, %v4426
  %v5393 = vmax.f32 %v3955, %v4431
  %v5394 = vmax.f32 %v3956, %v4436
  %v5395 = vmax.f32 %v3957, %v4441
  %v5396 = vmax.f32 %v3958, %v4446
  %v5397 = vmax.f32 %v3959, %v4451
  %v5398 = vmax.f32 %v3960, %v4456
  %v5399 = vmax.f32 %v3961, %v4461
  %v5400 = vmax.f32 %v3962, %v4466
  %v5401 = vmax.f32 %v3963, %v4471
  %v5402 = vmax.f32 %v3964, %v4476
  %v5403 = vmax.f32 %v3965, %v4481
  %v5404 = vmax.f32 %v3966, %v4486
  %v5405 = vmax.f32 %v3967, %v4491
  %v5406 = vmax.f32 %v3968, %v4496
  %v5407 = vmax.f32 %v3969, %v4501
  %v5408 = vmax.f32 %v3970, %v4506
  %v5409 = vmax.f32 %v3971, %v4511
  %v5410 = vmax.f32 %v3972, %v4516
  %v5411 = vmax.f32 %v3973, %v4521
  %v5412 = vmax.f32 %v3974, %v4526
  %v5413 = vmax.f32 %v3975, %v4531
  %v5414 = vmax.f32 %v3976, %v4536
  %v5415 = vmax.f32 %v3977, %v4541
  %v5416 = vmax.f32 %v3978, %v4546
  %v5417 = vmax.f32 %v3979, %v4551
  %v5418 = vmax.f32 %v3980, %v4556
  %v5419 = vmax.f32 %v3981, %v4561
  %v5420 = vmax.f32 %v3982, %v4566
  %v5421 = vmax.f32 %v3983, %v4571
  %v5422 = vmax.f32 %v3984, %v4576
  %v5423 = vmax.f32 %v3985, %v4581
  %v5424 = vmax.f32 %v3986, %v4586
  %v5425 = vmax.f32 %v3987, %v4591
  %v5426 = vmax.f32 %v3988, %v4596
  %v5427 = vmax.f32 %v3989, %v4601
  %v5428 = vmax.f32 %v3990, %v4606
  %v5429 = vmax.f32 %v3991, %v4611
  %v5430 = vmax.f32 %v3992, %v4616
  %v5431 = vmax.f32 %v3993, %v4621
  %v5432 = vmax.f32 %v3994, %v4626
  %v5433 = vmax.f32 %v3995, %v4631
  %v5434 = vmax.f32 %v3996, %v4636
  %v5435 = vmax.f32 %v3997, %v4641
  %v5436 = vmax.f32 %v3998, %v4646
  %v5437 = vmax.f32 %v3999, %v4651
  %v5438 = vmax.f32 %v4000, %v4656
  %v5439 = vmax.f32 %v4001, %v4661
  %v5440 = vmax.f32 %v4002, %v4666
  %v5441 = vmax.f32 %v4003, %v4671
  %v5442 = vmax.f32 %v4004, %v4676
  %v5443 = vmax.f32 %v4005, %v4681
  %v5444 = vmax.f32 %v4006, %v4686
  %v5445 = vmax.f32 %v4007, %v4691
  %v5446 = vmax.f32 %v4008, %v4696
  %v5447 = vmax.f32 %v4009, %v4701
  %v5448 = vmax.f32 %v4010, %v4706
  %v5449 = vmax.f32 %v4011, %v4711
  %v5450 = vmax.f32 %v4012, %v4716
  %v5451 = vmax.f32 %v4013, %v4721
  %v5452 = vmax.f32 %v4014, %v4726
  %v5453 = vmax.f32 %v4015, %v4731
  %v5454 = vmax.f32 %v4016, %v4736
  %v5455 = vmax.f32 %v4017, %v4741
  %v5456 = vmax.f32 %v4018, %v4746
  %v5457 = vmax.f32 %v4019, %v4751
  %v5458 = vmax.f32 %v4020, %v4756
  %v5459 = vmax.f32 %v4021, %v4761
  %v5460 = vmax.f32 %v4022, %v4766
  %v5461 = vmax.f32 %v4023, %v4771
  %v5462 = vmax.f32 %v4024, %v4776
  %v5463 = vmax.f32 %v4025, %v4781
  %v5464 = vmax.f32 %v4026, %v4786
  %v5465 = vmax.f32 %v4027, %v4791
  %v5466 = vmax.f32 %v4028, %v4796
  %v5467 = vmax.f32 %v4029, %v4801
  %v5468 = vmax.f32 %v4030, %v4806
  %v5469 = vmax.f32 %v4031, %v4811
  %v5470 = vmax.f32 %v4032, %v4816
  %v5471 = vmax.f32 %v4033, %v4821
  %v5472 = vmax.f32 %v4034, %v4826
  %v5473 = vmax.f32 %v4035, %v4831
  %v5474 = vmax.f32 %v4036, %v4836
  %v5475 = vmax.f32 %v4037, %v4841
  %v5476 = vmax.f32 %v4038, %v4846
  %v5477 = vmax.f32 %v4039, %v4851
  %v5478 = vmax.f32 %v4040, %v4856
  %v5479 = vmax.f32 %v4041, %v4861
  %v5480 = vmax.f32 %v4042, %v4866
  %v5481 = vmax.f32 %v4043, %v4871
  %v5482 = vmax.f32 %v4044, %v4876
  %v5483 = vmax.f32 %v4045, %v4881
  %v5484 = vmax.f32 %v4046, %v4886
  %v5485 = vmax.f32 %v4047, %v4891
  %v5486 = vmax.f32 %v4048, %v4896
  %v5487 = vmax.f32 %v4049, %v4901
  %v5488 = vmax.f32 %v4050, %v4906
  %v5489 = vmax.f32 %v4051, %v4911
  %v5490 = vmax.f32 %v4052, %v4916
  %v5491 = vmax.f32 %v4053, %v4921
  %v5492 = vmax.f32 %v4054, %v4926
  %v5493 = vmax.f32 %v4055, %v4931
  %v5494 = vmax.f32 %v4056, %v4936
  %v5495 = vmax.f32 %v4057, %v4941
  %v5496 = vmax.f32 %v4058, %v4946
  %v5497 = vmax.f32 %v4059, %v4951
  %v5498 = vmax.f32 %v4060, %v4956
  %v5499 = vmax.f32 %v4061, %v4961
  %v5500 = vmax.f32 %v4062, %v4966
  %v5501 = vmax.f32 %v4063, %v4971
  %v5502 = vmax.f32 %v4064, %v4976
  %v5503 = vmax.f32 %v4065, %v4981
  %v5504 = vmax.f32 %v4066, %v4986
  %v5505 = vmax.f32 %v4067, %v4991
  %v5506 = vmax.f32 %v4068, %v4996
  %v5507 = vmax.f32 %v4069, %v5001
  %v5508 = vmax.f32 %v4070, %v5006
  %v5509 = vmax.f32 %v4071, %v5011
  %v5510 = vmax.f32 %v4072, %v5016
  %v5511 = vmax.f32 %v4073, %v5021
  %v5512 = vmax.f32 %v4074, %v5026
  %v5513 = vmax.f32 %v4075, %v5031
  %v5514 = vmax.f32 %v4076, %v5036
  %v5515 = vmax.f32 %v4077, %v5041
  %v5516 = vmax.f32 %v4078, %v5046
  %v5517 = vmax.f32 %v4079, %v5051
  %v5518 = vmax.f32 %v4080, %v5056
  %v5519 = vmax.f32 %v4081, %v5061
  %v5520 = vmax.f32 %v4082, %v5066
  %v5521 = vmax.f32 %v4083, %v5071
  %v5522 = vmax.f32 %v4084, %v5076
  %v5523 = vmax.f32 %v4085, %v5081
  %v5524 = vmax.f32 %v4086, %v5086
  %v5525 = vmax.f32 %v4087, %v5091
  %v5526 = vmax.f32 %v4088, %v5096
  %v5527 = vmax.f32 %v4089, %v5101
  %v5528 = vmax.f32 %v4090, %v5106
  %v5529 = vmax.f32 %v4091, %v5111
  %v5530 = vmax.f32 %v4092, %v5116
  %v5531 = vmax.f32 %v4093, %v5121
  %v5532 = vmax.f32 %v4094, %v5126
  %v5533 = vmax.f32 %v4095, %v5131
  %v5534 = vmax.f32 %v4096, %v5136
  %v5535 = vmax.f32 %v4097, %v5141
  %v5536 = vmax.f32 %v4098, %v5146
  %v5537 = vmax.f32 %v4099, %v5151
  %v5538 = vmax.f32 %v4100, %v5156
  %v5539 = vmax.f32 %v4101, %v5161
  %v5540 = vmax.f32 %v4102, %v5166
  %v5541 = vmax.f32 %v4103, %v5171
  %v5542 = vmax.f32 %v4104, %v5176
  %v5543 = vmax.f32 %v4105, %v5181
  %v5544 = vmax.f32 %v4106, %v5186
  %v5545 = vmax.f32 %v4107, %v5191
  %v5546 = vmax.f32 %v4108, %v5196
  %v5547 = vmax.f32 %v4109, %v5201
  %v5548 = vmax.f32 %v4110, %v5206
  %v5549 = vmax.f32 %v4111, %v5211
  %v5550 = vmax.f32 %v4112, %v5216
  %v5551 = vmax.f32 %v4113, %v5221
  %v5552 = vmax.f32 %v4114, %v5226
  %v5553 = vmax.f32 %v4115, %v5231
  %v5554 = vmax.f32 %v4116, %v5236
  %v5555 = vmax.f32 %v4117, %v5241
  %v5556 = vmax.f32 %v4118, %v5246
  %v5557 = vmax.f32 %v4119, %v5251
  %v5558 = vmax.f32 %v4120, %v5256
  %v5559 = vmax.f32 %v4121, %v5261
  %v5560 = vmax.f32 %v4122, %v5266
  %v5561 = vmax.f32 %v4123, %v5271
  %v5562 = vmax.f32 %v4124, %v5276
  %v5563 = vmax.f32 %v4125, %v5281
  %v5564 = vmax.f32 %v4126, %v5286
  %v5565 = vmax.f32 %v4127, %v5291
  %v5566 = vmax.f32 %v4128, %v5296
  %v5567 = vmax.f32 %v4129, %v5301
  %v5568 = vmax.f32 %v4130, %v5306
  %v5569 = vmax.f32 %v4131, %v5311
  %v5570 = vmax.f32 %v4132, %v5316
  %v5571 = vmax.f32 %v4133, %v5321
  %v5572 = vmax.f32 %v4134, %v5326
  %v5573 = vmax.f32 %v4135, %v5331
  %v5574 = vmax.f32 %v4136, %v5336
  %v5575 = vmax.f32 %v4137, %v5341
  %v5576 = vmax.f32 %v4138, %v5346
  %v5577 = vmax.f32 %v4139, %v5351
  %v5578 = vmax.f32 %v4140, %v5356
  %v5579 = vmax.f32 %v4141, %v5361
  %v5580 = vmax.f32 %v4142, %v5366
  %v5581 = vmax.f32 %v4143, %v5371
  %v5582 = vmax.f32 %v4144, %v5376
  %v5583 = vmax.f32 %v4145, %v5381
  %v5584 = vmax.f32 %v4146, %v5386
  %v5585 = vld [vmem:[%s2] sm:$0x1]
  %v5587 = vlaneseq
  %v5588 = vshrl.u32 %v5587, 7
  %v5589 = vsub.s32 0, %v5588
  %v5590 = vrot.slane %v5585, %v5589
  %v5592 = vadd.f32 %v5389, %v5590
  %v5593 = vadd.f32 %v5390, %v5590
  %v5594 = vadd.f32 %v5391, %v5590
  %v5595 = vadd.f32 %v5392, %v5590
  %v5596 = vadd.f32 %v5393, %v5590
  %v5597 = vadd.f32 %v5394, %v5590
  %v5598 = vadd.f32 %v5395, %v5590
  %v5599 = vadd.f32 %v5396, %v5590
  %v5600 = vadd.f32 %v5397, %v5590
  %v5601 = vadd.f32 %v5398, %v5590
  %v5602 = vadd.f32 %v5399, %v5590
  %v5603 = vadd.f32 %v5400, %v5590
  %v5604 = vadd.f32 %v5401, %v5590
  %v5605 = vadd.f32 %v5402, %v5590
  %v5606 = vadd.f32 %v5403, %v5590
  %v5607 = vadd.f32 %v5404, %v5590
  %v5608 = vadd.f32 %v5405, %v5590
  %v5609 = vadd.f32 %v5406, %v5590
  %v5610 = vadd.f32 %v5407, %v5590
  %v5611 = vadd.f32 %v5408, %v5590
  %v5612 = vadd.f32 %v5409, %v5590
  %v5613 = vadd.f32 %v5410, %v5590
  %v5614 = vadd.f32 %v5411, %v5590
  %v5615 = vadd.f32 %v5412, %v5590
  %v5616 = vadd.f32 %v5413, %v5590
  %v5617 = vadd.f32 %v5414, %v5590
  %v5618 = vadd.f32 %v5415, %v5590
  %v5619 = vadd.f32 %v5416, %v5590
  %v5620 = vadd.f32 %v5417, %v5590
  %v5621 = vadd.f32 %v5418, %v5590
  %v5622 = vadd.f32 %v5419, %v5590
  %v5623 = vadd.f32 %v5420, %v5590
  %v5624 = vadd.f32 %v5421, %v5590
  %v5625 = vadd.f32 %v5422, %v5590
  %v5626 = vadd.f32 %v5423, %v5590
  %v5627 = vadd.f32 %v5424, %v5590
  %v5628 = vadd.f32 %v5425, %v5590
  %v5629 = vadd.f32 %v5426, %v5590
  %v5630 = vadd.f32 %v5427, %v5590
  %v5631 = vadd.f32 %v5428, %v5590
  %v5632 = vadd.f32 %v5429, %v5590
  %v5633 = vadd.f32 %v5430, %v5590
  %v5634 = vadd.f32 %v5431, %v5590
  %v5635 = vadd.f32 %v5432, %v5590
  %v5636 = vadd.f32 %v5433, %v5590
  %v5637 = vadd.f32 %v5434, %v5590
  %v5638 = vadd.f32 %v5435, %v5590
  %v5639 = vadd.f32 %v5436, %v5590
  %v5640 = vadd.f32 %v5437, %v5590
  %v5641 = vadd.f32 %v5438, %v5590
  %v5642 = vadd.f32 %v5439, %v5590
  %v5643 = vadd.f32 %v5440, %v5590
  %v5644 = vadd.f32 %v5441, %v5590
  %v5645 = vadd.f32 %v5442, %v5590
  %v5646 = vadd.f32 %v5443, %v5590
  %v5647 = vadd.f32 %v5444, %v5590
  %v5648 = vadd.f32 %v5445, %v5590
  %v5649 = vadd.f32 %v5446, %v5590
  %v5650 = vadd.f32 %v5447, %v5590
  %v5651 = vadd.f32 %v5448, %v5590
  %v5652 = vadd.f32 %v5449, %v5590
  %v5653 = vadd.f32 %v5450, %v5590
  %v5654 = vadd.f32 %v5451, %v5590
  %v5655 = vadd.f32 %v5452, %v5590
  %v5656 = vadd.f32 %v5453, %v5590
  %v5657 = vadd.f32 %v5454, %v5590
  %v5658 = vadd.f32 %v5455, %v5590
  %v5659 = vadd.f32 %v5456, %v5590
  %v5660 = vadd.f32 %v5457, %v5590
  %v5661 = vadd.f32 %v5458, %v5590
  %v5662 = vadd.f32 %v5459, %v5590
  %v5663 = vadd.f32 %v5460, %v5590
  %v5664 = vadd.f32 %v5461, %v5590
  %v5665 = vadd.f32 %v5462, %v5590
  %v5666 = vadd.f32 %v5463, %v5590
  %v5667 = vadd.f32 %v5464, %v5590
  %v5668 = vadd.f32 %v5465, %v5590
  %v5669 = vadd.f32 %v5466, %v5590
  %v5670 = vadd.f32 %v5467, %v5590
  %v5671 = vadd.f32 %v5468, %v5590
  %v5672 = vadd.f32 %v5469, %v5590
  %v5673 = vadd.f32 %v5470, %v5590
  %v5674 = vadd.f32 %v5471, %v5590
  %v5675 = vadd.f32 %v5472, %v5590
  %v5676 = vadd.f32 %v5473, %v5590
  %v5677 = vadd.f32 %v5474, %v5590
  %v5678 = vadd.f32 %v5475, %v5590
  %v5679 = vadd.f32 %v5476, %v5590
  %v5680 = vadd.f32 %v5477, %v5590
  %v5681 = vadd.f32 %v5478, %v5590
  %v5682 = vadd.f32 %v5479, %v5590
  %v5683 = vadd.f32 %v5480, %v5590
  %v5684 = vadd.f32 %v5481, %v5590
  %v5685 = vadd.f32 %v5482, %v5590
  %v5686 = vadd.f32 %v5483, %v5590
  %v5687 = vadd.f32 %v5484, %v5590
  %v5688 = vadd.f32 %v5485, %v5590
  %v5689 = vadd.f32 %v5486, %v5590
  %v5690 = vadd.f32 %v5487, %v5590
  %v5691 = vadd.f32 %v5488, %v5590
  %v5692 = vadd.f32 %v5489, %v5590
  %v5693 = vadd.f32 %v5490, %v5590
  %v5694 = vadd.f32 %v5491, %v5590
  %v5695 = vadd.f32 %v5492, %v5590
  %v5696 = vadd.f32 %v5493, %v5590
  %v5697 = vadd.f32 %v5494, %v5590
  %v5698 = vadd.f32 %v5495, %v5590
  %v5699 = vadd.f32 %v5496, %v5590
  %v5700 = vadd.f32 %v5497, %v5590
  %v5701 = vadd.f32 %v5498, %v5590
  %v5702 = vadd.f32 %v5499, %v5590
  %v5703 = vadd.f32 %v5500, %v5590
  %v5704 = vadd.f32 %v5501, %v5590
  %v5705 = vadd.f32 %v5502, %v5590
  %v5706 = vadd.f32 %v5503, %v5590
  %v5707 = vadd.f32 %v5504, %v5590
  %v5708 = vadd.f32 %v5505, %v5590
  %v5709 = vadd.f32 %v5506, %v5590
  %v5710 = vadd.f32 %v5507, %v5590
  %v5711 = vadd.f32 %v5508, %v5590
  %v5712 = vadd.f32 %v5509, %v5590
  %v5713 = vadd.f32 %v5510, %v5590
  %v5714 = vadd.f32 %v5511, %v5590
  %v5715 = vadd.f32 %v5512, %v5590
  %v5716 = vadd.f32 %v5513, %v5590
  %v5717 = vadd.f32 %v5514, %v5590
  %v5718 = vadd.f32 %v5515, %v5590
  %v5719 = vadd.f32 %v5516, %v5590
  %v5720 = vadd.f32 %v5517, %v5590
  %v5721 = vadd.f32 %v5518, %v5590
  %v5722 = vadd.f32 %v5519, %v5590
  %v5723 = vadd.f32 %v5520, %v5590
  %v5724 = vadd.f32 %v5521, %v5590
  %v5725 = vadd.f32 %v5522, %v5590
  %v5726 = vadd.f32 %v5523, %v5590
  %v5727 = vadd.f32 %v5524, %v5590
  %v5728 = vadd.f32 %v5525, %v5590
  %v5729 = vadd.f32 %v5526, %v5590
  %v5730 = vadd.f32 %v5527, %v5590
  %v5731 = vadd.f32 %v5528, %v5590
  %v5732 = vadd.f32 %v5529, %v5590
  %v5733 = vadd.f32 %v5530, %v5590
  %v5734 = vadd.f32 %v5531, %v5590
  %v5735 = vadd.f32 %v5532, %v5590
  %v5736 = vadd.f32 %v5533, %v5590
  %v5737 = vadd.f32 %v5534, %v5590
  %v5738 = vadd.f32 %v5535, %v5590
  %v5739 = vadd.f32 %v5536, %v5590
  %v5740 = vadd.f32 %v5537, %v5590
  %v5741 = vadd.f32 %v5538, %v5590
  %v5742 = vadd.f32 %v5539, %v5590
  %v5743 = vadd.f32 %v5540, %v5590
  %v5744 = vadd.f32 %v5541, %v5590
  %v5745 = vadd.f32 %v5542, %v5590
  %v5746 = vadd.f32 %v5543, %v5590
  %v5747 = vadd.f32 %v5544, %v5590
  %v5748 = vadd.f32 %v5545, %v5590
  %v5749 = vadd.f32 %v5546, %v5590
  %v5750 = vadd.f32 %v5547, %v5590
  %v5751 = vadd.f32 %v5548, %v5590
  %v5752 = vadd.f32 %v5549, %v5590
  %v5753 = vadd.f32 %v5550, %v5590
  %v5754 = vadd.f32 %v5551, %v5590
  %v5755 = vadd.f32 %v5552, %v5590
  %v5756 = vadd.f32 %v5553, %v5590
  %v5757 = vadd.f32 %v5554, %v5590
  %v5758 = vadd.f32 %v5555, %v5590
  %v5759 = vadd.f32 %v5556, %v5590
  %v5760 = vadd.f32 %v5557, %v5590
  %v5761 = vadd.f32 %v5558, %v5590
  %v5762 = vadd.f32 %v5559, %v5590
  %v5763 = vadd.f32 %v5560, %v5590
  %v5764 = vadd.f32 %v5561, %v5590
  %v5765 = vadd.f32 %v5562, %v5590
  %v5766 = vadd.f32 %v5563, %v5590
  %v5767 = vadd.f32 %v5564, %v5590
  %v5768 = vadd.f32 %v5565, %v5590
  %v5769 = vadd.f32 %v5566, %v5590
  %v5770 = vadd.f32 %v5567, %v5590
  %v5771 = vadd.f32 %v5568, %v5590
  %v5772 = vadd.f32 %v5569, %v5590
  %v5773 = vadd.f32 %v5570, %v5590
  %v5774 = vadd.f32 %v5571, %v5590
  %v5775 = vadd.f32 %v5572, %v5590
  %v5776 = vadd.f32 %v5573, %v5590
  %v5777 = vadd.f32 %v5574, %v5590
  %v5778 = vadd.f32 %v5575, %v5590
  %v5779 = vadd.f32 %v5576, %v5590
  %v5780 = vadd.f32 %v5577, %v5590
  %v5781 = vadd.f32 %v5578, %v5590
  %v5782 = vadd.f32 %v5579, %v5590
  %v5783 = vadd.f32 %v5580, %v5590
  %v5784 = vadd.f32 %v5581, %v5590
  %v5785 = vadd.f32 %v5582, %v5590
  %v5786 = vadd.f32 %v5583, %v5590
  %v5787 = vadd.f32 %v5584, %v5590
  %v5788 = vmax.f32 %v5592, 0.0
  %v5789 = vmax.f32 %v5593, 0.0
  %v5790 = vmax.f32 %v5594, 0.0
  %v5791 = vmax.f32 %v5595, 0.0
  %v5792 = vmax.f32 %v5596, 0.0
  %v5793 = vmax.f32 %v5597, 0.0
  %v5794 = vmax.f32 %v5598, 0.0
  %v5795 = vmax.f32 %v5599, 0.0
  %v5796 = vmax.f32 %v5600, 0.0
  %v5797 = vmax.f32 %v5601, 0.0
  %v5798 = vmax.f32 %v5602, 0.0
  %v5799 = vmax.f32 %v5603, 0.0
  %v5800 = vmax.f32 %v5604, 0.0
  %v5801 = vmax.f32 %v5605, 0.0
  %v5802 = vmax.f32 %v5606, 0.0
  %v5803 = vmax.f32 %v5607, 0.0
  %v5804 = vmax.f32 %v5608, 0.0
  %v5805 = vmax.f32 %v5609, 0.0
  %v5806 = vmax.f32 %v5610, 0.0
  %v5807 = vmax.f32 %v5611, 0.0
  %v5808 = vmax.f32 %v5612, 0.0
  %v5809 = vmax.f32 %v5613, 0.0
  %v5810 = vmax.f32 %v5614, 0.0
  %v5811 = vmax.f32 %v5615, 0.0
  %v5812 = vmax.f32 %v5616, 0.0
  %v5813 = vmax.f32 %v5617, 0.0
  %v5814 = vmax.f32 %v5618, 0.0
  %v5815 = vmax.f32 %v5619, 0.0
  %v5816 = vmax.f32 %v5620, 0.0
  %v5817 = vmax.f32 %v5621, 0.0
  %v5818 = vmax.f32 %v5622, 0.0
  %v5819 = vmax.f32 %v5623, 0.0
  %v5820 = vmax.f32 %v5624, 0.0
  %v5821 = vmax.f32 %v5625, 0.0
  %v5822 = vmax.f32 %v5626, 0.0
  %v5823 = vmax.f32 %v5627, 0.0
  %v5824 = vmax.f32 %v5628, 0.0
  %v5825 = vmax.f32 %v5629, 0.0
  %v5826 = vmax.f32 %v5630, 0.0
  %v5827 = vmax.f32 %v5631, 0.0
  %v5828 = vmax.f32 %v5632, 0.0
  %v5829 = vmax.f32 %v5633, 0.0
  %v5830 = vmax.f32 %v5634, 0.0
  %v5831 = vmax.f32 %v5635, 0.0
  %v5832 = vmax.f32 %v5636, 0.0
  %v5833 = vmax.f32 %v5637, 0.0
  %v5834 = vmax.f32 %v5638, 0.0
  %v5835 = vmax.f32 %v5639, 0.0
  %v5836 = vmax.f32 %v5640, 0.0
  %v5837 = vmax.f32 %v5641, 0.0
  %v5838 = vmax.f32 %v5642, 0.0
  %v5839 = vmax.f32 %v5643, 0.0
  %v5840 = vmax.f32 %v5644, 0.0
  %v5841 = vmax.f32 %v5645, 0.0
  %v5842 = vmax.f32 %v5646, 0.0
  %v5843 = vmax.f32 %v5647, 0.0
  %v5844 = vmax.f32 %v5648, 0.0
  %v5845 = vmax.f32 %v5649, 0.0
  %v5846 = vmax.f32 %v5650, 0.0
  %v5847 = vmax.f32 %v5651, 0.0
  %v5848 = vmax.f32 %v5652, 0.0
  %v5849 = vmax.f32 %v5653, 0.0
  %v5850 = vmax.f32 %v5654, 0.0
  %v5851 = vmax.f32 %v5655, 0.0
  %v5852 = vmax.f32 %v5656, 0.0
  %v5853 = vmax.f32 %v5657, 0.0
  %v5854 = vmax.f32 %v5658, 0.0
  %v5855 = vmax.f32 %v5659, 0.0
  %v5856 = vmax.f32 %v5660, 0.0
  %v5857 = vmax.f32 %v5661, 0.0
  %v5858 = vmax.f32 %v5662, 0.0
  %v5859 = vmax.f32 %v5663, 0.0
  %v5860 = vmax.f32 %v5664, 0.0
  %v5861 = vmax.f32 %v5665, 0.0
  %v5862 = vmax.f32 %v5666, 0.0
  %v5863 = vmax.f32 %v5667, 0.0
  %v5864 = vmax.f32 %v5668, 0.0
  %v5865 = vmax.f32 %v5669, 0.0
  %v5866 = vmax.f32 %v5670, 0.0
  %v5867 = vmax.f32 %v5671, 0.0
  %v5868 = vmax.f32 %v5672, 0.0
  %v5869 = vmax.f32 %v5673, 0.0
  %v5870 = vmax.f32 %v5674, 0.0
  %v5871 = vmax.f32 %v5675, 0.0
  %v5872 = vmax.f32 %v5676, 0.0
  %v5873 = vmax.f32 %v5677, 0.0
  %v5874 = vmax.f32 %v5678, 0.0
  %v5875 = vmax.f32 %v5679, 0.0
  %v5876 = vmax.f32 %v5680, 0.0
  %v5877 = vmax.f32 %v5681, 0.0
  %v5878 = vmax.f32 %v5682, 0.0
  %v5879 = vmax.f32 %v5683, 0.0
  %v5880 = vmax.f32 %v5684, 0.0
  %v5881 = vmax.f32 %v5685, 0.0
  %v5882 = vmax.f32 %v5686, 0.0
  %v5883 = vmax.f32 %v5687, 0.0
  %v5884 = vmax.f32 %v5688, 0.0
  %v5885 = vmax.f32 %v5689, 0.0
  %v5886 = vmax.f32 %v5690, 0.0
  %v5887 = vmax.f32 %v5691, 0.0
  %v5888 = vmax.f32 %v5692, 0.0
  %v5889 = vmax.f32 %v5693, 0.0
  %v5890 = vmax.f32 %v5694, 0.0
  %v5891 = vmax.f32 %v5695, 0.0
  %v5892 = vmax.f32 %v5696, 0.0
  %v5893 = vmax.f32 %v5697, 0.0
  %v5894 = vmax.f32 %v5698, 0.0
  %v5895 = vmax.f32 %v5699, 0.0
  %v5896 = vmax.f32 %v5700, 0.0
  %v5897 = vmax.f32 %v5701, 0.0
  %v5898 = vmax.f32 %v5702, 0.0
  %v5899 = vmax.f32 %v5703, 0.0
  %v5900 = vmax.f32 %v5704, 0.0
  %v5901 = vmax.f32 %v5705, 0.0
  %v5902 = vmax.f32 %v5706, 0.0
  %v5903 = vmax.f32 %v5707, 0.0
  %v5904 = vmax.f32 %v5708, 0.0
  %v5905 = vmax.f32 %v5709, 0.0
  %v5906 = vmax.f32 %v5710, 0.0
  %v5907 = vmax.f32 %v5711, 0.0
  %v5908 = vmax.f32 %v5712, 0.0
  %v5909 = vmax.f32 %v5713, 0.0
  %v5910 = vmax.f32 %v5714, 0.0
  %v5911 = vmax.f32 %v5715, 0.0
  %v5912 = vmax.f32 %v5716, 0.0
  %v5913 = vmax.f32 %v5717, 0.0
  %v5914 = vmax.f32 %v5718, 0.0
  %v5915 = vmax.f32 %v5719, 0.0
  %v5916 = vmax.f32 %v5720, 0.0
  %v5917 = vmax.f32 %v5721, 0.0
  %v5918 = vmax.f32 %v5722, 0.0
  %v5919 = vmax.f32 %v5723, 0.0
  %v5920 = vmax.f32 %v5724, 0.0
  %v5921 = vmax.f32 %v5725, 0.0
  %v5922 = vmax.f32 %v5726, 0.0
  %v5923 = vmax.f32 %v5727, 0.0
  %v5924 = vmax.f32 %v5728, 0.0
  %v5925 = vmax.f32 %v5729, 0.0
  %v5926 = vmax.f32 %v5730, 0.0
  %v5927 = vmax.f32 %v5731, 0.0
  %v5928 = vmax.f32 %v5732, 0.0
  %v5929 = vmax.f32 %v5733, 0.0
  %v5930 = vmax.f32 %v5734, 0.0
  %v5931 = vmax.f32 %v5735, 0.0
  %v5932 = vmax.f32 %v5736, 0.0
  %v5933 = vmax.f32 %v5737, 0.0
  %v5934 = vmax.f32 %v5738, 0.0
  %v5935 = vmax.f32 %v5739, 0.0
  %v5936 = vmax.f32 %v5740, 0.0
  %v5937 = vmax.f32 %v5741, 0.0
  %v5938 = vmax.f32 %v5742, 0.0
  %v5939 = vmax.f32 %v5743, 0.0
  %v5940 = vmax.f32 %v5744, 0.0
  %v5941 = vmax.f32 %v5745, 0.0
  %v5942 = vmax.f32 %v5746, 0.0
  %v5943 = vmax.f32 %v5747, 0.0
  %v5944 = vmax.f32 %v5748, 0.0
  %v5945 = vmax.f32 %v5749, 0.0
  %v5946 = vmax.f32 %v5750, 0.0
  %v5947 = vmax.f32 %v5751, 0.0
  %v5948 = vmax.f32 %v5752, 0.0
  %v5949 = vmax.f32 %v5753, 0.0
  %v5950 = vmax.f32 %v5754, 0.0
  %v5951 = vmax.f32 %v5755, 0.0
  %v5952 = vmax.f32 %v5756, 0.0
  %v5953 = vmax.f32 %v5757, 0.0
  %v5954 = vmax.f32 %v5758, 0.0
  %v5955 = vmax.f32 %v5759, 0.0
  %v5956 = vmax.f32 %v5760, 0.0
  %v5957 = vmax.f32 %v5761, 0.0
  %v5958 = vmax.f32 %v5762, 0.0
  %v5959 = vmax.f32 %v5763, 0.0
  %v5960 = vmax.f32 %v5764, 0.0
  %v5961 = vmax.f32 %v5765, 0.0
  %v5962 = vmax.f32 %v5766, 0.0
  %v5963 = vmax.f32 %v5767, 0.0
  %v5964 = vmax.f32 %v5768, 0.0
  %v5965 = vmax.f32 %v5769, 0.0
  %v5966 = vmax.f32 %v5770, 0.0
  %v5967 = vmax.f32 %v5771, 0.0
  %v5968 = vmax.f32 %v5772, 0.0
  %v5969 = vmax.f32 %v5773, 0.0
  %v5970 = vmax.f32 %v5774, 0.0
  %v5971 = vmax.f32 %v5775, 0.0
  %v5972 = vmax.f32 %v5776, 0.0
  %v5973 = vmax.f32 %v5777, 0.0
  %v5974 = vmax.f32 %v5778, 0.0
  %v5975 = vmax.f32 %v5779, 0.0
  %v5976 = vmax.f32 %v5780, 0.0
  %v5977 = vmax.f32 %v5781, 0.0
  %v5978 = vmax.f32 %v5782, 0.0
  %v5979 = vmax.f32 %v5783, 0.0
  %v5980 = vmax.f32 %v5784, 0.0
  %v5981 = vmax.f32 %v5785, 0.0
  %v5982 = vmax.f32 %v5786, 0.0
  %v5983 = vmax.f32 %v5787, 0.0
  %5984 = vst [vmem:[%s3] sm:$0xff] %v5788
  %5985 = vst [vmem:[%s3 + $0x8] sm:$0xff] %v5789
  %5986 = vst [vmem:[%s3 + $0x10] sm:$0xff] %v5790
  %5987 = vst [vmem:[%s3 + $0x18] sm:$0xff] %v5791
  %5988 = vst [vmem:[%s3 + $0x20] sm:$0xff] %v5792
  %5989 = vst [vmem:[%s3 + $0x28] sm:$0xff] %v5793
  %5990 = vst [vmem:[%s3 + $0x30] sm:$0xff] %v5794
  %5991 = vst [vmem:[%s3 + $0x38] sm:$0xff] %v5795
  %5992 = vst [vmem:[%s3 + $0x40] sm:$0xff] %v5796
  %5993 = vst [vmem:[%s3 + $0x48] sm:$0xff] %v5797
  %5994 = vst [vmem:[%s3 + $0x50] sm:$0xff] %v5798
  %5995 = vst [vmem:[%s3 + $0x58] sm:$0xff] %v5799
  %5996 = vst [vmem:[%s3 + $0x60] sm:$0xff] %v5800
  %5997 = vst [vmem:[%s3 + $0x68] sm:$0xff] %v5801
  %5998 = vst [vmem:[%s3 + $0x70] sm:$0xff] %v5802
  %5999 = vst [vmem:[%s3 + $0x78] sm:$0xff] %v5803
  %6000 = vst [vmem:[%s3 + $0x80] sm:$0xff] %v5804
  %6001 = vst [vmem:[%s3 + $0x88] sm:$0xff] %v5805
  %6002 = vst [vmem:[%s3 + $0x90] sm:$0xff] %v5806
  %6003 = vst [vmem:[%s3 + $0x98] sm:$0xff] %v5807
  %6004 = vst [vmem:[%s3 + $0xa0] sm:$0xff] %v5808
  %6005 = vst [vmem:[%s3 + $0xa8] sm:$0xff] %v5809
  %6006 = vst [vmem:[%s3 + $0xb0] sm:$0xff] %v5810
  %6007 = vst [vmem:[%s3 + $0xb8] sm:$0xff] %v5811
  %6008 = vst [vmem:[%s3 + $0xc0] sm:$0xff] %v5812
  %6009 = vst [vmem:[%s3 + $0xc8] sm:$0xff] %v5813
  %6010 = vst [vmem:[%s3 + $0xd0] sm:$0xff] %v5814
  %6011 = vst [vmem:[%s3 + $0xd8] sm:$0xff] %v5815
  %6012 = vst [vmem:[%s3 + $0xe0] sm:$0xff] %v5816
  %6013 = vst [vmem:[%s3 + $0xe8] sm:$0xff] %v5817
  %6014 = vst [vmem:[%s3 + $0xf0] sm:$0xff] %v5818
  %6015 = vst [vmem:[%s3 + $0xf8] sm:$0xff] %v5819
  %6016 = vst [vmem:[%s3 + $0x100] sm:$0xff] %v5820
  %6017 = vst [vmem:[%s3 + $0x108] sm:$0xff] %v5821
  %6018 = vst [vmem:[%s3 + $0x110] sm:$0xff] %v5822
  %6019 = vst [vmem:[%s3 + $0x118] sm:$0xff] %v5823
  %6020 = vst [vmem:[%s3 + $0x120] sm:$0xff] %v5824
  %6021 = vst [vmem:[%s3 + $0x128] sm:$0xff] %v5825
  %6022 = vst [vmem:[%s3 + $0x130] sm:$0xff] %v5826
  %6023 = vst [vmem:[%s3 + $0x138] sm:$0xff] %v5827
  %6024 = vst [vmem:[%s3 + $0x140] sm:$0xff] %v5828
  %6025 = vst [vmem:[%s3 + $0x148] sm:$0xff] %v5829
  %6026 = vst [vmem:[%s3 + $0x150] sm:$0xff] %v5830
  %6027 = vst [vmem:[%s3 + $0x158] sm:$0xff] %v5831
  %6028 = vst [vmem:[%s3 + $0x160] sm:$0xff] %v5832
  %6029 = vst [vmem:[%s3 + $0x168] sm:$0xff] %v5833
  %6030 = vst [vmem:[%s3 + $0x170] sm:$0xff] %v5834
  %6031 = vst [vmem:[%s3 + $0x178] sm:$0xff] %v5835
  %6032 = vst [vmem:[%s3 + $0x180] sm:$0xff] %v5836
  %6033 = vst [vmem:[%s3 + $0x188] sm:$0xff] %v5837
  %6034 = vst [vmem:[%s3 + $0x190] sm:$0xff] %v5838
  %6035 = vst [vmem:[%s3 + $0x198] sm:$0xff] %v5839
  %6036 = vst [vmem:[%s3 + $0x1a0] sm:$0xff] %v5840
  %6037 = vst [vmem:[%s3 + $0x1a8] sm:$0xff] %v5841
  %6038 = vst [vmem:[%s3 + $0x1b0] sm:$0xff] %v5842
  %6039 = vst [vmem:[%s3 + $0x1b8] sm:$0xff] %v5843
  %6040 = vst [vmem:[%s3 + $0x1c0] sm:$0xff] %v5844
  %6041 = vst [vmem:[%s3 + $0x1c8] sm:$0xff] %v5845
  %6042 = vst [vmem:[%s3 + $0x1d0] sm:$0xff] %v5846
  %6043 = vst [vmem:[%s3 + $0x1d8] sm:$0xff] %v5847
  %6044 = vst [vmem:[%s3 + $0x1e0] sm:$0xff] %v5848
  %6045 = vst [vmem:[%s3 + $0x1e8] sm:$0xff] %v5849
  %6046 = vst [vmem:[%s3 + $0x1f0] sm:$0xff] %v5850
  %6047 = vst [vmem:[%s3 + $0x1f8] sm:$0xff] %v5851
  %6048 = vst [vmem:[%s3 + $0x200] sm:$0xff] %v5852
  %6049 = vst [vmem:[%s3 + $0x208] sm:$0xff] %v5853
  %6050 = vst [vmem:[%s3 + $0x210] sm:$0xff] %v5854
  %6051 = vst [vmem:[%s3 + $0x218] sm:$0xff] %v5855
  %6052 = vst [vmem:[%s3 + $0x220] sm:$0xff] %v5856
  %6053 = vst [vmem:[%s3 + $0x228] sm:$0xff] %v5857
  %6054 = vst [vmem:[%s3 + $0x230] sm:$0xff] %v5858
  %6055 = vst [vmem:[%s3 + $0x238] sm:$0xff] %v5859
  %6056 = vst [vmem:[%s3 + $0x240] sm:$0xff] %v5860
  %6057 = vst [vmem:[%s3 + $0x248] sm:$0xff] %v5861
  %6058 = vst [vmem:[%s3 + $0x250] sm:$0xff] %v5862
  %6059 = vst [vmem:[%s3 + $0x258] sm:$0xff] %v5863
  %6060 = vst [vmem:[%s3 + $0x260] sm:$0xff] %v5864
  %6061 = vst [vmem:[%s3 + $0x268] sm:$0xff] %v5865
  %6062 = vst [vmem:[%s3 + $0x270] sm:$0xff] %v5866
  %6063 = vst [vmem:[%s3 + $0x278] sm:$0xff] %v5867
  %6064 = vst [vmem:[%s3 + $0x280] sm:$0xff] %v5868
  %6065 = vst [vmem:[%s3 + $0x288] sm:$0xff] %v5869
  %6066 = vst [vmem:[%s3 + $0x290] sm:$0xff] %v5870
  %6067 = vst [vmem:[%s3 + $0x298] sm:$0xff] %v5871
  %6068 = vst [vmem:[%s3 + $0x2a0] sm:$0xff] %v5872
  %6069 = vst [vmem:[%s3 + $0x2a8] sm:$0xff] %v5873
  %6070 = vst [vmem:[%s3 + $0x2b0] sm:$0xff] %v5874
  %6071 = vst [vmem:[%s3 + $0x2b8] sm:$0xff] %v5875
  %6072 = vst [vmem:[%s3 + $0x2c0] sm:$0xff] %v5876
  %6073 = vst [vmem:[%s3 + $0x2c8] sm:$0xff] %v5877
  %6074 = vst [vmem:[%s3 + $0x2d0] sm:$0xff] %v5878
  %6075 = vst [vmem:[%s3 + $0x2d8] sm:$0xff] %v5879
  %6076 = vst [vmem:[%s3 + $0x2e0] sm:$0xff] %v5880
  %6077 = vst [vmem:[%s3 + $0x2e8] sm:$0xff] %v5881
  %6078 = vst [vmem:[%s3 + $0x2f0] sm:$0xff] %v5882
  %6079 = vst [vmem:[%s3 + $0x2f8] sm:$0xff] %v5883
  %6080 = vst [vmem:[%s3 + $0x300] sm:$0xff] %v5884
  %6081 = vst [vmem:[%s3 + $0x308] sm:$0xff] %v5885
  %6082 = vst [vmem:[%s3 + $0x310] sm:$0xff] %v5886
  %6083 = vst [vmem:[%s3 + $0x318] sm:$0xff] %v5887
  %6084 = vst [vmem:[%s3 + $0x320] sm:$0xff] %v5888
  %6085 = vst [vmem:[%s3 + $0x328] sm:$0xff] %v5889
  %6086 = vst [vmem:[%s3 + $0x330] sm:$0xff] %v5890
  %6087 = vst [vmem:[%s3 + $0x338] sm:$0xff] %v5891
  %6088 = vst [vmem:[%s3 + $0x340] sm:$0xff] %v5892
  %6089 = vst [vmem:[%s3 + $0x348] sm:$0xff] %v5893
  %6090 = vst [vmem:[%s3 + $0x350] sm:$0xff] %v5894
  %6091 = vst [vmem:[%s3 + $0x358] sm:$0xff] %v5895
  %6092 = vst [vmem:[%s3 + $0x360] sm:$0xff] %v5896
  %6093 = vst [vmem:[%s3 + $0x368] sm:$0xff] %v5897
  %6094 = vst [vmem:[%s3 + $0x370] sm:$0xff] %v5898
  %6095 = vst [vmem:[%s3 + $0x378] sm:$0xff] %v5899
  %6096 = vst [vmem:[%s3 + $0x380] sm:$0xff] %v5900
  %6097 = vst [vmem:[%s3 + $0x388] sm:$0xff] %v5901
  %6098 = vst [vmem:[%s3 + $0x390] sm:$0xff] %v5902
  %6099 = vst [vmem:[%s3 + $0x398] sm:$0xff] %v5903
  %6100 = vst [vmem:[%s3 + $0x3a0] sm:$0xff] %v5904
  %6101 = vst [vmem:[%s3 + $0x3a8] sm:$0xff] %v5905
  %6102 = vst [vmem:[%s3 + $0x3b0] sm:$0xff] %v5906
  %6103 = vst [vmem:[%s3 + $0x3b8] sm:$0xff] %v5907
  %6104 = vst [vmem:[%s3 + $0x3c0] sm:$0xff] %v5908
  %6105 = vst [vmem:[%s3 + $0x3c8] sm:$0xff] %v5909
  %6106 = vst [vmem:[%s3 + $0x3d0] sm:$0xff] %v5910
  %6107 = vst [vmem:[%s3 + $0x3d8] sm:$0xff] %v5911
  %6108 = vst [vmem:[%s3 + $0x3e0] sm:$0xff] %v5912
  %6109 = vst [vmem:[%s3 + $0x3e8] sm:$0xff] %v5913
  %6110 = vst [vmem:[%s3 + $0x3f0] sm:$0xff] %v5914
  %6111 = vst [vmem:[%s3 + $0x3f8] sm:$0xff] %v5915
  %6112 = vst [vmem:[%s3 + $0x400] sm:$0xff] %v5916
  %6113 = vst [vmem:[%s3 + $0x408] sm:$0xff] %v5917
  %6114 = vst [vmem:[%s3 + $0x410] sm:$0xff] %v5918
  %6115 = vst [vmem:[%s3 + $0x418] sm:$0xff] %v5919
  %6116 = vst [vmem:[%s3 + $0x420] sm:$0xff] %v5920
  %6117 = vst [vmem:[%s3 + $0x428] sm:$0xff] %v5921
  %6118 = vst [vmem:[%s3 + $0x430] sm:$0xff] %v5922
  %6119 = vst [vmem:[%s3 + $0x438] sm:$0xff] %v5923
  %6120 = vst [vmem:[%s3 + $0x440] sm:$0xff] %v5924
  %6121 = vst [vmem:[%s3 + $0x448] sm:$0xff] %v5925
  %6122 = vst [vmem:[%s3 + $0x450] sm:$0xff] %v5926
  %6123 = vst [vmem:[%s3 + $0x458] sm:$0xff] %v5927
  %6124 = vst [vmem:[%s3 + $0x460] sm:$0xff] %v5928
  %6125 = vst [vmem:[%s3 + $0x468] sm:$0xff] %v5929
  %6126 = vst [vmem:[%s3 + $0x470] sm:$0xff] %v5930
  %6127 = vst [vmem:[%s3 + $0x478] sm:$0xff] %v5931
  %6128 = vst [vmem:[%s3 + $0x480] sm:$0xff] %v5932
  %6129 = vst [vmem:[%s3 + $0x488] sm:$0xff] %v5933
  %6130 = vst [vmem:[%s3 + $0x490] sm:$0xff] %v5934
  %6131 = vst [vmem:[%s3 + $0x498] sm:$0xff] %v5935
  %6132 = vst [vmem:[%s3 + $0x4a0] sm:$0xff] %v5936
  %6133 = vst [vmem:[%s3 + $0x4a8] sm:$0xff] %v5937
  %6134 = vst [vmem:[%s3 + $0x4b0] sm:$0xff] %v5938
  %6135 = vst [vmem:[%s3 + $0x4b8] sm:$0xff] %v5939
  %6136 = vst [vmem:[%s3 + $0x4c0] sm:$0xff] %v5940
  %6137 = vst [vmem:[%s3 + $0x4c8] sm:$0xff] %v5941
  %6138 = vst [vmem:[%s3 + $0x4d0] sm:$0xff] %v5942
  %6139 = vst [vmem:[%s3 + $0x4d8] sm:$0xff] %v5943
  %6140 = vst [vmem:[%s3 + $0x4e0] sm:$0xff] %v5944
  %6141 = vst [vmem:[%s3 + $0x4e8] sm:$0xff] %v5945
  %6142 = vst [vmem:[%s3 + $0x4f0] sm:$0xff] %v5946
  %6143 = vst [vmem:[%s3 + $0x4f8] sm:$0xff] %v5947
  %6144 = vst [vmem:[%s3 + $0x500] sm:$0xff] %v5948
  %6145 = vst [vmem:[%s3 + $0x508] sm:$0xff] %v5949
  %6146 = vst [vmem:[%s3 + $0x510] sm:$0xff] %v5950
  %6147 = vst [vmem:[%s3 + $0x518] sm:$0xff] %v5951
  %6148 = vst [vmem:[%s3 + $0x520] sm:$0xff] %v5952
  %6149 = vst [vmem:[%s3 + $0x528] sm:$0xff] %v5953
  %6150 = vst [vmem:[%s3 + $0x530] sm:$0xff] %v5954
  %6151 = vst [vmem:[%s3 + $0x538] sm:$0xff] %v5955
  %6152 = vst [vmem:[%s3 + $0x540] sm:$0xff] %v5956
  %6153 = vst [vmem:[%s3 + $0x548] sm:$0xff] %v5957
  %6154 = vst [vmem:[%s3 + $0x550] sm:$0xff] %v5958
  %6155 = vst [vmem:[%s3 + $0x558] sm:$0xff] %v5959
  %6156 = vst [vmem:[%s3 + $0x560] sm:$0xff] %v5960
  %6157 = vst [vmem:[%s3 + $0x568] sm:$0xff] %v5961
  %6158 = vst [vmem:[%s3 + $0x570] sm:$0xff] %v5962
  %6159 = vst [vmem:[%s3 + $0x578] sm:$0xff] %v5963
  %6160 = vst [vmem:[%s3 + $0x580] sm:$0xff] %v5964
  %6161 = vst [vmem:[%s3 + $0x588] sm:$0xff] %v5965
  %6162 = vst [vmem:[%s3 + $0x590] sm:$0xff] %v5966
  %6163 = vst [vmem:[%s3 + $0x598] sm:$0xff] %v5967
  %6164 = vst [vmem:[%s3 + $0x5a0] sm:$0xff] %v5968
  %6165 = vst [vmem:[%s3 + $0x5a8] sm:$0xff] %v5969
  %6166 = vst [vmem:[%s3 + $0x5b0] sm:$0xff] %v5970
  %6167 = vst [vmem:[%s3 + $0x5b8] sm:$0xff] %v5971
  %6168 = vst [vmem:[%s3 + $0x5c0] sm:$0xff] %v5972
  %6169 = vst [vmem:[%s3 + $0x5c8] sm:$0xff] %v5973
  %6170 = vst [vmem:[%s3 + $0x5d0] sm:$0xff] %v5974
  %6171 = vst [vmem:[%s3 + $0x5d8] sm:$0xff] %v5975
  %6172 = vst [vmem:[%s3 + $0x5e0] sm:$0xff] %v5976
  %6173 = vst [vmem:[%s3 + $0x5e8] sm:$0xff] %v5977
  %6174 = vst [vmem:[%s3 + $0x5f0] sm:$0xff] %v5978
  %6175 = vst [vmem:[%s3 + $0x5f8] sm:$0xff] %v5979
  %6176 = vst [vmem:[%s3 + $0x600] sm:$0xff] %v5980
  %6177 = vst [vmem:[%s3 + $0x608] sm:$0xff] %v5981
  %6178 = vst [vmem:[%s3 + $0x610] sm:$0xff] %v5982
  %6179 = vst [vmem:[%s3 + $0x618] sm:$0xff] %v5983
  // Predicated region
  $region14: #{lenet_forward.2} parent=0 // pred_check
    _
  $region15: #{lenet_forward.2} parent=0 // pred_check_branch
    %6181 = sbr.rel (0) target = $region17
  $region16: #{lenet_forward.2} parent=0 // pred_region
    _
  $region17: #{lenet_forward.2} parent=0 // pred_fallthru
    _
  // Predicated region
  $region18: #{lenet_forward.2} parent=0 // pred_check
    _
  $region19: #{lenet_forward.2} parent=0 // pred_check_branch
    %6183 = sbr.rel (0) target = $region21
  $region20: #{lenet_forward.2} parent=0 // pred_region
    _
  $region21: #{lenet_forward.2} parent=0 // pred_fallthru
    _

// kernel: lenet_forward.3
$region0: #{lenet_forward.3}
  #allocation0 [shape = 'u32[]', space=smem, size = 0x4, offset = 0x4, fixed_abs, tag = 'smem constant byte address 0x4 - core index']
  #allocation1 [shape = 'u32[144,128]{1,0:T(1,128)}', space=vmem, size = 0x12000, scoped, tag = 'internal scratch']
  %s0 = inlined_call_operand.vmem [shape: f32[4,200,256], index: 0, kind: input, shape index: {}]
  %s1 = inlined_call_operand.vmem [shape: f32[256,128], index: 1, kind: input, shape index: {}]
  %s2 = inlined_call_operand.vmem [shape: f32[1,128], index: 2, kind: input, shape index: {}]
  %s3 = inlined_call_operand.vmem [shape: f32[25,128,128], index: 3, kind: input, shape index: {}]
  %s4 = inlined_call_operand.vmem [shape: f32[1,128], index: 4, kind: input, shape index: {}]
  %s5 = inlined_call_operand.vmem [shape: f32[128,128], index: 5, kind: input, shape index: {}]
  %s6 = inlined_call_operand.vmem [shape: f32[1,128], index: 6, kind: input, shape index: {}]
  %s7 = inlined_call_operand.vmem [shape: f32[128,128], index: 7, kind: input, shape index: {}]
  %s8 = inlined_call_operand.vmem [shape: f32[1,128], index: 8, kind: input, shape index: {}]
  %s9 = inlined_call_operand.vmem [shape: f32[8,128], index: 9, kind: output, shape index: {}]
  %s10 = sld [smem:[#allocation0]]
  $region46: #{lenet_forward.3} parent=0
    _
  %s12 = ssub.s32 1, %s10
  %s13 = scalar_select 0, %s12, %s10
  // Predicated region
  $region2: #{lenet_forward.3} parent=0 // pred_check
    _
  $region3: #{lenet_forward.3} parent=0 // pred_check_branch
    %15 = sbr.rel (0) target = $region5
  $region4: #{lenet_forward.3} parent=0 // pred_region
    _
  $region5: #{lenet_forward.3} parent=0 // pred_fallthru
    _
  // Predicated region
  $region6: #{lenet_forward.3} parent=0 // pred_check
    _
  $region7: #{lenet_forward.3} parent=0 // pred_check_branch
    %17 = sbr.rel (0) target = $region9
  $region8: #{lenet_forward.3} parent=0 // pred_region
    _
  $region9: #{lenet_forward.3} parent=0 // pred_fallthru
    _
  // Predicated region
  $region10: #{lenet_forward.3} parent=0 // pred_check
    _
  $region11: #{lenet_forward.3} parent=0 // pred_check_branch
    %19 = sbr.rel (0) target = $region13
  $region12: #{lenet_forward.3} parent=0 // pred_region
    _
  $region13: #{lenet_forward.3} parent=0 // pred_fallthru
    _
  // Predicated region
  $region14: #{lenet_forward.3} parent=0 // pred_check
    _
  $region15: #{lenet_forward.3} parent=0 // pred_check_branch
    %21 = sbr.rel (0) target = $region17
  $region16: #{lenet_forward.3} parent=0 // pred_region
    _
  $region17: #{lenet_forward.3} parent=0 // pred_fallthru
    _
  // Predicated region
  $region18: #{lenet_forward.3} parent=0 // pred_check
    _
  $region19: #{lenet_forward.3} parent=0 // pred_check_branch
    %23 = sbr.rel (0) target = $region21
  $region20: #{lenet_forward.3} parent=0 // pred_region
    _
  $region21: #{lenet_forward.3} parent=0 // pred_fallthru
    _
  // Predicated region
  $region22: #{lenet_forward.3} parent=0 // pred_check
    _
  $region23: #{lenet_forward.3} parent=0 // pred_check_branch
    %25 = sbr.rel (0) target = $region25
  $region24: #{lenet_forward.3} parent=0 // pred_region
    _
  $region25: #{lenet_forward.3} parent=0 // pred_fallthru
    _
  // Predicated region
  $region26: #{lenet_forward.3} parent=0 // pred_check
    _
  $region27: #{lenet_forward.3} parent=0 // pred_check_branch
    %27 = sbr.rel (0) target = $region29
  $region28: #{lenet_forward.3} parent=0 // pred_region
    _
  $region29: #{lenet_forward.3} parent=0 // pred_fallthru
    _
  // Predicated region
  $region30: #{lenet_forward.3} parent=0 // pred_check
    _
  $region31: #{lenet_forward.3} parent=0 // pred_check_branch
    %29 = sbr.rel (0) target = $region33
  $region32: #{lenet_forward.3} parent=0 // pred_region
    _
  $region33: #{lenet_forward.3} parent=0 // pred_fallthru
    _
  // Predicated region
  $region34: #{lenet_forward.3} parent=0 // pred_check
    _
  $region35: #{lenet_forward.3} parent=0 // pred_check_branch
    %31 = sbr.rel (0) target = $region37
  $region36: #{lenet_forward.3} parent=0 // pred_region
    _
  $region37: #{lenet_forward.3} parent=0 // pred_fallthru
    _
  %v32 = vld [vmem:[%s1] sm:$0xff]
  %v33 = vld [vmem:[%s1 + $0x8] sm:$0xff]
  %v34 = vld [vmem:[%s1 + $0x10] sm:$0xff]
  %v35 = vld [vmem:[%s1 + $0x18] sm:$0xff]
  %v36 = vld [vmem:[%s1 + $0x20] sm:$0xff]
  %v37 = vld [vmem:[%s1 + $0x28] sm:$0xff]
  %v38 = vld [vmem:[%s1 + $0x30] sm:$0xff]
  %v39 = vld [vmem:[%s1 + $0x38] sm:$0xff]
  %v40 = vld [vmem:[%s1 + $0x40] sm:$0xff]
  %v41 = vld [vmem:[%s1 + $0x48] sm:$0xff]
  %v42 = vld [vmem:[%s1 + $0x50] sm:$0xff]
  %v43 = vld [vmem:[%s1 + $0x58] sm:$0xff]
  %v44 = vld [vmem:[%s1 + $0x60] sm:$0xff]
  %v45 = vld [vmem:[%s1 + $0x68] sm:$0xff]
  %v46 = vld [vmem:[%s1 + $0x70] sm:$0xff]
  %v47 = vld [vmem:[%s1 + $0x78] sm:$0xff]
  %v48 = vld [vmem:[%s1 + $0x80] sm:$0xff]
  %v49 = vld [vmem:[%s1 + $0x88] sm:$0xff]
  %v50 = vld [vmem:[%s1 + $0x90] sm:$0xff]
  %v51 = vld [vmem:[%s1 + $0x98] sm:$0xff]
  %v52 = vld [vmem:[%s1 + $0xa0] sm:$0xff]
  %v53 = vld [vmem:[%s1 + $0xa8] sm:$0xff]
  %v54 = vld [vmem:[%s1 + $0xb0] sm:$0xff]
  %v55 = vld [vmem:[%s1 + $0xb8] sm:$0xff]
  %v56 = vld [vmem:[%s1 + $0xc0] sm:$0xff]
  %v57 = vld [vmem:[%s1 + $0xc8] sm:$0xff]
  %v58 = vld [vmem:[%s1 + $0xd0] sm:$0xff]
  %v59 = vld [vmem:[%s1 + $0xd8] sm:$0xff]
  %v60 = vld [vmem:[%s1 + $0xe0] sm:$0xff]
  %v61 = vld [vmem:[%s1 + $0xe8] sm:$0xff]
  %v62 = vld [vmem:[%s1 + $0xf0] sm:$0xff]
  %v63 = vld [vmem:[%s1 + $0xf8] sm:$0xff]
  %v64 = vld [vmem:[%s0] sm:$0xff]
  %v65 = vld [vmem:[%s0 + $0x8] sm:$0xff]
  %v66 = vld [vmem:[%s0 + $0x10] sm:$0xff]
  %v67 = vld [vmem:[%s0 + $0x18] sm:$0xff]
  %v68 = vld [vmem:[%s0 + $0x20] sm:$0xff]
  %v69 = vld [vmem:[%s0 + $0x28] sm:$0xff]
  %v70 = vld [vmem:[%s0 + $0x30] sm:$0xff]
  %v71 = vld [vmem:[%s0 + $0x38] sm:$0xff]
  %v72 = vld [vmem:[%s0 + $0x40] sm:$0xff]
  %v73 = vld [vmem:[%s0 + $0x48] sm:$0xff]
  %v74 = vld [vmem:[%s0 + $0x50] sm:$0xff]
  %v75 = vld [vmem:[%s0 + $0x58] sm:$0xff]
  %v76 = vld [vmem:[%s0 + $0x60] sm:$0xff]
  %v77 = vld [vmem:[%s0 + $0x68] sm:$0xff]
  %v78 = vld [vmem:[%s0 + $0x70] sm:$0xff]
  %v79 = vld [vmem:[%s0 + $0x78] sm:$0xff]
  %v80 = vld [vmem:[%s0 + $0x80] sm:$0xff]
  %v81 = vld [vmem:[%s0 + $0x88] sm:$0xff]
  %v82 = vld [vmem:[%s0 + $0x90] sm:$0xff]
  %v83 = vld [vmem:[%s0 + $0x98] sm:$0xff]
  %v84 = vld [vmem:[%s0 + $0xa0] sm:$0xff]
  %v85 = vld [vmem:[%s0 + $0xa8] sm:$0xff]
  %v86 = vld [vmem:[%s0 + $0xb0] sm:$0xff]
  %v87 = vld [vmem:[%s0 + $0xb8] sm:$0xff]
  %v88 = vld [vmem:[%s0 + $0xc0] sm:$0xff]
  %v89 = vld [vmem:[%s0 + $0xc8] sm:$0xff]
  %v90 = vld [vmem:[%s0 + $0xd0] sm:$0xff]
  %v91 = vld [vmem:[%s0 + $0xd8] sm:$0xff]
  %v92 = vld [vmem:[%s0 + $0xe0] sm:$0xff]
  %v93 = vld [vmem:[%s0 + $0xe8] sm:$0xff]
  %v94 = vld [vmem:[%s0 + $0xf0] sm:$0xff]
  %v95 = vld [vmem:[%s0 + $0xf8] sm:$0xff]
  %v96 = vld [vmem:[%s0 + $0x100] sm:$0xff]
  %v97 = vld [vmem:[%s0 + $0x108] sm:$0xff]
  %v98 = vld [vmem:[%s0 + $0x110] sm:$0xff]
  %v99 = vld [vmem:[%s0 + $0x118] sm:$0xff]
  %v100 = vld [vmem:[%s0 + $0x120] sm:$0xff]
  %v101 = vld [vmem:[%s0 + $0x128] sm:$0xff]
  %v102 = vld [vmem:[%s0 + $0x130] sm:$0xff]
  %v103 = vld [vmem:[%s0 + $0x138] sm:$0xff]
  %v104 = vld [vmem:[%s0 + $0x140] sm:$0xff]
  %v105 = vld [vmem:[%s0 + $0x148] sm:$0xff]
  %v106 = vld [vmem:[%s0 + $0x150] sm:$0xff]
  %v107 = vld [vmem:[%s0 + $0x158] sm:$0xff]
  %v108 = vld [vmem:[%s0 + $0x160] sm:$0xff]
  %v109 = vld [vmem:[%s0 + $0x168] sm:$0xff]
  %v110 = vld [vmem:[%s0 + $0x170] sm:$0xff]
  %v111 = vld [vmem:[%s0 + $0x178] sm:$0xff]
  %v112 = vld [vmem:[%s0 + $0x180] sm:$0xff]
  %v113 = vld [vmem:[%s0 + $0x188] sm:$0xff]
  %114 = vmatprep.subr.mxu0 0.0
  %115 = vmatpush1.msra.mxu0 %v47
  %116 = vmatprep.subr.mxu0 0.0
  %117 = vmatpush1.msra.mxu0 %v46
  %118 = vmatprep.subr.mxu0 0.0
  %119 = vmatpush1.msra.mxu0 %v45
  %120 = vmatprep.subr.mxu0 0.0
  %121 = vmatpush1.msra.mxu0 %v44
  %122 = vmatprep.subr.mxu0 0.0
  %123 = vmatpush1.msra.mxu0 %v43
  %124 = vmatprep.subr.mxu0 0.0
  %125 = vmatpush1.msra.mxu0 %v42
  %126 = vmatprep.subr.mxu0 0.0
  %127 = vmatpush1.msra.mxu0 %v41
  %128 = vmatprep.subr.mxu0 0.0
  %129 = vmatpush1.msra.mxu0 %v40
  %130 = vmatprep.subr.mxu0 0.0
  %131 = vmatpush1.msra.mxu0 %v39
  %132 = vmatprep.subr.mxu0 0.0
  %133 = vmatpush1.msra.mxu0 %v38
  %134 = vmatprep.subr.mxu0 0.0
  %135 = vmatpush1.msra.mxu0 %v37
  %136 = vmatprep.subr.mxu0 0.0
  %137 = vmatpush1.msra.mxu0 %v36
  %138 = vmatprep.subr.mxu0 0.0
  %139 = vmatpush1.msra.mxu0 %v35
  %140 = vmatprep.subr.mxu0 0.0
  %141 = vmatpush1.msra.mxu0 %v34
  %142 = vmatprep.subr.mxu0 0.0
  %143 = vmatpush1.msra.mxu0 %v33
  %144 = vmatprep.subr.mxu0 0.0
  %145 = vmatpush1.msra.mxu0 %v32
  %146 = vmatprep.subr.mxu0 0.0
  %147 = vmatpush2.msra.mxu0 %v63
  %148 = vmatprep.subr.mxu0 0.0
  %149 = vmatpush2.msra.mxu0 %v62
  %150 = vmatprep.subr.mxu0 0.0
  %151 = vmatpush2.msra.mxu0 %v61
  %152 = vmatprep.subr.mxu0 0.0
  %153 = vmatpush2.msra.mxu0 %v60
  %154 = vmatprep.subr.mxu0 0.0
  %155 = vmatpush2.msra.mxu0 %v59
  %156 = vmatprep.subr.mxu0 0.0
  %157 = vmatpush2.msra.mxu0 %v58
  %158 = vmatprep.subr.mxu0 0.0
  %159 = vmatpush2.msra.mxu0 %v57
  %160 = vmatprep.subr.mxu0 0.0
  %161 = vmatpush2.msra.mxu0 %v56
  %162 = vmatprep.subr.mxu0 0.0
  %163 = vmatpush2.msra.mxu0 %v55
  %164 = vmatprep.subr.mxu0 0.0
  %165 = vmatpush2.msra.mxu0 %v54
  %166 = vmatprep.subr.mxu0 0.0
  %167 = vmatpush2.msra.mxu0 %v53
  %168 = vmatprep.subr.mxu0 0.0
  %169 = vmatpush2.msra.mxu0 %v52
  %170 = vmatprep.subr.mxu0 0.0
  %171 = vmatpush2.msra.mxu0 %v51
  %172 = vmatprep.subr.mxu0 0.0
  %173 = vmatpush2.msra.mxu0 %v50
  %174 = vmatprep.subr.mxu0 0.0
  %175 = vmatpush2.msra.mxu0 %v49
  %176 = vmatprep.subr.mxu0 0.0
  %177 = vmatpush2.msra.mxu0 %v48
  %178 = vmatprep.mubr.f32.mxu0 %v65
  %179 = vmatmul.mubr.f32.gmra.mxu0 %v64
  %v180 = vpop.f32.mrf.mxu0
  %v181 = vadd.f32 0.0, %v180
  %v182 = vpop.f32.mrf.mxu0
  %183 = vmatprep.mubr.f32.mxu0 %v67
  %184 = vmatmul.mubr.f32.gmra.mxu0 %v66
  %v185 = vpop.f32.mrf.mxu0
  %v186 = vadd.f32 0.0, %v185
  %v187 = vpop.f32.mrf.mxu0
  %188 = vmatprep.mubr.f32.mxu0 %v69
  %189 = vmatmul.mubr.f32.gmra.mxu0 %v68
  %v190 = vpop.f32.mrf.mxu0
  %v191 = vadd.f32 0.0, %v190
  %v192 = vpop.f32.mrf.mxu0
  %193 = vmatprep.mubr.f32.mxu0 %v71
  %194 = vmatmul.mubr.f32.gmra.mxu0 %v70
  %v195 = vpop.f32.mrf.mxu0
  %v196 = vadd.f32 0.0, %v195
  %v197 = vpop.f32.mrf.mxu0
  %198 = vmatprep.mubr.f32.mxu0 %v73
  %199 = vmatmul.mubr.f32.gmra.mxu0 %v72
  %v200 = vpop.f32.mrf.mxu0
  %v201 = vadd.f32 0.0, %v200
  %v202 = vpop.f32.mrf.mxu0
  %203 = vmatprep.mubr.f32.mxu0 %v75
  %204 = vmatmul.mubr.f32.gmra.mxu0 %v74
  %v205 = vpop.f32.mrf.mxu0
  %v206 = vadd.f32 0.0, %v205
  %v207 = vpop.f32.mrf.mxu0
  %208 = vmatprep.mubr.f32.mxu0 %v77
  %209 = vmatmul.mubr.f32.gmra.mxu0 %v76
  %v210 = vpop.f32.mrf.mxu0
  %v211 = vadd.f32 0.0, %v210
  %v212 = vpop.f32.mrf.mxu0
  %213 = vmatprep.mubr.f32.mxu0 %v79
  %214 = vmatmul.mubr.f32.gmra.mxu0 %v78
  %v215 = vpop.f32.mrf.mxu0
  %v216 = vadd.f32 0.0, %v215
  %v217 = vpop.f32.mrf.mxu0
  %218 = vmatprep.mubr.f32.mxu0 %v81
  %219 = vmatmul.mubr.f32.gmra.mxu0 %v80
  %v220 = vpop.f32.mrf.mxu0
  %v221 = vadd.f32 0.0, %v220
  %v222 = vpop.f32.mrf.mxu0
  %223 = vmatprep.mubr.f32.mxu0 %v83
  %224 = vmatmul.mubr.f32.gmra.mxu0 %v82
  %v225 = vpop.f32.mrf.mxu0
  %v226 = vadd.f32 0.0, %v225
  %v227 = vpop.f32.mrf.mxu0
  %228 = vmatprep.mubr.f32.mxu0 %v85
  %229 = vmatmul.mubr.f32.gmra.mxu0 %v84
  %v230 = vpop.f32.mrf.mxu0
  %v231 = vadd.f32 0.0, %v230
  %v232 = vpop.f32.mrf.mxu0
  %233 = vmatprep.mubr.f32.mxu0 %v87
  %234 = vmatmul.mubr.f32.gmra.mxu0 %v86
  %v235 = vpop.f32.mrf.mxu0
  %v236 = vadd.f32 0.0, %v235
  %v237 = vpop.f32.mrf.mxu0
  %238 = vmatprep.mubr.f32.mxu0 %v89
  %239 = vmatmul.mubr.f32.gmra.mxu0 %v88
  %v240 = vpop.f32.mrf.mxu0
  %v241 = vadd.f32 0.0, %v240
  %v242 = vpop.f32.mrf.mxu0
  %243 = vmatprep.mubr.f32.mxu0 %v91
  %244 = vmatmul.mubr.f32.gmra.mxu0 %v90
  %v245 = vpop.f32.mrf.mxu0
  %v246 = vadd.f32 0.0, %v245
  %v247 = vpop.f32.mrf.mxu0
  %248 = vmatprep.mubr.f32.mxu0 %v93
  %249 = vmatmul.mubr.f32.gmra.mxu0 %v92
  %v250 = vpop.f32.mrf.mxu0
  %v251 = vadd.f32 0.0, %v250
  %v252 = vpop.f32.mrf.mxu0
  %253 = vmatprep.mubr.f32.mxu0 %v95
  %254 = vmatmul.mubr.f32.gmra.mxu0 %v94
  %v255 = vpop.f32.mrf.mxu0
  %v256 = vadd.f32 0.0, %v255
  %v257 = vpop.f32.mrf.mxu0
  %258 = vmatprep.mubr.f32.mxu0 %v97
  %259 = vmatmul.mubr.f32.gmra.mxu0 %v96
  %v260 = vpop.f32.mrf.mxu0
  %v261 = vadd.f32 0.0, %v260
  %v262 = vpop.f32.mrf.mxu0
  %263 = vmatprep.mubr.f32.mxu0 %v99
  %264 = vmatmul.mubr.f32.gmra.mxu0 %v98
  %v265 = vpop.f32.mrf.mxu0
  %v266 = vadd.f32 0.0, %v265
  %v267 = vpop.f32.mrf.mxu0
  %268 = vmatprep.mubr.f32.mxu0 %v101
  %269 = vmatmul.mubr.f32.gmra.mxu0 %v100
  %v270 = vpop.f32.mrf.mxu0
  %v271 = vadd.f32 0.0, %v270
  %v272 = vpop.f32.mrf.mxu0
  %273 = vmatprep.mubr.f32.mxu0 %v103
  %274 = vmatmul.mubr.f32.gmra.mxu0 %v102
  %v275 = vpop.f32.mrf.mxu0
  %v276 = vadd.f32 0.0, %v275
  %v277 = vpop.f32.mrf.mxu0
  %278 = vmatprep.mubr.f32.mxu0 %v105
  %279 = vmatmul.mubr.f32.gmra.mxu0 %v104
  %v280 = vpop.f32.mrf.mxu0
  %v281 = vadd.f32 0.0, %v280
  %v282 = vpop.f32.mrf.mxu0
  %283 = vmatprep.mubr.f32.mxu0 %v107
  %284 = vmatmul.mubr.f32.gmra.mxu0 %v106
  %v285 = vpop.f32.mrf.mxu0
  %v286 = vadd.f32 0.0, %v285
  %v287 = vpop.f32.mrf.mxu0
  %288 = vmatprep.mubr.f32.mxu0 %v109
  %289 = vmatmul.mubr.f32.gmra.mxu0 %v108
  %v290 = vpop.f32.mrf.mxu0
  %v291 = vadd.f32 0.0, %v290
  %v292 = vpop.f32.mrf.mxu0
  %293 = vmatprep.mubr.f32.mxu0 %v111
  %294 = vmatmul.mubr.f32.gmra.mxu0 %v110
  %v295 = vpop.f32.mrf.mxu0
  %v296 = vadd.f32 0.0, %v295
  %v297 = vpop.f32.mrf.mxu0
  %298 = vmatprep.mubr.f32.mxu0 %v113
  %299 = vmatmul.mubr.f32.gmra.mxu0 %v112
  %v300 = vpop.f32.mrf.mxu0
  %v301 = vadd.f32 0.0, %v300
  %v302 = vpop.f32.mrf.mxu0
  %303 = vdwg.mxu0
  %s304 = scalar_lea.vmem %s0, 400
  %v305 = vld [vmem:[%s304] sm:$0xff]
  %v306 = vld [vmem:[%s304 + $0x8] sm:$0xff]
  %v307 = vld [vmem:[%s304 + $0x10] sm:$0xff]
  %v308 = vld [vmem:[%s304 + $0x18] sm:$0xff]
  %v309 = vld [vmem:[%s304 + $0x20] sm:$0xff]
  %v310 = vld [vmem:[%s304 + $0x28] sm:$0xff]
  %v311 = vld [vmem:[%s304 + $0x30] sm:$0xff]
  %v312 = vld [vmem:[%s304 + $0x38] sm:$0xff]
  %v313 = vld [vmem:[%s304 + $0x40] sm:$0xff]
  %v314 = vld [vmem:[%s304 + $0x48] sm:$0xff]
  %v315 = vld [vmem:[%s304 + $0x50] sm:$0xff]
  %v316 = vld [vmem:[%s304 + $0x58] sm:$0xff]
  %v317 = vld [vmem:[%s304 + $0x60] sm:$0xff]
  %v318 = vld [vmem:[%s304 + $0x68] sm:$0xff]
  %v319 = vld [vmem:[%s304 + $0x70] sm:$0xff]
  %v320 = vld [vmem:[%s304 + $0x78] sm:$0xff]
  %v321 = vld [vmem:[%s304 + $0x80] sm:$0xff]
  %v322 = vld [vmem:[%s304 + $0x88] sm:$0xff]
  %v323 = vld [vmem:[%s304 + $0x90] sm:$0xff]
  %v324 = vld [vmem:[%s304 + $0x98] sm:$0xff]
  %v325 = vld [vmem:[%s304 + $0xa0] sm:$0xff]
  %v326 = vld [vmem:[%s304 + $0xa8] sm:$0xff]
  %v327 = vld [vmem:[%s304 + $0xb0] sm:$0xff]
  %v328 = vld [vmem:[%s304 + $0xb8] sm:$0xff]
  %v329 = vld [vmem:[%s304 + $0xc0] sm:$0xff]
  %v330 = vld [vmem:[%s304 + $0xc8] sm:$0xff]
  %v331 = vld [vmem:[%s304 + $0xd0] sm:$0xff]
  %v332 = vld [vmem:[%s304 + $0xd8] sm:$0xff]
  %v333 = vld [vmem:[%s304 + $0xe0] sm:$0xff]
  %v334 = vld [vmem:[%s304 + $0xe8] sm:$0xff]
  %v335 = vld [vmem:[%s304 + $0xf0] sm:$0xff]
  %v336 = vld [vmem:[%s304 + $0xf8] sm:$0xff]
  %v337 = vld [vmem:[%s304 + $0x100] sm:$0xff]
  %v338 = vld [vmem:[%s304 + $0x108] sm:$0xff]
  %v339 = vld [vmem:[%s304 + $0x110] sm:$0xff]
  %v340 = vld [vmem:[%s304 + $0x118] sm:$0xff]
  %v341 = vld [vmem:[%s304 + $0x120] sm:$0xff]
  %v342 = vld [vmem:[%s304 + $0x128] sm:$0xff]
  %v343 = vld [vmem:[%s304 + $0x130] sm:$0xff]
  %v344 = vld [vmem:[%s304 + $0x138] sm:$0xff]
  %v345 = vld [vmem:[%s304 + $0x140] sm:$0xff]
  %v346 = vld [vmem:[%s304 + $0x148] sm:$0xff]
  %v347 = vld [vmem:[%s304 + $0x150] sm:$0xff]
  %v348 = vld [vmem:[%s304 + $0x158] sm:$0xff]
  %v349 = vld [vmem:[%s304 + $0x160] sm:$0xff]
  %v350 = vld [vmem:[%s304 + $0x168] sm:$0xff]
  %v351 = vld [vmem:[%s304 + $0x170] sm:$0xff]
  %v352 = vld [vmem:[%s304 + $0x178] sm:$0xff]
  %v353 = vld [vmem:[%s304 + $0x180] sm:$0xff]
  %v354 = vld [vmem:[%s304 + $0x188] sm:$0xff]
  %355 = vmatprep.subr.mxu0 0.0
  %356 = vmatpush1.msra.mxu0 %v47
  %357 = vmatprep.subr.mxu0 0.0
  %358 = vmatpush1.msra.mxu0 %v46
  %359 = vmatprep.subr.mxu0 0.0
  %360 = vmatpush1.msra.mxu0 %v45
  %361 = vmatprep.subr.mxu0 0.0
  %362 = vmatpush1.msra.mxu0 %v44
  %363 = vmatprep.subr.mxu0 0.0
  %364 = vmatpush1.msra.mxu0 %v43
  %365 = vmatprep.subr.mxu0 0.0
  %366 = vmatpush1.msra.mxu0 %v42
  %367 = vmatprep.subr.mxu0 0.0
  %368 = vmatpush1.msra.mxu0 %v41
  %369 = vmatprep.subr.mxu0 0.0
  %370 = vmatpush1.msra.mxu0 %v40
  %371 = vmatprep.subr.mxu0 0.0
  %372 = vmatpush1.msra.mxu0 %v39
  %373 = vmatprep.subr.mxu0 0.0
  %374 = vmatpush1.msra.mxu0 %v38
  %375 = vmatprep.subr.mxu0 0.0
  %376 = vmatpush1.msra.mxu0 %v37
  %377 = vmatprep.subr.mxu0 0.0
  %378 = vmatpush1.msra.mxu0 %v36
  %379 = vmatprep.subr.mxu0 0.0
  %380 = vmatpush1.msra.mxu0 %v35
  %381 = vmatprep.subr.mxu0 0.0
  %382 = vmatpush1.msra.mxu0 %v34
  %383 = vmatprep.subr.mxu0 0.0
  %384 = vmatpush1.msra.mxu0 %v33
  %385 = vmatprep.subr.mxu0 0.0
  %386 = vmatpush1.msra.mxu0 %v32
  %387 = vmatprep.subr.mxu0 0.0
  %388 = vmatpush2.msra.mxu0 %v63
  %389 = vmatprep.subr.mxu0 0.0
  %390 = vmatpush2.msra.mxu0 %v62
  %391 = vmatprep.subr.mxu0 0.0
  %392 = vmatpush2.msra.mxu0 %v61
  %393 = vmatprep.subr.mxu0 0.0
  %394 = vmatpush2.msra.mxu0 %v60
  %395 = vmatprep.subr.mxu0 0.0
  %396 = vmatpush2.msra.mxu0 %v59
  %397 = vmatprep.subr.mxu0 0.0
  %398 = vmatpush2.msra.mxu0 %v58
  %399 = vmatprep.subr.mxu0 0.0
  %400 = vmatpush2.msra.mxu0 %v57
  %401 = vmatprep.subr.mxu0 0.0
  %402 = vmatpush2.msra.mxu0 %v56
  %403 = vmatprep.subr.mxu0 0.0
  %404 = vmatpush2.msra.mxu0 %v55
  %405 = vmatprep.subr.mxu0 0.0
  %406 = vmatpush2.msra.mxu0 %v54
  %407 = vmatprep.subr.mxu0 0.0
  %408 = vmatpush2.msra.mxu0 %v53
  %409 = vmatprep.subr.mxu0 0.0
  %410 = vmatpush2.msra.mxu0 %v52
  %411 = vmatprep.subr.mxu0 0.0
  %412 = vmatpush2.msra.mxu0 %v51
  %413 = vmatprep.subr.mxu0 0.0
  %414 = vmatpush2.msra.mxu0 %v50
  %415 = vmatprep.subr.mxu0 0.0
  %416 = vmatpush2.msra.mxu0 %v49
  %417 = vmatprep.subr.mxu0 0.0
  %418 = vmatpush2.msra.mxu0 %v48
  %419 = vmatprep.mubr.f32.mxu0 %v306
  %420 = vmatmul.mubr.f32.gmra.mxu0 %v305
  %v421 = vpop.f32.mrf.mxu0
  %v422 = vadd.f32 0.0, %v421
  %v423 = vpop.f32.mrf.mxu0
  %424 = vmatprep.mubr.f32.mxu0 %v308
  %425 = vmatmul.mubr.f32.gmra.mxu0 %v307
  %v426 = vpop.f32.mrf.mxu0
  %v427 = vadd.f32 0.0, %v426
  %v428 = vpop.f32.mrf.mxu0
  %429 = vmatprep.mubr.f32.mxu0 %v310
  %430 = vmatmul.mubr.f32.gmra.mxu0 %v309
  %v431 = vpop.f32.mrf.mxu0
  %v432 = vadd.f32 0.0, %v431
  %v433 = vpop.f32.mrf.mxu0
  %434 = vmatprep.mubr.f32.mxu0 %v312
  %435 = vmatmul.mubr.f32.gmra.mxu0 %v311
  %v436 = vpop.f32.mrf.mxu0
  %v437 = vadd.f32 0.0, %v436
  %v438 = vpop.f32.mrf.mxu0
  %439 = vmatprep.mubr.f32.mxu0 %v314
  %440 = vmatmul.mubr.f32.gmra.mxu0 %v313
  %v441 = vpop.f32.mrf.mxu0
  %v442 = vadd.f32 0.0, %v441
  %v443 = vpop.f32.mrf.mxu0
  %444 = vmatprep.mubr.f32.mxu0 %v316
  %445 = vmatmul.mubr.f32.gmra.mxu0 %v315
  %v446 = vpop.f32.mrf.mxu0
  %v447 = vadd.f32 0.0, %v446
  %v448 = vpop.f32.mrf.mxu0
  %449 = vmatprep.mubr.f32.mxu0 %v318
  %450 = vmatmul.mubr.f32.gmra.mxu0 %v317
  %v451 = vpop.f32.mrf.mxu0
  %v452 = vadd.f32 0.0, %v451
  %v453 = vpop.f32.mrf.mxu0
  %454 = vmatprep.mubr.f32.mxu0 %v320
  %455 = vmatmul.mubr.f32.gmra.mxu0 %v319
  %v456 = vpop.f32.mrf.mxu0
  %v457 = vadd.f32 0.0, %v456
  %v458 = vpop.f32.mrf.mxu0
  %459 = vmatprep.mubr.f32.mxu0 %v322
  %460 = vmatmul.mubr.f32.gmra.mxu0 %v321
  %v461 = vpop.f32.mrf.mxu0
  %v462 = vadd.f32 0.0, %v461
  %v463 = vpop.f32.mrf.mxu0
  %464 = vmatprep.mubr.f32.mxu0 %v324
  %465 = vmatmul.mubr.f32.gmra.mxu0 %v323
  %v466 = vpop.f32.mrf.mxu0
  %v467 = vadd.f32 0.0, %v466
  %v468 = vpop.f32.mrf.mxu0
  %469 = vmatprep.mubr.f32.mxu0 %v326
  %470 = vmatmul.mubr.f32.gmra.mxu0 %v325
  %v471 = vpop.f32.mrf.mxu0
  %v472 = vadd.f32 0.0, %v471
  %v473 = vpop.f32.mrf.mxu0
  %474 = vmatprep.mubr.f32.mxu0 %v328
  %475 = vmatmul.mubr.f32.gmra.mxu0 %v327
  %v476 = vpop.f32.mrf.mxu0
  %v477 = vadd.f32 0.0, %v476
  %v478 = vpop.f32.mrf.mxu0
  %479 = vmatprep.mubr.f32.mxu0 %v330
  %480 = vmatmul.mubr.f32.gmra.mxu0 %v329
  %v481 = vpop.f32.mrf.mxu0
  %v482 = vadd.f32 0.0, %v481
  %v483 = vpop.f32.mrf.mxu0
  %484 = vmatprep.mubr.f32.mxu0 %v332
  %485 = vmatmul.mubr.f32.gmra.mxu0 %v331
  %v486 = vpop.f32.mrf.mxu0
  %v487 = vadd.f32 0.0, %v486
  %v488 = vpop.f32.mrf.mxu0
  %489 = vmatprep.mubr.f32.mxu0 %v334
  %490 = vmatmul.mubr.f32.gmra.mxu0 %v333
  %v491 = vpop.f32.mrf.mxu0
  %v492 = vadd.f32 0.0, %v491
  %v493 = vpop.f32.mrf.mxu0
  %494 = vmatprep.mubr.f32.mxu0 %v336
  %495 = vmatmul.mubr.f32.gmra.mxu0 %v335
  %v496 = vpop.f32.mrf.mxu0
  %v497 = vadd.f32 0.0, %v496
  %v498 = vpop.f32.mrf.mxu0
  %499 = vmatprep.mubr.f32.mxu0 %v338
  %500 = vmatmul.mubr.f32.gmra.mxu0 %v337
  %v501 = vpop.f32.mrf.mxu0
  %v502 = vadd.f32 0.0, %v501
  %v503 = vpop.f32.mrf.mxu0
  %504 = vmatprep.mubr.f32.mxu0 %v340
  %505 = vmatmul.mubr.f32.gmra.mxu0 %v339
  %v506 = vpop.f32.mrf.mxu0
  %v507 = vadd.f32 0.0, %v506
  %v508 = vpop.f32.mrf.mxu0
  %509 = vmatprep.mubr.f32.mxu0 %v342
  %510 = vmatmul.mubr.f32.gmra.mxu0 %v341
  %v511 = vpop.f32.mrf.mxu0
  %v512 = vadd.f32 0.0, %v511
  %v513 = vpop.f32.mrf.mxu0
  %514 = vmatprep.mubr.f32.mxu0 %v344
  %515 = vmatmul.mubr.f32.gmra.mxu0 %v343
  %v516 = vpop.f32.mrf.mxu0
  %v517 = vadd.f32 0.0, %v516
  %v518 = vpop.f32.mrf.mxu0
  %519 = vmatprep.mubr.f32.mxu0 %v346
  %520 = vmatmul.mubr.f32.gmra.mxu0 %v345
  %v521 = vpop.f32.mrf.mxu0
  %v522 = vadd.f32 0.0, %v521
  %v523 = vpop.f32.mrf.mxu0
  %524 = vmatprep.mubr.f32.mxu0 %v348
  %525 = vmatmul.mubr.f32.gmra.mxu0 %v347
  %v526 = vpop.f32.mrf.mxu0
  %v527 = vadd.f32 0.0, %v526
  %v528 = vpop.f32.mrf.mxu0
  %529 = vmatprep.mubr.f32.mxu0 %v350
  %530 = vmatmul.mubr.f32.gmra.mxu0 %v349
  %v531 = vpop.f32.mrf.mxu0
  %v532 = vadd.f32 0.0, %v531
  %v533 = vpop.f32.mrf.mxu0
  %534 = vmatprep.mubr.f32.mxu0 %v352
  %535 = vmatmul.mubr.f32.gmra.mxu0 %v351
  %v536 = vpop.f32.mrf.mxu0
  %v537 = vadd.f32 0.0, %v536
  %v538 = vpop.f32.mrf.mxu0
  %539 = vmatprep.mubr.f32.mxu0 %v354
  %540 = vmatmul.mubr.f32.gmra.mxu0 %v353
  %v541 = vpop.f32.mrf.mxu0
  %v542 = vadd.f32 0.0, %v541
  %v543 = vpop.f32.mrf.mxu0
  %544 = vdwg.mxu0
  %v545 = vmax.f32 %v181, %v422
  %v546 = vmax.f32 %v186, %v427
  %v547 = vmax.f32 %v191, %v432
  %v548 = vmax.f32 %v196, %v437
  %v549 = vmax.f32 %v201, %v442
  %v550 = vmax.f32 %v206, %v447
  %v551 = vmax.f32 %v211, %v452
  %v552 = vmax.f32 %v216, %v457
  %v553 = vmax.f32 %v221, %v462
  %v554 = vmax.f32 %v226, %v467
  %v555 = vmax.f32 %v231, %v472
  %v556 = vmax.f32 %v236, %v477
  %v557 = vmax.f32 %v241, %v482
  %v558 = vmax.f32 %v246, %v487
  %v559 = vmax.f32 %v251, %v492
  %v560 = vmax.f32 %v256, %v497
  %v561 = vmax.f32 %v261, %v502
  %v562 = vmax.f32 %v266, %v507
  %v563 = vmax.f32 %v271, %v512
  %v564 = vmax.f32 %v276, %v517
  %v565 = vmax.f32 %v281, %v522
  %v566 = vmax.f32 %v286, %v527
  %v567 = vmax.f32 %v291, %v532
  %v568 = vmax.f32 %v296, %v537
  %v569 = vmax.f32 %v301, %v542
  %s570 = scalar_lea.vmem %s0, 800
  %v571 = vld [vmem:[%s570] sm:$0xff]
  %v572 = vld [vmem:[%s570 + $0x8] sm:$0xff]
  %v573 = vld [vmem:[%s570 + $0x10] sm:$0xff]
  %v574 = vld [vmem:[%s570 + $0x18] sm:$0xff]
  %v575 = vld [vmem:[%s570 + $0x20] sm:$0xff]
  %v576 = vld [vmem:[%s570 + $0x28] sm:$0xff]
  %v577 = vld [vmem:[%s570 + $0x30] sm:$0xff]
  %v578 = vld [vmem:[%s570 + $0x38] sm:$0xff]
  %v579 = vld [vmem:[%s570 + $0x40] sm:$0xff]
  %v580 = vld [vmem:[%s570 + $0x48] sm:$0xff]
  %v581 = vld [vmem:[%s570 + $0x50] sm:$0xff]
  %v582 = vld [vmem:[%s570 + $0x58] sm:$0xff]
  %v583 = vld [vmem:[%s570 + $0x60] sm:$0xff]
  %v584 = vld [vmem:[%s570 + $0x68] sm:$0xff]
  %v585 = vld [vmem:[%s570 + $0x70] sm:$0xff]
  %v586 = vld [vmem:[%s570 + $0x78] sm:$0xff]
  %v587 = vld [vmem:[%s570 + $0x80] sm:$0xff]
  %v588 = vld [vmem:[%s570 + $0x88] sm:$0xff]
  %v589 = vld [vmem:[%s570 + $0x90] sm:$0xff]
  %v590 = vld [vmem:[%s570 + $0x98] sm:$0xff]
  %v591 = vld [vmem:[%s570 + $0xa0] sm:$0xff]
  %v592 = vld [vmem:[%s570 + $0xa8] sm:$0xff]
  %v593 = vld [vmem:[%s570 + $0xb0] sm:$0xff]
  %v594 = vld [vmem:[%s570 + $0xb8] sm:$0xff]
  %v595 = vld [vmem:[%s570 + $0xc0] sm:$0xff]
  %v596 = vld [vmem:[%s570 + $0xc8] sm:$0xff]
  %v597 = vld [vmem:[%s570 + $0xd0] sm:$0xff]
  %v598 = vld [vmem:[%s570 + $0xd8] sm:$0xff]
  %v599 = vld [vmem:[%s570 + $0xe0] sm:$0xff]
  %v600 = vld [vmem:[%s570 + $0xe8] sm:$0xff]
  %v601 = vld [vmem:[%s570 + $0xf0] sm:$0xff]
  %v602 = vld [vmem:[%s570 + $0xf8] sm:$0xff]
  %v603 = vld [vmem:[%s570 + $0x100] sm:$0xff]
  %v604 = vld [vmem:[%s570 + $0x108] sm:$0xff]
  %v605 = vld [vmem:[%s570 + $0x110] sm:$0xff]
  %v606 = vld [vmem:[%s570 + $0x118] sm:$0xff]
  %v607 = vld [vmem:[%s570 + $0x120] sm:$0xff]
  %v608 = vld [vmem:[%s570 + $0x128] sm:$0xff]
  %v609 = vld [vmem:[%s570 + $0x130] sm:$0xff]
  %v610 = vld [vmem:[%s570 + $0x138] sm:$0xff]
  %v611 = vld [vmem:[%s570 + $0x140] sm:$0xff]
  %v612 = vld [vmem:[%s570 + $0x148] sm:$0xff]
  %v613 = vld [vmem:[%s570 + $0x150] sm:$0xff]
  %v614 = vld [vmem:[%s570 + $0x158] sm:$0xff]
  %v615 = vld [vmem:[%s570 + $0x160] sm:$0xff]
  %v616 = vld [vmem:[%s570 + $0x168] sm:$0xff]
  %v617 = vld [vmem:[%s570 + $0x170] sm:$0xff]
  %v618 = vld [vmem:[%s570 + $0x178] sm:$0xff]
  %v619 = vld [vmem:[%s570 + $0x180] sm:$0xff]
  %v620 = vld [vmem:[%s570 + $0x188] sm:$0xff]
  %621 = vmatprep.subr.mxu0 0.0
  %622 = vmatpush1.msra.mxu0 %v47
  %623 = vmatprep.subr.mxu0 0.0
  %624 = vmatpush1.msra.mxu0 %v46
  %625 = vmatprep.subr.mxu0 0.0
  %626 = vmatpush1.msra.mxu0 %v45
  %627 = vmatprep.subr.mxu0 0.0
  %628 = vmatpush1.msra.mxu0 %v44
  %629 = vmatprep.subr.mxu0 0.0
  %630 = vmatpush1.msra.mxu0 %v43
  %631 = vmatprep.subr.mxu0 0.0
  %632 = vmatpush1.msra.mxu0 %v42
  %633 = vmatprep.subr.mxu0 0.0
  %634 = vmatpush1.msra.mxu0 %v41
  %635 = vmatprep.subr.mxu0 0.0
  %636 = vmatpush1.msra.mxu0 %v40
  %637 = vmatprep.subr.mxu0 0.0
  %638 = vmatpush1.msra.mxu0 %v39
  %639 = vmatprep.subr.mxu0 0.0
  %640 = vmatpush1.msra.mxu0 %v38
  %641 = vmatprep.subr.mxu0 0.0
  %642 = vmatpush1.msra.mxu0 %v37
  %643 = vmatprep.subr.mxu0 0.0
  %644 = vmatpush1.msra.mxu0 %v36
  %645 = vmatprep.subr.mxu0 0.0
  %646 = vmatpush1.msra.mxu0 %v35
  %647 = vmatprep.subr.mxu0 0.0
  %648 = vmatpush1.msra.mxu0 %v34
  %649 = vmatprep.subr.mxu0 0.0
  %650 = vmatpush1.msra.mxu0 %v33
  %651 = vmatprep.subr.mxu0 0.0
  %652 = vmatpush1.msra.mxu0 %v32
  %653 = vmatprep.subr.mxu0 0.0
  %654 = vmatpush2.msra.mxu0 %v63
  %655 = vmatprep.subr.mxu0 0.0
  %656 = vmatpush2.msra.mxu0 %v62
  %657 = vmatprep.subr.mxu0 0.0
  %658 = vmatpush2.msra.mxu0 %v61
  %659 = vmatprep.subr.mxu0 0.0
  %660 = vmatpush2.msra.mxu0 %v60
  %661 = vmatprep.subr.mxu0 0.0
  %662 = vmatpush2.msra.mxu0 %v59
  %663 = vmatprep.subr.mxu0 0.0
  %664 = vmatpush2.msra.mxu0 %v58
  %665 = vmatprep.subr.mxu0 0.0
  %666 = vmatpush2.msra.mxu0 %v57
  %667 = vmatprep.subr.mxu0 0.0
  %668 = vmatpush2.msra.mxu0 %v56
  %669 = vmatprep.subr.mxu0 0.0
  %670 = vmatpush2.msra.mxu0 %v55
  %671 = vmatprep.subr.mxu0 0.0
  %672 = vmatpush2.msra.mxu0 %v54
  %673 = vmatprep.subr.mxu0 0.0
  %674 = vmatpush2.msra.mxu0 %v53
  %675 = vmatprep.subr.mxu0 0.0
  %676 = vmatpush2.msra.mxu0 %v52
  %677 = vmatprep.subr.mxu0 0.0
  %678 = vmatpush2.msra.mxu0 %v51
  %679 = vmatprep.subr.mxu0 0.0
  %680 = vmatpush2.msra.mxu0 %v50
  %681 = vmatprep.subr.mxu0 0.0
  %682 = vmatpush2.msra.mxu0 %v49
  %683 = vmatprep.subr.mxu0 0.0
  %684 = vmatpush2.msra.mxu0 %v48
  %685 = vmatprep.mubr.f32.mxu0 %v572
  %686 = vmatmul.mubr.f32.gmra.mxu0 %v571
  %v687 = vpop.f32.mrf.mxu0
  %v688 = vadd.f32 0.0, %v687
  %v689 = vpop.f32.mrf.mxu0
  %690 = vmatprep.mubr.f32.mxu0 %v574
  %691 = vmatmul.mubr.f32.gmra.mxu0 %v573
  %v692 = vpop.f32.mrf.mxu0
  %v693 = vadd.f32 0.0, %v692
  %v694 = vpop.f32.mrf.mxu0
  %695 = vmatprep.mubr.f32.mxu0 %v576
  %696 = vmatmul.mubr.f32.gmra.mxu0 %v575
  %v697 = vpop.f32.mrf.mxu0
  %v698 = vadd.f32 0.0, %v697
  %v699 = vpop.f32.mrf.mxu0
  %700 = vmatprep.mubr.f32.mxu0 %v578
  %701 = vmatmul.mubr.f32.gmra.mxu0 %v577
  %v702 = vpop.f32.mrf.mxu0
  %v703 = vadd.f32 0.0, %v702
  %v704 = vpop.f32.mrf.mxu0
  %705 = vmatprep.mubr.f32.mxu0 %v580
  %706 = vmatmul.mubr.f32.gmra.mxu0 %v579
  %v707 = vpop.f32.mrf.mxu0
  %v708 = vadd.f32 0.0, %v707
  %v709 = vpop.f32.mrf.mxu0
  %710 = vmatprep.mubr.f32.mxu0 %v582
  %711 = vmatmul.mubr.f32.gmra.mxu0 %v581
  %v712 = vpop.f32.mrf.mxu0
  %v713 = vadd.f32 0.0, %v712
  %v714 = vpop.f32.mrf.mxu0
  %715 = vmatprep.mubr.f32.mxu0 %v584
  %716 = vmatmul.mubr.f32.gmra.mxu0 %v583
  %v717 = vpop.f32.mrf.mxu0
  %v718 = vadd.f32 0.0, %v717
  %v719 = vpop.f32.mrf.mxu0
  %720 = vmatprep.mubr.f32.mxu0 %v586
  %721 = vmatmul.mubr.f32.gmra.mxu0 %v585
  %v722 = vpop.f32.mrf.mxu0
  %v723 = vadd.f32 0.0, %v722
  %v724 = vpop.f32.mrf.mxu0
  %725 = vmatprep.mubr.f32.mxu0 %v588
  %726 = vmatmul.mubr.f32.gmra.mxu0 %v587
  %v727 = vpop.f32.mrf.mxu0
  %v728 = vadd.f32 0.0, %v727
  %v729 = vpop.f32.mrf.mxu0
  %730 = vmatprep.mubr.f32.mxu0 %v590
  %731 = vmatmul.mubr.f32.gmra.mxu0 %v589
  %v732 = vpop.f32.mrf.mxu0
  %v733 = vadd.f32 0.0, %v732
  %v734 = vpop.f32.mrf.mxu0
  %735 = vmatprep.mubr.f32.mxu0 %v592
  %736 = vmatmul.mubr.f32.gmra.mxu0 %v591
  %v737 = vpop.f32.mrf.mxu0
  %v738 = vadd.f32 0.0, %v737
  %v739 = vpop.f32.mrf.mxu0
  %740 = vmatprep.mubr.f32.mxu0 %v594
  %741 = vmatmul.mubr.f32.gmra.mxu0 %v593
  %v742 = vpop.f32.mrf.mxu0
  %v743 = vadd.f32 0.0, %v742
  %v744 = vpop.f32.mrf.mxu0
  %745 = vmatprep.mubr.f32.mxu0 %v596
  %746 = vmatmul.mubr.f32.gmra.mxu0 %v595
  %v747 = vpop.f32.mrf.mxu0
  %v748 = vadd.f32 0.0, %v747
  %v749 = vpop.f32.mrf.mxu0
  %750 = vmatprep.mubr.f32.mxu0 %v598
  %751 = vmatmul.mubr.f32.gmra.mxu0 %v597
  %v752 = vpop.f32.mrf.mxu0
  %v753 = vadd.f32 0.0, %v752
  %v754 = vpop.f32.mrf.mxu0
  %755 = vmatprep.mubr.f32.mxu0 %v600
  %756 = vmatmul.mubr.f32.gmra.mxu0 %v599
  %v757 = vpop.f32.mrf.mxu0
  %v758 = vadd.f32 0.0, %v757
  %v759 = vpop.f32.mrf.mxu0
  %760 = vmatprep.mubr.f32.mxu0 %v602
  %761 = vmatmul.mubr.f32.gmra.mxu0 %v601
  %v762 = vpop.f32.mrf.mxu0
  %v763 = vadd.f32 0.0, %v762
  %v764 = vpop.f32.mrf.mxu0
  %765 = vmatprep.mubr.f32.mxu0 %v604
  %766 = vmatmul.mubr.f32.gmra.mxu0 %v603
  %v767 = vpop.f32.mrf.mxu0
  %v768 = vadd.f32 0.0, %v767
  %v769 = vpop.f32.mrf.mxu0
  %770 = vmatprep.mubr.f32.mxu0 %v606
  %771 = vmatmul.mubr.f32.gmra.mxu0 %v605
  %v772 = vpop.f32.mrf.mxu0
  %v773 = vadd.f32 0.0, %v772
  %v774 = vpop.f32.mrf.mxu0
  %775 = vmatprep.mubr.f32.mxu0 %v608
  %776 = vmatmul.mubr.f32.gmra.mxu0 %v607
  %v777 = vpop.f32.mrf.mxu0
  %v778 = vadd.f32 0.0, %v777
  %v779 = vpop.f32.mrf.mxu0
  %780 = vmatprep.mubr.f32.mxu0 %v610
  %781 = vmatmul.mubr.f32.gmra.mxu0 %v609
  %v782 = vpop.f32.mrf.mxu0
  %v783 = vadd.f32 0.0, %v782
  %v784 = vpop.f32.mrf.mxu0
  %785 = vmatprep.mubr.f32.mxu0 %v612
  %786 = vmatmul.mubr.f32.gmra.mxu0 %v611
  %v787 = vpop.f32.mrf.mxu0
  %v788 = vadd.f32 0.0, %v787
  %v789 = vpop.f32.mrf.mxu0
  %790 = vmatprep.mubr.f32.mxu0 %v614
  %791 = vmatmul.mubr.f32.gmra.mxu0 %v613
  %v792 = vpop.f32.mrf.mxu0
  %v793 = vadd.f32 0.0, %v792
  %v794 = vpop.f32.mrf.mxu0
  %795 = vmatprep.mubr.f32.mxu0 %v616
  %796 = vmatmul.mubr.f32.gmra.mxu0 %v615
  %v797 = vpop.f32.mrf.mxu0
  %v798 = vadd.f32 0.0, %v797
  %v799 = vpop.f32.mrf.mxu0
  %800 = vmatprep.mubr.f32.mxu0 %v618
  %801 = vmatmul.mubr.f32.gmra.mxu0 %v617
  %v802 = vpop.f32.mrf.mxu0
  %v803 = vadd.f32 0.0, %v802
  %v804 = vpop.f32.mrf.mxu0
  %805 = vmatprep.mubr.f32.mxu0 %v620
  %806 = vmatmul.mubr.f32.gmra.mxu0 %v619
  %v807 = vpop.f32.mrf.mxu0
  %v808 = vadd.f32 0.0, %v807
  %v809 = vpop.f32.mrf.mxu0
  %810 = vdwg.mxu0
  %v811 = vmax.f32 %v545, %v688
  %v812 = vmax.f32 %v546, %v693
  %v813 = vmax.f32 %v547, %v698
  %v814 = vmax.f32 %v548, %v703
  %v815 = vmax.f32 %v549, %v708
  %v816 = vmax.f32 %v550, %v713
  %v817 = vmax.f32 %v551, %v718
  %v818 = vmax.f32 %v552, %v723
  %v819 = vmax.f32 %v553, %v728
  %v820 = vmax.f32 %v554, %v733
  %v821 = vmax.f32 %v555, %v738
  %v822 = vmax.f32 %v556, %v743
  %v823 = vmax.f32 %v557, %v748
  %v824 = vmax.f32 %v558, %v753
  %v825 = vmax.f32 %v559, %v758
  %v826 = vmax.f32 %v560, %v763
  %v827 = vmax.f32 %v561, %v768
  %v828 = vmax.f32 %v562, %v773
  %v829 = vmax.f32 %v563, %v778
  %v830 = vmax.f32 %v564, %v783
  %v831 = vmax.f32 %v565, %v788
  %v832 = vmax.f32 %v566, %v793
  %v833 = vmax.f32 %v567, %v798
  %v834 = vmax.f32 %v568, %v803
  %v835 = vmax.f32 %v569, %v808
  %s836 = scalar_lea.vmem %s0, 1200
  %v837 = vld [vmem:[%s836] sm:$0xff]
  %v838 = vld [vmem:[%s836 + $0x8] sm:$0xff]
  %v839 = vld [vmem:[%s836 + $0x10] sm:$0xff]
  %v840 = vld [vmem:[%s836 + $0x18] sm:$0xff]
  %v841 = vld [vmem:[%s836 + $0x20] sm:$0xff]
  %v842 = vld [vmem:[%s836 + $0x28] sm:$0xff]
  %v843 = vld [vmem:[%s836 + $0x30] sm:$0xff]
  %v844 = vld [vmem:[%s836 + $0x38] sm:$0xff]
  %v845 = vld [vmem:[%s836 + $0x40] sm:$0xff]
  %v846 = vld [vmem:[%s836 + $0x48] sm:$0xff]
  %v847 = vld [vmem:[%s836 + $0x50] sm:$0xff]
  %v848 = vld [vmem:[%s836 + $0x58] sm:$0xff]
  %v849 = vld [vmem:[%s836 + $0x60] sm:$0xff]
  %v850 = vld [vmem:[%s836 + $0x68] sm:$0xff]
  %v851 = vld [vmem:[%s836 + $0x70] sm:$0xff]
  %v852 = vld [vmem:[%s836 + $0x78] sm:$0xff]
  %v853 = vld [vmem:[%s836 + $0x80] sm:$0xff]
  %v854 = vld [vmem:[%s836 + $0x88] sm:$0xff]
  %v855 = vld [vmem:[%s836 + $0x90] sm:$0xff]
  %v856 = vld [vmem:[%s836 + $0x98] sm:$0xff]
  %v857 = vld [vmem:[%s836 + $0xa0] sm:$0xff]
  %v858 = vld [vmem:[%s836 + $0xa8] sm:$0xff]
  %v859 = vld [vmem:[%s836 + $0xb0] sm:$0xff]
  %v860 = vld [vmem:[%s836 + $0xb8] sm:$0xff]
  %v861 = vld [vmem:[%s836 + $0xc0] sm:$0xff]
  %v862 = vld [vmem:[%s836 + $0xc8] sm:$0xff]
  %v863 = vld [vmem:[%s836 + $0xd0] sm:$0xff]
  %v864 = vld [vmem:[%s836 + $0xd8] sm:$0xff]
  %v865 = vld [vmem:[%s836 + $0xe0] sm:$0xff]
  %v866 = vld [vmem:[%s836 + $0xe8] sm:$0xff]
  %v867 = vld [vmem:[%s836 + $0xf0] sm:$0xff]
  %v868 = vld [vmem:[%s836 + $0xf8] sm:$0xff]
  %v869 = vld [vmem:[%s836 + $0x100] sm:$0xff]
  %v870 = vld [vmem:[%s836 + $0x108] sm:$0xff]
  %v871 = vld [vmem:[%s836 + $0x110] sm:$0xff]
  %v872 = vld [vmem:[%s836 + $0x118] sm:$0xff]
  %v873 = vld [vmem:[%s836 + $0x120] sm:$0xff]
  %v874 = vld [vmem:[%s836 + $0x128] sm:$0xff]
  %v875 = vld [vmem:[%s836 + $0x130] sm:$0xff]
  %v876 = vld [vmem:[%s836 + $0x138] sm:$0xff]
  %v877 = vld [vmem:[%s836 + $0x140] sm:$0xff]
  %v878 = vld [vmem:[%s836 + $0x148] sm:$0xff]
  %v879 = vld [vmem:[%s836 + $0x150] sm:$0xff]
  %v880 = vld [vmem:[%s836 + $0x158] sm:$0xff]
  %v881 = vld [vmem:[%s836 + $0x160] sm:$0xff]
  %v882 = vld [vmem:[%s836 + $0x168] sm:$0xff]
  %v883 = vld [vmem:[%s836 + $0x170] sm:$0xff]
  %v884 = vld [vmem:[%s836 + $0x178] sm:$0xff]
  %v885 = vld [vmem:[%s836 + $0x180] sm:$0xff]
  %v886 = vld [vmem:[%s836 + $0x188] sm:$0xff]
  %887 = vmatprep.subr.mxu0 0.0
  %888 = vmatpush1.msra.mxu0 %v47
  %889 = vmatprep.subr.mxu0 0.0
  %890 = vmatpush1.msra.mxu0 %v46
  %891 = vmatprep.subr.mxu0 0.0
  %892 = vmatpush1.msra.mxu0 %v45
  %893 = vmatprep.subr.mxu0 0.0
  %894 = vmatpush1.msra.mxu0 %v44
  %895 = vmatprep.subr.mxu0 0.0
  %896 = vmatpush1.msra.mxu0 %v43
  %897 = vmatprep.subr.mxu0 0.0
  %898 = vmatpush1.msra.mxu0 %v42
  %899 = vmatprep.subr.mxu0 0.0
  %900 = vmatpush1.msra.mxu0 %v41
  %901 = vmatprep.subr.mxu0 0.0
  %902 = vmatpush1.msra.mxu0 %v40
  %903 = vmatprep.subr.mxu0 0.0
  %904 = vmatpush1.msra.mxu0 %v39
  %905 = vmatprep.subr.mxu0 0.0
  %906 = vmatpush1.msra.mxu0 %v38
  %907 = vmatprep.subr.mxu0 0.0
  %908 = vmatpush1.msra.mxu0 %v37
  %909 = vmatprep.subr.mxu0 0.0
  %910 = vmatpush1.msra.mxu0 %v36
  %911 = vmatprep.subr.mxu0 0.0
  %912 = vmatpush1.msra.mxu0 %v35
  %913 = vmatprep.subr.mxu0 0.0
  %914 = vmatpush1.msra.mxu0 %v34
  %915 = vmatprep.subr.mxu0 0.0
  %916 = vmatpush1.msra.mxu0 %v33
  %917 = vmatprep.subr.mxu0 0.0
  %918 = vmatpush1.msra.mxu0 %v32
  %919 = vmatprep.subr.mxu0 0.0
  %920 = vmatpush2.msra.mxu0 %v63
  %921 = vmatprep.subr.mxu0 0.0
  %922 = vmatpush2.msra.mxu0 %v62
  %923 = vmatprep.subr.mxu0 0.0
  %924 = vmatpush2.msra.mxu0 %v61
  %925 = vmatprep.subr.mxu0 0.0
  %926 = vmatpush2.msra.mxu0 %v60
  %927 = vmatprep.subr.mxu0 0.0
  %928 = vmatpush2.msra.mxu0 %v59
  %929 = vmatprep.subr.mxu0 0.0
  %930 = vmatpush2.msra.mxu0 %v58
  %931 = vmatprep.subr.mxu0 0.0
  %932 = vmatpush2.msra.mxu0 %v57
  %933 = vmatprep.subr.mxu0 0.0
  %934 = vmatpush2.msra.mxu0 %v56
  %935 = vmatprep.subr.mxu0 0.0
  %936 = vmatpush2.msra.mxu0 %v55
  %937 = vmatprep.subr.mxu0 0.0
  %938 = vmatpush2.msra.mxu0 %v54
  %939 = vmatprep.subr.mxu0 0.0
  %940 = vmatpush2.msra.mxu0 %v53
  %941 = vmatprep.subr.mxu0 0.0
  %942 = vmatpush2.msra.mxu0 %v52
  %943 = vmatprep.subr.mxu0 0.0
  %944 = vmatpush2.msra.mxu0 %v51
  %945 = vmatprep.subr.mxu0 0.0
  %946 = vmatpush2.msra.mxu0 %v50
  %947 = vmatprep.subr.mxu0 0.0
  %948 = vmatpush2.msra.mxu0 %v49
  %949 = vmatprep.subr.mxu0 0.0
  %950 = vmatpush2.msra.mxu0 %v48
  %951 = vmatprep.mubr.f32.mxu0 %v838
  %952 = vmatmul.mubr.f32.gmra.mxu0 %v837
  %v953 = vpop.f32.mrf.mxu0
  %v954 = vadd.f32 0.0, %v953
  %v955 = vpop.f32.mrf.mxu0
  %956 = vmatprep.mubr.f32.mxu0 %v840
  %957 = vmatmul.mubr.f32.gmra.mxu0 %v839
  %v958 = vpop.f32.mrf.mxu0
  %v959 = vadd.f32 0.0, %v958
  %v960 = vpop.f32.mrf.mxu0
  %961 = vmatprep.mubr.f32.mxu0 %v842
  %962 = vmatmul.mubr.f32.gmra.mxu0 %v841
  %v963 = vpop.f32.mrf.mxu0
  %v964 = vadd.f32 0.0, %v963
  %v965 = vpop.f32.mrf.mxu0
  %966 = vmatprep.mubr.f32.mxu0 %v844
  %967 = vmatmul.mubr.f32.gmra.mxu0 %v843
  %v968 = vpop.f32.mrf.mxu0
  %v969 = vadd.f32 0.0, %v968
  %v970 = vpop.f32.mrf.mxu0
  %971 = vmatprep.mubr.f32.mxu0 %v846
  %972 = vmatmul.mubr.f32.gmra.mxu0 %v845
  %v973 = vpop.f32.mrf.mxu0
  %v974 = vadd.f32 0.0, %v973
  %v975 = vpop.f32.mrf.mxu0
  %976 = vmatprep.mubr.f32.mxu0 %v848
  %977 = vmatmul.mubr.f32.gmra.mxu0 %v847
  %v978 = vpop.f32.mrf.mxu0
  %v979 = vadd.f32 0.0, %v978
  %v980 = vpop.f32.mrf.mxu0
  %981 = vmatprep.mubr.f32.mxu0 %v850
  %982 = vmatmul.mubr.f32.gmra.mxu0 %v849
  %v983 = vpop.f32.mrf.mxu0
  %v984 = vadd.f32 0.0, %v983
  %v985 = vpop.f32.mrf.mxu0
  %986 = vmatprep.mubr.f32.mxu0 %v852
  %987 = vmatmul.mubr.f32.gmra.mxu0 %v851
  %v988 = vpop.f32.mrf.mxu0
  %v989 = vadd.f32 0.0, %v988
  %v990 = vpop.f32.mrf.mxu0
  %991 = vmatprep.mubr.f32.mxu0 %v854
  %992 = vmatmul.mubr.f32.gmra.mxu0 %v853
  %v993 = vpop.f32.mrf.mxu0
  %v994 = vadd.f32 0.0, %v993
  %v995 = vpop.f32.mrf.mxu0
  %996 = vmatprep.mubr.f32.mxu0 %v856
  %997 = vmatmul.mubr.f32.gmra.mxu0 %v855
  %v998 = vpop.f32.mrf.mxu0
  %v999 = vadd.f32 0.0, %v998
  %v1000 = vpop.f32.mrf.mxu0
  %1001 = vmatprep.mubr.f32.mxu0 %v858
  %1002 = vmatmul.mubr.f32.gmra.mxu0 %v857
  %v1003 = vpop.f32.mrf.mxu0
  %v1004 = vadd.f32 0.0, %v1003
  %v1005 = vpop.f32.mrf.mxu0
  %1006 = vmatprep.mubr.f32.mxu0 %v860
  %1007 = vmatmul.mubr.f32.gmra.mxu0 %v859
  %v1008 = vpop.f32.mrf.mxu0
  %v1009 = vadd.f32 0.0, %v1008
  %v1010 = vpop.f32.mrf.mxu0
  %1011 = vmatprep.mubr.f32.mxu0 %v862
  %1012 = vmatmul.mubr.f32.gmra.mxu0 %v861
  %v1013 = vpop.f32.mrf.mxu0
  %v1014 = vadd.f32 0.0, %v1013
  %v1015 = vpop.f32.mrf.mxu0
  %1016 = vmatprep.mubr.f32.mxu0 %v864
  %1017 = vmatmul.mubr.f32.gmra.mxu0 %v863
  %v1018 = vpop.f32.mrf.mxu0
  %v1019 = vadd.f32 0.0, %v1018
  %v1020 = vpop.f32.mrf.mxu0
  %1021 = vmatprep.mubr.f32.mxu0 %v866
  %1022 = vmatmul.mubr.f32.gmra.mxu0 %v865
  %v1023 = vpop.f32.mrf.mxu0
  %v1024 = vadd.f32 0.0, %v1023
  %v1025 = vpop.f32.mrf.mxu0
  %1026 = vmatprep.mubr.f32.mxu0 %v868
  %1027 = vmatmul.mubr.f32.gmra.mxu0 %v867
  %v1028 = vpop.f32.mrf.mxu0
  %v1029 = vadd.f32 0.0, %v1028
  %v1030 = vpop.f32.mrf.mxu0
  %1031 = vmatprep.mubr.f32.mxu0 %v870
  %1032 = vmatmul.mubr.f32.gmra.mxu0 %v869
  %v1033 = vpop.f32.mrf.mxu0
  %v1034 = vadd.f32 0.0, %v1033
  %v1035 = vpop.f32.mrf.mxu0
  %1036 = vmatprep.mubr.f32.mxu0 %v872
  %1037 = vmatmul.mubr.f32.gmra.mxu0 %v871
  %v1038 = vpop.f32.mrf.mxu0
  %v1039 = vadd.f32 0.0, %v1038
  %v1040 = vpop.f32.mrf.mxu0
  %1041 = vmatprep.mubr.f32.mxu0 %v874
  %1042 = vmatmul.mubr.f32.gmra.mxu0 %v873
  %v1043 = vpop.f32.mrf.mxu0
  %v1044 = vadd.f32 0.0, %v1043
  %v1045 = vpop.f32.mrf.mxu0
  %1046 = vmatprep.mubr.f32.mxu0 %v876
  %1047 = vmatmul.mubr.f32.gmra.mxu0 %v875
  %v1048 = vpop.f32.mrf.mxu0
  %v1049 = vadd.f32 0.0, %v1048
  %v1050 = vpop.f32.mrf.mxu0
  %1051 = vmatprep.mubr.f32.mxu0 %v878
  %1052 = vmatmul.mubr.f32.gmra.mxu0 %v877
  %v1053 = vpop.f32.mrf.mxu0
  %v1054 = vadd.f32 0.0, %v1053
  %v1055 = vpop.f32.mrf.mxu0
  %1056 = vmatprep.mubr.f32.mxu0 %v880
  %1057 = vmatmul.mubr.f32.gmra.mxu0 %v879
  %v1058 = vpop.f32.mrf.mxu0
  %v1059 = vadd.f32 0.0, %v1058
  %v1060 = vpop.f32.mrf.mxu0
  %1061 = vmatprep.mubr.f32.mxu0 %v882
  %1062 = vmatmul.mubr.f32.gmra.mxu0 %v881
  %v1063 = vpop.f32.mrf.mxu0
  %v1064 = vadd.f32 0.0, %v1063
  %v1065 = vpop.f32.mrf.mxu0
  %1066 = vmatprep.mubr.f32.mxu0 %v884
  %1067 = vmatmul.mubr.f32.gmra.mxu0 %v883
  %v1068 = vpop.f32.mrf.mxu0
  %v1069 = vadd.f32 0.0, %v1068
  %v1070 = vpop.f32.mrf.mxu0
  %1071 = vmatprep.mubr.f32.mxu0 %v886
  %1072 = vmatmul.mubr.f32.gmra.mxu0 %v885
  %v1073 = vpop.f32.mrf.mxu0
  %v1074 = vadd.f32 0.0, %v1073
  %v1075 = vpop.f32.mrf.mxu0
  %1076 = vdwg.mxu0
  %v1077 = vmax.f32 %v811, %v954
  %v1078 = vmax.f32 %v812, %v959
  %v1079 = vmax.f32 %v813, %v964
  %v1080 = vmax.f32 %v814, %v969
  %v1081 = vmax.f32 %v815, %v974
  %v1082 = vmax.f32 %v816, %v979
  %v1083 = vmax.f32 %v817, %v984
  %v1084 = vmax.f32 %v818, %v989
  %v1085 = vmax.f32 %v819, %v994
  %v1086 = vmax.f32 %v820, %v999
  %v1087 = vmax.f32 %v821, %v1004
  %v1088 = vmax.f32 %v822, %v1009
  %v1089 = vmax.f32 %v823, %v1014
  %v1090 = vmax.f32 %v824, %v1019
  %v1091 = vmax.f32 %v825, %v1024
  %v1092 = vmax.f32 %v826, %v1029
  %v1093 = vmax.f32 %v827, %v1034
  %v1094 = vmax.f32 %v828, %v1039
  %v1095 = vmax.f32 %v829, %v1044
  %v1096 = vmax.f32 %v830, %v1049
  %v1097 = vmax.f32 %v831, %v1054
  %v1098 = vmax.f32 %v832, %v1059
  %v1099 = vmax.f32 %v833, %v1064
  %v1100 = vmax.f32 %v834, %v1069
  %v1101 = vmax.f32 %v835, %v1074
  %v1102 = vld [vmem:[%s2] sm:$0x1]
  %v1104 = vlaneseq
  %v1105 = vshrl.u32 %v1104, 7
  %v1106 = vsub.s32 0, %v1105
  %v1107 = vrot.slane %v1102, %v1106
  %v1109 = vadd.f32 %v1077, %v1107
  %v1110 = vadd.f32 %v1078, %v1107
  %v1111 = vadd.f32 %v1079, %v1107
  %v1112 = vadd.f32 %v1080, %v1107
  %v1113 = vadd.f32 %v1081, %v1107
  %v1114 = vadd.f32 %v1082, %v1107
  %v1115 = vadd.f32 %v1083, %v1107
  %v1116 = vadd.f32 %v1084, %v1107
  %v1117 = vadd.f32 %v1085, %v1107
  %v1118 = vadd.f32 %v1086, %v1107
  %v1119 = vadd.f32 %v1087, %v1107
  %v1120 = vadd.f32 %v1088, %v1107
  %v1121 = vadd.f32 %v1089, %v1107
  %v1122 = vadd.f32 %v1090, %v1107
  %v1123 = vadd.f32 %v1091, %v1107
  %v1124 = vadd.f32 %v1092, %v1107
  %v1125 = vadd.f32 %v1093, %v1107
  %v1126 = vadd.f32 %v1094, %v1107
  %v1127 = vadd.f32 %v1095, %v1107
  %v1128 = vadd.f32 %v1096, %v1107
  %v1129 = vadd.f32 %v1097, %v1107
  %v1130 = vadd.f32 %v1098, %v1107
  %v1131 = vadd.f32 %v1099, %v1107
  %v1132 = vadd.f32 %v1100, %v1107
  %v1133 = vadd.f32 %v1101, %v1107
  %v1134 = vmax.f32 %v1109, 0.0
  %v1135 = vmax.f32 %v1110, 0.0
  %v1136 = vmax.f32 %v1111, 0.0
  %v1137 = vmax.f32 %v1112, 0.0
  %v1138 = vmax.f32 %v1113, 0.0
  %v1139 = vmax.f32 %v1114, 0.0
  %v1140 = vmax.f32 %v1115, 0.0
  %v1141 = vmax.f32 %v1116, 0.0
  %v1142 = vmax.f32 %v1117, 0.0
  %v1143 = vmax.f32 %v1118, 0.0
  %v1144 = vmax.f32 %v1119, 0.0
  %v1145 = vmax.f32 %v1120, 0.0
  %v1146 = vmax.f32 %v1121, 0.0
  %v1147 = vmax.f32 %v1122, 0.0
  %v1148 = vmax.f32 %v1123, 0.0
  %v1149 = vmax.f32 %v1124, 0.0
  %v1150 = vmax.f32 %v1125, 0.0
  %v1151 = vmax.f32 %v1126, 0.0
  %v1152 = vmax.f32 %v1127, 0.0
  %v1153 = vmax.f32 %v1128, 0.0
  %v1154 = vmax.f32 %v1129, 0.0
  %v1155 = vmax.f32 %v1130, 0.0
  %v1156 = vmax.f32 %v1131, 0.0
  %v1157 = vmax.f32 %v1132, 0.0
  %v1158 = vmax.f32 %v1133, 0.0
  %v1159 = vld [vmem:[%s3] sm:$0xff]
  %v1160 = vld [vmem:[%s3 + $0x8] sm:$0xff]
  %v1161 = vld [vmem:[%s3 + $0x10] sm:$0xff]
  %v1162 = vld [vmem:[%s3 + $0x18] sm:$0xff]
  %v1163 = vld [vmem:[%s3 + $0x20] sm:$0xff]
  %v1164 = vld [vmem:[%s3 + $0x28] sm:$0xff]
  %v1165 = vld [vmem:[%s3 + $0x30] sm:$0xff]
  %v1166 = vld [vmem:[%s3 + $0x38] sm:$0xff]
  %v1167 = vld [vmem:[%s3 + $0x40] sm:$0xff]
  %v1168 = vld [vmem:[%s3 + $0x48] sm:$0xff]
  %v1169 = vld [vmem:[%s3 + $0x50] sm:$0xff]
  %v1170 = vld [vmem:[%s3 + $0x58] sm:$0xff]
  %v1171 = vld [vmem:[%s3 + $0x60] sm:$0xff]
  %v1172 = vld [vmem:[%s3 + $0x68] sm:$0xff]
  %v1173 = vld [vmem:[%s3 + $0x70] sm:$0xff]
  %v1174 = vld [vmem:[%s3 + $0x78] sm:$0xff]
  %s1175 = scalar_lea.vmem %s3, 128
  %v1176 = vld [vmem:[%s1175] sm:$0xff]
  %v1177 = vld [vmem:[%s1175 + $0x8] sm:$0xff]
  %v1178 = vld [vmem:[%s1175 + $0x10] sm:$0xff]
  %v1179 = vld [vmem:[%s1175 + $0x18] sm:$0xff]
  %v1180 = vld [vmem:[%s1175 + $0x20] sm:$0xff]
  %v1181 = vld [vmem:[%s1175 + $0x28] sm:$0xff]
  %v1182 = vld [vmem:[%s1175 + $0x30] sm:$0xff]
  %v1183 = vld [vmem:[%s1175 + $0x38] sm:$0xff]
  %v1184 = vld [vmem:[%s1175 + $0x40] sm:$0xff]
  %v1185 = vld [vmem:[%s1175 + $0x48] sm:$0xff]
  %v1186 = vld [vmem:[%s1175 + $0x50] sm:$0xff]
  %v1187 = vld [vmem:[%s1175 + $0x58] sm:$0xff]
  %v1188 = vld [vmem:[%s1175 + $0x60] sm:$0xff]
  %v1189 = vld [vmem:[%s1175 + $0x68] sm:$0xff]
  %v1190 = vld [vmem:[%s1175 + $0x70] sm:$0xff]
  %v1191 = vld [vmem:[%s1175 + $0x78] sm:$0xff]
  %1192 = vmatprep.subr.mxu0 0.0
  %1193 = vmatpush1.msra.mxu0 %v1191
  %1194 = vmatprep.subr.mxu0 0.0
  %1195 = vmatpush1.msra.mxu0 %v1190
  %1196 = vmatprep.subr.mxu0 0.0
  %1197 = vmatpush1.msra.mxu0 %v1189
  %1198 = vmatprep.subr.mxu0 0.0
  %1199 = vmatpush1.msra.mxu0 %v1188
  %1200 = vmatprep.subr.mxu0 0.0
  %1201 = vmatpush1.msra.mxu0 %v1187
  %1202 = vmatprep.subr.mxu0 0.0
  %1203 = vmatpush1.msra.mxu0 %v1186
  %1204 = vmatprep.subr.mxu0 0.0
  %1205 = vmatpush1.msra.mxu0 %v1185
  %1206 = vmatprep.subr.mxu0 0.0
  %1207 = vmatpush1.msra.mxu0 %v1184
  %1208 = vmatprep.subr.mxu0 0.0
  %1209 = vmatpush1.msra.mxu0 %v1183
  %1210 = vmatprep.subr.mxu0 0.0
  %1211 = vmatpush1.msra.mxu0 %v1182
  %1212 = vmatprep.subr.mxu0 0.0
  %1213 = vmatpush1.msra.mxu0 %v1181
  %1214 = vmatprep.subr.mxu0 0.0
  %1215 = vmatpush1.msra.mxu0 %v1180
  %1216 = vmatprep.subr.mxu0 0.0
  %1217 = vmatpush1.msra.mxu0 %v1179
  %1218 = vmatprep.subr.mxu0 0.0
  %1219 = vmatpush1.msra.mxu0 %v1178
  %1220 = vmatprep.subr.mxu0 0.0
  %1221 = vmatpush1.msra.mxu0 %v1177
  %1222 = vmatprep.subr.mxu0 0.0
  %1223 = vmatpush1.msra.mxu0 %v1176
  %1224 = vmatprep.subr.mxu0 0.0
  %1225 = vmatpush2.msra.mxu0 0.0
  %1226 = vmatprep.subr.mxu0 0.0
  %1227 = vmatpush2.msra.mxu0 0.0
  %1228 = vmatprep.subr.mxu0 0.0
  %1229 = vmatpush2.msra.mxu0 0.0
  %1230 = vmatprep.subr.mxu0 0.0
  %1231 = vmatpush2.msra.mxu0 0.0
  %1232 = vmatprep.subr.mxu0 0.0
  %1233 = vmatpush2.msra.mxu0 0.0
  %1234 = vmatprep.subr.mxu0 0.0
  %1235 = vmatpush2.msra.mxu0 0.0
  %1236 = vmatprep.subr.mxu0 0.0
  %1237 = vmatpush2.msra.mxu0 0.0
  %1238 = vmatprep.subr.mxu0 0.0
  %1239 = vmatpush2.msra.mxu0 0.0
  %1240 = vmatprep.subr.mxu0 0.0
  %1241 = vmatpush2.msra.mxu0 0.0
  %1242 = vmatprep.subr.mxu0 0.0
  %1243 = vmatpush2.msra.mxu0 0.0
  %1244 = vmatprep.subr.mxu0 0.0
  %1245 = vmatpush2.msra.mxu0 0.0
  %1246 = vmatprep.subr.mxu0 0.0
  %1247 = vmatpush2.msra.mxu0 0.0
  %1248 = vmatprep.subr.mxu0 0.0
  %1249 = vmatpush2.msra.mxu0 0.0
  %1250 = vmatprep.subr.mxu0 0.0
  %1251 = vmatpush2.msra.mxu0 0.0
  %1252 = vmatprep.subr.mxu0 0.0
  %1253 = vmatpush2.msra.mxu0 0.0
  %1254 = vmatprep.subr.mxu0 0.0
  %1255 = vmatpush2.msra.mxu0 0.0
  %1256 = vmatprep.mubr.f32.mxu0 0.0
  %1257 = vmatmul.mubr.f32.gmra.mxu0 %v1135
  %v1258 = vpop.f32.mrf.mxu0
  %v1259 = vadd.f32 0.0, %v1258
  %v1260 = vpop.f32.mrf.mxu0
  %1261 = vdwg.mxu0
  %1262 = vmatprep.subr.mxu0 0.0
  %1263 = vmatpush1.msra.mxu0 %v1174
  %1264 = vmatprep.subr.mxu0 0.0
  %1265 = vmatpush1.msra.mxu0 %v1173
  %1266 = vmatprep.subr.mxu0 0.0
  %1267 = vmatpush1.msra.mxu0 %v1172
  %1268 = vmatprep.subr.mxu0 0.0
  %1269 = vmatpush1.msra.mxu0 %v1171
  %1270 = vmatprep.subr.mxu0 0.0
  %1271 = vmatpush1.msra.mxu0 %v1170
  %1272 = vmatprep.subr.mxu0 0.0
  %1273 = vmatpush1.msra.mxu0 %v1169
  %1274 = vmatprep.subr.mxu0 0.0
  %1275 = vmatpush1.msra.mxu0 %v1168
  %1276 = vmatprep.subr.mxu0 0.0
  %1277 = vmatpush1.msra.mxu0 %v1167
  %1278 = vmatprep.subr.mxu0 0.0
  %1279 = vmatpush1.msra.mxu0 %v1166
  %1280 = vmatprep.subr.mxu0 0.0
  %1281 = vmatpush1.msra.mxu0 %v1165
  %1282 = vmatprep.subr.mxu0 0.0
  %1283 = vmatpush1.msra.mxu0 %v1164
  %1284 = vmatprep.subr.mxu0 0.0
  %1285 = vmatpush1.msra.mxu0 %v1163
  %1286 = vmatprep.subr.mxu0 0.0
  %1287 = vmatpush1.msra.mxu0 %v1162
  %1288 = vmatprep.subr.mxu0 0.0
  %1289 = vmatpush1.msra.mxu0 %v1161
  %1290 = vmatprep.subr.mxu0 0.0
  %1291 = vmatpush1.msra.mxu0 %v1160
  %1292 = vmatprep.subr.mxu0 0.0
  %1293 = vmatpush1.msra.mxu0 %v1159
  %1294 = vmatprep.subr.mxu0 0.0
  %1295 = vmatpush2.msra.mxu0 0.0
  %1296 = vmatprep.subr.mxu0 0.0
  %1297 = vmatpush2.msra.mxu0 0.0
  %1298 = vmatprep.subr.mxu0 0.0
  %1299 = vmatpush2.msra.mxu0 0.0
  %1300 = vmatprep.subr.mxu0 0.0
  %1301 = vmatpush2.msra.mxu0 0.0
  %1302 = vmatprep.subr.mxu0 0.0
  %1303 = vmatpush2.msra.mxu0 0.0
  %1304 = vmatprep.subr.mxu0 0.0
  %1305 = vmatpush2.msra.mxu0 0.0
  %1306 = vmatprep.subr.mxu0 0.0
  %1307 = vmatpush2.msra.mxu0 0.0
  %1308 = vmatprep.subr.mxu0 0.0
  %1309 = vmatpush2.msra.mxu0 0.0
  %1310 = vmatprep.subr.mxu0 0.0
  %1311 = vmatpush2.msra.mxu0 0.0
  %1312 = vmatprep.subr.mxu0 0.0
  %1313 = vmatpush2.msra.mxu0 0.0
  %1314 = vmatprep.subr.mxu0 0.0
  %1315 = vmatpush2.msra.mxu0 0.0
  %1316 = vmatprep.subr.mxu0 0.0
  %1317 = vmatpush2.msra.mxu0 0.0
  %1318 = vmatprep.subr.mxu0 0.0
  %1319 = vmatpush2.msra.mxu0 0.0
  %1320 = vmatprep.subr.mxu0 0.0
  %1321 = vmatpush2.msra.mxu0 0.0
  %1322 = vmatprep.subr.mxu0 0.0
  %1323 = vmatpush2.msra.mxu0 0.0
  %1324 = vmatprep.subr.mxu0 0.0
  %1325 = vmatpush2.msra.mxu0 0.0
  %1326 = vmatprep.mubr.f32.mxu0 0.0
  %1327 = vmatmul.mubr.f32.gmra.mxu0 %v1134
  %v1328 = vpop.f32.mrf.mxu0
  %v1329 = vadd.f32 %v1259, %v1328
  %v1330 = vpop.f32.mrf.mxu0
  %1331 = vdwg.mxu0
  %s1332 = scalar_lea.vmem %s3, 256
  %v1333 = vld [vmem:[%s1332] sm:$0xff]
  %v1334 = vld [vmem:[%s1332 + $0x8] sm:$0xff]
  %v1335 = vld [vmem:[%s1332 + $0x10] sm:$0xff]
  %v1336 = vld [vmem:[%s1332 + $0x18] sm:$0xff]
  %v1337 = vld [vmem:[%s1332 + $0x20] sm:$0xff]
  %v1338 = vld [vmem:[%s1332 + $0x28] sm:$0xff]
  %v1339 = vld [vmem:[%s1332 + $0x30] sm:$0xff]
  %v1340 = vld [vmem:[%s1332 + $0x38] sm:$0xff]
  %v1341 = vld [vmem:[%s1332 + $0x40] sm:$0xff]
  %v1342 = vld [vmem:[%s1332 + $0x48] sm:$0xff]
  %v1343 = vld [vmem:[%s1332 + $0x50] sm:$0xff]
  %v1344 = vld [vmem:[%s1332 + $0x58] sm:$0xff]
  %v1345 = vld [vmem:[%s1332 + $0x60] sm:$0xff]
  %v1346 = vld [vmem:[%s1332 + $0x68] sm:$0xff]
  %v1347 = vld [vmem:[%s1332 + $0x70] sm:$0xff]
  %v1348 = vld [vmem:[%s1332 + $0x78] sm:$0xff]
  %1349 = vmatprep.subr.mxu0 0.0
  %1350 = vmatpush1.msra.mxu0 %v1348
  %1351 = vmatprep.subr.mxu0 0.0
  %1352 = vmatpush1.msra.mxu0 %v1347
  %1353 = vmatprep.subr.mxu0 0.0
  %1354 = vmatpush1.msra.mxu0 %v1346
  %1355 = vmatprep.subr.mxu0 0.0
  %1356 = vmatpush1.msra.mxu0 %v1345
  %1357 = vmatprep.subr.mxu0 0.0
  %1358 = vmatpush1.msra.mxu0 %v1344
  %1359 = vmatprep.subr.mxu0 0.0
  %1360 = vmatpush1.msra.mxu0 %v1343
  %1361 = vmatprep.subr.mxu0 0.0
  %1362 = vmatpush1.msra.mxu0 %v1342
  %1363 = vmatprep.subr.mxu0 0.0
  %1364 = vmatpush1.msra.mxu0 %v1341
  %1365 = vmatprep.subr.mxu0 0.0
  %1366 = vmatpush1.msra.mxu0 %v1340
  %1367 = vmatprep.subr.mxu0 0.0
  %1368 = vmatpush1.msra.mxu0 %v1339
  %1369 = vmatprep.subr.mxu0 0.0
  %1370 = vmatpush1.msra.mxu0 %v1338
  %1371 = vmatprep.subr.mxu0 0.0
  %1372 = vmatpush1.msra.mxu0 %v1337
  %1373 = vmatprep.subr.mxu0 0.0
  %1374 = vmatpush1.msra.mxu0 %v1336
  %1375 = vmatprep.subr.mxu0 0.0
  %1376 = vmatpush1.msra.mxu0 %v1335
  %1377 = vmatprep.subr.mxu0 0.0
  %1378 = vmatpush1.msra.mxu0 %v1334
  %1379 = vmatprep.subr.mxu0 0.0
  %1380 = vmatpush1.msra.mxu0 %v1333
  %1381 = vmatprep.subr.mxu0 0.0
  %1382 = vmatpush2.msra.mxu0 0.0
  %1383 = vmatprep.subr.mxu0 0.0
  %1384 = vmatpush2.msra.mxu0 0.0
  %1385 = vmatprep.subr.mxu0 0.0
  %1386 = vmatpush2.msra.mxu0 0.0
  %1387 = vmatprep.subr.mxu0 0.0
  %1388 = vmatpush2.msra.mxu0 0.0
  %1389 = vmatprep.subr.mxu0 0.0
  %1390 = vmatpush2.msra.mxu0 0.0
  %1391 = vmatprep.subr.mxu0 0.0
  %1392 = vmatpush2.msra.mxu0 0.0
  %1393 = vmatprep.subr.mxu0 0.0
  %1394 = vmatpush2.msra.mxu0 0.0
  %1395 = vmatprep.subr.mxu0 0.0
  %1396 = vmatpush2.msra.mxu0 0.0
  %1397 = vmatprep.subr.mxu0 0.0
  %1398 = vmatpush2.msra.mxu0 0.0
  %1399 = vmatprep.subr.mxu0 0.0
  %1400 = vmatpush2.msra.mxu0 0.0
  %1401 = vmatprep.subr.mxu0 0.0
  %1402 = vmatpush2.msra.mxu0 0.0
  %1403 = vmatprep.subr.mxu0 0.0
  %1404 = vmatpush2.msra.mxu0 0.0
  %1405 = vmatprep.subr.mxu0 0.0
  %1406 = vmatpush2.msra.mxu0 0.0
  %1407 = vmatprep.subr.mxu0 0.0
  %1408 = vmatpush2.msra.mxu0 0.0
  %1409 = vmatprep.subr.mxu0 0.0
  %1410 = vmatpush2.msra.mxu0 0.0
  %1411 = vmatprep.subr.mxu0 0.0
  %1412 = vmatpush2.msra.mxu0 0.0
  %1413 = vmatprep.mubr.f32.mxu0 0.0
  %1414 = vmatmul.mubr.f32.gmra.mxu0 %v1136
  %v1415 = vpop.f32.mrf.mxu0
  %v1416 = vadd.f32 0.0, %v1415
  %v1417 = vpop.f32.mrf.mxu0
  %1418 = vdwg.mxu0
  %v1419 = vadd.f32 %v1329, %v1416
  %s1420 = scalar_lea.vmem %s3, 384
  %v1421 = vld [vmem:[%s1420] sm:$0xff]
  %v1422 = vld [vmem:[%s1420 + $0x8] sm:$0xff]
  %v1423 = vld [vmem:[%s1420 + $0x10] sm:$0xff]
  %v1424 = vld [vmem:[%s1420 + $0x18] sm:$0xff]
  %v1425 = vld [vmem:[%s1420 + $0x20] sm:$0xff]
  %v1426 = vld [vmem:[%s1420 + $0x28] sm:$0xff]
  %v1427 = vld [vmem:[%s1420 + $0x30] sm:$0xff]
  %v1428 = vld [vmem:[%s1420 + $0x38] sm:$0xff]
  %v1429 = vld [vmem:[%s1420 + $0x40] sm:$0xff]
  %v1430 = vld [vmem:[%s1420 + $0x48] sm:$0xff]
  %v1431 = vld [vmem:[%s1420 + $0x50] sm:$0xff]
  %v1432 = vld [vmem:[%s1420 + $0x58] sm:$0xff]
  %v1433 = vld [vmem:[%s1420 + $0x60] sm:$0xff]
  %v1434 = vld [vmem:[%s1420 + $0x68] sm:$0xff]
  %v1435 = vld [vmem:[%s1420 + $0x70] sm:$0xff]
  %v1436 = vld [vmem:[%s1420 + $0x78] sm:$0xff]
  %1437 = vmatprep.subr.mxu0 0.0
  %1438 = vmatpush1.msra.mxu0 %v1436
  %1439 = vmatprep.subr.mxu0 0.0
  %1440 = vmatpush1.msra.mxu0 %v1435
  %1441 = vmatprep.subr.mxu0 0.0
  %1442 = vmatpush1.msra.mxu0 %v1434
  %1443 = vmatprep.subr.mxu0 0.0
  %1444 = vmatpush1.msra.mxu0 %v1433
  %1445 = vmatprep.subr.mxu0 0.0
  %1446 = vmatpush1.msra.mxu0 %v1432
  %1447 = vmatprep.subr.mxu0 0.0
  %1448 = vmatpush1.msra.mxu0 %v1431
  %1449 = vmatprep.subr.mxu0 0.0
  %1450 = vmatpush1.msra.mxu0 %v1430
  %1451 = vmatprep.subr.mxu0 0.0
  %1452 = vmatpush1.msra.mxu0 %v1429
  %1453 = vmatprep.subr.mxu0 0.0
  %1454 = vmatpush1.msra.mxu0 %v1428
  %1455 = vmatprep.subr.mxu0 0.0
  %1456 = vmatpush1.msra.mxu0 %v1427
  %1457 = vmatprep.subr.mxu0 0.0
  %1458 = vmatpush1.msra.mxu0 %v1426
  %1459 = vmatprep.subr.mxu0 0.0
  %1460 = vmatpush1.msra.mxu0 %v1425
  %1461 = vmatprep.subr.mxu0 0.0
  %1462 = vmatpush1.msra.mxu0 %v1424
  %1463 = vmatprep.subr.mxu0 0.0
  %1464 = vmatpush1.msra.mxu0 %v1423
  %1465 = vmatprep.subr.mxu0 0.0
  %1466 = vmatpush1.msra.mxu0 %v1422
  %1467 = vmatprep.subr.mxu0 0.0
  %1468 = vmatpush1.msra.mxu0 %v1421
  %1469 = vmatprep.subr.mxu0 0.0
  %1470 = vmatpush2.msra.mxu0 0.0
  %1471 = vmatprep.subr.mxu0 0.0
  %1472 = vmatpush2.msra.mxu0 0.0
  %1473 = vmatprep.subr.mxu0 0.0
  %1474 = vmatpush2.msra.mxu0 0.0
  %1475 = vmatprep.subr.mxu0 0.0
  %1476 = vmatpush2.msra.mxu0 0.0
  %1477 = vmatprep.subr.mxu0 0.0
  %1478 = vmatpush2.msra.mxu0 0.0
  %1479 = vmatprep.subr.mxu0 0.0
  %1480 = vmatpush2.msra.mxu0 0.0
  %1481 = vmatprep.subr.mxu0 0.0
  %1482 = vmatpush2.msra.mxu0 0.0
  %1483 = vmatprep.subr.mxu0 0.0
  %1484 = vmatpush2.msra.mxu0 0.0
  %1485 = vmatprep.subr.mxu0 0.0
  %1486 = vmatpush2.msra.mxu0 0.0
  %1487 = vmatprep.subr.mxu0 0.0
  %1488 = vmatpush2.msra.mxu0 0.0
  %1489 = vmatprep.subr.mxu0 0.0
  %1490 = vmatpush2.msra.mxu0 0.0
  %1491 = vmatprep.subr.mxu0 0.0
  %1492 = vmatpush2.msra.mxu0 0.0
  %1493 = vmatprep.subr.mxu0 0.0
  %1494 = vmatpush2.msra.mxu0 0.0
  %1495 = vmatprep.subr.mxu0 0.0
  %1496 = vmatpush2.msra.mxu0 0.0
  %1497 = vmatprep.subr.mxu0 0.0
  %1498 = vmatpush2.msra.mxu0 0.0
  %1499 = vmatprep.subr.mxu0 0.0
  %1500 = vmatpush2.msra.mxu0 0.0
  %1501 = vmatprep.mubr.f32.mxu0 0.0
  %1502 = vmatmul.mubr.f32.gmra.mxu0 %v1137
  %v1503 = vpop.f32.mrf.mxu0
  %v1504 = vadd.f32 0.0, %v1503
  %v1505 = vpop.f32.mrf.mxu0
  %1506 = vdwg.mxu0
  %v1507 = vadd.f32 %v1419, %v1504
  %s1508 = scalar_lea.vmem %s3, 512
  %v1509 = vld [vmem:[%s1508] sm:$0xff]
  %v1510 = vld [vmem:[%s1508 + $0x8] sm:$0xff]
  %v1511 = vld [vmem:[%s1508 + $0x10] sm:$0xff]
  %v1512 = vld [vmem:[%s1508 + $0x18] sm:$0xff]
  %v1513 = vld [vmem:[%s1508 + $0x20] sm:$0xff]
  %v1514 = vld [vmem:[%s1508 + $0x28] sm:$0xff]
  %v1515 = vld [vmem:[%s1508 + $0x30] sm:$0xff]
  %v1516 = vld [vmem:[%s1508 + $0x38] sm:$0xff]
  %v1517 = vld [vmem:[%s1508 + $0x40] sm:$0xff]
  %v1518 = vld [vmem:[%s1508 + $0x48] sm:$0xff]
  %v1519 = vld [vmem:[%s1508 + $0x50] sm:$0xff]
  %v1520 = vld [vmem:[%s1508 + $0x58] sm:$0xff]
  %v1521 = vld [vmem:[%s1508 + $0x60] sm:$0xff]
  %v1522 = vld [vmem:[%s1508 + $0x68] sm:$0xff]
  %v1523 = vld [vmem:[%s1508 + $0x70] sm:$0xff]
  %v1524 = vld [vmem:[%s1508 + $0x78] sm:$0xff]
  %1525 = vmatprep.subr.mxu0 0.0
  %1526 = vmatpush1.msra.mxu0 %v1524
  %1527 = vmatprep.subr.mxu0 0.0
  %1528 = vmatpush1.msra.mxu0 %v1523
  %1529 = vmatprep.subr.mxu0 0.0
  %1530 = vmatpush1.msra.mxu0 %v1522
  %1531 = vmatprep.subr.mxu0 0.0
  %1532 = vmatpush1.msra.mxu0 %v1521
  %1533 = vmatprep.subr.mxu0 0.0
  %1534 = vmatpush1.msra.mxu0 %v1520
  %1535 = vmatprep.subr.mxu0 0.0
  %1536 = vmatpush1.msra.mxu0 %v1519
  %1537 = vmatprep.subr.mxu0 0.0
  %1538 = vmatpush1.msra.mxu0 %v1518
  %1539 = vmatprep.subr.mxu0 0.0
  %1540 = vmatpush1.msra.mxu0 %v1517
  %1541 = vmatprep.subr.mxu0 0.0
  %1542 = vmatpush1.msra.mxu0 %v1516
  %1543 = vmatprep.subr.mxu0 0.0
  %1544 = vmatpush1.msra.mxu0 %v1515
  %1545 = vmatprep.subr.mxu0 0.0
  %1546 = vmatpush1.msra.mxu0 %v1514
  %1547 = vmatprep.subr.mxu0 0.0
  %1548 = vmatpush1.msra.mxu0 %v1513
  %1549 = vmatprep.subr.mxu0 0.0
  %1550 = vmatpush1.msra.mxu0 %v1512
  %1551 = vmatprep.subr.mxu0 0.0
  %1552 = vmatpush1.msra.mxu0 %v1511
  %1553 = vmatprep.subr.mxu0 0.0
  %1554 = vmatpush1.msra.mxu0 %v1510
  %1555 = vmatprep.subr.mxu0 0.0
  %1556 = vmatpush1.msra.mxu0 %v1509
  %1557 = vmatprep.subr.mxu0 0.0
  %1558 = vmatpush2.msra.mxu0 0.0
  %1559 = vmatprep.subr.mxu0 0.0
  %1560 = vmatpush2.msra.mxu0 0.0
  %1561 = vmatprep.subr.mxu0 0.0
  %1562 = vmatpush2.msra.mxu0 0.0
  %1563 = vmatprep.subr.mxu0 0.0
  %1564 = vmatpush2.msra.mxu0 0.0
  %1565 = vmatprep.subr.mxu0 0.0
  %1566 = vmatpush2.msra.mxu0 0.0
  %1567 = vmatprep.subr.mxu0 0.0
  %1568 = vmatpush2.msra.mxu0 0.0
  %1569 = vmatprep.subr.mxu0 0.0
  %1570 = vmatpush2.msra.mxu0 0.0
  %1571 = vmatprep.subr.mxu0 0.0
  %1572 = vmatpush2.msra.mxu0 0.0
  %1573 = vmatprep.subr.mxu0 0.0
  %1574 = vmatpush2.msra.mxu0 0.0
  %1575 = vmatprep.subr.mxu0 0.0
  %1576 = vmatpush2.msra.mxu0 0.0
  %1577 = vmatprep.subr.mxu0 0.0
  %1578 = vmatpush2.msra.mxu0 0.0
  %1579 = vmatprep.subr.mxu0 0.0
  %1580 = vmatpush2.msra.mxu0 0.0
  %1581 = vmatprep.subr.mxu0 0.0
  %1582 = vmatpush2.msra.mxu0 0.0
  %1583 = vmatprep.subr.mxu0 0.0
  %1584 = vmatpush2.msra.mxu0 0.0
  %1585 = vmatprep.subr.mxu0 0.0
  %1586 = vmatpush2.msra.mxu0 0.0
  %1587 = vmatprep.subr.mxu0 0.0
  %1588 = vmatpush2.msra.mxu0 0.0
  %1589 = vmatprep.mubr.f32.mxu0 0.0
  %1590 = vmatmul.mubr.f32.gmra.mxu0 %v1138
  %v1591 = vpop.f32.mrf.mxu0
  %v1592 = vadd.f32 0.0, %v1591
  %v1593 = vpop.f32.mrf.mxu0
  %1594 = vdwg.mxu0
  %v1595 = vadd.f32 %v1507, %v1592
  %s1596 = scalar_lea.vmem %s3, 640
  %v1597 = vld [vmem:[%s1596] sm:$0xff]
  %v1598 = vld [vmem:[%s1596 + $0x8] sm:$0xff]
  %v1599 = vld [vmem:[%s1596 + $0x10] sm:$0xff]
  %v1600 = vld [vmem:[%s1596 + $0x18] sm:$0xff]
  %v1601 = vld [vmem:[%s1596 + $0x20] sm:$0xff]
  %v1602 = vld [vmem:[%s1596 + $0x28] sm:$0xff]
  %v1603 = vld [vmem:[%s1596 + $0x30] sm:$0xff]
  %v1604 = vld [vmem:[%s1596 + $0x38] sm:$0xff]
  %v1605 = vld [vmem:[%s1596 + $0x40] sm:$0xff]
  %v1606 = vld [vmem:[%s1596 + $0x48] sm:$0xff]
  %v1607 = vld [vmem:[%s1596 + $0x50] sm:$0xff]
  %v1608 = vld [vmem:[%s1596 + $0x58] sm:$0xff]
  %v1609 = vld [vmem:[%s1596 + $0x60] sm:$0xff]
  %v1610 = vld [vmem:[%s1596 + $0x68] sm:$0xff]
  %v1611 = vld [vmem:[%s1596 + $0x70] sm:$0xff]
  %v1612 = vld [vmem:[%s1596 + $0x78] sm:$0xff]
  %1613 = vmatprep.subr.mxu0 0.0
  %1614 = vmatpush1.msra.mxu0 %v1612
  %1615 = vmatprep.subr.mxu0 0.0
  %1616 = vmatpush1.msra.mxu0 %v1611
  %1617 = vmatprep.subr.mxu0 0.0
  %1618 = vmatpush1.msra.mxu0 %v1610
  %1619 = vmatprep.subr.mxu0 0.0
  %1620 = vmatpush1.msra.mxu0 %v1609
  %1621 = vmatprep.subr.mxu0 0.0
  %1622 = vmatpush1.msra.mxu0 %v1608
  %1623 = vmatprep.subr.mxu0 0.0
  %1624 = vmatpush1.msra.mxu0 %v1607
  %1625 = vmatprep.subr.mxu0 0.0
  %1626 = vmatpush1.msra.mxu0 %v1606
  %1627 = vmatprep.subr.mxu0 0.0
  %1628 = vmatpush1.msra.mxu0 %v1605
  %1629 = vmatprep.subr.mxu0 0.0
  %1630 = vmatpush1.msra.mxu0 %v1604
  %1631 = vmatprep.subr.mxu0 0.0
  %1632 = vmatpush1.msra.mxu0 %v1603
  %1633 = vmatprep.subr.mxu0 0.0
  %1634 = vmatpush1.msra.mxu0 %v1602
  %1635 = vmatprep.subr.mxu0 0.0
  %1636 = vmatpush1.msra.mxu0 %v1601
  %1637 = vmatprep.subr.mxu0 0.0
  %1638 = vmatpush1.msra.mxu0 %v1600
  %1639 = vmatprep.subr.mxu0 0.0
  %1640 = vmatpush1.msra.mxu0 %v1599
  %1641 = vmatprep.subr.mxu0 0.0
  %1642 = vmatpush1.msra.mxu0 %v1598
  %1643 = vmatprep.subr.mxu0 0.0
  %1644 = vmatpush1.msra.mxu0 %v1597
  %1645 = vmatprep.subr.mxu0 0.0
  %1646 = vmatpush2.msra.mxu0 0.0
  %1647 = vmatprep.subr.mxu0 0.0
  %1648 = vmatpush2.msra.mxu0 0.0
  %1649 = vmatprep.subr.mxu0 0.0
  %1650 = vmatpush2.msra.mxu0 0.0
  %1651 = vmatprep.subr.mxu0 0.0
  %1652 = vmatpush2.msra.mxu0 0.0
  %1653 = vmatprep.subr.mxu0 0.0
  %1654 = vmatpush2.msra.mxu0 0.0
  %1655 = vmatprep.subr.mxu0 0.0
  %1656 = vmatpush2.msra.mxu0 0.0
  %1657 = vmatprep.subr.mxu0 0.0
  %1658 = vmatpush2.msra.mxu0 0.0
  %1659 = vmatprep.subr.mxu0 0.0
  %1660 = vmatpush2.msra.mxu0 0.0
  %1661 = vmatprep.subr.mxu0 0.0
  %1662 = vmatpush2.msra.mxu0 0.0
  %1663 = vmatprep.subr.mxu0 0.0
  %1664 = vmatpush2.msra.mxu0 0.0
  %1665 = vmatprep.subr.mxu0 0.0
  %1666 = vmatpush2.msra.mxu0 0.0
  %1667 = vmatprep.subr.mxu0 0.0
  %1668 = vmatpush2.msra.mxu0 0.0
  %1669 = vmatprep.subr.mxu0 0.0
  %1670 = vmatpush2.msra.mxu0 0.0
  %1671 = vmatprep.subr.mxu0 0.0
  %1672 = vmatpush2.msra.mxu0 0.0
  %1673 = vmatprep.subr.mxu0 0.0
  %1674 = vmatpush2.msra.mxu0 0.0
  %1675 = vmatprep.subr.mxu0 0.0
  %1676 = vmatpush2.msra.mxu0 0.0
  %1677 = vmatprep.mubr.f32.mxu0 0.0
  %1678 = vmatmul.mubr.f32.gmra.mxu0 %v1139
  %v1679 = vpop.f32.mrf.mxu0
  %v1680 = vadd.f32 0.0, %v1679
  %v1681 = vpop.f32.mrf.mxu0
  %1682 = vdwg.mxu0
  %v1683 = vadd.f32 %v1595, %v1680
  %s1684 = scalar_lea.vmem %s3, 768
  %v1685 = vld [vmem:[%s1684] sm:$0xff]
  %v1686 = vld [vmem:[%s1684 + $0x8] sm:$0xff]
  %v1687 = vld [vmem:[%s1684 + $0x10] sm:$0xff]
  %v1688 = vld [vmem:[%s1684 + $0x18] sm:$0xff]
  %v1689 = vld [vmem:[%s1684 + $0x20] sm:$0xff]
  %v1690 = vld [vmem:[%s1684 + $0x28] sm:$0xff]
  %v1691 = vld [vmem:[%s1684 + $0x30] sm:$0xff]
  %v1692 = vld [vmem:[%s1684 + $0x38] sm:$0xff]
  %v1693 = vld [vmem:[%s1684 + $0x40] sm:$0xff]
  %v1694 = vld [vmem:[%s1684 + $0x48] sm:$0xff]
  %v1695 = vld [vmem:[%s1684 + $0x50] sm:$0xff]
  %v1696 = vld [vmem:[%s1684 + $0x58] sm:$0xff]
  %v1697 = vld [vmem:[%s1684 + $0x60] sm:$0xff]
  %v1698 = vld [vmem:[%s1684 + $0x68] sm:$0xff]
  %v1699 = vld [vmem:[%s1684 + $0x70] sm:$0xff]
  %v1700 = vld [vmem:[%s1684 + $0x78] sm:$0xff]
  %1701 = vmatprep.subr.mxu0 0.0
  %1702 = vmatpush1.msra.mxu0 %v1700
  %1703 = vmatprep.subr.mxu0 0.0
  %1704 = vmatpush1.msra.mxu0 %v1699
  %1705 = vmatprep.subr.mxu0 0.0
  %1706 = vmatpush1.msra.mxu0 %v1698
  %1707 = vmatprep.subr.mxu0 0.0
  %1708 = vmatpush1.msra.mxu0 %v1697
  %1709 = vmatprep.subr.mxu0 0.0
  %1710 = vmatpush1.msra.mxu0 %v1696
  %1711 = vmatprep.subr.mxu0 0.0
  %1712 = vmatpush1.msra.mxu0 %v1695
  %1713 = vmatprep.subr.mxu0 0.0
  %1714 = vmatpush1.msra.mxu0 %v1694
  %1715 = vmatprep.subr.mxu0 0.0
  %1716 = vmatpush1.msra.mxu0 %v1693
  %1717 = vmatprep.subr.mxu0 0.0
  %1718 = vmatpush1.msra.mxu0 %v1692
  %1719 = vmatprep.subr.mxu0 0.0
  %1720 = vmatpush1.msra.mxu0 %v1691
  %1721 = vmatprep.subr.mxu0 0.0
  %1722 = vmatpush1.msra.mxu0 %v1690
  %1723 = vmatprep.subr.mxu0 0.0
  %1724 = vmatpush1.msra.mxu0 %v1689
  %1725 = vmatprep.subr.mxu0 0.0
  %1726 = vmatpush1.msra.mxu0 %v1688
  %1727 = vmatprep.subr.mxu0 0.0
  %1728 = vmatpush1.msra.mxu0 %v1687
  %1729 = vmatprep.subr.mxu0 0.0
  %1730 = vmatpush1.msra.mxu0 %v1686
  %1731 = vmatprep.subr.mxu0 0.0
  %1732 = vmatpush1.msra.mxu0 %v1685
  %1733 = vmatprep.subr.mxu0 0.0
  %1734 = vmatpush2.msra.mxu0 0.0
  %1735 = vmatprep.subr.mxu0 0.0
  %1736 = vmatpush2.msra.mxu0 0.0
  %1737 = vmatprep.subr.mxu0 0.0
  %1738 = vmatpush2.msra.mxu0 0.0
  %1739 = vmatprep.subr.mxu0 0.0
  %1740 = vmatpush2.msra.mxu0 0.0
  %1741 = vmatprep.subr.mxu0 0.0
  %1742 = vmatpush2.msra.mxu0 0.0
  %1743 = vmatprep.subr.mxu0 0.0
  %1744 = vmatpush2.msra.mxu0 0.0
  %1745 = vmatprep.subr.mxu0 0.0
  %1746 = vmatpush2.msra.mxu0 0.0
  %1747 = vmatprep.subr.mxu0 0.0
  %1748 = vmatpush2.msra.mxu0 0.0
  %1749 = vmatprep.subr.mxu0 0.0
  %1750 = vmatpush2.msra.mxu0 0.0
  %1751 = vmatprep.subr.mxu0 0.0
  %1752 = vmatpush2.msra.mxu0 0.0
  %1753 = vmatprep.subr.mxu0 0.0
  %1754 = vmatpush2.msra.mxu0 0.0
  %1755 = vmatprep.subr.mxu0 0.0
  %1756 = vmatpush2.msra.mxu0 0.0
  %1757 = vmatprep.subr.mxu0 0.0
  %1758 = vmatpush2.msra.mxu0 0.0
  %1759 = vmatprep.subr.mxu0 0.0
  %1760 = vmatpush2.msra.mxu0 0.0
  %1761 = vmatprep.subr.mxu0 0.0
  %1762 = vmatpush2.msra.mxu0 0.0
  %1763 = vmatprep.subr.mxu0 0.0
  %1764 = vmatpush2.msra.mxu0 0.0
  %1765 = vmatprep.mubr.f32.mxu0 0.0
  %1766 = vmatmul.mubr.f32.gmra.mxu0 %v1140
  %v1767 = vpop.f32.mrf.mxu0
  %v1768 = vadd.f32 0.0, %v1767
  %v1769 = vpop.f32.mrf.mxu0
  %1770 = vdwg.mxu0
  %v1771 = vadd.f32 %v1683, %v1768
  %s1772 = scalar_lea.vmem %s3, 896
  %v1773 = vld [vmem:[%s1772] sm:$0xff]
  %v1774 = vld [vmem:[%s1772 + $0x8] sm:$0xff]
  %v1775 = vld [vmem:[%s1772 + $0x10] sm:$0xff]
  %v1776 = vld [vmem:[%s1772 + $0x18] sm:$0xff]
  %v1777 = vld [vmem:[%s1772 + $0x20] sm:$0xff]
  %v1778 = vld [vmem:[%s1772 + $0x28] sm:$0xff]
  %v1779 = vld [vmem:[%s1772 + $0x30] sm:$0xff]
  %v1780 = vld [vmem:[%s1772 + $0x38] sm:$0xff]
  %v1781 = vld [vmem:[%s1772 + $0x40] sm:$0xff]
  %v1782 = vld [vmem:[%s1772 + $0x48] sm:$0xff]
  %v1783 = vld [vmem:[%s1772 + $0x50] sm:$0xff]
  %v1784 = vld [vmem:[%s1772 + $0x58] sm:$0xff]
  %v1785 = vld [vmem:[%s1772 + $0x60] sm:$0xff]
  %v1786 = vld [vmem:[%s1772 + $0x68] sm:$0xff]
  %v1787 = vld [vmem:[%s1772 + $0x70] sm:$0xff]
  %v1788 = vld [vmem:[%s1772 + $0x78] sm:$0xff]
  %1789 = vmatprep.subr.mxu0 0.0
  %1790 = vmatpush1.msra.mxu0 %v1788
  %1791 = vmatprep.subr.mxu0 0.0
  %1792 = vmatpush1.msra.mxu0 %v1787
  %1793 = vmatprep.subr.mxu0 0.0
  %1794 = vmatpush1.msra.mxu0 %v1786
  %1795 = vmatprep.subr.mxu0 0.0
  %1796 = vmatpush1.msra.mxu0 %v1785
  %1797 = vmatprep.subr.mxu0 0.0
  %1798 = vmatpush1.msra.mxu0 %v1784
  %1799 = vmatprep.subr.mxu0 0.0
  %1800 = vmatpush1.msra.mxu0 %v1783
  %1801 = vmatprep.subr.mxu0 0.0
  %1802 = vmatpush1.msra.mxu0 %v1782
  %1803 = vmatprep.subr.mxu0 0.0
  %1804 = vmatpush1.msra.mxu0 %v1781
  %1805 = vmatprep.subr.mxu0 0.0
  %1806 = vmatpush1.msra.mxu0 %v1780
  %1807 = vmatprep.subr.mxu0 0.0
  %1808 = vmatpush1.msra.mxu0 %v1779
  %1809 = vmatprep.subr.mxu0 0.0
  %1810 = vmatpush1.msra.mxu0 %v1778
  %1811 = vmatprep.subr.mxu0 0.0
  %1812 = vmatpush1.msra.mxu0 %v1777
  %1813 = vmatprep.subr.mxu0 0.0
  %1814 = vmatpush1.msra.mxu0 %v1776
  %1815 = vmatprep.subr.mxu0 0.0
  %1816 = vmatpush1.msra.mxu0 %v1775
  %1817 = vmatprep.subr.mxu0 0.0
  %1818 = vmatpush1.msra.mxu0 %v1774
  %1819 = vmatprep.subr.mxu0 0.0
  %1820 = vmatpush1.msra.mxu0 %v1773
  %1821 = vmatprep.subr.mxu0 0.0
  %1822 = vmatpush2.msra.mxu0 0.0
  %1823 = vmatprep.subr.mxu0 0.0
  %1824 = vmatpush2.msra.mxu0 0.0
  %1825 = vmatprep.subr.mxu0 0.0
  %1826 = vmatpush2.msra.mxu0 0.0
  %1827 = vmatprep.subr.mxu0 0.0
  %1828 = vmatpush2.msra.mxu0 0.0
  %1829 = vmatprep.subr.mxu0 0.0
  %1830 = vmatpush2.msra.mxu0 0.0
  %1831 = vmatprep.subr.mxu0 0.0
  %1832 = vmatpush2.msra.mxu0 0.0
  %1833 = vmatprep.subr.mxu0 0.0
  %1834 = vmatpush2.msra.mxu0 0.0
  %1835 = vmatprep.subr.mxu0 0.0
  %1836 = vmatpush2.msra.mxu0 0.0
  %1837 = vmatprep.subr.mxu0 0.0
  %1838 = vmatpush2.msra.mxu0 0.0
  %1839 = vmatprep.subr.mxu0 0.0
  %1840 = vmatpush2.msra.mxu0 0.0
  %1841 = vmatprep.subr.mxu0 0.0
  %1842 = vmatpush2.msra.mxu0 0.0
  %1843 = vmatprep.subr.mxu0 0.0
  %1844 = vmatpush2.msra.mxu0 0.0
  %1845 = vmatprep.subr.mxu0 0.0
  %1846 = vmatpush2.msra.mxu0 0.0
  %1847 = vmatprep.subr.mxu0 0.0
  %1848 = vmatpush2.msra.mxu0 0.0
  %1849 = vmatprep.subr.mxu0 0.0
  %1850 = vmatpush2.msra.mxu0 0.0
  %1851 = vmatprep.subr.mxu0 0.0
  %1852 = vmatpush2.msra.mxu0 0.0
  %1853 = vmatprep.mubr.f32.mxu0 0.0
  %1854 = vmatmul.mubr.f32.gmra.mxu0 %v1141
  %v1855 = vpop.f32.mrf.mxu0
  %v1856 = vadd.f32 0.0, %v1855
  %v1857 = vpop.f32.mrf.mxu0
  %1858 = vdwg.mxu0
  %v1859 = vadd.f32 %v1771, %v1856
  %s1860 = scalar_lea.vmem %s3, 1024
  %v1861 = vld [vmem:[%s1860] sm:$0xff]
  %v1862 = vld [vmem:[%s1860 + $0x8] sm:$0xff]
  %v1863 = vld [vmem:[%s1860 + $0x10] sm:$0xff]
  %v1864 = vld [vmem:[%s1860 + $0x18] sm:$0xff]
  %v1865 = vld [vmem:[%s1860 + $0x20] sm:$0xff]
  %v1866 = vld [vmem:[%s1860 + $0x28] sm:$0xff]
  %v1867 = vld [vmem:[%s1860 + $0x30] sm:$0xff]
  %v1868 = vld [vmem:[%s1860 + $0x38] sm:$0xff]
  %v1869 = vld [vmem:[%s1860 + $0x40] sm:$0xff]
  %v1870 = vld [vmem:[%s1860 + $0x48] sm:$0xff]
  %v1871 = vld [vmem:[%s1860 + $0x50] sm:$0xff]
  %v1872 = vld [vmem:[%s1860 + $0x58] sm:$0xff]
  %v1873 = vld [vmem:[%s1860 + $0x60] sm:$0xff]
  %v1874 = vld [vmem:[%s1860 + $0x68] sm:$0xff]
  %v1875 = vld [vmem:[%s1860 + $0x70] sm:$0xff]
  %v1876 = vld [vmem:[%s1860 + $0x78] sm:$0xff]
  %1877 = vmatprep.subr.mxu0 0.0
  %1878 = vmatpush1.msra.mxu0 %v1876
  %1879 = vmatprep.subr.mxu0 0.0
  %1880 = vmatpush1.msra.mxu0 %v1875
  %1881 = vmatprep.subr.mxu0 0.0
  %1882 = vmatpush1.msra.mxu0 %v1874
  %1883 = vmatprep.subr.mxu0 0.0
  %1884 = vmatpush1.msra.mxu0 %v1873
  %1885 = vmatprep.subr.mxu0 0.0
  %1886 = vmatpush1.msra.mxu0 %v1872
  %1887 = vmatprep.subr.mxu0 0.0
  %1888 = vmatpush1.msra.mxu0 %v1871
  %1889 = vmatprep.subr.mxu0 0.0
  %1890 = vmatpush1.msra.mxu0 %v1870
  %1891 = vmatprep.subr.mxu0 0.0
  %1892 = vmatpush1.msra.mxu0 %v1869
  %1893 = vmatprep.subr.mxu0 0.0
  %1894 = vmatpush1.msra.mxu0 %v1868
  %1895 = vmatprep.subr.mxu0 0.0
  %1896 = vmatpush1.msra.mxu0 %v1867
  %1897 = vmatprep.subr.mxu0 0.0
  %1898 = vmatpush1.msra.mxu0 %v1866
  %1899 = vmatprep.subr.mxu0 0.0
  %1900 = vmatpush1.msra.mxu0 %v1865
  %1901 = vmatprep.subr.mxu0 0.0
  %1902 = vmatpush1.msra.mxu0 %v1864
  %1903 = vmatprep.subr.mxu0 0.0
  %1904 = vmatpush1.msra.mxu0 %v1863
  %1905 = vmatprep.subr.mxu0 0.0
  %1906 = vmatpush1.msra.mxu0 %v1862
  %1907 = vmatprep.subr.mxu0 0.0
  %1908 = vmatpush1.msra.mxu0 %v1861
  %1909 = vmatprep.subr.mxu0 0.0
  %1910 = vmatpush2.msra.mxu0 0.0
  %1911 = vmatprep.subr.mxu0 0.0
  %1912 = vmatpush2.msra.mxu0 0.0
  %1913 = vmatprep.subr.mxu0 0.0
  %1914 = vmatpush2.msra.mxu0 0.0
  %1915 = vmatprep.subr.mxu0 0.0
  %1916 = vmatpush2.msra.mxu0 0.0
  %1917 = vmatprep.subr.mxu0 0.0
  %1918 = vmatpush2.msra.mxu0 0.0
  %1919 = vmatprep.subr.mxu0 0.0
  %1920 = vmatpush2.msra.mxu0 0.0
  %1921 = vmatprep.subr.mxu0 0.0
  %1922 = vmatpush2.msra.mxu0 0.0
  %1923 = vmatprep.subr.mxu0 0.0
  %1924 = vmatpush2.msra.mxu0 0.0
  %1925 = vmatprep.subr.mxu0 0.0
  %1926 = vmatpush2.msra.mxu0 0.0
  %1927 = vmatprep.subr.mxu0 0.0
  %1928 = vmatpush2.msra.mxu0 0.0
  %1929 = vmatprep.subr.mxu0 0.0
  %1930 = vmatpush2.msra.mxu0 0.0
  %1931 = vmatprep.subr.mxu0 0.0
  %1932 = vmatpush2.msra.mxu0 0.0
  %1933 = vmatprep.subr.mxu0 0.0
  %1934 = vmatpush2.msra.mxu0 0.0
  %1935 = vmatprep.subr.mxu0 0.0
  %1936 = vmatpush2.msra.mxu0 0.0
  %1937 = vmatprep.subr.mxu0 0.0
  %1938 = vmatpush2.msra.mxu0 0.0
  %1939 = vmatprep.subr.mxu0 0.0
  %1940 = vmatpush2.msra.mxu0 0.0
  %1941 = vmatprep.mubr.f32.mxu0 0.0
  %1942 = vmatmul.mubr.f32.gmra.mxu0 %v1142
  %v1943 = vpop.f32.mrf.mxu0
  %v1944 = vadd.f32 0.0, %v1943
  %v1945 = vpop.f32.mrf.mxu0
  %1946 = vdwg.mxu0
  %v1947 = vadd.f32 %v1859, %v1944
  %s1948 = scalar_lea.vmem %s3, 1152
  %v1949 = vld [vmem:[%s1948] sm:$0xff]
  %v1950 = vld [vmem:[%s1948 + $0x8] sm:$0xff]
  %v1951 = vld [vmem:[%s1948 + $0x10] sm:$0xff]
  %v1952 = vld [vmem:[%s1948 + $0x18] sm:$0xff]
  %v1953 = vld [vmem:[%s1948 + $0x20] sm:$0xff]
  %v1954 = vld [vmem:[%s1948 + $0x28] sm:$0xff]
  %v1955 = vld [vmem:[%s1948 + $0x30] sm:$0xff]
  %v1956 = vld [vmem:[%s1948 + $0x38] sm:$0xff]
  %v1957 = vld [vmem:[%s1948 + $0x40] sm:$0xff]
  %v1958 = vld [vmem:[%s1948 + $0x48] sm:$0xff]
  %v1959 = vld [vmem:[%s1948 + $0x50] sm:$0xff]
  %v1960 = vld [vmem:[%s1948 + $0x58] sm:$0xff]
  %v1961 = vld [vmem:[%s1948 + $0x60] sm:$0xff]
  %v1962 = vld [vmem:[%s1948 + $0x68] sm:$0xff]
  %v1963 = vld [vmem:[%s1948 + $0x70] sm:$0xff]
  %v1964 = vld [vmem:[%s1948 + $0x78] sm:$0xff]
  %1965 = vmatprep.subr.mxu0 0.0
  %1966 = vmatpush1.msra.mxu0 %v1964
  %1967 = vmatprep.subr.mxu0 0.0
  %1968 = vmatpush1.msra.mxu0 %v1963
  %1969 = vmatprep.subr.mxu0 0.0
  %1970 = vmatpush1.msra.mxu0 %v1962
  %1971 = vmatprep.subr.mxu0 0.0
  %1972 = vmatpush1.msra.mxu0 %v1961
  %1973 = vmatprep.subr.mxu0 0.0
  %1974 = vmatpush1.msra.mxu0 %v1960
  %1975 = vmatprep.subr.mxu0 0.0
  %1976 = vmatpush1.msra.mxu0 %v1959
  %1977 = vmatprep.subr.mxu0 0.0
  %1978 = vmatpush1.msra.mxu0 %v1958
  %1979 = vmatprep.subr.mxu0 0.0
  %1980 = vmatpush1.msra.mxu0 %v1957
  %1981 = vmatprep.subr.mxu0 0.0
  %1982 = vmatpush1.msra.mxu0 %v1956
  %1983 = vmatprep.subr.mxu0 0.0
  %1984 = vmatpush1.msra.mxu0 %v1955
  %1985 = vmatprep.subr.mxu0 0.0
  %1986 = vmatpush1.msra.mxu0 %v1954
  %1987 = vmatprep.subr.mxu0 0.0
  %1988 = vmatpush1.msra.mxu0 %v1953
  %1989 = vmatprep.subr.mxu0 0.0
  %1990 = vmatpush1.msra.mxu0 %v1952
  %1991 = vmatprep.subr.mxu0 0.0
  %1992 = vmatpush1.msra.mxu0 %v1951
  %1993 = vmatprep.subr.mxu0 0.0
  %1994 = vmatpush1.msra.mxu0 %v1950
  %1995 = vmatprep.subr.mxu0 0.0
  %1996 = vmatpush1.msra.mxu0 %v1949
  %1997 = vmatprep.subr.mxu0 0.0
  %1998 = vmatpush2.msra.mxu0 0.0
  %1999 = vmatprep.subr.mxu0 0.0
  %2000 = vmatpush2.msra.mxu0 0.0
  %2001 = vmatprep.subr.mxu0 0.0
  %2002 = vmatpush2.msra.mxu0 0.0
  %2003 = vmatprep.subr.mxu0 0.0
  %2004 = vmatpush2.msra.mxu0 0.0
  %2005 = vmatprep.subr.mxu0 0.0
  %2006 = vmatpush2.msra.mxu0 0.0
  %2007 = vmatprep.subr.mxu0 0.0
  %2008 = vmatpush2.msra.mxu0 0.0
  %2009 = vmatprep.subr.mxu0 0.0
  %2010 = vmatpush2.msra.mxu0 0.0
  %2011 = vmatprep.subr.mxu0 0.0
  %2012 = vmatpush2.msra.mxu0 0.0
  %2013 = vmatprep.subr.mxu0 0.0
  %2014 = vmatpush2.msra.mxu0 0.0
  %2015 = vmatprep.subr.mxu0 0.0
  %2016 = vmatpush2.msra.mxu0 0.0
  %2017 = vmatprep.subr.mxu0 0.0
  %2018 = vmatpush2.msra.mxu0 0.0
  %2019 = vmatprep.subr.mxu0 0.0
  %2020 = vmatpush2.msra.mxu0 0.0
  %2021 = vmatprep.subr.mxu0 0.0
  %2022 = vmatpush2.msra.mxu0 0.0
  %2023 = vmatprep.subr.mxu0 0.0
  %2024 = vmatpush2.msra.mxu0 0.0
  %2025 = vmatprep.subr.mxu0 0.0
  %2026 = vmatpush2.msra.mxu0 0.0
  %2027 = vmatprep.subr.mxu0 0.0
  %2028 = vmatpush2.msra.mxu0 0.0
  %2029 = vmatprep.mubr.f32.mxu0 0.0
  %2030 = vmatmul.mubr.f32.gmra.mxu0 %v1143
  %v2031 = vpop.f32.mrf.mxu0
  %v2032 = vadd.f32 0.0, %v2031
  %v2033 = vpop.f32.mrf.mxu0
  %2034 = vdwg.mxu0
  %v2035 = vadd.f32 %v1947, %v2032
  %s2036 = scalar_lea.vmem %s3, 1280
  %v2037 = vld [vmem:[%s2036] sm:$0xff]
  %v2038 = vld [vmem:[%s2036 + $0x8] sm:$0xff]
  %v2039 = vld [vmem:[%s2036 + $0x10] sm:$0xff]
  %v2040 = vld [vmem:[%s2036 + $0x18] sm:$0xff]
  %v2041 = vld [vmem:[%s2036 + $0x20] sm:$0xff]
  %v2042 = vld [vmem:[%s2036 + $0x28] sm:$0xff]
  %v2043 = vld [vmem:[%s2036 + $0x30] sm:$0xff]
  %v2044 = vld [vmem:[%s2036 + $0x38] sm:$0xff]
  %v2045 = vld [vmem:[%s2036 + $0x40] sm:$0xff]
  %v2046 = vld [vmem:[%s2036 + $0x48] sm:$0xff]
  %v2047 = vld [vmem:[%s2036 + $0x50] sm:$0xff]
  %v2048 = vld [vmem:[%s2036 + $0x58] sm:$0xff]
  %v2049 = vld [vmem:[%s2036 + $0x60] sm:$0xff]
  %v2050 = vld [vmem:[%s2036 + $0x68] sm:$0xff]
  %v2051 = vld [vmem:[%s2036 + $0x70] sm:$0xff]
  %v2052 = vld [vmem:[%s2036 + $0x78] sm:$0xff]
  %2053 = vmatprep.subr.mxu0 0.0
  %2054 = vmatpush1.msra.mxu0 %v2052
  %2055 = vmatprep.subr.mxu0 0.0
  %2056 = vmatpush1.msra.mxu0 %v2051
  %2057 = vmatprep.subr.mxu0 0.0
  %2058 = vmatpush1.msra.mxu0 %v2050
  %2059 = vmatprep.subr.mxu0 0.0
  %2060 = vmatpush1.msra.mxu0 %v2049
  %2061 = vmatprep.subr.mxu0 0.0
  %2062 = vmatpush1.msra.mxu0 %v2048
  %2063 = vmatprep.subr.mxu0 0.0
  %2064 = vmatpush1.msra.mxu0 %v2047
  %2065 = vmatprep.subr.mxu0 0.0
  %2066 = vmatpush1.msra.mxu0 %v2046
  %2067 = vmatprep.subr.mxu0 0.0
  %2068 = vmatpush1.msra.mxu0 %v2045
  %2069 = vmatprep.subr.mxu0 0.0
  %2070 = vmatpush1.msra.mxu0 %v2044
  %2071 = vmatprep.subr.mxu0 0.0
  %2072 = vmatpush1.msra.mxu0 %v2043
  %2073 = vmatprep.subr.mxu0 0.0
  %2074 = vmatpush1.msra.mxu0 %v2042
  %2075 = vmatprep.subr.mxu0 0.0
  %2076 = vmatpush1.msra.mxu0 %v2041
  %2077 = vmatprep.subr.mxu0 0.0
  %2078 = vmatpush1.msra.mxu0 %v2040
  %2079 = vmatprep.subr.mxu0 0.0
  %2080 = vmatpush1.msra.mxu0 %v2039
  %2081 = vmatprep.subr.mxu0 0.0
  %2082 = vmatpush1.msra.mxu0 %v2038
  %2083 = vmatprep.subr.mxu0 0.0
  %2084 = vmatpush1.msra.mxu0 %v2037
  %2085 = vmatprep.subr.mxu0 0.0
  %2086 = vmatpush2.msra.mxu0 0.0
  %2087 = vmatprep.subr.mxu0 0.0
  %2088 = vmatpush2.msra.mxu0 0.0
  %2089 = vmatprep.subr.mxu0 0.0
  %2090 = vmatpush2.msra.mxu0 0.0
  %2091 = vmatprep.subr.mxu0 0.0
  %2092 = vmatpush2.msra.mxu0 0.0
  %2093 = vmatprep.subr.mxu0 0.0
  %2094 = vmatpush2.msra.mxu0 0.0
  %2095 = vmatprep.subr.mxu0 0.0
  %2096 = vmatpush2.msra.mxu0 0.0
  %2097 = vmatprep.subr.mxu0 0.0
  %2098 = vmatpush2.msra.mxu0 0.0
  %2099 = vmatprep.subr.mxu0 0.0
  %2100 = vmatpush2.msra.mxu0 0.0
  %2101 = vmatprep.subr.mxu0 0.0
  %2102 = vmatpush2.msra.mxu0 0.0
  %2103 = vmatprep.subr.mxu0 0.0
  %2104 = vmatpush2.msra.mxu0 0.0
  %2105 = vmatprep.subr.mxu0 0.0
  %2106 = vmatpush2.msra.mxu0 0.0
  %2107 = vmatprep.subr.mxu0 0.0
  %2108 = vmatpush2.msra.mxu0 0.0
  %2109 = vmatprep.subr.mxu0 0.0
  %2110 = vmatpush2.msra.mxu0 0.0
  %2111 = vmatprep.subr.mxu0 0.0
  %2112 = vmatpush2.msra.mxu0 0.0
  %2113 = vmatprep.subr.mxu0 0.0
  %2114 = vmatpush2.msra.mxu0 0.0
  %2115 = vmatprep.subr.mxu0 0.0
  %2116 = vmatpush2.msra.mxu0 0.0
  %2117 = vmatprep.mubr.f32.mxu0 0.0
  %2118 = vmatmul.mubr.f32.gmra.mxu0 %v1144
  %v2119 = vpop.f32.mrf.mxu0
  %v2120 = vadd.f32 0.0, %v2119
  %v2121 = vpop.f32.mrf.mxu0
  %2122 = vdwg.mxu0
  %v2123 = vadd.f32 %v2035, %v2120
  %s2124 = scalar_lea.vmem %s3, 1408
  %v2125 = vld [vmem:[%s2124] sm:$0xff]
  %v2126 = vld [vmem:[%s2124 + $0x8] sm:$0xff]
  %v2127 = vld [vmem:[%s2124 + $0x10] sm:$0xff]
  %v2128 = vld [vmem:[%s2124 + $0x18] sm:$0xff]
  %v2129 = vld [vmem:[%s2124 + $0x20] sm:$0xff]
  %v2130 = vld [vmem:[%s2124 + $0x28] sm:$0xff]
  %v2131 = vld [vmem:[%s2124 + $0x30] sm:$0xff]
  %v2132 = vld [vmem:[%s2124 + $0x38] sm:$0xff]
  %v2133 = vld [vmem:[%s2124 + $0x40] sm:$0xff]
  %v2134 = vld [vmem:[%s2124 + $0x48] sm:$0xff]
  %v2135 = vld [vmem:[%s2124 + $0x50] sm:$0xff]
  %v2136 = vld [vmem:[%s2124 + $0x58] sm:$0xff]
  %v2137 = vld [vmem:[%s2124 + $0x60] sm:$0xff]
  %v2138 = vld [vmem:[%s2124 + $0x68] sm:$0xff]
  %v2139 = vld [vmem:[%s2124 + $0x70] sm:$0xff]
  %v2140 = vld [vmem:[%s2124 + $0x78] sm:$0xff]
  %2141 = vmatprep.subr.mxu0 0.0
  %2142 = vmatpush1.msra.mxu0 %v2140
  %2143 = vmatprep.subr.mxu0 0.0
  %2144 = vmatpush1.msra.mxu0 %v2139
  %2145 = vmatprep.subr.mxu0 0.0
  %2146 = vmatpush1.msra.mxu0 %v2138
  %2147 = vmatprep.subr.mxu0 0.0
  %2148 = vmatpush1.msra.mxu0 %v2137
  %2149 = vmatprep.subr.mxu0 0.0
  %2150 = vmatpush1.msra.mxu0 %v2136
  %2151 = vmatprep.subr.mxu0 0.0
  %2152 = vmatpush1.msra.mxu0 %v2135
  %2153 = vmatprep.subr.mxu0 0.0
  %2154 = vmatpush1.msra.mxu0 %v2134
  %2155 = vmatprep.subr.mxu0 0.0
  %2156 = vmatpush1.msra.mxu0 %v2133
  %2157 = vmatprep.subr.mxu0 0.0
  %2158 = vmatpush1.msra.mxu0 %v2132
  %2159 = vmatprep.subr.mxu0 0.0
  %2160 = vmatpush1.msra.mxu0 %v2131
  %2161 = vmatprep.subr.mxu0 0.0
  %2162 = vmatpush1.msra.mxu0 %v2130
  %2163 = vmatprep.subr.mxu0 0.0
  %2164 = vmatpush1.msra.mxu0 %v2129
  %2165 = vmatprep.subr.mxu0 0.0
  %2166 = vmatpush1.msra.mxu0 %v2128
  %2167 = vmatprep.subr.mxu0 0.0
  %2168 = vmatpush1.msra.mxu0 %v2127
  %2169 = vmatprep.subr.mxu0 0.0
  %2170 = vmatpush1.msra.mxu0 %v2126
  %2171 = vmatprep.subr.mxu0 0.0
  %2172 = vmatpush1.msra.mxu0 %v2125
  %2173 = vmatprep.subr.mxu0 0.0
  %2174 = vmatpush2.msra.mxu0 0.0
  %2175 = vmatprep.subr.mxu0 0.0
  %2176 = vmatpush2.msra.mxu0 0.0
  %2177 = vmatprep.subr.mxu0 0.0
  %2178 = vmatpush2.msra.mxu0 0.0
  %2179 = vmatprep.subr.mxu0 0.0
  %2180 = vmatpush2.msra.mxu0 0.0
  %2181 = vmatprep.subr.mxu0 0.0
  %2182 = vmatpush2.msra.mxu0 0.0
  %2183 = vmatprep.subr.mxu0 0.0
  %2184 = vmatpush2.msra.mxu0 0.0
  %2185 = vmatprep.subr.mxu0 0.0
  %2186 = vmatpush2.msra.mxu0 0.0
  %2187 = vmatprep.subr.mxu0 0.0
  %2188 = vmatpush2.msra.mxu0 0.0
  %2189 = vmatprep.subr.mxu0 0.0
  %2190 = vmatpush2.msra.mxu0 0.0
  %2191 = vmatprep.subr.mxu0 0.0
  %2192 = vmatpush2.msra.mxu0 0.0
  %2193 = vmatprep.subr.mxu0 0.0
  %2194 = vmatpush2.msra.mxu0 0.0
  %2195 = vmatprep.subr.mxu0 0.0
  %2196 = vmatpush2.msra.mxu0 0.0
  %2197 = vmatprep.subr.mxu0 0.0
  %2198 = vmatpush2.msra.mxu0 0.0
  %2199 = vmatprep.subr.mxu0 0.0
  %2200 = vmatpush2.msra.mxu0 0.0
  %2201 = vmatprep.subr.mxu0 0.0
  %2202 = vmatpush2.msra.mxu0 0.0
  %2203 = vmatprep.subr.mxu0 0.0
  %2204 = vmatpush2.msra.mxu0 0.0
  %2205 = vmatprep.mubr.f32.mxu0 0.0
  %2206 = vmatmul.mubr.f32.gmra.mxu0 %v1145
  %v2207 = vpop.f32.mrf.mxu0
  %v2208 = vadd.f32 0.0, %v2207
  %v2209 = vpop.f32.mrf.mxu0
  %2210 = vdwg.mxu0
  %v2211 = vadd.f32 %v2123, %v2208
  %s2212 = scalar_lea.vmem %s3, 1536
  %v2213 = vld [vmem:[%s2212] sm:$0xff]
  %v2214 = vld [vmem:[%s2212 + $0x8] sm:$0xff]
  %v2215 = vld [vmem:[%s2212 + $0x10] sm:$0xff]
  %v2216 = vld [vmem:[%s2212 + $0x18] sm:$0xff]
  %v2217 = vld [vmem:[%s2212 + $0x20] sm:$0xff]
  %v2218 = vld [vmem:[%s2212 + $0x28] sm:$0xff]
  %v2219 = vld [vmem:[%s2212 + $0x30] sm:$0xff]
  %v2220 = vld [vmem:[%s2212 + $0x38] sm:$0xff]
  %v2221 = vld [vmem:[%s2212 + $0x40] sm:$0xff]
  %v2222 = vld [vmem:[%s2212 + $0x48] sm:$0xff]
  %v2223 = vld [vmem:[%s2212 + $0x50] sm:$0xff]
  %v2224 = vld [vmem:[%s2212 + $0x58] sm:$0xff]
  %v2225 = vld [vmem:[%s2212 + $0x60] sm:$0xff]
  %v2226 = vld [vmem:[%s2212 + $0x68] sm:$0xff]
  %v2227 = vld [vmem:[%s2212 + $0x70] sm:$0xff]
  %v2228 = vld [vmem:[%s2212 + $0x78] sm:$0xff]
  %2229 = vmatprep.subr.mxu0 0.0
  %2230 = vmatpush1.msra.mxu0 %v2228
  %2231 = vmatprep.subr.mxu0 0.0
  %2232 = vmatpush1.msra.mxu0 %v2227
  %2233 = vmatprep.subr.mxu0 0.0
  %2234 = vmatpush1.msra.mxu0 %v2226
  %2235 = vmatprep.subr.mxu0 0.0
  %2236 = vmatpush1.msra.mxu0 %v2225
  %2237 = vmatprep.subr.mxu0 0.0
  %2238 = vmatpush1.msra.mxu0 %v2224
  %2239 = vmatprep.subr.mxu0 0.0
  %2240 = vmatpush1.msra.mxu0 %v2223
  %2241 = vmatprep.subr.mxu0 0.0
  %2242 = vmatpush1.msra.mxu0 %v2222
  %2243 = vmatprep.subr.mxu0 0.0
  %2244 = vmatpush1.msra.mxu0 %v2221
  %2245 = vmatprep.subr.mxu0 0.0
  %2246 = vmatpush1.msra.mxu0 %v2220
  %2247 = vmatprep.subr.mxu0 0.0
  %2248 = vmatpush1.msra.mxu0 %v2219
  %2249 = vmatprep.subr.mxu0 0.0
  %2250 = vmatpush1.msra.mxu0 %v2218
  %2251 = vmatprep.subr.mxu0 0.0
  %2252 = vmatpush1.msra.mxu0 %v2217
  %2253 = vmatprep.subr.mxu0 0.0
  %2254 = vmatpush1.msra.mxu0 %v2216
  %2255 = vmatprep.subr.mxu0 0.0
  %2256 = vmatpush1.msra.mxu0 %v2215
  %2257 = vmatprep.subr.mxu0 0.0
  %2258 = vmatpush1.msra.mxu0 %v2214
  %2259 = vmatprep.subr.mxu0 0.0
  %2260 = vmatpush1.msra.mxu0 %v2213
  %2261 = vmatprep.subr.mxu0 0.0
  %2262 = vmatpush2.msra.mxu0 0.0
  %2263 = vmatprep.subr.mxu0 0.0
  %2264 = vmatpush2.msra.mxu0 0.0
  %2265 = vmatprep.subr.mxu0 0.0
  %2266 = vmatpush2.msra.mxu0 0.0
  %2267 = vmatprep.subr.mxu0 0.0
  %2268 = vmatpush2.msra.mxu0 0.0
  %2269 = vmatprep.subr.mxu0 0.0
  %2270 = vmatpush2.msra.mxu0 0.0
  %2271 = vmatprep.subr.mxu0 0.0
  %2272 = vmatpush2.msra.mxu0 0.0
  %2273 = vmatprep.subr.mxu0 0.0
  %2274 = vmatpush2.msra.mxu0 0.0
  %2275 = vmatprep.subr.mxu0 0.0
  %2276 = vmatpush2.msra.mxu0 0.0
  %2277 = vmatprep.subr.mxu0 0.0
  %2278 = vmatpush2.msra.mxu0 0.0
  %2279 = vmatprep.subr.mxu0 0.0
  %2280 = vmatpush2.msra.mxu0 0.0
  %2281 = vmatprep.subr.mxu0 0.0
  %2282 = vmatpush2.msra.mxu0 0.0
  %2283 = vmatprep.subr.mxu0 0.0
  %2284 = vmatpush2.msra.mxu0 0.0
  %2285 = vmatprep.subr.mxu0 0.0
  %2286 = vmatpush2.msra.mxu0 0.0
  %2287 = vmatprep.subr.mxu0 0.0
  %2288 = vmatpush2.msra.mxu0 0.0
  %2289 = vmatprep.subr.mxu0 0.0
  %2290 = vmatpush2.msra.mxu0 0.0
  %2291 = vmatprep.subr.mxu0 0.0
  %2292 = vmatpush2.msra.mxu0 0.0
  %2293 = vmatprep.mubr.f32.mxu0 0.0
  %2294 = vmatmul.mubr.f32.gmra.mxu0 %v1146
  %v2295 = vpop.f32.mrf.mxu0
  %v2296 = vadd.f32 0.0, %v2295
  %v2297 = vpop.f32.mrf.mxu0
  %2298 = vdwg.mxu0
  %v2299 = vadd.f32 %v2211, %v2296
  %s2300 = scalar_lea.vmem %s3, 1664
  %v2301 = vld [vmem:[%s2300] sm:$0xff]
  %v2302 = vld [vmem:[%s2300 + $0x8] sm:$0xff]
  %v2303 = vld [vmem:[%s2300 + $0x10] sm:$0xff]
  %v2304 = vld [vmem:[%s2300 + $0x18] sm:$0xff]
  %v2305 = vld [vmem:[%s2300 + $0x20] sm:$0xff]
  %v2306 = vld [vmem:[%s2300 + $0x28] sm:$0xff]
  %v2307 = vld [vmem:[%s2300 + $0x30] sm:$0xff]
  %v2308 = vld [vmem:[%s2300 + $0x38] sm:$0xff]
  %v2309 = vld [vmem:[%s2300 + $0x40] sm:$0xff]
  %v2310 = vld [vmem:[%s2300 + $0x48] sm:$0xff]
  %v2311 = vld [vmem:[%s2300 + $0x50] sm:$0xff]
  %v2312 = vld [vmem:[%s2300 + $0x58] sm:$0xff]
  %v2313 = vld [vmem:[%s2300 + $0x60] sm:$0xff]
  %v2314 = vld [vmem:[%s2300 + $0x68] sm:$0xff]
  %v2315 = vld [vmem:[%s2300 + $0x70] sm:$0xff]
  %v2316 = vld [vmem:[%s2300 + $0x78] sm:$0xff]
  %2317 = vmatprep.subr.mxu0 0.0
  %2318 = vmatpush1.msra.mxu0 %v2316
  %2319 = vmatprep.subr.mxu0 0.0
  %2320 = vmatpush1.msra.mxu0 %v2315
  %2321 = vmatprep.subr.mxu0 0.0
  %2322 = vmatpush1.msra.mxu0 %v2314
  %2323 = vmatprep.subr.mxu0 0.0
  %2324 = vmatpush1.msra.mxu0 %v2313
  %2325 = vmatprep.subr.mxu0 0.0
  %2326 = vmatpush1.msra.mxu0 %v2312
  %2327 = vmatprep.subr.mxu0 0.0
  %2328 = vmatpush1.msra.mxu0 %v2311
  %2329 = vmatprep.subr.mxu0 0.0
  %2330 = vmatpush1.msra.mxu0 %v2310
  %2331 = vmatprep.subr.mxu0 0.0
  %2332 = vmatpush1.msra.mxu0 %v2309
  %2333 = vmatprep.subr.mxu0 0.0
  %2334 = vmatpush1.msra.mxu0 %v2308
  %2335 = vmatprep.subr.mxu0 0.0
  %2336 = vmatpush1.msra.mxu0 %v2307
  %2337 = vmatprep.subr.mxu0 0.0
  %2338 = vmatpush1.msra.mxu0 %v2306
  %2339 = vmatprep.subr.mxu0 0.0
  %2340 = vmatpush1.msra.mxu0 %v2305
  %2341 = vmatprep.subr.mxu0 0.0
  %2342 = vmatpush1.msra.mxu0 %v2304
  %2343 = vmatprep.subr.mxu0 0.0
  %2344 = vmatpush1.msra.mxu0 %v2303
  %2345 = vmatprep.subr.mxu0 0.0
  %2346 = vmatpush1.msra.mxu0 %v2302
  %2347 = vmatprep.subr.mxu0 0.0
  %2348 = vmatpush1.msra.mxu0 %v2301
  %2349 = vmatprep.subr.mxu0 0.0
  %2350 = vmatpush2.msra.mxu0 0.0
  %2351 = vmatprep.subr.mxu0 0.0
  %2352 = vmatpush2.msra.mxu0 0.0
  %2353 = vmatprep.subr.mxu0 0.0
  %2354 = vmatpush2.msra.mxu0 0.0
  %2355 = vmatprep.subr.mxu0 0.0
  %2356 = vmatpush2.msra.mxu0 0.0
  %2357 = vmatprep.subr.mxu0 0.0
  %2358 = vmatpush2.msra.mxu0 0.0
  %2359 = vmatprep.subr.mxu0 0.0
  %2360 = vmatpush2.msra.mxu0 0.0
  %2361 = vmatprep.subr.mxu0 0.0
  %2362 = vmatpush2.msra.mxu0 0.0
  %2363 = vmatprep.subr.mxu0 0.0
  %2364 = vmatpush2.msra.mxu0 0.0
  %2365 = vmatprep.subr.mxu0 0.0
  %2366 = vmatpush2.msra.mxu0 0.0
  %2367 = vmatprep.subr.mxu0 0.0
  %2368 = vmatpush2.msra.mxu0 0.0
  %2369 = vmatprep.subr.mxu0 0.0
  %2370 = vmatpush2.msra.mxu0 0.0
  %2371 = vmatprep.subr.mxu0 0.0
  %2372 = vmatpush2.msra.mxu0 0.0
  %2373 = vmatprep.subr.mxu0 0.0
  %2374 = vmatpush2.msra.mxu0 0.0
  %2375 = vmatprep.subr.mxu0 0.0
  %2376 = vmatpush2.msra.mxu0 0.0
  %2377 = vmatprep.subr.mxu0 0.0
  %2378 = vmatpush2.msra.mxu0 0.0
  %2379 = vmatprep.subr.mxu0 0.0
  %2380 = vmatpush2.msra.mxu0 0.0
  %2381 = vmatprep.mubr.f32.mxu0 0.0
  %2382 = vmatmul.mubr.f32.gmra.mxu0 %v1147
  %v2383 = vpop.f32.mrf.mxu0
  %v2384 = vadd.f32 0.0, %v2383
  %v2385 = vpop.f32.mrf.mxu0
  %2386 = vdwg.mxu0
  %v2387 = vadd.f32 %v2299, %v2384
  %s2388 = scalar_lea.vmem %s3, 1792
  %v2389 = vld [vmem:[%s2388] sm:$0xff]
  %v2390 = vld [vmem:[%s2388 + $0x8] sm:$0xff]
  %v2391 = vld [vmem:[%s2388 + $0x10] sm:$0xff]
  %v2392 = vld [vmem:[%s2388 + $0x18] sm:$0xff]
  %v2393 = vld [vmem:[%s2388 + $0x20] sm:$0xff]
  %v2394 = vld [vmem:[%s2388 + $0x28] sm:$0xff]
  %v2395 = vld [vmem:[%s2388 + $0x30] sm:$0xff]
  %v2396 = vld [vmem:[%s2388 + $0x38] sm:$0xff]
  %v2397 = vld [vmem:[%s2388 + $0x40] sm:$0xff]
  %v2398 = vld [vmem:[%s2388 + $0x48] sm:$0xff]
  %v2399 = vld [vmem:[%s2388 + $0x50] sm:$0xff]
  %v2400 = vld [vmem:[%s2388 + $0x58] sm:$0xff]
  %v2401 = vld [vmem:[%s2388 + $0x60] sm:$0xff]
  %v2402 = vld [vmem:[%s2388 + $0x68] sm:$0xff]
  %v2403 = vld [vmem:[%s2388 + $0x70] sm:$0xff]
  %v2404 = vld [vmem:[%s2388 + $0x78] sm:$0xff]
  %2405 = vmatprep.subr.mxu0 0.0
  %2406 = vmatpush1.msra.mxu0 %v2404
  %2407 = vmatprep.subr.mxu0 0.0
  %2408 = vmatpush1.msra.mxu0 %v2403
  %2409 = vmatprep.subr.mxu0 0.0
  %2410 = vmatpush1.msra.mxu0 %v2402
  %2411 = vmatprep.subr.mxu0 0.0
  %2412 = vmatpush1.msra.mxu0 %v2401
  %2413 = vmatprep.subr.mxu0 0.0
  %2414 = vmatpush1.msra.mxu0 %v2400
  %2415 = vmatprep.subr.mxu0 0.0
  %2416 = vmatpush1.msra.mxu0 %v2399
  %2417 = vmatprep.subr.mxu0 0.0
  %2418 = vmatpush1.msra.mxu0 %v2398
  %2419 = vmatprep.subr.mxu0 0.0
  %2420 = vmatpush1.msra.mxu0 %v2397
  %2421 = vmatprep.subr.mxu0 0.0
  %2422 = vmatpush1.msra.mxu0 %v2396
  %2423 = vmatprep.subr.mxu0 0.0
  %2424 = vmatpush1.msra.mxu0 %v2395
  %2425 = vmatprep.subr.mxu0 0.0
  %2426 = vmatpush1.msra.mxu0 %v2394
  %2427 = vmatprep.subr.mxu0 0.0
  %2428 = vmatpush1.msra.mxu0 %v2393
  %2429 = vmatprep.subr.mxu0 0.0
  %2430 = vmatpush1.msra.mxu0 %v2392
  %2431 = vmatprep.subr.mxu0 0.0
  %2432 = vmatpush1.msra.mxu0 %v2391
  %2433 = vmatprep.subr.mxu0 0.0
  %2434 = vmatpush1.msra.mxu0 %v2390
  %2435 = vmatprep.subr.mxu0 0.0
  %2436 = vmatpush1.msra.mxu0 %v2389
  %2437 = vmatprep.subr.mxu0 0.0
  %2438 = vmatpush2.msra.mxu0 0.0
  %2439 = vmatprep.subr.mxu0 0.0
  %2440 = vmatpush2.msra.mxu0 0.0
  %2441 = vmatprep.subr.mxu0 0.0
  %2442 = vmatpush2.msra.mxu0 0.0
  %2443 = vmatprep.subr.mxu0 0.0
  %2444 = vmatpush2.msra.mxu0 0.0
  %2445 = vmatprep.subr.mxu0 0.0
  %2446 = vmatpush2.msra.mxu0 0.0
  %2447 = vmatprep.subr.mxu0 0.0
  %2448 = vmatpush2.msra.mxu0 0.0
  %2449 = vmatprep.subr.mxu0 0.0
  %2450 = vmatpush2.msra.mxu0 0.0
  %2451 = vmatprep.subr.mxu0 0.0
  %2452 = vmatpush2.msra.mxu0 0.0
  %2453 = vmatprep.subr.mxu0 0.0
  %2454 = vmatpush2.msra.mxu0 0.0
  %2455 = vmatprep.subr.mxu0 0.0
  %2456 = vmatpush2.msra.mxu0 0.0
  %2457 = vmatprep.subr.mxu0 0.0
  %2458 = vmatpush2.msra.mxu0 0.0
  %2459 = vmatprep.subr.mxu0 0.0
  %2460 = vmatpush2.msra.mxu0 0.0
  %2461 = vmatprep.subr.mxu0 0.0
  %2462 = vmatpush2.msra.mxu0 0.0
  %2463 = vmatprep.subr.mxu0 0.0
  %2464 = vmatpush2.msra.mxu0 0.0
  %2465 = vmatprep.subr.mxu0 0.0
  %2466 = vmatpush2.msra.mxu0 0.0
  %2467 = vmatprep.subr.mxu0 0.0
  %2468 = vmatpush2.msra.mxu0 0.0
  %2469 = vmatprep.mubr.f32.mxu0 0.0
  %2470 = vmatmul.mubr.f32.gmra.mxu0 %v1148
  %v2471 = vpop.f32.mrf.mxu0
  %v2472 = vadd.f32 0.0, %v2471
  %v2473 = vpop.f32.mrf.mxu0
  %2474 = vdwg.mxu0
  %v2475 = vadd.f32 %v2387, %v2472
  %s2476 = scalar_lea.vmem %s3, 1920
  %v2477 = vld [vmem:[%s2476] sm:$0xff]
  %v2478 = vld [vmem:[%s2476 + $0x8] sm:$0xff]
  %v2479 = vld [vmem:[%s2476 + $0x10] sm:$0xff]
  %v2480 = vld [vmem:[%s2476 + $0x18] sm:$0xff]
  %v2481 = vld [vmem:[%s2476 + $0x20] sm:$0xff]
  %v2482 = vld [vmem:[%s2476 + $0x28] sm:$0xff]
  %v2483 = vld [vmem:[%s2476 + $0x30] sm:$0xff]
  %v2484 = vld [vmem:[%s2476 + $0x38] sm:$0xff]
  %v2485 = vld [vmem:[%s2476 + $0x40] sm:$0xff]
  %v2486 = vld [vmem:[%s2476 + $0x48] sm:$0xff]
  %v2487 = vld [vmem:[%s2476 + $0x50] sm:$0xff]
  %v2488 = vld [vmem:[%s2476 + $0x58] sm:$0xff]
  %v2489 = vld [vmem:[%s2476 + $0x60] sm:$0xff]
  %v2490 = vld [vmem:[%s2476 + $0x68] sm:$0xff]
  %v2491 = vld [vmem:[%s2476 + $0x70] sm:$0xff]
  %v2492 = vld [vmem:[%s2476 + $0x78] sm:$0xff]
  %2493 = vmatprep.subr.mxu0 0.0
  %2494 = vmatpush1.msra.mxu0 %v2492
  %2495 = vmatprep.subr.mxu0 0.0
  %2496 = vmatpush1.msra.mxu0 %v2491
  %2497 = vmatprep.subr.mxu0 0.0
  %2498 = vmatpush1.msra.mxu0 %v2490
  %2499 = vmatprep.subr.mxu0 0.0
  %2500 = vmatpush1.msra.mxu0 %v2489
  %2501 = vmatprep.subr.mxu0 0.0
  %2502 = vmatpush1.msra.mxu0 %v2488
  %2503 = vmatprep.subr.mxu0 0.0
  %2504 = vmatpush1.msra.mxu0 %v2487
  %2505 = vmatprep.subr.mxu0 0.0
  %2506 = vmatpush1.msra.mxu0 %v2486
  %2507 = vmatprep.subr.mxu0 0.0
  %2508 = vmatpush1.msra.mxu0 %v2485
  %2509 = vmatprep.subr.mxu0 0.0
  %2510 = vmatpush1.msra.mxu0 %v2484
  %2511 = vmatprep.subr.mxu0 0.0
  %2512 = vmatpush1.msra.mxu0 %v2483
  %2513 = vmatprep.subr.mxu0 0.0
  %2514 = vmatpush1.msra.mxu0 %v2482
  %2515 = vmatprep.subr.mxu0 0.0
  %2516 = vmatpush1.msra.mxu0 %v2481
  %2517 = vmatprep.subr.mxu0 0.0
  %2518 = vmatpush1.msra.mxu0 %v2480
  %2519 = vmatprep.subr.mxu0 0.0
  %2520 = vmatpush1.msra.mxu0 %v2479
  %2521 = vmatprep.subr.mxu0 0.0
  %2522 = vmatpush1.msra.mxu0 %v2478
  %2523 = vmatprep.subr.mxu0 0.0
  %2524 = vmatpush1.msra.mxu0 %v2477
  %2525 = vmatprep.subr.mxu0 0.0
  %2526 = vmatpush2.msra.mxu0 0.0
  %2527 = vmatprep.subr.mxu0 0.0
  %2528 = vmatpush2.msra.mxu0 0.0
  %2529 = vmatprep.subr.mxu0 0.0
  %2530 = vmatpush2.msra.mxu0 0.0
  %2531 = vmatprep.subr.mxu0 0.0
  %2532 = vmatpush2.msra.mxu0 0.0
  %2533 = vmatprep.subr.mxu0 0.0
  %2534 = vmatpush2.msra.mxu0 0.0
  %2535 = vmatprep.subr.mxu0 0.0
  %2536 = vmatpush2.msra.mxu0 0.0
  %2537 = vmatprep.subr.mxu0 0.0
  %2538 = vmatpush2.msra.mxu0 0.0
  %2539 = vmatprep.subr.mxu0 0.0
  %2540 = vmatpush2.msra.mxu0 0.0
  %2541 = vmatprep.subr.mxu0 0.0
  %2542 = vmatpush2.msra.mxu0 0.0
  %2543 = vmatprep.subr.mxu0 0.0
  %2544 = vmatpush2.msra.mxu0 0.0
  %2545 = vmatprep.subr.mxu0 0.0
  %2546 = vmatpush2.msra.mxu0 0.0
  %2547 = vmatprep.subr.mxu0 0.0
  %2548 = vmatpush2.msra.mxu0 0.0
  %2549 = vmatprep.subr.mxu0 0.0
  %2550 = vmatpush2.msra.mxu0 0.0
  %2551 = vmatprep.subr.mxu0 0.0
  %2552 = vmatpush2.msra.mxu0 0.0
  %2553 = vmatprep.subr.mxu0 0.0
  %2554 = vmatpush2.msra.mxu0 0.0
  %2555 = vmatprep.subr.mxu0 0.0
  %2556 = vmatpush2.msra.mxu0 0.0
  %2557 = vmatprep.mubr.f32.mxu0 0.0
  %2558 = vmatmul.mubr.f32.gmra.mxu0 %v1149
  %v2559 = vpop.f32.mrf.mxu0
  %v2560 = vadd.f32 0.0, %v2559
  %v2561 = vpop.f32.mrf.mxu0
  %2562 = vdwg.mxu0
  %v2563 = vadd.f32 %v2475, %v2560
  %s2564 = scalar_lea.vmem %s3, 2048
  %v2565 = vld [vmem:[%s2564] sm:$0xff]
  %v2566 = vld [vmem:[%s2564 + $0x8] sm:$0xff]
  %v2567 = vld [vmem:[%s2564 + $0x10] sm:$0xff]
  %v2568 = vld [vmem:[%s2564 + $0x18] sm:$0xff]
  %v2569 = vld [vmem:[%s2564 + $0x20] sm:$0xff]
  %v2570 = vld [vmem:[%s2564 + $0x28] sm:$0xff]
  %v2571 = vld [vmem:[%s2564 + $0x30] sm:$0xff]
  %v2572 = vld [vmem:[%s2564 + $0x38] sm:$0xff]
  %v2573 = vld [vmem:[%s2564 + $0x40] sm:$0xff]
  %v2574 = vld [vmem:[%s2564 + $0x48] sm:$0xff]
  %v2575 = vld [vmem:[%s2564 + $0x50] sm:$0xff]
  %v2576 = vld [vmem:[%s2564 + $0x58] sm:$0xff]
  %v2577 = vld [vmem:[%s2564 + $0x60] sm:$0xff]
  %v2578 = vld [vmem:[%s2564 + $0x68] sm:$0xff]
  %v2579 = vld [vmem:[%s2564 + $0x70] sm:$0xff]
  %v2580 = vld [vmem:[%s2564 + $0x78] sm:$0xff]
  %2581 = vmatprep.subr.mxu0 0.0
  %2582 = vmatpush1.msra.mxu0 %v2580
  %2583 = vmatprep.subr.mxu0 0.0
  %2584 = vmatpush1.msra.mxu0 %v2579
  %2585 = vmatprep.subr.mxu0 0.0
  %2586 = vmatpush1.msra.mxu0 %v2578
  %2587 = vmatprep.subr.mxu0 0.0
  %2588 = vmatpush1.msra.mxu0 %v2577
  %2589 = vmatprep.subr.mxu0 0.0
  %2590 = vmatpush1.msra.mxu0 %v2576
  %2591 = vmatprep.subr.mxu0 0.0
  %2592 = vmatpush1.msra.mxu0 %v2575
  %2593 = vmatprep.subr.mxu0 0.0
  %2594 = vmatpush1.msra.mxu0 %v2574
  %2595 = vmatprep.subr.mxu0 0.0
  %2596 = vmatpush1.msra.mxu0 %v2573
  %2597 = vmatprep.subr.mxu0 0.0
  %2598 = vmatpush1.msra.mxu0 %v2572
  %2599 = vmatprep.subr.mxu0 0.0
  %2600 = vmatpush1.msra.mxu0 %v2571
  %2601 = vmatprep.subr.mxu0 0.0
  %2602 = vmatpush1.msra.mxu0 %v2570
  %2603 = vmatprep.subr.mxu0 0.0
  %2604 = vmatpush1.msra.mxu0 %v2569
  %2605 = vmatprep.subr.mxu0 0.0
  %2606 = vmatpush1.msra.mxu0 %v2568
  %2607 = vmatprep.subr.mxu0 0.0
  %2608 = vmatpush1.msra.mxu0 %v2567
  %2609 = vmatprep.subr.mxu0 0.0
  %2610 = vmatpush1.msra.mxu0 %v2566
  %2611 = vmatprep.subr.mxu0 0.0
  %2612 = vmatpush1.msra.mxu0 %v2565
  %2613 = vmatprep.subr.mxu0 0.0
  %2614 = vmatpush2.msra.mxu0 0.0
  %2615 = vmatprep.subr.mxu0 0.0
  %2616 = vmatpush2.msra.mxu0 0.0
  %2617 = vmatprep.subr.mxu0 0.0
  %2618 = vmatpush2.msra.mxu0 0.0
  %2619 = vmatprep.subr.mxu0 0.0
  %2620 = vmatpush2.msra.mxu0 0.0
  %2621 = vmatprep.subr.mxu0 0.0
  %2622 = vmatpush2.msra.mxu0 0.0
  %2623 = vmatprep.subr.mxu0 0.0
  %2624 = vmatpush2.msra.mxu0 0.0
  %2625 = vmatprep.subr.mxu0 0.0
  %2626 = vmatpush2.msra.mxu0 0.0
  %2627 = vmatprep.subr.mxu0 0.0
  %2628 = vmatpush2.msra.mxu0 0.0
  %2629 = vmatprep.subr.mxu0 0.0
  %2630 = vmatpush2.msra.mxu0 0.0
  %2631 = vmatprep.subr.mxu0 0.0
  %2632 = vmatpush2.msra.mxu0 0.0
  %2633 = vmatprep.subr.mxu0 0.0
  %2634 = vmatpush2.msra.mxu0 0.0
  %2635 = vmatprep.subr.mxu0 0.0
  %2636 = vmatpush2.msra.mxu0 0.0
  %2637 = vmatprep.subr.mxu0 0.0
  %2638 = vmatpush2.msra.mxu0 0.0
  %2639 = vmatprep.subr.mxu0 0.0
  %2640 = vmatpush2.msra.mxu0 0.0
  %2641 = vmatprep.subr.mxu0 0.0
  %2642 = vmatpush2.msra.mxu0 0.0
  %2643 = vmatprep.subr.mxu0 0.0
  %2644 = vmatpush2.msra.mxu0 0.0
  %2645 = vmatprep.mubr.f32.mxu0 0.0
  %2646 = vmatmul.mubr.f32.gmra.mxu0 %v1150
  %v2647 = vpop.f32.mrf.mxu0
  %v2648 = vadd.f32 0.0, %v2647
  %v2649 = vpop.f32.mrf.mxu0
  %2650 = vdwg.mxu0
  %v2651 = vadd.f32 %v2563, %v2648
  %s2652 = scalar_lea.vmem %s3, 2176
  %v2653 = vld [vmem:[%s2652] sm:$0xff]
  %v2654 = vld [vmem:[%s2652 + $0x8] sm:$0xff]
  %v2655 = vld [vmem:[%s2652 + $0x10] sm:$0xff]
  %v2656 = vld [vmem:[%s2652 + $0x18] sm:$0xff]
  %v2657 = vld [vmem:[%s2652 + $0x20] sm:$0xff]
  %v2658 = vld [vmem:[%s2652 + $0x28] sm:$0xff]
  %v2659 = vld [vmem:[%s2652 + $0x30] sm:$0xff]
  %v2660 = vld [vmem:[%s2652 + $0x38] sm:$0xff]
  %v2661 = vld [vmem:[%s2652 + $0x40] sm:$0xff]
  %v2662 = vld [vmem:[%s2652 + $0x48] sm:$0xff]
  %v2663 = vld [vmem:[%s2652 + $0x50] sm:$0xff]
  %v2664 = vld [vmem:[%s2652 + $0x58] sm:$0xff]
  %v2665 = vld [vmem:[%s2652 + $0x60] sm:$0xff]
  %v2666 = vld [vmem:[%s2652 + $0x68] sm:$0xff]
  %v2667 = vld [vmem:[%s2652 + $0x70] sm:$0xff]
  %v2668 = vld [vmem:[%s2652 + $0x78] sm:$0xff]
  %2669 = vmatprep.subr.mxu0 0.0
  %2670 = vmatpush1.msra.mxu0 %v2668
  %2671 = vmatprep.subr.mxu0 0.0
  %2672 = vmatpush1.msra.mxu0 %v2667
  %2673 = vmatprep.subr.mxu0 0.0
  %2674 = vmatpush1.msra.mxu0 %v2666
  %2675 = vmatprep.subr.mxu0 0.0
  %2676 = vmatpush1.msra.mxu0 %v2665
  %2677 = vmatprep.subr.mxu0 0.0
  %2678 = vmatpush1.msra.mxu0 %v2664
  %2679 = vmatprep.subr.mxu0 0.0
  %2680 = vmatpush1.msra.mxu0 %v2663
  %2681 = vmatprep.subr.mxu0 0.0
  %2682 = vmatpush1.msra.mxu0 %v2662
  %2683 = vmatprep.subr.mxu0 0.0
  %2684 = vmatpush1.msra.mxu0 %v2661
  %2685 = vmatprep.subr.mxu0 0.0
  %2686 = vmatpush1.msra.mxu0 %v2660
  %2687 = vmatprep.subr.mxu0 0.0
  %2688 = vmatpush1.msra.mxu0 %v2659
  %2689 = vmatprep.subr.mxu0 0.0
  %2690 = vmatpush1.msra.mxu0 %v2658
  %2691 = vmatprep.subr.mxu0 0.0
  %2692 = vmatpush1.msra.mxu0 %v2657
  %2693 = vmatprep.subr.mxu0 0.0
  %2694 = vmatpush1.msra.mxu0 %v2656
  %2695 = vmatprep.subr.mxu0 0.0
  %2696 = vmatpush1.msra.mxu0 %v2655
  %2697 = vmatprep.subr.mxu0 0.0
  %2698 = vmatpush1.msra.mxu0 %v2654
  %2699 = vmatprep.subr.mxu0 0.0
  %2700 = vmatpush1.msra.mxu0 %v2653
  %2701 = vmatprep.subr.mxu0 0.0
  %2702 = vmatpush2.msra.mxu0 0.0
  %2703 = vmatprep.subr.mxu0 0.0
  %2704 = vmatpush2.msra.mxu0 0.0
  %2705 = vmatprep.subr.mxu0 0.0
  %2706 = vmatpush2.msra.mxu0 0.0
  %2707 = vmatprep.subr.mxu0 0.0
  %2708 = vmatpush2.msra.mxu0 0.0
  %2709 = vmatprep.subr.mxu0 0.0
  %2710 = vmatpush2.msra.mxu0 0.0
  %2711 = vmatprep.subr.mxu0 0.0
  %2712 = vmatpush2.msra.mxu0 0.0
  %2713 = vmatprep.subr.mxu0 0.0
  %2714 = vmatpush2.msra.mxu0 0.0
  %2715 = vmatprep.subr.mxu0 0.0
  %2716 = vmatpush2.msra.mxu0 0.0
  %2717 = vmatprep.subr.mxu0 0.0
  %2718 = vmatpush2.msra.mxu0 0.0
  %2719 = vmatprep.subr.mxu0 0.0
  %2720 = vmatpush2.msra.mxu0 0.0
  %2721 = vmatprep.subr.mxu0 0.0
  %2722 = vmatpush2.msra.mxu0 0.0
  %2723 = vmatprep.subr.mxu0 0.0
  %2724 = vmatpush2.msra.mxu0 0.0
  %2725 = vmatprep.subr.mxu0 0.0
  %2726 = vmatpush2.msra.mxu0 0.0
  %2727 = vmatprep.subr.mxu0 0.0
  %2728 = vmatpush2.msra.mxu0 0.0
  %2729 = vmatprep.subr.mxu0 0.0
  %2730 = vmatpush2.msra.mxu0 0.0
  %2731 = vmatprep.subr.mxu0 0.0
  %2732 = vmatpush2.msra.mxu0 0.0
  %2733 = vmatprep.mubr.f32.mxu0 0.0
  %2734 = vmatmul.mubr.f32.gmra.mxu0 %v1151
  %v2735 = vpop.f32.mrf.mxu0
  %v2736 = vadd.f32 0.0, %v2735
  %v2737 = vpop.f32.mrf.mxu0
  %2738 = vdwg.mxu0
  %v2739 = vadd.f32 %v2651, %v2736
  %s2740 = scalar_lea.vmem %s3, 2304
  %v2741 = vld [vmem:[%s2740] sm:$0xff]
  %v2742 = vld [vmem:[%s2740 + $0x8] sm:$0xff]
  %v2743 = vld [vmem:[%s2740 + $0x10] sm:$0xff]
  %v2744 = vld [vmem:[%s2740 + $0x18] sm:$0xff]
  %v2745 = vld [vmem:[%s2740 + $0x20] sm:$0xff]
  %v2746 = vld [vmem:[%s2740 + $0x28] sm:$0xff]
  %v2747 = vld [vmem:[%s2740 + $0x30] sm:$0xff]
  %v2748 = vld [vmem:[%s2740 + $0x38] sm:$0xff]
  %v2749 = vld [vmem:[%s2740 + $0x40] sm:$0xff]
  %v2750 = vld [vmem:[%s2740 + $0x48] sm:$0xff]
  %v2751 = vld [vmem:[%s2740 + $0x50] sm:$0xff]
  %v2752 = vld [vmem:[%s2740 + $0x58] sm:$0xff]
  %v2753 = vld [vmem:[%s2740 + $0x60] sm:$0xff]
  %v2754 = vld [vmem:[%s2740 + $0x68] sm:$0xff]
  %v2755 = vld [vmem:[%s2740 + $0x70] sm:$0xff]
  %v2756 = vld [vmem:[%s2740 + $0x78] sm:$0xff]
  %2757 = vmatprep.subr.mxu0 0.0
  %2758 = vmatpush1.msra.mxu0 %v2756
  %2759 = vmatprep.subr.mxu0 0.0
  %2760 = vmatpush1.msra.mxu0 %v2755
  %2761 = vmatprep.subr.mxu0 0.0
  %2762 = vmatpush1.msra.mxu0 %v2754
  %2763 = vmatprep.subr.mxu0 0.0
  %2764 = vmatpush1.msra.mxu0 %v2753
  %2765 = vmatprep.subr.mxu0 0.0
  %2766 = vmatpush1.msra.mxu0 %v2752
  %2767 = vmatprep.subr.mxu0 0.0
  %2768 = vmatpush1.msra.mxu0 %v2751
  %2769 = vmatprep.subr.mxu0 0.0
  %2770 = vmatpush1.msra.mxu0 %v2750
  %2771 = vmatprep.subr.mxu0 0.0
  %2772 = vmatpush1.msra.mxu0 %v2749
  %2773 = vmatprep.subr.mxu0 0.0
  %2774 = vmatpush1.msra.mxu0 %v2748
  %2775 = vmatprep.subr.mxu0 0.0
  %2776 = vmatpush1.msra.mxu0 %v2747
  %2777 = vmatprep.subr.mxu0 0.0
  %2778 = vmatpush1.msra.mxu0 %v2746
  %2779 = vmatprep.subr.mxu0 0.0
  %2780 = vmatpush1.msra.mxu0 %v2745
  %2781 = vmatprep.subr.mxu0 0.0
  %2782 = vmatpush1.msra.mxu0 %v2744
  %2783 = vmatprep.subr.mxu0 0.0
  %2784 = vmatpush1.msra.mxu0 %v2743
  %2785 = vmatprep.subr.mxu0 0.0
  %2786 = vmatpush1.msra.mxu0 %v2742
  %2787 = vmatprep.subr.mxu0 0.0
  %2788 = vmatpush1.msra.mxu0 %v2741
  %2789 = vmatprep.subr.mxu0 0.0
  %2790 = vmatpush2.msra.mxu0 0.0
  %2791 = vmatprep.subr.mxu0 0.0
  %2792 = vmatpush2.msra.mxu0 0.0
  %2793 = vmatprep.subr.mxu0 0.0
  %2794 = vmatpush2.msra.mxu0 0.0
  %2795 = vmatprep.subr.mxu0 0.0
  %2796 = vmatpush2.msra.mxu0 0.0
  %2797 = vmatprep.subr.mxu0 0.0
  %2798 = vmatpush2.msra.mxu0 0.0
  %2799 = vmatprep.subr.mxu0 0.0
  %2800 = vmatpush2.msra.mxu0 0.0
  %2801 = vmatprep.subr.mxu0 0.0
  %2802 = vmatpush2.msra.mxu0 0.0
  %2803 = vmatprep.subr.mxu0 0.0
  %2804 = vmatpush2.msra.mxu0 0.0
  %2805 = vmatprep.subr.mxu0 0.0
  %2806 = vmatpush2.msra.mxu0 0.0
  %2807 = vmatprep.subr.mxu0 0.0
  %2808 = vmatpush2.msra.mxu0 0.0
  %2809 = vmatprep.subr.mxu0 0.0
  %2810 = vmatpush2.msra.mxu0 0.0
  %2811 = vmatprep.subr.mxu0 0.0
  %2812 = vmatpush2.msra.mxu0 0.0
  %2813 = vmatprep.subr.mxu0 0.0
  %2814 = vmatpush2.msra.mxu0 0.0
  %2815 = vmatprep.subr.mxu0 0.0
  %2816 = vmatpush2.msra.mxu0 0.0
  %2817 = vmatprep.subr.mxu0 0.0
  %2818 = vmatpush2.msra.mxu0 0.0
  %2819 = vmatprep.subr.mxu0 0.0
  %2820 = vmatpush2.msra.mxu0 0.0
  %2821 = vmatprep.mubr.f32.mxu0 0.0
  %2822 = vmatmul.mubr.f32.gmra.mxu0 %v1152
  %v2823 = vpop.f32.mrf.mxu0
  %v2824 = vadd.f32 0.0, %v2823
  %v2825 = vpop.f32.mrf.mxu0
  %2826 = vdwg.mxu0
  %v2827 = vadd.f32 %v2739, %v2824
  %s2828 = scalar_lea.vmem %s3, 2432
  %v2829 = vld [vmem:[%s2828] sm:$0xff]
  %v2830 = vld [vmem:[%s2828 + $0x8] sm:$0xff]
  %v2831 = vld [vmem:[%s2828 + $0x10] sm:$0xff]
  %v2832 = vld [vmem:[%s2828 + $0x18] sm:$0xff]
  %v2833 = vld [vmem:[%s2828 + $0x20] sm:$0xff]
  %v2834 = vld [vmem:[%s2828 + $0x28] sm:$0xff]
  %v2835 = vld [vmem:[%s2828 + $0x30] sm:$0xff]
  %v2836 = vld [vmem:[%s2828 + $0x38] sm:$0xff]
  %v2837 = vld [vmem:[%s2828 + $0x40] sm:$0xff]
  %v2838 = vld [vmem:[%s2828 + $0x48] sm:$0xff]
  %v2839 = vld [vmem:[%s2828 + $0x50] sm:$0xff]
  %v2840 = vld [vmem:[%s2828 + $0x58] sm:$0xff]
  %v2841 = vld [vmem:[%s2828 + $0x60] sm:$0xff]
  %v2842 = vld [vmem:[%s2828 + $0x68] sm:$0xff]
  %v2843 = vld [vmem:[%s2828 + $0x70] sm:$0xff]
  %v2844 = vld [vmem:[%s2828 + $0x78] sm:$0xff]
  %2845 = vmatprep.subr.mxu0 0.0
  %2846 = vmatpush1.msra.mxu0 %v2844
  %2847 = vmatprep.subr.mxu0 0.0
  %2848 = vmatpush1.msra.mxu0 %v2843
  %2849 = vmatprep.subr.mxu0 0.0
  %2850 = vmatpush1.msra.mxu0 %v2842
  %2851 = vmatprep.subr.mxu0 0.0
  %2852 = vmatpush1.msra.mxu0 %v2841
  %2853 = vmatprep.subr.mxu0 0.0
  %2854 = vmatpush1.msra.mxu0 %v2840
  %2855 = vmatprep.subr.mxu0 0.0
  %2856 = vmatpush1.msra.mxu0 %v2839
  %2857 = vmatprep.subr.mxu0 0.0
  %2858 = vmatpush1.msra.mxu0 %v2838
  %2859 = vmatprep.subr.mxu0 0.0
  %2860 = vmatpush1.msra.mxu0 %v2837
  %2861 = vmatprep.subr.mxu0 0.0
  %2862 = vmatpush1.msra.mxu0 %v2836
  %2863 = vmatprep.subr.mxu0 0.0
  %2864 = vmatpush1.msra.mxu0 %v2835
  %2865 = vmatprep.subr.mxu0 0.0
  %2866 = vmatpush1.msra.mxu0 %v2834
  %2867 = vmatprep.subr.mxu0 0.0
  %2868 = vmatpush1.msra.mxu0 %v2833
  %2869 = vmatprep.subr.mxu0 0.0
  %2870 = vmatpush1.msra.mxu0 %v2832
  %2871 = vmatprep.subr.mxu0 0.0
  %2872 = vmatpush1.msra.mxu0 %v2831
  %2873 = vmatprep.subr.mxu0 0.0
  %2874 = vmatpush1.msra.mxu0 %v2830
  %2875 = vmatprep.subr.mxu0 0.0
  %2876 = vmatpush1.msra.mxu0 %v2829
  %2877 = vmatprep.subr.mxu0 0.0
  %2878 = vmatpush2.msra.mxu0 0.0
  %2879 = vmatprep.subr.mxu0 0.0
  %2880 = vmatpush2.msra.mxu0 0.0
  %2881 = vmatprep.subr.mxu0 0.0
  %2882 = vmatpush2.msra.mxu0 0.0
  %2883 = vmatprep.subr.mxu0 0.0
  %2884 = vmatpush2.msra.mxu0 0.0
  %2885 = vmatprep.subr.mxu0 0.0
  %2886 = vmatpush2.msra.mxu0 0.0
  %2887 = vmatprep.subr.mxu0 0.0
  %2888 = vmatpush2.msra.mxu0 0.0
  %2889 = vmatprep.subr.mxu0 0.0
  %2890 = vmatpush2.msra.mxu0 0.0
  %2891 = vmatprep.subr.mxu0 0.0
  %2892 = vmatpush2.msra.mxu0 0.0
  %2893 = vmatprep.subr.mxu0 0.0
  %2894 = vmatpush2.msra.mxu0 0.0
  %2895 = vmatprep.subr.mxu0 0.0
  %2896 = vmatpush2.msra.mxu0 0.0
  %2897 = vmatprep.subr.mxu0 0.0
  %2898 = vmatpush2.msra.mxu0 0.0
  %2899 = vmatprep.subr.mxu0 0.0
  %2900 = vmatpush2.msra.mxu0 0.0
  %2901 = vmatprep.subr.mxu0 0.0
  %2902 = vmatpush2.msra.mxu0 0.0
  %2903 = vmatprep.subr.mxu0 0.0
  %2904 = vmatpush2.msra.mxu0 0.0
  %2905 = vmatprep.subr.mxu0 0.0
  %2906 = vmatpush2.msra.mxu0 0.0
  %2907 = vmatprep.subr.mxu0 0.0
  %2908 = vmatpush2.msra.mxu0 0.0
  %2909 = vmatprep.mubr.f32.mxu0 0.0
  %2910 = vmatmul.mubr.f32.gmra.mxu0 %v1153
  %v2911 = vpop.f32.mrf.mxu0
  %v2912 = vadd.f32 0.0, %v2911
  %v2913 = vpop.f32.mrf.mxu0
  %2914 = vdwg.mxu0
  %v2915 = vadd.f32 %v2827, %v2912
  %s2916 = scalar_lea.vmem %s3, 2560
  %v2917 = vld [vmem:[%s2916] sm:$0xff]
  %v2918 = vld [vmem:[%s2916 + $0x8] sm:$0xff]
  %v2919 = vld [vmem:[%s2916 + $0x10] sm:$0xff]
  %v2920 = vld [vmem:[%s2916 + $0x18] sm:$0xff]
  %v2921 = vld [vmem:[%s2916 + $0x20] sm:$0xff]
  %v2922 = vld [vmem:[%s2916 + $0x28] sm:$0xff]
  %v2923 = vld [vmem:[%s2916 + $0x30] sm:$0xff]
  %v2924 = vld [vmem:[%s2916 + $0x38] sm:$0xff]
  %v2925 = vld [vmem:[%s2916 + $0x40] sm:$0xff]
  %v2926 = vld [vmem:[%s2916 + $0x48] sm:$0xff]
  %v2927 = vld [vmem:[%s2916 + $0x50] sm:$0xff]
  %v2928 = vld [vmem:[%s2916 + $0x58] sm:$0xff]
  %v2929 = vld [vmem:[%s2916 + $0x60] sm:$0xff]
  %v2930 = vld [vmem:[%s2916 + $0x68] sm:$0xff]
  %v2931 = vld [vmem:[%s2916 + $0x70] sm:$0xff]
  %v2932 = vld [vmem:[%s2916 + $0x78] sm:$0xff]
  %2933 = vmatprep.subr.mxu0 0.0
  %2934 = vmatpush1.msra.mxu0 %v2932
  %2935 = vmatprep.subr.mxu0 0.0
  %2936 = vmatpush1.msra.mxu0 %v2931
  %2937 = vmatprep.subr.mxu0 0.0
  %2938 = vmatpush1.msra.mxu0 %v2930
  %2939 = vmatprep.subr.mxu0 0.0
  %2940 = vmatpush1.msra.mxu0 %v2929
  %2941 = vmatprep.subr.mxu0 0.0
  %2942 = vmatpush1.msra.mxu0 %v2928
  %2943 = vmatprep.subr.mxu0 0.0
  %2944 = vmatpush1.msra.mxu0 %v2927
  %2945 = vmatprep.subr.mxu0 0.0
  %2946 = vmatpush1.msra.mxu0 %v2926
  %2947 = vmatprep.subr.mxu0 0.0
  %2948 = vmatpush1.msra.mxu0 %v2925
  %2949 = vmatprep.subr.mxu0 0.0
  %2950 = vmatpush1.msra.mxu0 %v2924
  %2951 = vmatprep.subr.mxu0 0.0
  %2952 = vmatpush1.msra.mxu0 %v2923
  %2953 = vmatprep.subr.mxu0 0.0
  %2954 = vmatpush1.msra.mxu0 %v2922
  %2955 = vmatprep.subr.mxu0 0.0
  %2956 = vmatpush1.msra.mxu0 %v2921
  %2957 = vmatprep.subr.mxu0 0.0
  %2958 = vmatpush1.msra.mxu0 %v2920
  %2959 = vmatprep.subr.mxu0 0.0
  %2960 = vmatpush1.msra.mxu0 %v2919
  %2961 = vmatprep.subr.mxu0 0.0
  %2962 = vmatpush1.msra.mxu0 %v2918
  %2963 = vmatprep.subr.mxu0 0.0
  %2964 = vmatpush1.msra.mxu0 %v2917
  %2965 = vmatprep.subr.mxu0 0.0
  %2966 = vmatpush2.msra.mxu0 0.0
  %2967 = vmatprep.subr.mxu0 0.0
  %2968 = vmatpush2.msra.mxu0 0.0
  %2969 = vmatprep.subr.mxu0 0.0
  %2970 = vmatpush2.msra.mxu0 0.0
  %2971 = vmatprep.subr.mxu0 0.0
  %2972 = vmatpush2.msra.mxu0 0.0
  %2973 = vmatprep.subr.mxu0 0.0
  %2974 = vmatpush2.msra.mxu0 0.0
  %2975 = vmatprep.subr.mxu0 0.0
  %2976 = vmatpush2.msra.mxu0 0.0
  %2977 = vmatprep.subr.mxu0 0.0
  %2978 = vmatpush2.msra.mxu0 0.0
  %2979 = vmatprep.subr.mxu0 0.0
  %2980 = vmatpush2.msra.mxu0 0.0
  %2981 = vmatprep.subr.mxu0 0.0
  %2982 = vmatpush2.msra.mxu0 0.0
  %2983 = vmatprep.subr.mxu0 0.0
  %2984 = vmatpush2.msra.mxu0 0.0
  %2985 = vmatprep.subr.mxu0 0.0
  %2986 = vmatpush2.msra.mxu0 0.0
  %2987 = vmatprep.subr.mxu0 0.0
  %2988 = vmatpush2.msra.mxu0 0.0
  %2989 = vmatprep.subr.mxu0 0.0
  %2990 = vmatpush2.msra.mxu0 0.0
  %2991 = vmatprep.subr.mxu0 0.0
  %2992 = vmatpush2.msra.mxu0 0.0
  %2993 = vmatprep.subr.mxu0 0.0
  %2994 = vmatpush2.msra.mxu0 0.0
  %2995 = vmatprep.subr.mxu0 0.0
  %2996 = vmatpush2.msra.mxu0 0.0
  %2997 = vmatprep.mubr.f32.mxu0 0.0
  %2998 = vmatmul.mubr.f32.gmra.mxu0 %v1154
  %v2999 = vpop.f32.mrf.mxu0
  %v3000 = vadd.f32 0.0, %v2999
  %v3001 = vpop.f32.mrf.mxu0
  %3002 = vdwg.mxu0
  %v3003 = vadd.f32 %v2915, %v3000
  %s3004 = scalar_lea.vmem %s3, 2688
  %v3005 = vld [vmem:[%s3004] sm:$0xff]
  %v3006 = vld [vmem:[%s3004 + $0x8] sm:$0xff]
  %v3007 = vld [vmem:[%s3004 + $0x10] sm:$0xff]
  %v3008 = vld [vmem:[%s3004 + $0x18] sm:$0xff]
  %v3009 = vld [vmem:[%s3004 + $0x20] sm:$0xff]
  %v3010 = vld [vmem:[%s3004 + $0x28] sm:$0xff]
  %v3011 = vld [vmem:[%s3004 + $0x30] sm:$0xff]
  %v3012 = vld [vmem:[%s3004 + $0x38] sm:$0xff]
  %v3013 = vld [vmem:[%s3004 + $0x40] sm:$0xff]
  %v3014 = vld [vmem:[%s3004 + $0x48] sm:$0xff]
  %v3015 = vld [vmem:[%s3004 + $0x50] sm:$0xff]
  %v3016 = vld [vmem:[%s3004 + $0x58] sm:$0xff]
  %v3017 = vld [vmem:[%s3004 + $0x60] sm:$0xff]
  %v3018 = vld [vmem:[%s3004 + $0x68] sm:$0xff]
  %v3019 = vld [vmem:[%s3004 + $0x70] sm:$0xff]
  %v3020 = vld [vmem:[%s3004 + $0x78] sm:$0xff]
  %3021 = vmatprep.subr.mxu0 0.0
  %3022 = vmatpush1.msra.mxu0 %v3020
  %3023 = vmatprep.subr.mxu0 0.0
  %3024 = vmatpush1.msra.mxu0 %v3019
  %3025 = vmatprep.subr.mxu0 0.0
  %3026 = vmatpush1.msra.mxu0 %v3018
  %3027 = vmatprep.subr.mxu0 0.0
  %3028 = vmatpush1.msra.mxu0 %v3017
  %3029 = vmatprep.subr.mxu0 0.0
  %3030 = vmatpush1.msra.mxu0 %v3016
  %3031 = vmatprep.subr.mxu0 0.0
  %3032 = vmatpush1.msra.mxu0 %v3015
  %3033 = vmatprep.subr.mxu0 0.0
  %3034 = vmatpush1.msra.mxu0 %v3014
  %3035 = vmatprep.subr.mxu0 0.0
  %3036 = vmatpush1.msra.mxu0 %v3013
  %3037 = vmatprep.subr.mxu0 0.0
  %3038 = vmatpush1.msra.mxu0 %v3012
  %3039 = vmatprep.subr.mxu0 0.0
  %3040 = vmatpush1.msra.mxu0 %v3011
  %3041 = vmatprep.subr.mxu0 0.0
  %3042 = vmatpush1.msra.mxu0 %v3010
  %3043 = vmatprep.subr.mxu0 0.0
  %3044 = vmatpush1.msra.mxu0 %v3009
  %3045 = vmatprep.subr.mxu0 0.0
  %3046 = vmatpush1.msra.mxu0 %v3008
  %3047 = vmatprep.subr.mxu0 0.0
  %3048 = vmatpush1.msra.mxu0 %v3007
  %3049 = vmatprep.subr.mxu0 0.0
  %3050 = vmatpush1.msra.mxu0 %v3006
  %3051 = vmatprep.subr.mxu0 0.0
  %3052 = vmatpush1.msra.mxu0 %v3005
  %3053 = vmatprep.subr.mxu0 0.0
  %3054 = vmatpush2.msra.mxu0 0.0
  %3055 = vmatprep.subr.mxu0 0.0
  %3056 = vmatpush2.msra.mxu0 0.0
  %3057 = vmatprep.subr.mxu0 0.0
  %3058 = vmatpush2.msra.mxu0 0.0
  %3059 = vmatprep.subr.mxu0 0.0
  %3060 = vmatpush2.msra.mxu0 0.0
  %3061 = vmatprep.subr.mxu0 0.0
  %3062 = vmatpush2.msra.mxu0 0.0
  %3063 = vmatprep.subr.mxu0 0.0
  %3064 = vmatpush2.msra.mxu0 0.0
  %3065 = vmatprep.subr.mxu0 0.0
  %3066 = vmatpush2.msra.mxu0 0.0
  %3067 = vmatprep.subr.mxu0 0.0
  %3068 = vmatpush2.msra.mxu0 0.0
  %3069 = vmatprep.subr.mxu0 0.0
  %3070 = vmatpush2.msra.mxu0 0.0
  %3071 = vmatprep.subr.mxu0 0.0
  %3072 = vmatpush2.msra.mxu0 0.0
  %3073 = vmatprep.subr.mxu0 0.0
  %3074 = vmatpush2.msra.mxu0 0.0
  %3075 = vmatprep.subr.mxu0 0.0
  %3076 = vmatpush2.msra.mxu0 0.0
  %3077 = vmatprep.subr.mxu0 0.0
  %3078 = vmatpush2.msra.mxu0 0.0
  %3079 = vmatprep.subr.mxu0 0.0
  %3080 = vmatpush2.msra.mxu0 0.0
  %3081 = vmatprep.subr.mxu0 0.0
  %3082 = vmatpush2.msra.mxu0 0.0
  %3083 = vmatprep.subr.mxu0 0.0
  %3084 = vmatpush2.msra.mxu0 0.0
  %3085 = vmatprep.mubr.f32.mxu0 0.0
  %3086 = vmatmul.mubr.f32.gmra.mxu0 %v1155
  %v3087 = vpop.f32.mrf.mxu0
  %v3088 = vadd.f32 0.0, %v3087
  %v3089 = vpop.f32.mrf.mxu0
  %3090 = vdwg.mxu0
  %v3091 = vadd.f32 %v3003, %v3088
  %s3092 = scalar_lea.vmem %s3, 2816
  %v3093 = vld [vmem:[%s3092] sm:$0xff]
  %v3094 = vld [vmem:[%s3092 + $0x8] sm:$0xff]
  %v3095 = vld [vmem:[%s3092 + $0x10] sm:$0xff]
  %v3096 = vld [vmem:[%s3092 + $0x18] sm:$0xff]
  %v3097 = vld [vmem:[%s3092 + $0x20] sm:$0xff]
  %v3098 = vld [vmem:[%s3092 + $0x28] sm:$0xff]
  %v3099 = vld [vmem:[%s3092 + $0x30] sm:$0xff]
  %v3100 = vld [vmem:[%s3092 + $0x38] sm:$0xff]
  %v3101 = vld [vmem:[%s3092 + $0x40] sm:$0xff]
  %v3102 = vld [vmem:[%s3092 + $0x48] sm:$0xff]
  %v3103 = vld [vmem:[%s3092 + $0x50] sm:$0xff]
  %v3104 = vld [vmem:[%s3092 + $0x58] sm:$0xff]
  %v3105 = vld [vmem:[%s3092 + $0x60] sm:$0xff]
  %v3106 = vld [vmem:[%s3092 + $0x68] sm:$0xff]
  %v3107 = vld [vmem:[%s3092 + $0x70] sm:$0xff]
  %v3108 = vld [vmem:[%s3092 + $0x78] sm:$0xff]
  %3109 = vmatprep.subr.mxu0 0.0
  %3110 = vmatpush1.msra.mxu0 %v3108
  %3111 = vmatprep.subr.mxu0 0.0
  %3112 = vmatpush1.msra.mxu0 %v3107
  %3113 = vmatprep.subr.mxu0 0.0
  %3114 = vmatpush1.msra.mxu0 %v3106
  %3115 = vmatprep.subr.mxu0 0.0
  %3116 = vmatpush1.msra.mxu0 %v3105
  %3117 = vmatprep.subr.mxu0 0.0
  %3118 = vmatpush1.msra.mxu0 %v3104
  %3119 = vmatprep.subr.mxu0 0.0
  %3120 = vmatpush1.msra.mxu0 %v3103
  %3121 = vmatprep.subr.mxu0 0.0
  %3122 = vmatpush1.msra.mxu0 %v3102
  %3123 = vmatprep.subr.mxu0 0.0
  %3124 = vmatpush1.msra.mxu0 %v3101
  %3125 = vmatprep.subr.mxu0 0.0
  %3126 = vmatpush1.msra.mxu0 %v3100
  %3127 = vmatprep.subr.mxu0 0.0
  %3128 = vmatpush1.msra.mxu0 %v3099
  %3129 = vmatprep.subr.mxu0 0.0
  %3130 = vmatpush1.msra.mxu0 %v3098
  %3131 = vmatprep.subr.mxu0 0.0
  %3132 = vmatpush1.msra.mxu0 %v3097
  %3133 = vmatprep.subr.mxu0 0.0
  %3134 = vmatpush1.msra.mxu0 %v3096
  %3135 = vmatprep.subr.mxu0 0.0
  %3136 = vmatpush1.msra.mxu0 %v3095
  %3137 = vmatprep.subr.mxu0 0.0
  %3138 = vmatpush1.msra.mxu0 %v3094
  %3139 = vmatprep.subr.mxu0 0.0
  %3140 = vmatpush1.msra.mxu0 %v3093
  %3141 = vmatprep.subr.mxu0 0.0
  %3142 = vmatpush2.msra.mxu0 0.0
  %3143 = vmatprep.subr.mxu0 0.0
  %3144 = vmatpush2.msra.mxu0 0.0
  %3145 = vmatprep.subr.mxu0 0.0
  %3146 = vmatpush2.msra.mxu0 0.0
  %3147 = vmatprep.subr.mxu0 0.0
  %3148 = vmatpush2.msra.mxu0 0.0
  %3149 = vmatprep.subr.mxu0 0.0
  %3150 = vmatpush2.msra.mxu0 0.0
  %3151 = vmatprep.subr.mxu0 0.0
  %3152 = vmatpush2.msra.mxu0 0.0
  %3153 = vmatprep.subr.mxu0 0.0
  %3154 = vmatpush2.msra.mxu0 0.0
  %3155 = vmatprep.subr.mxu0 0.0
  %3156 = vmatpush2.msra.mxu0 0.0
  %3157 = vmatprep.subr.mxu0 0.0
  %3158 = vmatpush2.msra.mxu0 0.0
  %3159 = vmatprep.subr.mxu0 0.0
  %3160 = vmatpush2.msra.mxu0 0.0
  %3161 = vmatprep.subr.mxu0 0.0
  %3162 = vmatpush2.msra.mxu0 0.0
  %3163 = vmatprep.subr.mxu0 0.0
  %3164 = vmatpush2.msra.mxu0 0.0
  %3165 = vmatprep.subr.mxu0 0.0
  %3166 = vmatpush2.msra.mxu0 0.0
  %3167 = vmatprep.subr.mxu0 0.0
  %3168 = vmatpush2.msra.mxu0 0.0
  %3169 = vmatprep.subr.mxu0 0.0
  %3170 = vmatpush2.msra.mxu0 0.0
  %3171 = vmatprep.subr.mxu0 0.0
  %3172 = vmatpush2.msra.mxu0 0.0
  %3173 = vmatprep.mubr.f32.mxu0 0.0
  %3174 = vmatmul.mubr.f32.gmra.mxu0 %v1156
  %v3175 = vpop.f32.mrf.mxu0
  %v3176 = vadd.f32 0.0, %v3175
  %v3177 = vpop.f32.mrf.mxu0
  %3178 = vdwg.mxu0
  %v3179 = vadd.f32 %v3091, %v3176
  %s3180 = scalar_lea.vmem %s3, 2944
  %v3181 = vld [vmem:[%s3180] sm:$0xff]
  %v3182 = vld [vmem:[%s3180 + $0x8] sm:$0xff]
  %v3183 = vld [vmem:[%s3180 + $0x10] sm:$0xff]
  %v3184 = vld [vmem:[%s3180 + $0x18] sm:$0xff]
  %v3185 = vld [vmem:[%s3180 + $0x20] sm:$0xff]
  %v3186 = vld [vmem:[%s3180 + $0x28] sm:$0xff]
  %v3187 = vld [vmem:[%s3180 + $0x30] sm:$0xff]
  %v3188 = vld [vmem:[%s3180 + $0x38] sm:$0xff]
  %v3189 = vld [vmem:[%s3180 + $0x40] sm:$0xff]
  %v3190 = vld [vmem:[%s3180 + $0x48] sm:$0xff]
  %v3191 = vld [vmem:[%s3180 + $0x50] sm:$0xff]
  %v3192 = vld [vmem:[%s3180 + $0x58] sm:$0xff]
  %v3193 = vld [vmem:[%s3180 + $0x60] sm:$0xff]
  %v3194 = vld [vmem:[%s3180 + $0x68] sm:$0xff]
  %v3195 = vld [vmem:[%s3180 + $0x70] sm:$0xff]
  %v3196 = vld [vmem:[%s3180 + $0x78] sm:$0xff]
  %3197 = vmatprep.subr.mxu0 0.0
  %3198 = vmatpush1.msra.mxu0 %v3196
  %3199 = vmatprep.subr.mxu0 0.0
  %3200 = vmatpush1.msra.mxu0 %v3195
  %3201 = vmatprep.subr.mxu0 0.0
  %3202 = vmatpush1.msra.mxu0 %v3194
  %3203 = vmatprep.subr.mxu0 0.0
  %3204 = vmatpush1.msra.mxu0 %v3193
  %3205 = vmatprep.subr.mxu0 0.0
  %3206 = vmatpush1.msra.mxu0 %v3192
  %3207 = vmatprep.subr.mxu0 0.0
  %3208 = vmatpush1.msra.mxu0 %v3191
  %3209 = vmatprep.subr.mxu0 0.0
  %3210 = vmatpush1.msra.mxu0 %v3190
  %3211 = vmatprep.subr.mxu0 0.0
  %3212 = vmatpush1.msra.mxu0 %v3189
  %3213 = vmatprep.subr.mxu0 0.0
  %3214 = vmatpush1.msra.mxu0 %v3188
  %3215 = vmatprep.subr.mxu0 0.0
  %3216 = vmatpush1.msra.mxu0 %v3187
  %3217 = vmatprep.subr.mxu0 0.0
  %3218 = vmatpush1.msra.mxu0 %v3186
  %3219 = vmatprep.subr.mxu0 0.0
  %3220 = vmatpush1.msra.mxu0 %v3185
  %3221 = vmatprep.subr.mxu0 0.0
  %3222 = vmatpush1.msra.mxu0 %v3184
  %3223 = vmatprep.subr.mxu0 0.0
  %3224 = vmatpush1.msra.mxu0 %v3183
  %3225 = vmatprep.subr.mxu0 0.0
  %3226 = vmatpush1.msra.mxu0 %v3182
  %3227 = vmatprep.subr.mxu0 0.0
  %3228 = vmatpush1.msra.mxu0 %v3181
  %3229 = vmatprep.subr.mxu0 0.0
  %3230 = vmatpush2.msra.mxu0 0.0
  %3231 = vmatprep.subr.mxu0 0.0
  %3232 = vmatpush2.msra.mxu0 0.0
  %3233 = vmatprep.subr.mxu0 0.0
  %3234 = vmatpush2.msra.mxu0 0.0
  %3235 = vmatprep.subr.mxu0 0.0
  %3236 = vmatpush2.msra.mxu0 0.0
  %3237 = vmatprep.subr.mxu0 0.0
  %3238 = vmatpush2.msra.mxu0 0.0
  %3239 = vmatprep.subr.mxu0 0.0
  %3240 = vmatpush2.msra.mxu0 0.0
  %3241 = vmatprep.subr.mxu0 0.0
  %3242 = vmatpush2.msra.mxu0 0.0
  %3243 = vmatprep.subr.mxu0 0.0
  %3244 = vmatpush2.msra.mxu0 0.0
  %3245 = vmatprep.subr.mxu0 0.0
  %3246 = vmatpush2.msra.mxu0 0.0
  %3247 = vmatprep.subr.mxu0 0.0
  %3248 = vmatpush2.msra.mxu0 0.0
  %3249 = vmatprep.subr.mxu0 0.0
  %3250 = vmatpush2.msra.mxu0 0.0
  %3251 = vmatprep.subr.mxu0 0.0
  %3252 = vmatpush2.msra.mxu0 0.0
  %3253 = vmatprep.subr.mxu0 0.0
  %3254 = vmatpush2.msra.mxu0 0.0
  %3255 = vmatprep.subr.mxu0 0.0
  %3256 = vmatpush2.msra.mxu0 0.0
  %3257 = vmatprep.subr.mxu0 0.0
  %3258 = vmatpush2.msra.mxu0 0.0
  %3259 = vmatprep.subr.mxu0 0.0
  %3260 = vmatpush2.msra.mxu0 0.0
  %3261 = vmatprep.mubr.f32.mxu0 0.0
  %3262 = vmatmul.mubr.f32.gmra.mxu0 %v1157
  %v3263 = vpop.f32.mrf.mxu0
  %v3264 = vadd.f32 0.0, %v3263
  %v3265 = vpop.f32.mrf.mxu0
  %3266 = vdwg.mxu0
  %v3267 = vadd.f32 %v3179, %v3264
  %s3268 = scalar_lea.vmem %s3, 3072
  %v3269 = vld [vmem:[%s3268] sm:$0xff]
  %v3270 = vld [vmem:[%s3268 + $0x8] sm:$0xff]
  %v3271 = vld [vmem:[%s3268 + $0x10] sm:$0xff]
  %v3272 = vld [vmem:[%s3268 + $0x18] sm:$0xff]
  %v3273 = vld [vmem:[%s3268 + $0x20] sm:$0xff]
  %v3274 = vld [vmem:[%s3268 + $0x28] sm:$0xff]
  %v3275 = vld [vmem:[%s3268 + $0x30] sm:$0xff]
  %v3276 = vld [vmem:[%s3268 + $0x38] sm:$0xff]
  %v3277 = vld [vmem:[%s3268 + $0x40] sm:$0xff]
  %v3278 = vld [vmem:[%s3268 + $0x48] sm:$0xff]
  %v3279 = vld [vmem:[%s3268 + $0x50] sm:$0xff]
  %v3280 = vld [vmem:[%s3268 + $0x58] sm:$0xff]
  %v3281 = vld [vmem:[%s3268 + $0x60] sm:$0xff]
  %v3282 = vld [vmem:[%s3268 + $0x68] sm:$0xff]
  %v3283 = vld [vmem:[%s3268 + $0x70] sm:$0xff]
  %v3284 = vld [vmem:[%s3268 + $0x78] sm:$0xff]
  %3285 = vmatprep.subr.mxu0 0.0
  %3286 = vmatpush1.msra.mxu0 %v3284
  %3287 = vmatprep.subr.mxu0 0.0
  %3288 = vmatpush1.msra.mxu0 %v3283
  %3289 = vmatprep.subr.mxu0 0.0
  %3290 = vmatpush1.msra.mxu0 %v3282
  %3291 = vmatprep.subr.mxu0 0.0
  %3292 = vmatpush1.msra.mxu0 %v3281
  %3293 = vmatprep.subr.mxu0 0.0
  %3294 = vmatpush1.msra.mxu0 %v3280
  %3295 = vmatprep.subr.mxu0 0.0
  %3296 = vmatpush1.msra.mxu0 %v3279
  %3297 = vmatprep.subr.mxu0 0.0
  %3298 = vmatpush1.msra.mxu0 %v3278
  %3299 = vmatprep.subr.mxu0 0.0
  %3300 = vmatpush1.msra.mxu0 %v3277
  %3301 = vmatprep.subr.mxu0 0.0
  %3302 = vmatpush1.msra.mxu0 %v3276
  %3303 = vmatprep.subr.mxu0 0.0
  %3304 = vmatpush1.msra.mxu0 %v3275
  %3305 = vmatprep.subr.mxu0 0.0
  %3306 = vmatpush1.msra.mxu0 %v3274
  %3307 = vmatprep.subr.mxu0 0.0
  %3308 = vmatpush1.msra.mxu0 %v3273
  %3309 = vmatprep.subr.mxu0 0.0
  %3310 = vmatpush1.msra.mxu0 %v3272
  %3311 = vmatprep.subr.mxu0 0.0
  %3312 = vmatpush1.msra.mxu0 %v3271
  %3313 = vmatprep.subr.mxu0 0.0
  %3314 = vmatpush1.msra.mxu0 %v3270
  %3315 = vmatprep.subr.mxu0 0.0
  %3316 = vmatpush1.msra.mxu0 %v3269
  %3317 = vmatprep.subr.mxu0 0.0
  %3318 = vmatpush2.msra.mxu0 0.0
  %3319 = vmatprep.subr.mxu0 0.0
  %3320 = vmatpush2.msra.mxu0 0.0
  %3321 = vmatprep.subr.mxu0 0.0
  %3322 = vmatpush2.msra.mxu0 0.0
  %3323 = vmatprep.subr.mxu0 0.0
  %3324 = vmatpush2.msra.mxu0 0.0
  %3325 = vmatprep.subr.mxu0 0.0
  %3326 = vmatpush2.msra.mxu0 0.0
  %3327 = vmatprep.subr.mxu0 0.0
  %3328 = vmatpush2.msra.mxu0 0.0
  %3329 = vmatprep.subr.mxu0 0.0
  %3330 = vmatpush2.msra.mxu0 0.0
  %3331 = vmatprep.subr.mxu0 0.0
  %3332 = vmatpush2.msra.mxu0 0.0
  %3333 = vmatprep.subr.mxu0 0.0
  %3334 = vmatpush2.msra.mxu0 0.0
  %3335 = vmatprep.subr.mxu0 0.0
  %3336 = vmatpush2.msra.mxu0 0.0
  %3337 = vmatprep.subr.mxu0 0.0
  %3338 = vmatpush2.msra.mxu0 0.0
  %3339 = vmatprep.subr.mxu0 0.0
  %3340 = vmatpush2.msra.mxu0 0.0
  %3341 = vmatprep.subr.mxu0 0.0
  %3342 = vmatpush2.msra.mxu0 0.0
  %3343 = vmatprep.subr.mxu0 0.0
  %3344 = vmatpush2.msra.mxu0 0.0
  %3345 = vmatprep.subr.mxu0 0.0
  %3346 = vmatpush2.msra.mxu0 0.0
  %3347 = vmatprep.subr.mxu0 0.0
  %3348 = vmatpush2.msra.mxu0 0.0
  %3349 = vmatprep.mubr.f32.mxu0 0.0
  %3350 = vmatmul.mubr.f32.gmra.mxu0 %v1158
  %v3351 = vpop.f32.mrf.mxu0
  %v3352 = vadd.f32 0.0, %v3351
  %v3353 = vpop.f32.mrf.mxu0
  %3354 = vdwg.mxu0
  %v3355 = vadd.f32 %v3267, %v3352
  %v3356 = vld [vmem:[%s4] sm:$0x1]
  %v3358 = vlaneseq
  %v3359 = vshrl.u32 %v3358, 7
  %v3360 = vsub.s32 0, %v3359
  %v3361 = vrot.slane %v3356, %v3360
  %v3363 = vadd.f32 %v3355, %v3361
  %v3364 = vmax.f32 %v3363, 0.0
  %v3365 = vld [vmem:[%s5] sm:$0xff]
  %v3366 = vld [vmem:[%s5 + $0x8] sm:$0xff]
  %v3367 = vld [vmem:[%s5 + $0x10] sm:$0xff]
  %v3368 = vld [vmem:[%s5 + $0x18] sm:$0xff]
  %v3369 = vld [vmem:[%s5 + $0x20] sm:$0xff]
  %v3370 = vld [vmem:[%s5 + $0x28] sm:$0xff]
  %v3371 = vld [vmem:[%s5 + $0x30] sm:$0xff]
  %v3372 = vld [vmem:[%s5 + $0x38] sm:$0xff]
  %v3373 = vld [vmem:[%s5 + $0x40] sm:$0xff]
  %v3374 = vld [vmem:[%s5 + $0x48] sm:$0xff]
  %v3375 = vld [vmem:[%s5 + $0x50] sm:$0xff]
  %v3376 = vld [vmem:[%s5 + $0x58] sm:$0xff]
  %v3377 = vld [vmem:[%s5 + $0x60] sm:$0xff]
  %v3378 = vld [vmem:[%s5 + $0x68] sm:$0xff]
  %v3379 = vld [vmem:[%s5 + $0x70] sm:$0xff]
  %v3380 = vld [vmem:[%s5 + $0x78] sm:$0xff]
  %v3381 = vld [vmem:[%s6] sm:$0x1]
  %v3383 = vlaneseq
  %v3384 = vshrl.u32 %v3383, 7
  %v3385 = vsub.s32 0, %v3384
  %v3386 = vrot.slane %v3381, %v3385
  %3388 = vmatprep.subr.mxu0 0.0
  %3389 = vmatpush1.msra.mxu0 %v3380
  %3390 = vmatprep.subr.mxu0 0.0
  %3391 = vmatpush1.msra.mxu0 %v3379
  %3392 = vmatprep.subr.mxu0 0.0
  %3393 = vmatpush1.msra.mxu0 %v3378
  %3394 = vmatprep.subr.mxu0 0.0
  %3395 = vmatpush1.msra.mxu0 %v3377
  %3396 = vmatprep.subr.mxu0 0.0
  %3397 = vmatpush1.msra.mxu0 %v3376
  %3398 = vmatprep.subr.mxu0 0.0
  %3399 = vmatpush1.msra.mxu0 %v3375
  %3400 = vmatprep.subr.mxu0 0.0
  %3401 = vmatpush1.msra.mxu0 %v3374
  %3402 = vmatprep.subr.mxu0 0.0
  %3403 = vmatpush1.msra.mxu0 %v3373
  %3404 = vmatprep.subr.mxu0 0.0
  %3405 = vmatpush1.msra.mxu0 %v3372
  %3406 = vmatprep.subr.mxu0 0.0
  %3407 = vmatpush1.msra.mxu0 %v3371
  %3408 = vmatprep.subr.mxu0 0.0
  %3409 = vmatpush1.msra.mxu0 %v3370
  %3410 = vmatprep.subr.mxu0 0.0
  %3411 = vmatpush1.msra.mxu0 %v3369
  %3412 = vmatprep.subr.mxu0 0.0
  %3413 = vmatpush1.msra.mxu0 %v3368
  %3414 = vmatprep.subr.mxu0 0.0
  %3415 = vmatpush1.msra.mxu0 %v3367
  %3416 = vmatprep.subr.mxu0 0.0
  %3417 = vmatpush1.msra.mxu0 %v3366
  %3418 = vmatprep.subr.mxu0 0.0
  %3419 = vmatpush1.msra.mxu0 %v3365
  %3420 = vmatprep.subr.mxu0 0.0
  %3421 = vmatpush2.msra.mxu0 0.0
  %3422 = vmatprep.subr.mxu0 0.0
  %3423 = vmatpush2.msra.mxu0 0.0
  %3424 = vmatprep.subr.mxu0 0.0
  %3425 = vmatpush2.msra.mxu0 0.0
  %3426 = vmatprep.subr.mxu0 0.0
  %3427 = vmatpush2.msra.mxu0 0.0
  %3428 = vmatprep.subr.mxu0 0.0
  %3429 = vmatpush2.msra.mxu0 0.0
  %3430 = vmatprep.subr.mxu0 0.0
  %3431 = vmatpush2.msra.mxu0 0.0
  %3432 = vmatprep.subr.mxu0 0.0
  %3433 = vmatpush2.msra.mxu0 0.0
  %3434 = vmatprep.subr.mxu0 0.0
  %3435 = vmatpush2.msra.mxu0 0.0
  %3436 = vmatprep.subr.mxu0 0.0
  %3437 = vmatpush2.msra.mxu0 0.0
  %3438 = vmatprep.subr.mxu0 0.0
  %3439 = vmatpush2.msra.mxu0 0.0
  %3440 = vmatprep.subr.mxu0 0.0
  %3441 = vmatpush2.msra.mxu0 0.0
  %3442 = vmatprep.subr.mxu0 0.0
  %3443 = vmatpush2.msra.mxu0 0.0
  %3444 = vmatprep.subr.mxu0 0.0
  %3445 = vmatpush2.msra.mxu0 0.0
  %3446 = vmatprep.subr.mxu0 0.0
  %3447 = vmatpush2.msra.mxu0 0.0
  %3448 = vmatprep.subr.mxu0 0.0
  %3449 = vmatpush2.msra.mxu0 0.0
  %3450 = vmatprep.subr.mxu0 0.0
  %3451 = vmatpush2.msra.mxu0 0.0
  %3452 = vmatprep.mubr.f32.mxu0 0.0
  %3453 = vmatmul.mubr.f32.gmra.mxu0 %v3364
  %v3454 = vpop.f32.mrf.mxu0
  %v3455 = vadd.f32 %v3386, %v3454
  %v3456 = vpop.f32.mrf.mxu0
  %3457 = vdwg.mxu0
  %v3458 = vmax.f32 %v3455, 0.0
  %v3459 = vld [vmem:[%s7] sm:$0xff]
  %v3460 = vld [vmem:[%s7 + $0x8] sm:$0xff]
  %v3461 = vld [vmem:[%s7 + $0x10] sm:$0xff]
  %v3462 = vld [vmem:[%s7 + $0x18] sm:$0xff]
  %v3463 = vld [vmem:[%s7 + $0x20] sm:$0xff]
  %v3464 = vld [vmem:[%s7 + $0x28] sm:$0xff]
  %v3465 = vld [vmem:[%s7 + $0x30] sm:$0xff]
  %v3466 = vld [vmem:[%s7 + $0x38] sm:$0xff]
  %v3467 = vld [vmem:[%s7 + $0x40] sm:$0xff]
  %v3468 = vld [vmem:[%s7 + $0x48] sm:$0xff]
  %v3469 = vld [vmem:[%s7 + $0x50] sm:$0xff]
  %v3470 = vld [vmem:[%s7 + $0x58] sm:$0xff]
  %v3471 = vld [vmem:[%s7 + $0x60] sm:$0xff]
  %v3472 = vld [vmem:[%s7 + $0x68] sm:$0xff]
  %v3473 = vld [vmem:[%s7 + $0x70] sm:$0xff]
  %v3474 = vld [vmem:[%s7 + $0x78] sm:$0xff]
  %v3475 = vld [vmem:[%s8] sm:$0x1]
  %v3477 = vlaneseq
  %v3478 = vshrl.u32 %v3477, 7
  %v3479 = vsub.s32 0, %v3478
  %v3480 = vrot.slane %v3475, %v3479
  %3482 = vmatprep.subr.mxu0 0.0
  %3483 = vmatpush1.msra.mxu0 %v3474
  %3484 = vmatprep.subr.mxu0 0.0
  %3485 = vmatpush1.msra.mxu0 %v3473
  %3486 = vmatprep.subr.mxu0 0.0
  %3487 = vmatpush1.msra.mxu0 %v3472
  %3488 = vmatprep.subr.mxu0 0.0
  %3489 = vmatpush1.msra.mxu0 %v3471
  %3490 = vmatprep.subr.mxu0 0.0
  %3491 = vmatpush1.msra.mxu0 %v3470
  %3492 = vmatprep.subr.mxu0 0.0
  %3493 = vmatpush1.msra.mxu0 %v3469
  %3494 = vmatprep.subr.mxu0 0.0
  %3495 = vmatpush1.msra.mxu0 %v3468
  %3496 = vmatprep.subr.mxu0 0.0
  %3497 = vmatpush1.msra.mxu0 %v3467
  %3498 = vmatprep.subr.mxu0 0.0
  %3499 = vmatpush1.msra.mxu0 %v3466
  %3500 = vmatprep.subr.mxu0 0.0
  %3501 = vmatpush1.msra.mxu0 %v3465
  %3502 = vmatprep.subr.mxu0 0.0
  %3503 = vmatpush1.msra.mxu0 %v3464
  %3504 = vmatprep.subr.mxu0 0.0
  %3505 = vmatpush1.msra.mxu0 %v3463
  %3506 = vmatprep.subr.mxu0 0.0
  %3507 = vmatpush1.msra.mxu0 %v3462
  %3508 = vmatprep.subr.mxu0 0.0
  %3509 = vmatpush1.msra.mxu0 %v3461
  %3510 = vmatprep.subr.mxu0 0.0
  %3511 = vmatpush1.msra.mxu0 %v3460
  %3512 = vmatprep.subr.mxu0 0.0
  %3513 = vmatpush1.msra.mxu0 %v3459
  %3514 = vmatprep.subr.mxu0 0.0
  %3515 = vmatpush2.msra.mxu0 0.0
  %3516 = vmatprep.subr.mxu0 0.0
  %3517 = vmatpush2.msra.mxu0 0.0
  %3518 = vmatprep.subr.mxu0 0.0
  %3519 = vmatpush2.msra.mxu0 0.0
  %3520 = vmatprep.subr.mxu0 0.0
  %3521 = vmatpush2.msra.mxu0 0.0
  %3522 = vmatprep.subr.mxu0 0.0
  %3523 = vmatpush2.msra.mxu0 0.0
  %3524 = vmatprep.subr.mxu0 0.0
  %3525 = vmatpush2.msra.mxu0 0.0
  %3526 = vmatprep.subr.mxu0 0.0
  %3527 = vmatpush2.msra.mxu0 0.0
  %3528 = vmatprep.subr.mxu0 0.0
  %3529 = vmatpush2.msra.mxu0 0.0
  %3530 = vmatprep.subr.mxu0 0.0
  %3531 = vmatpush2.msra.mxu0 0.0
  %3532 = vmatprep.subr.mxu0 0.0
  %3533 = vmatpush2.msra.mxu0 0.0
  %3534 = vmatprep.subr.mxu0 0.0
  %3535 = vmatpush2.msra.mxu0 0.0
  %3536 = vmatprep.subr.mxu0 0.0
  %3537 = vmatpush2.msra.mxu0 0.0
  %3538 = vmatprep.subr.mxu0 0.0
  %3539 = vmatpush2.msra.mxu0 0.0
  %3540 = vmatprep.subr.mxu0 0.0
  %3541 = vmatpush2.msra.mxu0 0.0
  %3542 = vmatprep.subr.mxu0 0.0
  %3543 = vmatpush2.msra.mxu0 0.0
  %3544 = vmatprep.subr.mxu0 0.0
  %3545 = vmatpush2.msra.mxu0 0.0
  %3546 = vmatprep.mubr.f32.mxu0 0.0
  %3547 = vmatmul.mubr.f32.gmra.mxu0 %v3458
  %v3548 = vpop.f32.mrf.mxu0
  %v3549 = vadd.f32 %v3480, %v3548
  %v3550 = vpop.f32.mrf.mxu0
  %3551 = vdwg.mxu0
  %3552 = vst [vmem:[%s9] sm:$0xff] %v3549
  // Predicated region
  $region38: #{lenet_forward.3} parent=0 // pred_check
    _
  $region39: #{lenet_forward.3} parent=0 // pred_check_branch
    %3554 = sbr.rel (0) target = $region41
  $region40: #{lenet_forward.3} parent=0 // pred_region
    _
  $region41: #{lenet_forward.3} parent=0 // pred_fallthru
    _
  // Predicated region
  $region42: #{lenet_forward.3} parent=0 // pred_check
    _
  $region43: #{lenet_forward.3} parent=0 // pred_check_branch
    %3556 = sbr.rel (0) target = $region45
  $region44: #{lenet_forward.3} parent=0 // pred_region
    _
  $region45: #{lenet_forward.3} parent=0 // pred_fallthru
    _

</llo_original>
